<compile_context>
chip_gen: v6e
topology: v6e:2x2x1
jax: 0.10.0
libtpu: 0.0.40
codegen_flags: <defaults>
</compile_context>

<pallas_src>
import math
import functools

import jax
import jax.numpy as jnp
from jax import lax
from jax.experimental import pallas as pl
from jax.experimental.pallas import tpu as pltpu


MATMUL_DTYPE = jnp.bfloat16        # MXU operand dtype; accumulation is always f32.
_MOD_ALL_MAX_BYTES = 8 << 20       # cap for the (tile_b, 3C*nblk + 2C) f32 modulation temp


# ---------------------------------------------------------------------------
# Helpers
# ---------------------------------------------------------------------------
def _timestep_features(t, freqs):
    """Sinusoidal timestep featurization (freq_size even, as in the module)."""
    args = t[:, None].astype(jnp.float32) * freqs[None, :]
    return jnp.concatenate([jnp.cos(args), jnp.sin(args)], axis=-1)


def _vmem_limit_bytes():
    try:
        cap = pltpu.get_tpu_info().vmem_capacity_bytes
        return min(int(cap * 0.85), 100 * 1024 * 1024)
    except Exception:
        return 48 * 1024 * 1024    # safe on v5e/v6e (128 MiB) and v7x (64 MiB)


def _compiler_params(vmem_limit):
    return pltpu.CompilerParams(
        dimension_semantics=("parallel",),
        vmem_limit_bytes=int(vmem_limit),
    )


def _pick_tile_b(B, requested):
    """Largest multiple-of-8 divisor of B that is <= requested.

    No forced batch split: v5e/v6e have a single TensorCore, so a split only adds
    per-step overhead. On v7x pass tile_b <= B // 2 to shard the parallel batch
    axis across both TensorCores.
    """
    assert B % 8 == 0, "batch must be a multiple of 8 (f32 sublane tiling)"
    cap = max(8, min(requested, B))
    tb = 8
    for cand in range(8, cap + 1, 8):
        if B % cand == 0:
            tb = cand
    return tb


def _row_spec(tile_b, width):
    return pl.BlockSpec((tile_b, width), lambda i: (i, 0))


def _const_spec(shape, single_buffer):
    """Spec for a weight/bias that is identical for every grid step."""
    index_map = lambda i: (0,) * len(shape)
    if single_buffer:
        try:
            # Constant-index blocks never re-DMA; one buffer halves their VMEM footprint.
            return pl.BlockSpec(shape, index_map, pipeline_mode=pl.Buffered(1))
        except Exception:            # older jax without pipeline_mode / pl.Buffered
            pass
    return pl.BlockSpec(shape, index_map)


# ---------------------------------------------------------------------------
# Fused kernel: prelude + all ResBlocks + FinalLayer for one batch tile
# ---------------------------------------------------------------------------
def _fused_forward_kernel(x_ref, tf_ref, c_ref,
                          w_in_ref, b_in_ref,
                          wt1_ref, bt1_ref, wt2_ref, bt2_ref,
                          wc_ref, bc_ref,
                          ln_w_ref, ln_b_ref,
                          ada_w_ref, ada_b_ref,
                          w1_ref, b1_ref, w2_ref, b2_ref,
                          lin_w_ref, lin_b_ref,
                          o_ref):
    f32 = jnp.float32
    nblk, C = w1_ref.shape[0], w1_ref.shape[1]
    tile_b = x_ref.shape[0]

    def mm(a, w):                                   # bf16 operands, f32 accumulation
        return jnp.dot(a.astype(MATMUL_DTYPE), w, preferred_element_type=f32)

    # ---- prelude: x = input_proj(x);  y = time_mlp(t_freq) + cond_embed(c) ----
    x = mm(x_ref[...], w_in_ref[...]) + b_in_ref[...]
    h = mm(tf_ref[...], wt1_ref[...]) + bt1_ref[...]
    h = h * jax.nn.sigmoid(h)                       # SiLU
    y = mm(h, wt2_ref[...]) + bt2_ref[...]
    y = y + mm(c_ref[...], wc_ref[...]) + bc_ref[...]

    # ---- adaLN modulation: SiLU(y) once; one wide matmul against the
    # concatenation of all blocks' ada_w plus the final layer's ada_w ----
    y_silu = (y * jax.nn.sigmoid(y)).astype(MATMUL_DTYPE)
    mod_w = ada_w_ref.shape[1]                      # 3*C*nblk + 2*C
    if tile_b * mod_w * 4 <= _MOD_ALL_MAX_BYTES:
        mod_all = (jnp.dot(y_silu, ada_w_ref[...], preferred_element_type=f32)
                   + ada_b_ref[...])

        def mod_slab(lo, width):                    # lane-aligned slices (C % 128 == 0)
            return mod_all[:, lo:lo + width]
    else:
        # Very wide configs: keep the temp small — one dot per slab instead.
        def mod_slab(lo, width):
            return (jnp.dot(y_silu, ada_w_ref[:, lo:lo + width],
                            preferred_element_type=f32) + ada_b_ref[:, lo:lo + width])

    def layer_norm(v, w=None, b=None):              # two-pass stats, eps = 1e-6
        mean = jnp.mean(v, axis=-1, keepdims=True)
        cent = v - mean
        var = jnp.mean(cent * cent, axis=-1, keepdims=True)
        out = cent * lax.rsqrt(var + 1e-6)
        if w is not None:
            out = out * w + b
        return out

    # ---- residual blocks (nblk is static -> fully unrolled, LLO-visible) ----
    for bi in range(nblk):
        m = mod_slab(bi * 3 * C, 3 * C)
        shift, scale, gate = m[:, :C], m[:, C:2 * C], m[:, 2 * C:]
        hh = layer_norm(x, ln_w_ref[bi], ln_b_ref[bi]) * (scale + 1.0) + shift
        hh = mm(hh, w1_ref[bi]) + b1_ref[bi]
        hh = hh * jax.nn.sigmoid(hh)                # SiLU
        hh = mm(hh, w2_ref[bi]) + b2_ref[bi]
        x = x + gate * hh                           # gated residual (f32)

    # ---- final layer: LN (no affine) -> modulate -> Linear(C, Cout) ----
    m = mod_slab(nblk * 3 * C, 2 * C)
    shift, scale = m[:, :C], m[:, C:]
    hh = layer_norm(x) * (scale + 1.0) + shift
    o_ref[...] = (mm(hh, lin_w_ref[...]) + lin_b_ref[...]).astype(o_ref.dtype)


# ---------------------------------------------------------------------------
# Wrapper
# ---------------------------------------------------------------------------
def simple_mlp_adaln_forward(x, t, c, p, *, tile_b=256, single_buffer_weights=True):
    """Fused SimpleMLPAdaLN forward. x:[B,Cin] f32, t:[B] f32, c:[B,Cz] f32.

    `p` must come from prepare_params() (weights already bf16 / stacked / concatenated).
    """
    B, Cin = x.shape
    Cz = c.shape[1]
    C = p["w_in"].shape[1]
    Cout = p["lin_w"].shape[1]
    nblk = p["w1"].shape[0]
    F = p["wt1"].shape[0]
    W = p["ada_w"].shape[1]                          # 3*C*nblk + 2*C
    assert C % 128 == 0, "model_channels must be a multiple of 128 (lane alignment)"
    assert B % 8 == 0, "batch must be a multiple of 8"

    tb = _pick_tile_b(B, tile_b)
    vmem_limit = _vmem_limit_bytes()
    cp = _compiler_params(vmem_limit)

    t_freq = _timestep_features(t, p["freqs"])

    const_args = (p["w_in"], p["b_in"], p["wt1"], p["bt1"], p["wt2"], p["bt2"],
                  p["wc"], p["bc"], p["ln_w"], p["ln_b"], p["ada_w"], p["ada_b"],
                  p["w1"], p["b1"], p["w2"], p["b2"], p["lin_w"], p["lin_b"])

    # Weight-residency sanity check (all weights stay resident across the grid).
    weight_bytes = sum(int(a.size) * a.dtype.itemsize for a in const_args)
    weight_bufs = 1 if single_buffer_weights else 2
    act_bytes = 2 * tb * (Cin + F + Cz + Cout) * 4           # double-buffered I/O tiles
    mod_tmp_cols = W if tb * W * 4 <= _MOD_ALL_MAX_BYTES else 3 * C
    tmp_bytes = tb * (mod_tmp_cols + 8 * C) * 4
    assert weight_bytes * weight_bufs + act_bytes + tmp_bytes + (8 << 20) < vmem_limit, (
        "resident weights + activation tiles exceed the VMEM budget; lower tile_b or "
        "stream per-block weights")
    # TODO(synk): for very large C / num_res_blocks on v7x (64 MiB VMEM), stream per-block
    # weights from HBM (memory_space=pl.ANY + pltpu.emit_pipeline) instead of full residency.

    flops = 2 * B * (Cin * C + F * C + C * C + Cz * C + C * W
                     + nblk * 2 * C * C + C * Cout)
    bytes_accessed = (x.size + t_freq.size + c.size + B * Cout) * 4 + weight_bytes
    cost = pl.CostEstimate(flops=int(flops),
                           transcendentals=int(B * C * (nblk + 2)),
                           bytes_accessed=int(bytes_accessed))

    grid_spec = pltpu.PrefetchScalarGridSpec(
        num_scalar_prefetch=0,
        grid=(B // tb,),
        in_specs=[_row_spec(tb, Cin), _row_spec(tb, F), _row_spec(tb, Cz)]
                 + [_const_spec(a.shape, single_buffer_weights) for a in const_args],
        out_specs=_row_spec(tb, Cout),
    )

    return pl.pallas_call(
        _fused_forward_kernel,
        out_shape=jax.ShapeDtypeStruct((B, Cout), jnp.float32),
        grid_spec=grid_spec,
        compiler_params=cp,
        cost_estimate=cost,
    )(x, t_freq, c, *const_args)


# ---------------------------------------------------------------------------
# Parameter preparation (one-time, OUTSIDE the jitted forward)
# ---------------------------------------------------------------------------
def prepare_params(p):
    """bf16-cast, stack per-block weights, and concatenate all adaLN weights once."""
    C = p["w_in"].shape[1]
    blocks = p["res_blocks"]
    assert len(blocks) >= 1
    bf16 = lambda w: w.astype(MATMUL_DTYPE)
    row = lambda b: b.reshape(1, -1).astype(jnp.float32)

    ada_w_cat = jnp.concatenate([blk["ada_w"] for blk in blocks]
                                + [p["final"]["ada_w"]], axis=1)
    ada_b_cat = jnp.concatenate([blk["ada_b"] for blk in blocks]
                                + [p["final"]["ada_b"]], axis=0)

    stack_mat = lambda name: jnp.stack([blk[name] for blk in blocks])
    stack_vec = lambda name: jnp.stack([blk[name] for blk in blocks])[:, None, :].astype(jnp.float32)

    return {
        "freqs": p["freqs"],
        "w_in": bf16(p["w_in"]), "b_in": row(p["b_in"]),
        "wt1": bf16(p["wt1"]), "bt1": row(p["bt1"]),
        "wt2": bf16(p["wt2"]), "bt2": row(p["bt2"]),
        "wc": bf16(p["wc"]), "bc": row(p["bc"]),
        "ln_w": stack_vec("ln_w"), "ln_b": stack_vec("ln_b"),
        "ada_w": bf16(ada_w_cat), "ada_b": row(ada_b_cat),
        "w1": bf16(stack_mat("w1")), "b1": stack_vec("b1"),
        "w2": bf16(stack_mat("w2")), "b2": stack_vec("b2"),
        "lin_w": bf16(p["final"]["lin_w"]), "lin_b": row(p["final"]["lin_b"]),
    }


# ---------------------------------------------------------------------------
# Synthetic params + pure-f32 JAX reference (mirrors the PyTorch forward)
# ---------------------------------------------------------------------------
def init_params(key, *, in_channels, model_channels, out_channels, z_channels,
                num_res_blocks, freq_size=256):
    """Synthetic init. (The PyTorch module zero-inits adaLN + the final linear, which
    would make the output identically zero; random weights give a meaningful test
    while keeping all shapes identical to the nn.Module.)"""
    C = model_channels
    half = freq_size // 2

    def linear(k, fan_in, fan_out, w_std=None):
        kw, kb = jax.random.split(k)
        std = w_std if w_std is not None else math.sqrt(2.0 / (fan_in + fan_out))
        w = jax.random.normal(kw, (fan_in, fan_out), jnp.float32) * std
        b = jax.random.normal(kb, (fan_out,), jnp.float32) * 0.02
        return w, b

    keys = jax.random.split(key, 5 + num_res_blocks)
    w_in, b_in = linear(keys[0], in_channels, C)
    wt1, bt1 = linear(keys[1], freq_size, C, w_std=0.02)
    wt2, bt2 = linear(keys[2], C, C, w_std=0.02)
    wc, bc = linear(keys[3], z_channels, C)

    blocks = []
    for i in range(num_res_blocks):
        kb = jax.random.split(keys[5 + i], 3)
        ada_w, ada_b = linear(kb[0], C, 3 * C)
        w1, b1 = linear(kb[1], C, C)
        w2, b2 = linear(kb[2], C, C)
        blocks.append({
            "ln_w": jnp.ones((C,), jnp.float32),
            "ln_b": jnp.zeros((C,), jnp.float32),
            "ada_w": ada_w, "ada_b": ada_b,
            "w1": w1, "b1": b1, "w2": w2, "b2": b2,
        })

    kf = jax.random.split(keys[4], 2)
    ada2_w, ada2_b = linear(kf[0], C, 2 * C)
    lin_w, lin_b = linear(kf[1], C, out_channels)

    freqs = jnp.exp(-math.log(10000.0) * jnp.arange(half, dtype=jnp.float32) / half)

    return {
        "freqs": freqs,
        "w_in": w_in, "b_in": b_in,
        "wt1": wt1, "bt1": bt1, "wt2": wt2, "bt2": bt2,
        "wc": wc, "bc": bc,
        "res_blocks": blocks,
        "final": {"ada_w": ada2_w, "ada_b": ada2_b, "lin_w": lin_w, "lin_b": lin_b},
    }


def model_reference(x, t, c, p):
    """Pure-f32 JAX reference mirroring the PyTorch forward."""
    def layernorm(v, w=None, b=None):
        mean = jnp.mean(v, axis=-1, keepdims=True)
        var = jnp.mean((v - mean) ** 2, axis=-1, keepdims=True)
        out = (v - mean) * lax.rsqrt(var + 1e-6)
        if w is not None:
            out = out * w + b
        return out

    emb = _timestep_features(t, p["freqs"])
    t_emb = jnp.dot(jax.nn.silu(jnp.dot(emb, p["wt1"]) + p["bt1"]), p["wt2"]) + p["bt2"]
    y = t_emb + jnp.dot(c, p["wc"]) + p["bc"]
    h = jnp.dot(x, p["w_in"]) + p["b_in"]

    for blk in p["res_blocks"]:
        mod = jnp.dot(jax.nn.silu(y), blk["ada_w"]) + blk["ada_b"]
        shift, scale, gate = jnp.split(mod, 3, axis=-1)
        hh = layernorm(h, blk["ln_w"], blk["ln_b"]) * (1 + scale) + shift
        hh = jnp.dot(jax.nn.silu(jnp.dot(hh, blk["w1"]) + blk["b1"]), blk["w2"]) + blk["b2"]
        h = h + gate * hh

    f = p["final"]
    mod = jnp.dot(jax.nn.silu(y), f["ada_w"]) + f["ada_b"]
    shift, scale = jnp.split(mod, 2, axis=-1)
    hh = layernorm(h) * (1 + scale) + shift
    return jnp.dot(hh, f["lin_w"]) + f["lin_b"]


# ---------------------------------------------------------------------------
# Demo / self-check
# ---------------------------------------------------------------------------
if __name__ == "__main__":
    # Small, TPU-friendly shapes: model_channels multiple of 128 (lane-aligned
    # shift/scale/gate slices), tile_b=64 -> 2 grid steps to exercise the batch pipeline.
    B = 128
    in_channels, model_channels, out_channels = 16, 128, 32
    z_channels, num_res_blocks = 64, 2

    key = jax.random.PRNGKey(0)
    kx, kt, kc, kp = jax.random.split(key, 4)
    x = jax.random.normal(kx, (B, in_channels), jnp.float32)
    t = jax.random.uniform(kt, (B,), jnp.float32, 0.0, 1000.0)
    c = jax.random.normal(kc, (B, z_channels), jnp.float32)

    params = init_params(kp, in_channels=in_channels, model_channels=model_channels,
                         out_channels=out_channels, z_channels=z_channels,
                         num_res_blocks=num_res_blocks)
    prepared = prepare_params(params)          # one-time bf16 cast / stack / concat

    def run(single_buffer):
        fwd = jax.jit(functools.partial(simple_mlp_adaln_forward,
                                        tile_b=64,
                                        single_buffer_weights=single_buffer))
        return jax.block_until_ready(fwd(x, t, c, prepared))

    try:
        out = run(True)
    except Exception:
        # pl.Buffered(1) not supported on this jax/libtpu: fall back to default buffering.
        out = run(False)

    assert out.shape == (B, out_channels)

    # Scale-relative check vs. the pure-f32 reference (kernel uses bf16 MXU operands,
    # so bitwise parity with a bf16 "mirror" reference is not expected).
    ref = model_reference(x, t, c, params)
    max_err = float(jnp.max(jnp.abs(out - ref)))
    tol = 0.1 * max(1.0, float(jnp.max(jnp.abs(ref))))
    assert max_err < tol, f"mismatch vs f32 reference: max_err={max_err:.4f} tol={tol:.4f}"

    print("KERNEL_OK")
</pallas_src>

<mosaic_0001>
module attributes {stable_mosaic.version = 11 : i64} {
  func.func @_fused_forward_kernel(%arg0: i32, %arg1: memref<64x16xf32, #tpu.memory_space<vmem>>, %arg2: memref<64x256xf32, #tpu.memory_space<vmem>>, %arg3: memref<64x64xf32, #tpu.memory_space<vmem>>, %arg4: memref<16x128xbf16, #tpu.memory_space<vmem>>, %arg5: memref<1x128xf32, #tpu.memory_space<vmem>>, %arg6: memref<256x128xbf16, #tpu.memory_space<vmem>>, %arg7: memref<1x128xf32, #tpu.memory_space<vmem>>, %arg8: memref<128x128xbf16, #tpu.memory_space<vmem>>, %arg9: memref<1x128xf32, #tpu.memory_space<vmem>>, %arg10: memref<64x128xbf16, #tpu.memory_space<vmem>>, %arg11: memref<1x128xf32, #tpu.memory_space<vmem>>, %arg12: memref<2x1x128xf32, #tpu.memory_space<vmem>>, %arg13: memref<2x1x128xf32, #tpu.memory_space<vmem>>, %arg14: memref<128x1024xbf16, #tpu.memory_space<vmem>>, %arg15: memref<1x1024xf32, #tpu.memory_space<vmem>>, %arg16: memref<2x128x128xbf16, #tpu.memory_space<vmem>>, %arg17: memref<2x1x128xf32, #tpu.memory_space<vmem>>, %arg18: memref<2x128x128xbf16, #tpu.memory_space<vmem>>, %arg19: memref<2x1x128xf32, #tpu.memory_space<vmem>>, %arg20: memref<128x32xbf16, #tpu.memory_space<vmem>>, %arg21: memref<1x32xf32, #tpu.memory_space<vmem>>, %arg22: memref<64x32xf32, #tpu.memory_space<vmem>>) attributes {dimension_semantics = [#tpu.dimension_semantics<parallel>], iteration_bounds = array<i64: 2>, scalar_prefetch = 0 : i64, scratch_operands = 0 : i64, tpu.core_type = #tpu.core_type<tc>, window_params = [{transform_indices = @transform_0, window_bounds = array<i64: 64, 16>}, {transform_indices = @transform_1, window_bounds = array<i64: 64, 256>}, {transform_indices = @transform_2, window_bounds = array<i64: 64, 64>}, {pipeline_mode = #tpu.pipeline_mode<synchronous>, transform_indices = @transform_3, window_bounds = array<i64: 16, 128>}, {pipeline_mode = #tpu.pipeline_mode<synchronous>, transform_indices = @transform_4, window_bounds = array<i64: 1, 128>}, {pipeline_mode = #tpu.pipeline_mode<synchronous>, transform_indices = @transform_5, window_bounds = array<i64: 256, 128>}, {pipeline_mode = #tpu.pipeline_mode<synchronous>, transform_indices = @transform_6, window_bounds = array<i64: 1, 128>}, {pipeline_mode = #tpu.pipeline_mode<synchronous>, transform_indices = @transform_7, window_bounds = array<i64: 128, 128>}, {pipeline_mode = #tpu.pipeline_mode<synchronous>, transform_indices = @transform_8, window_bounds = array<i64: 1, 128>}, {pipeline_mode = #tpu.pipeline_mode<synchronous>, transform_indices = @transform_9, window_bounds = array<i64: 64, 128>}, {pipeline_mode = #tpu.pipeline_mode<synchronous>, transform_indices = @transform_10, window_bounds = array<i64: 1, 128>}, {pipeline_mode = #tpu.pipeline_mode<synchronous>, transform_indices = @transform_11, window_bounds = array<i64: 2, 1, 128>}, {pipeline_mode = #tpu.pipeline_mode<synchronous>, transform_indices = @transform_12, window_bounds = array<i64: 2, 1, 128>}, {pipeline_mode = #tpu.pipeline_mode<synchronous>, transform_indices = @transform_13, window_bounds = array<i64: 128, 1024>}, {pipeline_mode = #tpu.pipeline_mode<synchronous>, transform_indices = @transform_14, window_bounds = array<i64: 1, 1024>}, {pipeline_mode = #tpu.pipeline_mode<synchronous>, transform_indices = @transform_15, window_bounds = array<i64: 2, 128, 128>}, {pipeline_mode = #tpu.pipeline_mode<synchronous>, transform_indices = @transform_16, window_bounds = array<i64: 2, 1, 128>}, {pipeline_mode = #tpu.pipeline_mode<synchronous>, transform_indices = @transform_17, window_bounds = array<i64: 2, 128, 128>}, {pipeline_mode = #tpu.pipeline_mode<synchronous>, transform_indices = @transform_18, window_bounds = array<i64: 2, 1, 128>}, {pipeline_mode = #tpu.pipeline_mode<synchronous>, transform_indices = @transform_19, window_bounds = array<i64: 128, 32>}, {pipeline_mode = #tpu.pipeline_mode<synchronous>, transform_indices = @transform_20, window_bounds = array<i64: 1, 32>}, {transform_indices = @transform_21, window_bounds = array<i64: 64, 32>}]} {
    %c0 = arith.constant 0 : index
    %c0_0 = arith.constant 0 : index
    %0 = vector.load %arg1[%c0, %c0_0] : memref<64x16xf32, #tpu.memory_space<vmem>>, vector<64x16xf32>
    %c0_1 = arith.constant 0 : index
    %c0_2 = arith.constant 0 : index
    %1 = vector.load %arg4[%c0_1, %c0_2] : memref<16x128xbf16, #tpu.memory_space<vmem>>, vector<16x128xbf16>
    %2 = arith.truncf %0 : vector<64x16xf32> to vector<64x16xbf16>
    %cst = arith.constant dense<0.000000e+00> : vector<64x128xf32>
    %3 = tpu.matmul %2, %1, %cst {dimension_numbers = #tpu.dot_dimension_numbers<[1], [0], [0], [1], [0, 0, 1, 1], [], []>} : vector<64x16xbf16>, vector<16x128xbf16>, vector<64x128xf32> -> vector<64x128xf32>
    %c0_3 = arith.constant 0 : index
    %c0_4 = arith.constant 0 : index
    %4 = vector.load %arg5[%c0_3, %c0_4] : memref<1x128xf32, #tpu.memory_space<vmem>>, vector<1x128xf32>
    %5 = vector.broadcast %4 : vector<1x128xf32> to vector<64x128xf32>
    %6 = arith.addf %3, %5 : vector<64x128xf32>
    %c0_5 = arith.constant 0 : index
    %c0_6 = arith.constant 0 : index
    %7 = vector.load %arg2[%c0_5, %c0_6] : memref<64x256xf32, #tpu.memory_space<vmem>>, vector<64x256xf32>
    %c0_7 = arith.constant 0 : index
    %c0_8 = arith.constant 0 : index
    %8 = vector.load %arg6[%c0_7, %c0_8] : memref<256x128xbf16, #tpu.memory_space<vmem>>, vector<256x128xbf16>
    %9 = arith.truncf %7 : vector<64x256xf32> to vector<64x256xbf16>
    %cst_9 = arith.constant dense<0.000000e+00> : vector<64x128xf32>
    %10 = tpu.matmul %9, %8, %cst_9 {dimension_numbers = #tpu.dot_dimension_numbers<[1], [0], [0], [1], [0, 0, 1, 1], [], []>} : vector<64x256xbf16>, vector<256x128xbf16>, vector<64x128xf32> -> vector<64x128xf32>
    %c0_10 = arith.constant 0 : index
    %c0_11 = arith.constant 0 : index
    %11 = vector.load %arg7[%c0_10, %c0_11] : memref<1x128xf32, #tpu.memory_space<vmem>>, vector<1x128xf32>
    %12 = vector.broadcast %11 : vector<1x128xf32> to vector<64x128xf32>
    %13 = arith.addf %10, %12 : vector<64x128xf32>
    %14 = arith.negf %13 : vector<64x128xf32>
    %15 = math.exp %14 : vector<64x128xf32>
    %cst_12 = arith.constant 1.000000e+00 : f32
    %16 = vector.broadcast %cst_12 : f32 to vector<64x128xf32>
    %17 = arith.addf %16, %15 : vector<64x128xf32>
    %18 = arith.divf %16, %17 : vector<64x128xf32>
    %19 = arith.mulf %13, %18 : vector<64x128xf32>
    %c0_13 = arith.constant 0 : index
    %c0_14 = arith.constant 0 : index
    %20 = vector.load %arg8[%c0_13, %c0_14] : memref<128x128xbf16, #tpu.memory_space<vmem>>, vector<128x128xbf16>
    %21 = arith.truncf %19 : vector<64x128xf32> to vector<64x128xbf16>
    %cst_15 = arith.constant dense<0.000000e+00> : vector<64x128xf32>
    %22 = tpu.matmul %21, %20, %cst_15 {dimension_numbers = #tpu.dot_dimension_numbers<[1], [0], [0], [1], [0, 0, 1, 1], [], []>} : vector<64x128xbf16>, vector<128x128xbf16>, vector<64x128xf32> -> vector<64x128xf32>
    %c0_16 = arith.constant 0 : index
    %c0_17 = arith.constant 0 : index
    %23 = vector.load %arg9[%c0_16, %c0_17] : memref<1x128xf32, #tpu.memory_space<vmem>>, vector<1x128xf32>
    %24 = vector.broadcast %23 : vector<1x128xf32> to vector<64x128xf32>
    %25 = arith.addf %22, %24 : vector<64x128xf32>
    %c0_18 = arith.constant 0 : index
    %c0_19 = arith.constant 0 : index
    %26 = vector.load %arg3[%c0_18, %c0_19] : memref<64x64xf32, #tpu.memory_space<vmem>>, vector<64x64xf32>
    %c0_20 = arith.constant 0 : index
    %c0_21 = arith.constant 0 : index
    %27 = vector.load %arg10[%c0_20, %c0_21] : memref<64x128xbf16, #tpu.memory_space<vmem>>, vector<64x128xbf16>
    %28 = arith.truncf %26 : vector<64x64xf32> to vector<64x64xbf16>
    %cst_22 = arith.constant dense<0.000000e+00> : vector<64x128xf32>
    %29 = tpu.matmul %28, %27, %cst_22 {dimension_numbers = #tpu.dot_dimension_numbers<[1], [0], [0], [1], [0, 0, 1, 1], [], []>} : vector<64x64xbf16>, vector<64x128xbf16>, vector<64x128xf32> -> vector<64x128xf32>
    %30 = arith.addf %25, %29 : vector<64x128xf32>
    %c0_23 = arith.constant 0 : index
    %c0_24 = arith.constant 0 : index
    %31 = vector.load %arg11[%c0_23, %c0_24] : memref<1x128xf32, #tpu.memory_space<vmem>>, vector<1x128xf32>
    %32 = vector.broadcast %31 : vector<1x128xf32> to vector<64x128xf32>
    %33 = arith.addf %30, %32 : vector<64x128xf32>
    %34 = arith.negf %33 : vector<64x128xf32>
    %35 = math.exp %34 : vector<64x128xf32>
    %cst_25 = arith.constant 1.000000e+00 : f32
    %36 = vector.broadcast %cst_25 : f32 to vector<64x128xf32>
    %37 = arith.addf %36, %35 : vector<64x128xf32>
    %38 = arith.divf %36, %37 : vector<64x128xf32>
    %39 = arith.mulf %33, %38 : vector<64x128xf32>
    %40 = arith.truncf %39 : vector<64x128xf32> to vector<64x128xbf16>
    %c0_26 = arith.constant 0 : index
    %c0_27 = arith.constant 0 : index
    %41 = vector.load %arg14[%c0_26, %c0_27] : memref<128x1024xbf16, #tpu.memory_space<vmem>>, vector<128x1024xbf16>
    %cst_28 = arith.constant dense<0.000000e+00> : vector<64x1024xf32>
    %42 = tpu.matmul %40, %41, %cst_28 {dimension_numbers = #tpu.dot_dimension_numbers<[1], [0], [0], [1], [0, 0, 1, 1], [], []>} : vector<64x128xbf16>, vector<128x1024xbf16>, vector<64x1024xf32> -> vector<64x1024xf32>
    %c0_29 = arith.constant 0 : index
    %c0_30 = arith.constant 0 : index
    %43 = vector.load %arg15[%c0_29, %c0_30] : memref<1x1024xf32, #tpu.memory_space<vmem>>, vector<1x1024xf32>
    %44 = vector.broadcast %43 : vector<1x1024xf32> to vector<64x1024xf32>
    %45 = arith.addf %42, %44 : vector<64x1024xf32>
    %46 = vector.extract_strided_slice %45 {offsets = [0, 0], sizes = [64, 384], strides = [1, 1]} : vector<64x1024xf32> to vector<64x384xf32>
    %47 = vector.extract_strided_slice %46 {offsets = [0, 0], sizes = [64, 128], strides = [1, 1]} : vector<64x384xf32> to vector<64x128xf32>
    %48 = vector.extract_strided_slice %46 {offsets = [0, 128], sizes = [64, 128], strides = [1, 1]} : vector<64x384xf32> to vector<64x128xf32>
    %49 = vector.extract_strided_slice %46 {offsets = [0, 256], sizes = [64, 128], strides = [1, 1]} : vector<64x384xf32> to vector<64x128xf32>
    %c0_31 = arith.constant 0 : index
    %c0_32 = arith.constant 0 : index
    %c0_33 = arith.constant 0 : index
    %50 = vector.load %arg12[%c0_31, %c0_32, %c0_33] : memref<2x1x128xf32, #tpu.memory_space<vmem>>, vector<1x1x128xf32>
    %51 = vector.shape_cast %50 : vector<1x1x128xf32> to vector<1x128xf32>
    %c0_34 = arith.constant 0 : index
    %c0_35 = arith.constant 0 : index
    %c0_36 = arith.constant 0 : index
    %52 = vector.load %arg13[%c0_34, %c0_35, %c0_36] : memref<2x1x128xf32, #tpu.memory_space<vmem>>, vector<1x1x128xf32>
    %53 = vector.shape_cast %52 : vector<1x1x128xf32> to vector<1x128xf32>
    %cst_37 = arith.constant dense<0.000000e+00> : vector<64xf32>
    %54 = vector.multi_reduction <add>, %6, %cst_37 [1] : vector<64x128xf32> to vector<64xf32>
    %55 = vector.shape_cast %54 : vector<64xf32> to vector<64x1xf32>
    %cst_38 = arith.constant 1.280000e+02 : f32
    %56 = vector.broadcast %cst_38 : f32 to vector<64x1xf32>
    %57 = arith.divf %55, %56 : vector<64x1xf32>
    %58 = vector.broadcast %57 : vector<64x1xf32> to vector<64x128xf32>
    %59 = arith.subf %6, %58 : vector<64x128xf32>
    %60 = arith.mulf %59, %59 : vector<64x128xf32>
    %cst_39 = arith.constant dense<0.000000e+00> : vector<64xf32>
    %61 = vector.multi_reduction <add>, %60, %cst_39 [1] : vector<64x128xf32> to vector<64xf32>
    %62 = vector.shape_cast %61 : vector<64xf32> to vector<64x1xf32>
    %cst_40 = arith.constant 1.280000e+02 : f32
    %63 = vector.broadcast %cst_40 : f32 to vector<64x1xf32>
    %64 = arith.divf %62, %63 : vector<64x1xf32>
    %cst_41 = arith.constant 9.99999997E-7 : f32
    %65 = vector.broadcast %cst_41 : f32 to vector<64x1xf32>
    %66 = arith.addf %64, %65 : vector<64x1xf32>
    %67 = math.rsqrt %66 : vector<64x1xf32>
    %68 = vector.broadcast %67 : vector<64x1xf32> to vector<64x128xf32>
    %69 = arith.mulf %59, %68 : vector<64x128xf32>
    %70 = vector.broadcast %51 : vector<1x128xf32> to vector<64x128xf32>
    %71 = arith.mulf %69, %70 : vector<64x128xf32>
    %72 = vector.broadcast %53 : vector<1x128xf32> to vector<64x128xf32>
    %73 = arith.addf %71, %72 : vector<64x128xf32>
    %cst_42 = arith.constant 1.000000e+00 : f32
    %74 = vector.broadcast %cst_42 : f32 to vector<64x128xf32>
    %75 = arith.addf %48, %74 : vector<64x128xf32>
    %76 = arith.mulf %73, %75 : vector<64x128xf32>
    %77 = arith.addf %76, %47 : vector<64x128xf32>
    %c0_43 = arith.constant 0 : index
    %c0_44 = arith.constant 0 : index
    %c0_45 = arith.constant 0 : index
    %78 = vector.load %arg16[%c0_43, %c0_44, %c0_45] : memref<2x128x128xbf16, #tpu.memory_space<vmem>>, vector<1x128x128xbf16>
    %79 = vector.shape_cast %78 : vector<1x128x128xbf16> to vector<128x128xbf16>
    %80 = arith.truncf %77 : vector<64x128xf32> to vector<64x128xbf16>
    %cst_46 = arith.constant dense<0.000000e+00> : vector<64x128xf32>
    %81 = tpu.matmul %80, %79, %cst_46 {dimension_numbers = #tpu.dot_dimension_numbers<[1], [0], [0], [1], [0, 0, 1, 1], [], []>} : vector<64x128xbf16>, vector<128x128xbf16>, vector<64x128xf32> -> vector<64x128xf32>
    %c0_47 = arith.constant 0 : index
    %c0_48 = arith.constant 0 : index
    %c0_49 = arith.constant 0 : index
    %82 = vector.load %arg17[%c0_47, %c0_48, %c0_49] : memref<2x1x128xf32, #tpu.memory_space<vmem>>, vector<1x1x128xf32>
    %83 = vector.shape_cast %82 : vector<1x1x128xf32> to vector<1x128xf32>
    %84 = vector.broadcast %83 : vector<1x128xf32> to vector<64x128xf32>
    %85 = arith.addf %81, %84 : vector<64x128xf32>
    %86 = arith.negf %85 : vector<64x128xf32>
    %87 = math.exp %86 : vector<64x128xf32>
    %cst_50 = arith.constant 1.000000e+00 : f32
    %88 = vector.broadcast %cst_50 : f32 to vector<64x128xf32>
    %89 = arith.addf %88, %87 : vector<64x128xf32>
    %90 = arith.divf %88, %89 : vector<64x128xf32>
    %91 = arith.mulf %85, %90 : vector<64x128xf32>
    %c0_51 = arith.constant 0 : index
    %c0_52 = arith.constant 0 : index
    %c0_53 = arith.constant 0 : index
    %92 = vector.load %arg18[%c0_51, %c0_52, %c0_53] : memref<2x128x128xbf16, #tpu.memory_space<vmem>>, vector<1x128x128xbf16>
    %93 = vector.shape_cast %92 : vector<1x128x128xbf16> to vector<128x128xbf16>
    %94 = arith.truncf %91 : vector<64x128xf32> to vector<64x128xbf16>
    %cst_54 = arith.constant dense<0.000000e+00> : vector<64x128xf32>
    %95 = tpu.matmul %94, %93, %cst_54 {dimension_numbers = #tpu.dot_dimension_numbers<[1], [0], [0], [1], [0, 0, 1, 1], [], []>} : vector<64x128xbf16>, vector<128x128xbf16>, vector<64x128xf32> -> vector<64x128xf32>
    %c0_55 = arith.constant 0 : index
    %c0_56 = arith.constant 0 : index
    %c0_57 = arith.constant 0 : index
    %96 = vector.load %arg19[%c0_55, %c0_56, %c0_57] : memref<2x1x128xf32, #tpu.memory_space<vmem>>, vector<1x1x128xf32>
    %97 = vector.shape_cast %96 : vector<1x1x128xf32> to vector<1x128xf32>
    %98 = vector.broadcast %97 : vector<1x128xf32> to vector<64x128xf32>
    %99 = arith.addf %95, %98 : vector<64x128xf32>
    %100 = arith.mulf %49, %99 : vector<64x128xf32>
    %101 = arith.addf %6, %100 : vector<64x128xf32>
    %102 = vector.extract_strided_slice %45 {offsets = [0, 384], sizes = [64, 384], strides = [1, 1]} : vector<64x1024xf32> to vector<64x384xf32>
    %103 = vector.extract_strided_slice %102 {offsets = [0, 0], sizes = [64, 128], strides = [1, 1]} : vector<64x384xf32> to vector<64x128xf32>
    %104 = vector.extract_strided_slice %102 {offsets = [0, 128], sizes = [64, 128], strides = [1, 1]} : vector<64x384xf32> to vector<64x128xf32>
    %105 = vector.extract_strided_slice %102 {offsets = [0, 256], sizes = [64, 128], strides = [1, 1]} : vector<64x384xf32> to vector<64x128xf32>
    %c1 = arith.constant 1 : index
    %c0_58 = arith.constant 0 : index
    %c0_59 = arith.constant 0 : index
    %106 = vector.load %arg12[%c1, %c0_58, %c0_59] : memref<2x1x128xf32, #tpu.memory_space<vmem>>, vector<1x1x128xf32>
    %107 = vector.shape_cast %106 : vector<1x1x128xf32> to vector<1x128xf32>
    %c1_60 = arith.constant 1 : index
    %c0_61 = arith.constant 0 : index
    %c0_62 = arith.constant 0 : index
    %108 = vector.load %arg13[%c1_60, %c0_61, %c0_62] : memref<2x1x128xf32, #tpu.memory_space<vmem>>, vector<1x1x128xf32>
    %109 = vector.shape_cast %108 : vector<1x1x128xf32> to vector<1x128xf32>
    %cst_63 = arith.constant dense<0.000000e+00> : vector<64xf32>
    %110 = vector.multi_reduction <add>, %101, %cst_63 [1] : vector<64x128xf32> to vector<64xf32>
    %111 = vector.shape_cast %110 : vector<64xf32> to vector<64x1xf32>
    %cst_64 = arith.constant 1.280000e+02 : f32
    %112 = vector.broadcast %cst_64 : f32 to vector<64x1xf32>
    %113 = arith.divf %111, %112 : vector<64x1xf32>
    %114 = vector.broadcast %113 : vector<64x1xf32> to vector<64x128xf32>
    %115 = arith.subf %101, %114 : vector<64x128xf32>
    %116 = arith.mulf %115, %115 : vector<64x128xf32>
    %cst_65 = arith.constant dense<0.000000e+00> : vector<64xf32>
    %117 = vector.multi_reduction <add>, %116, %cst_65 [1] : vector<64x128xf32> to vector<64xf32>
    %118 = vector.shape_cast %117 : vector<64xf32> to vector<64x1xf32>
    %cst_66 = arith.constant 1.280000e+02 : f32
    %119 = vector.broadcast %cst_66 : f32 to vector<64x1xf32>
    %120 = arith.divf %118, %119 : vector<64x1xf32>
    %cst_67 = arith.constant 9.99999997E-7 : f32
    %121 = vector.broadcast %cst_67 : f32 to vector<64x1xf32>
    %122 = arith.addf %120, %121 : vector<64x1xf32>
    %123 = math.rsqrt %122 : vector<64x1xf32>
    %124 = vector.broadcast %123 : vector<64x1xf32> to vector<64x128xf32>
    %125 = arith.mulf %115, %124 : vector<64x128xf32>
    %126 = vector.broadcast %107 : vector<1x128xf32> to vector<64x128xf32>
    %127 = arith.mulf %125, %126 : vector<64x128xf32>
    %128 = vector.broadcast %109 : vector<1x128xf32> to vector<64x128xf32>
    %129 = arith.addf %127, %128 : vector<64x128xf32>
    %cst_68 = arith.constant 1.000000e+00 : f32
    %130 = vector.broadcast %cst_68 : f32 to vector<64x128xf32>
    %131 = arith.addf %104, %130 : vector<64x128xf32>
    %132 = arith.mulf %129, %131 : vector<64x128xf32>
    %133 = arith.addf %132, %103 : vector<64x128xf32>
    %c1_69 = arith.constant 1 : index
    %c0_70 = arith.constant 0 : index
    %c0_71 = arith.constant 0 : index
    %134 = vector.load %arg16[%c1_69, %c0_70, %c0_71] : memref<2x128x128xbf16, #tpu.memory_space<vmem>>, vector<1x128x128xbf16>
    %135 = vector.shape_cast %134 : vector<1x128x128xbf16> to vector<128x128xbf16>
    %136 = arith.truncf %133 : vector<64x128xf32> to vector<64x128xbf16>
    %cst_72 = arith.constant dense<0.000000e+00> : vector<64x128xf32>
    %137 = tpu.matmul %136, %135, %cst_72 {dimension_numbers = #tpu.dot_dimension_numbers<[1], [0], [0], [1], [0, 0, 1, 1], [], []>} : vector<64x128xbf16>, vector<128x128xbf16>, vector<64x128xf32> -> vector<64x128xf32>
    %c1_73 = arith.constant 1 : index
    %c0_74 = arith.constant 0 : index
    %c0_75 = arith.constant 0 : index
    %138 = vector.load %arg17[%c1_73, %c0_74, %c0_75] : memref<2x1x128xf32, #tpu.memory_space<vmem>>, vector<1x1x128xf32>
    %139 = vector.shape_cast %138 : vector<1x1x128xf32> to vector<1x128xf32>
    %140 = vector.broadcast %139 : vector<1x128xf32> to vector<64x128xf32>
    %141 = arith.addf %137, %140 : vector<64x128xf32>
    %142 = arith.negf %141 : vector<64x128xf32>
    %143 = math.exp %142 : vector<64x128xf32>
    %cst_76 = arith.constant 1.000000e+00 : f32
    %144 = vector.broadcast %cst_76 : f32 to vector<64x128xf32>
    %145 = arith.addf %144, %143 : vector<64x128xf32>
    %146 = arith.divf %144, %145 : vector<64x128xf32>
    %147 = arith.mulf %141, %146 : vector<64x128xf32>
    %c1_77 = arith.constant 1 : index
    %c0_78 = arith.constant 0 : index
    %c0_79 = arith.constant 0 : index
    %148 = vector.load %arg18[%c1_77, %c0_78, %c0_79] : memref<2x128x128xbf16, #tpu.memory_space<vmem>>, vector<1x128x128xbf16>
    %149 = vector.shape_cast %148 : vector<1x128x128xbf16> to vector<128x128xbf16>
    %150 = arith.truncf %147 : vector<64x128xf32> to vector<64x128xbf16>
    %cst_80 = arith.constant dense<0.000000e+00> : vector<64x128xf32>
    %151 = tpu.matmul %150, %149, %cst_80 {dimension_numbers = #tpu.dot_dimension_numbers<[1], [0], [0], [1], [0, 0, 1, 1], [], []>} : vector<64x128xbf16>, vector<128x128xbf16>, vector<64x128xf32> -> vector<64x128xf32>
    %c1_81 = arith.constant 1 : index
    %c0_82 = arith.constant 0 : index
    %c0_83 = arith.constant 0 : index
    %152 = vector.load %arg19[%c1_81, %c0_82, %c0_83] : memref<2x1x128xf32, #tpu.memory_space<vmem>>, vector<1x1x128xf32>
    %153 = vector.shape_cast %152 : vector<1x1x128xf32> to vector<1x128xf32>
    %154 = vector.broadcast %153 : vector<1x128xf32> to vector<64x128xf32>
    %155 = arith.addf %151, %154 : vector<64x128xf32>
    %156 = arith.mulf %105, %155 : vector<64x128xf32>
    %157 = arith.addf %101, %156 : vector<64x128xf32>
    %158 = vector.extract_strided_slice %45 {offsets = [0, 768], sizes = [64, 256], strides = [1, 1]} : vector<64x1024xf32> to vector<64x256xf32>
    %159 = vector.extract_strided_slice %158 {offsets = [0, 0], sizes = [64, 128], strides = [1, 1]} : vector<64x256xf32> to vector<64x128xf32>
    %160 = vector.extract_strided_slice %158 {offsets = [0, 128], sizes = [64, 128], strides = [1, 1]} : vector<64x256xf32> to vector<64x128xf32>
    %cst_84 = arith.constant dense<0.000000e+00> : vector<64xf32>
    %161 = vector.multi_reduction <add>, %157, %cst_84 [1] : vector<64x128xf32> to vector<64xf32>
    %162 = vector.shape_cast %161 : vector<64xf32> to vector<64x1xf32>
    %cst_85 = arith.constant 1.280000e+02 : f32
    %163 = vector.broadcast %cst_85 : f32 to vector<64x1xf32>
    %164 = arith.divf %162, %163 : vector<64x1xf32>
    %165 = vector.broadcast %164 : vector<64x1xf32> to vector<64x128xf32>
    %166 = arith.subf %157, %165 : vector<64x128xf32>
    %167 = arith.mulf %166, %166 : vector<64x128xf32>
    %cst_86 = arith.constant dense<0.000000e+00> : vector<64xf32>
    %168 = vector.multi_reduction <add>, %167, %cst_86 [1] : vector<64x128xf32> to vector<64xf32>
    %169 = vector.shape_cast %168 : vector<64xf32> to vector<64x1xf32>
    %cst_87 = arith.constant 1.280000e+02 : f32
    %170 = vector.broadcast %cst_87 : f32 to vector<64x1xf32>
    %171 = arith.divf %169, %170 : vector<64x1xf32>
    %cst_88 = arith.constant 9.99999997E-7 : f32
    %172 = vector.broadcast %cst_88 : f32 to vector<64x1xf32>
    %173 = arith.addf %171, %172 : vector<64x1xf32>
    %174 = math.rsqrt %173 : vector<64x1xf32>
    %175 = vector.broadcast %174 : vector<64x1xf32> to vector<64x128xf32>
    %176 = arith.mulf %166, %175 : vector<64x128xf32>
    %cst_89 = arith.constant 1.000000e+00 : f32
    %177 = vector.broadcast %cst_89 : f32 to vector<64x128xf32>
    %178 = arith.addf %160, %177 : vector<64x128xf32>
    %179 = arith.mulf %176, %178 : vector<64x128xf32>
    %180 = arith.addf %179, %159 : vector<64x128xf32>
    %c0_90 = arith.constant 0 : index
    %c0_91 = arith.constant 0 : index
    %181 = vector.load %arg20[%c0_90, %c0_91] : memref<128x32xbf16, #tpu.memory_space<vmem>>, vector<128x32xbf16>
    %182 = arith.truncf %180 : vector<64x128xf32> to vector<64x128xbf16>
    %cst_92 = arith.constant dense<0.000000e+00> : vector<64x32xf32>
    %183 = tpu.matmul %182, %181, %cst_92 {dimension_numbers = #tpu.dot_dimension_numbers<[1], [0], [0], [1], [0, 0, 1, 1], [], []>} : vector<64x128xbf16>, vector<128x32xbf16>, vector<64x32xf32> -> vector<64x32xf32>
    %c0_93 = arith.constant 0 : index
    %c0_94 = arith.constant 0 : index
    %184 = vector.load %arg21[%c0_93, %c0_94] : memref<1x32xf32, #tpu.memory_space<vmem>>, vector<1x32xf32>
    %185 = vector.broadcast %184 : vector<1x32xf32> to vector<64x32xf32>
    %186 = arith.addf %183, %185 : vector<64x32xf32>
    %c0_95 = arith.constant 0 : index
    %c0_96 = arith.constant 0 : index
    %187 = vector.load %arg22[%c0_95, %c0_96] : memref<64x32xf32, #tpu.memory_space<vmem>>, vector<64x32xf32>
    tpu.vector_store %arg22[%c0_95, %c0_96], %186 {strides = array<i32>} : memref<64x32xf32, #tpu.memory_space<vmem>>, vector<64x32xf32>,
    return
  }
  func.func @transform_0(%arg0: i32) -> (i32, i32) {
    %c0_i32 = arith.constant 0 : i32
    %c0_i32_0 = arith.constant 0 : i32
    return %arg0, %c0_i32 : i32, i32
  }
  func.func @transform_1(%arg0: i32) -> (i32, i32) {
    %c0_i32 = arith.constant 0 : i32
    %c0_i32_0 = arith.constant 0 : i32
    return %arg0, %c0_i32 : i32, i32
  }
  func.func @transform_2(%arg0: i32) -> (i32, i32) {
    %c0_i32 = arith.constant 0 : i32
    %c0_i32_0 = arith.constant 0 : i32
    return %arg0, %c0_i32 : i32, i32
  }
  func.func @transform_3(%arg0: i32) -> (i32, i32) {
    %c0_i32 = arith.constant 0 : i32
    %c0_i32_0 = arith.constant 0 : i32
    %c0_i32_1 = arith.constant 0 : i32
    return %c0_i32, %c0_i32_0 : i32, i32
  }
  func.func @transform_4(%arg0: i32) -> (i32, i32) {
    %c0_i32 = arith.constant 0 : i32
    %c0_i32_0 = arith.constant 0 : i32
    %c0_i32_1 = arith.constant 0 : i32
    return %c0_i32, %c0_i32_0 : i32, i32
  }
  func.func @transform_5(%arg0: i32) -> (i32, i32) {
    %c0_i32 = arith.constant 0 : i32
    %c0_i32_0 = arith.constant 0 : i32
    %c0_i32_1 = arith.constant 0 : i32
    return %c0_i32, %c0_i32_0 : i32, i32
  }
  func.func @transform_6(%arg0: i32) -> (i32, i32) {
    %c0_i32 = arith.constant 0 : i32
    %c0_i32_0 = arith.constant 0 : i32
    %c0_i32_1 = arith.constant 0 : i32
    return %c0_i32, %c0_i32_0 : i32, i32
  }
  func.func @transform_7(%arg0: i32) -> (i32, i32) {
    %c0_i32 = arith.constant 0 : i32
    %c0_i32_0 = arith.constant 0 : i32
    %c0_i32_1 = arith.constant 0 : i32
    return %c0_i32, %c0_i32_0 : i32, i32
  }
  func.func @transform_8(%arg0: i32) -> (i32, i32) {
    %c0_i32 = arith.constant 0 : i32
    %c0_i32_0 = arith.constant 0 : i32
    %c0_i32_1 = arith.constant 0 : i32
    return %c0_i32, %c0_i32_0 : i32, i32
  }
  func.func @transform_9(%arg0: i32) -> (i32, i32) {
    %c0_i32 = arith.constant 0 : i32
    %c0_i32_0 = arith.constant 0 : i32
    %c0_i32_1 = arith.constant 0 : i32
    return %c0_i32, %c0_i32_0 : i32, i32
  }
  func.func @transform_10(%arg0: i32) -> (i32, i32) {
    %c0_i32 = arith.constant 0 : i32
    %c0_i32_0 = arith.constant 0 : i32
    %c0_i32_1 = arith.constant 0 : i32
    return %c0_i32, %c0_i32_0 : i32, i32
  }
  func.func @transform_11(%arg0: i32) -> (i32, i32, i32) {
    %c0_i32 = arith.constant 0 : i32
    %c0_i32_0 = arith.constant 0 : i32
    %c0_i32_1 = arith.constant 0 : i32
    %c0_i32_2 = arith.constant 0 : i32
    return %c0_i32, %c0_i32_0, %c0_i32_1 : i32, i32, i32
  }
  func.func @transform_12(%arg0: i32) -> (i32, i32, i32) {
    %c0_i32 = arith.constant 0 : i32
    %c0_i32_0 = arith.constant 0 : i32
    %c0_i32_1 = arith.constant 0 : i32
    %c0_i32_2 = arith.constant 0 : i32
    return %c0_i32, %c0_i32_0, %c0_i32_1 : i32, i32, i32
  }
  func.func @transform_13(%arg0: i32) -> (i32, i32) {
    %c0_i32 = arith.constant 0 : i32
    %c0_i32_0 = arith.constant 0 : i32
    %c0_i32_1 = arith.constant 0 : i32
    return %c0_i32, %c0_i32_0 : i32, i32
  }
  func.func @transform_14(%arg0: i32) -> (i32, i32) {
    %c0_i32 = arith.constant 0 : i32
    %c0_i32_0 = arith.constant 0 : i32
    %c0_i32_1 = arith.constant 0 : i32
    return %c0_i32, %c0_i32_0 : i32, i32
  }
  func.func @transform_15(%arg0: i32) -> (i32, i32, i32) {
    %c0_i32 = arith.constant 0 : i32
    %c0_i32_0 = arith.constant 0 : i32
    %c0_i32_1 = arith.constant 0 : i32
    %c0_i32_2 = arith.constant 0 : i32
    return %c0_i32, %c0_i32_0, %c0_i32_1 : i32, i32, i32
  }
  func.func @transform_16(%arg0: i32) -> (i32, i32, i32) {
    %c0_i32 = arith.constant 0 : i32
    %c0_i32_0 = arith.constant 0 : i32
    %c0_i32_1 = arith.constant 0 : i32
    %c0_i32_2 = arith.constant 0 : i32
    return %c0_i32, %c0_i32_0, %c0_i32_1 : i32, i32, i32
  }
  func.func @transform_17(%arg0: i32) -> (i32, i32, i32) {
    %c0_i32 = arith.constant 0 : i32
    %c0_i32_0 = arith.constant 0 : i32
    %c0_i32_1 = arith.constant 0 : i32
    %c0_i32_2 = arith.constant 0 : i32
    return %c0_i32, %c0_i32_0, %c0_i32_1 : i32, i32, i32
  }
  func.func @transform_18(%arg0: i32) -> (i32, i32, i32) {
    %c0_i32 = arith.constant 0 : i32
    %c0_i32_0 = arith.constant 0 : i32
    %c0_i32_1 = arith.constant 0 : i32
    %c0_i32_2 = arith.constant 0 : i32
    return %c0_i32, %c0_i32_0, %c0_i32_1 : i32, i32, i32
  }
  func.func @transform_19(%arg0: i32) -> (i32, i32) {
    %c0_i32 = arith.constant 0 : i32
    %c0_i32_0 = arith.constant 0 : i32
    %c0_i32_1 = arith.constant 0 : i32
    return %c0_i32, %c0_i32_0 : i32, i32
  }
  func.func @transform_20(%arg0: i32) -> (i32, i32) {
    %c0_i32 = arith.constant 0 : i32
    %c0_i32_0 = arith.constant 0 : i32
    %c0_i32_1 = arith.constant 0 : i32
    return %c0_i32, %c0_i32_0 : i32, i32
  }
  func.func @transform_21(%arg0: i32) -> (i32, i32) {
    %c0_i32 = arith.constant 0 : i32
    %c0_i32_0 = arith.constant 0 : i32
    return %arg0, %c0_i32 : i32, i32
  }
}

module attributes {stable_mosaic.version = 11 : i64} {
  func.func @_fused_forward_kernel(%arg0: i32, %arg1: memref<64x16xf32, #tpu.memory_space<vmem>>, %arg2: memref<64x256xf32, #tpu.memory_space<vmem>>, %arg3: memref<64x64xf32, #tpu.memory_space<vmem>>, %arg4: memref<16x128xbf16, #tpu.memory_space<vmem>>, %arg5: memref<1x128xf32, #tpu.memory_space<vmem>>, %arg6: memref<256x128xbf16, #tpu.memory_space<vmem>>, %arg7: memref<1x128xf32, #tpu.memory_space<vmem>>, %arg8: memref<128x128xbf16, #tpu.memory_space<vmem>>, %arg9: memref<1x128xf32, #tpu.memory_space<vmem>>, %arg10: memref<64x128xbf16, #tpu.memory_space<vmem>>, %arg11: memref<1x128xf32, #tpu.memory_space<vmem>>, %arg12: memref<2x1x128xf32, #tpu.memory_space<vmem>>, %arg13: memref<2x1x128xf32, #tpu.memory_space<vmem>>, %arg14: memref<128x1024xbf16, #tpu.memory_space<vmem>>, %arg15: memref<1x1024xf32, #tpu.memory_space<vmem>>, %arg16: memref<2x128x128xbf16, #tpu.memory_space<vmem>>, %arg17: memref<2x1x128xf32, #tpu.memory_space<vmem>>, %arg18: memref<2x128x128xbf16, #tpu.memory_space<vmem>>, %arg19: memref<2x1x128xf32, #tpu.memory_space<vmem>>, %arg20: memref<128x32xbf16, #tpu.memory_space<vmem>>, %arg21: memref<1x32xf32, #tpu.memory_space<vmem>>, %arg22: memref<64x32xf32, #tpu.memory_space<vmem>>) attributes {dimension_semantics = [#tpu.dimension_semantics<parallel>], iteration_bounds = array<i64: 2>, scalar_prefetch = 0 : i64, scratch_operands = 0 : i64, tpu.core_type = #tpu.core_type<tc>, window_params = [{transform_indices = @transform_0, window_bounds = array<i64: 64, 16>}, {transform_indices = @transform_1, window_bounds = array<i64: 64, 256>}, {transform_indices = @transform_2, window_bounds = array<i64: 64, 64>}, {pipeline_mode = #tpu.pipeline_mode<synchronous>, transform_indices = @transform_3, window_bounds = array<i64: 16, 128>}, {pipeline_mode = #tpu.pipeline_mode<synchronous>, transform_indices = @transform_4, window_bounds = array<i64: 1, 128>}, {pipeline_mode = #tpu.pipeline_mode<synchronous>, transform_indices = @transform_5, window_bounds = array<i64: 256, 128>}, {pipeline_mode = #tpu.pipeline_mode<synchronous>, transform_indices = @transform_6, window_bounds = array<i64: 1, 128>}, {pipeline_mode = #tpu.pipeline_mode<synchronous>, transform_indices = @transform_7, window_bounds = array<i64: 128, 128>}, {pipeline_mode = #tpu.pipeline_mode<synchronous>, transform_indices = @transform_8, window_bounds = array<i64: 1, 128>}, {pipeline_mode = #tpu.pipeline_mode<synchronous>, transform_indices = @transform_9, window_bounds = array<i64: 64, 128>}, {pipeline_mode = #tpu.pipeline_mode<synchronous>, transform_indices = @transform_10, window_bounds = array<i64: 1, 128>}, {pipeline_mode = #tpu.pipeline_mode<synchronous>, transform_indices = @transform_11, window_bounds = array<i64: 2, 1, 128>}, {pipeline_mode = #tpu.pipeline_mode<synchronous>, transform_indices = @transform_12, window_bounds = array<i64: 2, 1, 128>}, {pipeline_mode = #tpu.pipeline_mode<synchronous>, transform_indices = @transform_13, window_bounds = array<i64: 128, 1024>}, {pipeline_mode = #tpu.pipeline_mode<synchronous>, transform_indices = @transform_14, window_bounds = array<i64: 1, 1024>}, {pipeline_mode = #tpu.pipeline_mode<synchronous>, transform_indices = @transform_15, window_bounds = array<i64: 2, 128, 128>}, {pipeline_mode = #tpu.pipeline_mode<synchronous>, transform_indices = @transform_16, window_bounds = array<i64: 2, 1, 128>}, {pipeline_mode = #tpu.pipeline_mode<synchronous>, transform_indices = @transform_17, window_bounds = array<i64: 2, 128, 128>}, {pipeline_mode = #tpu.pipeline_mode<synchronous>, transform_indices = @transform_18, window_bounds = array<i64: 2, 1, 128>}, {pipeline_mode = #tpu.pipeline_mode<synchronous>, transform_indices = @transform_19, window_bounds = array<i64: 128, 32>}, {pipeline_mode = #tpu.pipeline_mode<synchronous>, transform_indices = @transform_20, window_bounds = array<i64: 1, 32>}, {transform_indices = @transform_21, window_bounds = array<i64: 64, 32>}]} {
    %c0 = arith.constant 0 : index
    %c0_0 = arith.constant 0 : index
    %0 = vector.load %arg1[%c0, %c0_0] : memref<64x16xf32, #tpu.memory_space<vmem>>, vector<64x16xf32>
    %c0_1 = arith.constant 0 : index
    %c0_2 = arith.constant 0 : index
    %1 = vector.load %arg4[%c0_1, %c0_2] : memref<16x128xbf16, #tpu.memory_space<vmem>>, vector<16x128xbf16>
    %2 = arith.truncf %0 : vector<64x16xf32> to vector<64x16xbf16>
    %cst = arith.constant dense<0.000000e+00> : vector<64x128xf32>
    %3 = tpu.matmul %2, %1, %cst {dimension_numbers = #tpu.dot_dimension_numbers<[1], [0], [0], [1], [0, 0, 1, 1], [], []>} : vector<64x16xbf16>, vector<16x128xbf16>, vector<64x128xf32> -> vector<64x128xf32>
    %c0_3 = arith.constant 0 : index
    %c0_4 = arith.constant 0 : index
    %4 = vector.load %arg5[%c0_3, %c0_4] : memref<1x128xf32, #tpu.memory_space<vmem>>, vector<1x128xf32>
    %5 = vector.broadcast %4 : vector<1x128xf32> to vector<64x128xf32>
    %6 = arith.addf %3, %5 : vector<64x128xf32>
    %c0_5 = arith.constant 0 : index
    %c0_6 = arith.constant 0 : index
    %7 = vector.load %arg2[%c0_5, %c0_6] : memref<64x256xf32, #tpu.memory_space<vmem>>, vector<64x256xf32>
    %c0_7 = arith.constant 0 : index
    %c0_8 = arith.constant 0 : index
    %8 = vector.load %arg6[%c0_7, %c0_8] : memref<256x128xbf16, #tpu.memory_space<vmem>>, vector<256x128xbf16>
    %9 = arith.truncf %7 : vector<64x256xf32> to vector<64x256xbf16>
    %cst_9 = arith.constant dense<0.000000e+00> : vector<64x128xf32>
    %10 = tpu.matmul %9, %8, %cst_9 {dimension_numbers = #tpu.dot_dimension_numbers<[1], [0], [0], [1], [0, 0, 1, 1], [], []>} : vector<64x256xbf16>, vector<256x128xbf16>, vector<64x128xf32> -> vector<64x128xf32>
    %c0_10 = arith.constant 0 : index
    %c0_11 = arith.constant 0 : index
    %11 = vector.load %arg7[%c0_10, %c0_11] : memref<1x128xf32, #tpu.memory_space<vmem>>, vector<1x128xf32>
    %12 = vector.broadcast %11 : vector<1x128xf32> to vector<64x128xf32>
    %13 = arith.addf %10, %12 : vector<64x128xf32>
    %14 = arith.negf %13 : vector<64x128xf32>
    %15 = math.exp %14 : vector<64x128xf32>
    %cst_12 = arith.constant 1.000000e+00 : f32
    %16 = vector.broadcast %cst_12 : f32 to vector<64x128xf32>
    %17 = arith.addf %16, %15 : vector<64x128xf32>
    %18 = arith.divf %16, %17 : vector<64x128xf32>
    %19 = arith.mulf %13, %18 : vector<64x128xf32>
    %c0_13 = arith.constant 0 : index
    %c0_14 = arith.constant 0 : index
    %20 = vector.load %arg8[%c0_13, %c0_14] : memref<128x128xbf16, #tpu.memory_space<vmem>>, vector<128x128xbf16>
    %21 = arith.truncf %19 : vector<64x128xf32> to vector<64x128xbf16>
    %cst_15 = arith.constant dense<0.000000e+00> : vector<64x128xf32>
    %22 = tpu.matmul %21, %20, %cst_15 {dimension_numbers = #tpu.dot_dimension_numbers<[1], [0], [0], [1], [0, 0, 1, 1], [], []>} : vector<64x128xbf16>, vector<128x128xbf16>, vector<64x128xf32> -> vector<64x128xf32>
    %c0_16 = arith.constant 0 : index
    %c0_17 = arith.constant 0 : index
    %23 = vector.load %arg9[%c0_16, %c0_17] : memref<1x128xf32, #tpu.memory_space<vmem>>, vector<1x128xf32>
    %24 = vector.broadcast %23 : vector<1x128xf32> to vector<64x128xf32>
    %25 = arith.addf %22, %24 : vector<64x128xf32>
    %c0_18 = arith.constant 0 : index
    %c0_19 = arith.constant 0 : index
    %26 = vector.load %arg3[%c0_18, %c0_19] : memref<64x64xf32, #tpu.memory_space<vmem>>, vector<64x64xf32>
    %c0_20 = arith.constant 0 : index
    %c0_21 = arith.constant 0 : index
    %27 = vector.load %arg10[%c0_20, %c0_21] : memref<64x128xbf16, #tpu.memory_space<vmem>>, vector<64x128xbf16>
    %28 = arith.truncf %26 : vector<64x64xf32> to vector<64x64xbf16>
    %cst_22 = arith.constant dense<0.000000e+00> : vector<64x128xf32>
    %29 = tpu.matmul %28, %27, %cst_22 {dimension_numbers = #tpu.dot_dimension_numbers<[1], [0], [0], [1], [0, 0, 1, 1], [], []>} : vector<64x64xbf16>, vector<64x128xbf16>, vector<64x128xf32> -> vector<64x128xf32>
    %30 = arith.addf %25, %29 : vector<64x128xf32>
    %c0_23 = arith.constant 0 : index
    %c0_24 = arith.constant 0 : index
    %31 = vector.load %arg11[%c0_23, %c0_24] : memref<1x128xf32, #tpu.memory_space<vmem>>, vector<1x128xf32>
    %32 = vector.broadcast %31 : vector<1x128xf32> to vector<64x128xf32>
    %33 = arith.addf %30, %32 : vector<64x128xf32>
    %34 = arith.negf %33 : vector<64x128xf32>
    %35 = math.exp %34 : vector<64x128xf32>
    %cst_25 = arith.constant 1.000000e+00 : f32
    %36 = vector.broadcast %cst_25 : f32 to vector<64x128xf32>
    %37 = arith.addf %36, %35 : vector<64x128xf32>
    %38 = arith.divf %36, %37 : vector<64x128xf32>
    %39 = arith.mulf %33, %38 : vector<64x128xf32>
    %40 = arith.truncf %39 : vector<64x128xf32> to vector<64x128xbf16>
    %c0_26 = arith.constant 0 : index
    %c0_27 = arith.constant 0 : index
    %41 = vector.load %arg14[%c0_26, %c0_27] : memref<128x1024xbf16, #tpu.memory_space<vmem>>, vector<128x1024xbf16>
    %cst_28 = arith.constant dense<0.000000e+00> : vector<64x1024xf32>
    %42 = tpu.matmul %40, %41, %cst_28 {dimension_numbers = #tpu.dot_dimension_numbers<[1], [0], [0], [1], [0, 0, 1, 1], [], []>} : vector<64x128xbf16>, vector<128x1024xbf16>, vector<64x1024xf32> -> vector<64x1024xf32>
    %c0_29 = arith.constant 0 : index
    %c0_30 = arith.constant 0 : index
    %43 = vector.load %arg15[%c0_29, %c0_30] : memref<1x1024xf32, #tpu.memory_space<vmem>>, vector<1x1024xf32>
    %44 = vector.broadcast %43 : vector<1x1024xf32> to vector<64x1024xf32>
    %45 = arith.addf %42, %44 : vector<64x1024xf32>
    %46 = vector.extract_strided_slice %45 {offsets = [0, 0], sizes = [64, 384], strides = [1, 1]} : vector<64x1024xf32> to vector<64x384xf32>
    %47 = vector.extract_strided_slice %46 {offsets = [0, 0], sizes = [64, 128], strides = [1, 1]} : vector<64x384xf32> to vector<64x128xf32>
    %48 = vector.extract_strided_slice %46 {offsets = [0, 128], sizes = [64, 128], strides = [1, 1]} : vector<64x384xf32> to vector<64x128xf32>
    %49 = vector.extract_strided_slice %46 {offsets = [0, 256], sizes = [64, 128], strides = [1, 1]} : vector<64x384xf32> to vector<64x128xf32>
    %c0_31 = arith.constant 0 : index
    %c0_32 = arith.constant 0 : index
    %c0_33 = arith.constant 0 : index
    %50 = vector.load %arg12[%c0_31, %c0_32, %c0_33] : memref<2x1x128xf32, #tpu.memory_space<vmem>>, vector<1x1x128xf32>
    %51 = vector.shape_cast %50 : vector<1x1x128xf32> to vector<1x128xf32>
    %c0_34 = arith.constant 0 : index
    %c0_35 = arith.constant 0 : index
    %c0_36 = arith.constant 0 : index
    %52 = vector.load %arg13[%c0_34, %c0_35, %c0_36] : memref<2x1x128xf32, #tpu.memory_space<vmem>>, vector<1x1x128xf32>
    %53 = vector.shape_cast %52 : vector<1x1x128xf32> to vector<1x128xf32>
    %cst_37 = arith.constant dense<0.000000e+00> : vector<64xf32>
    %54 = vector.multi_reduction <add>, %6, %cst_37 [1] : vector<64x128xf32> to vector<64xf32>
    %55 = vector.shape_cast %54 : vector<64xf32> to vector<64x1xf32>
    %cst_38 = arith.constant 1.280000e+02 : f32
    %56 = vector.broadcast %cst_38 : f32 to vector<64x1xf32>
    %57 = arith.divf %55, %56 : vector<64x1xf32>
    %58 = vector.broadcast %57 : vector<64x1xf32> to vector<64x128xf32>
    %59 = arith.subf %6, %58 : vector<64x128xf32>
    %60 = arith.mulf %59, %59 : vector<64x128xf32>
    %cst_39 = arith.constant dense<0.000000e+00> : vector<64xf32>
    %61 = vector.multi_reduction <add>, %60, %cst_39 [1] : vector<64x128xf32> to vector<64xf32>
    %62 = vector.shape_cast %61 : vector<64xf32> to vector<64x1xf32>
    %cst_40 = arith.constant 1.280000e+02 : f32
    %63 = vector.broadcast %cst_40 : f32 to vector<64x1xf32>
    %64 = arith.divf %62, %63 : vector<64x1xf32>
    %cst_41 = arith.constant 9.99999997E-7 : f32
    %65 = vector.broadcast %cst_41 : f32 to vector<64x1xf32>
    %66 = arith.addf %64, %65 : vector<64x1xf32>
    %67 = math.rsqrt %66 : vector<64x1xf32>
    %68 = vector.broadcast %67 : vector<64x1xf32> to vector<64x128xf32>
    %69 = arith.mulf %59, %68 : vector<64x128xf32>
    %70 = vector.broadcast %51 : vector<1x128xf32> to vector<64x128xf32>
    %71 = arith.mulf %69, %70 : vector<64x128xf32>
    %72 = vector.broadcast %53 : vector<1x128xf32> to vector<64x128xf32>
    %73 = arith.addf %71, %72 : vector<64x128xf32>
    %cst_42 = arith.constant 1.000000e+00 : f32
    %74 = vector.broadcast %cst_42 : f32 to vector<64x128xf32>
    %75 = arith.addf %48, %74 : vector<64x128xf32>
    %76 = arith.mulf %73, %75 : vector<64x128xf32>
    %77 = arith.addf %76, %47 : vector<64x128xf32>
    %c0_43 = arith.constant 0 : index
    %c0_44 = arith.constant 0 : index
    %c0_45 = arith.constant 0 : index
    %78 = vector.load %arg16[%c0_43, %c0_44, %c0_45] : memref<2x128x128xbf16, #tpu.memory_space<vmem>>, vector<1x128x128xbf16>
    %79 = vector.shape_cast %78 : vector<1x128x128xbf16> to vector<128x128xbf16>
    %80 = arith.truncf %77 : vector<64x128xf32> to vector<64x128xbf16>
    %cst_46 = arith.constant dense<0.000000e+00> : vector<64x128xf32>
    %81 = tpu.matmul %80, %79, %cst_46 {dimension_numbers = #tpu.dot_dimension_numbers<[1], [0], [0], [1], [0, 0, 1, 1], [], []>} : vector<64x128xbf16>, vector<128x128xbf16>, vector<64x128xf32> -> vector<64x128xf32>
    %c0_47 = arith.constant 0 : index
    %c0_48 = arith.constant 0 : index
    %c0_49 = arith.constant 0 : index
    %82 = vector.load %arg17[%c0_47, %c0_48, %c0_49] : memref<2x1x128xf32, #tpu.memory_space<vmem>>, vector<1x1x128xf32>
    %83 = vector.shape_cast %82 : vector<1x1x128xf32> to vector<1x128xf32>
    %84 = vector.broadcast %83 : vector<1x128xf32> to vector<64x128xf32>
    %85 = arith.addf %81, %84 : vector<64x128xf32>
    %86 = arith.negf %85 : vector<64x128xf32>
    %87 = math.exp %86 : vector<64x128xf32>
    %cst_50 = arith.constant 1.000000e+00 : f32
    %88 = vector.broadcast %cst_50 : f32 to vector<64x128xf32>
    %89 = arith.addf %88, %87 : vector<64x128xf32>
    %90 = arith.divf %88, %89 : vector<64x128xf32>
    %91 = arith.mulf %85, %90 : vector<64x128xf32>
    %c0_51 = arith.constant 0 : index
    %c0_52 = arith.constant 0 : index
    %c0_53 = arith.constant 0 : index
    %92 = vector.load %arg18[%c0_51, %c0_52, %c0_53] : memref<2x128x128xbf16, #tpu.memory_space<vmem>>, vector<1x128x128xbf16>
    %93 = vector.shape_cast %92 : vector<1x128x128xbf16> to vector<128x128xbf16>
    %94 = arith.truncf %91 : vector<64x128xf32> to vector<64x128xbf16>
    %cst_54 = arith.constant dense<0.000000e+00> : vector<64x128xf32>
    %95 = tpu.matmul %94, %93, %cst_54 {dimension_numbers = #tpu.dot_dimension_numbers<[1], [0], [0], [1], [0, 0, 1, 1], [], []>} : vector<64x128xbf16>, vector<128x128xbf16>, vector<64x128xf32> -> vector<64x128xf32>
    %c0_55 = arith.constant 0 : index
    %c0_56 = arith.constant 0 : index
    %c0_57 = arith.constant 0 : index
    %96 = vector.load %arg19[%c0_55, %c0_56, %c0_57] : memref<2x1x128xf32, #tpu.memory_space<vmem>>, vector<1x1x128xf32>
    %97 = vector.shape_cast %96 : vector<1x1x128xf32> to vector<1x128xf32>
    %98 = vector.broadcast %97 : vector<1x128xf32> to vector<64x128xf32>
    %99 = arith.addf %95, %98 : vector<64x128xf32>
    %100 = arith.mulf %49, %99 : vector<64x128xf32>
    %101 = arith.addf %6, %100 : vector<64x128xf32>
    %102 = vector.extract_strided_slice %45 {offsets = [0, 384], sizes = [64, 384], strides = [1, 1]} : vector<64x1024xf32> to vector<64x384xf32>
    %103 = vector.extract_strided_slice %102 {offsets = [0, 0], sizes = [64, 128], strides = [1, 1]} : vector<64x384xf32> to vector<64x128xf32>
    %104 = vector.extract_strided_slice %102 {offsets = [0, 128], sizes = [64, 128], strides = [1, 1]} : vector<64x384xf32> to vector<64x128xf32>
    %105 = vector.extract_strided_slice %102 {offsets = [0, 256], sizes = [64, 128], strides = [1, 1]} : vector<64x384xf32> to vector<64x128xf32>
    %c1 = arith.constant 1 : index
    %c0_58 = arith.constant 0 : index
    %c0_59 = arith.constant 0 : index
    %106 = vector.load %arg12[%c1, %c0_58, %c0_59] : memref<2x1x128xf32, #tpu.memory_space<vmem>>, vector<1x1x128xf32>
    %107 = vector.shape_cast %106 : vector<1x1x128xf32> to vector<1x128xf32>
    %c1_60 = arith.constant 1 : index
    %c0_61 = arith.constant 0 : index
    %c0_62 = arith.constant 0 : index
    %108 = vector.load %arg13[%c1_60, %c0_61, %c0_62] : memref<2x1x128xf32, #tpu.memory_space<vmem>>, vector<1x1x128xf32>
    %109 = vector.shape_cast %108 : vector<1x1x128xf32> to vector<1x128xf32>
    %cst_63 = arith.constant dense<0.000000e+00> : vector<64xf32>
    %110 = vector.multi_reduction <add>, %101, %cst_63 [1] : vector<64x128xf32> to vector<64xf32>
    %111 = vector.shape_cast %110 : vector<64xf32> to vector<64x1xf32>
    %cst_64 = arith.constant 1.280000e+02 : f32
    %112 = vector.broadcast %cst_64 : f32 to vector<64x1xf32>
    %113 = arith.divf %111, %112 : vector<64x1xf32>
    %114 = vector.broadcast %113 : vector<64x1xf32> to vector<64x128xf32>
    %115 = arith.subf %101, %114 : vector<64x128xf32>
    %116 = arith.mulf %115, %115 : vector<64x128xf32>
    %cst_65 = arith.constant dense<0.000000e+00> : vector<64xf32>
    %117 = vector.multi_reduction <add>, %116, %cst_65 [1] : vector<64x128xf32> to vector<64xf32>
    %118 = vector.shape_cast %117 : vector<64xf32> to vector<64x1xf32>
    %cst_66 = arith.constant 1.280000e+02 : f32
    %119 = vector.broadcast %cst_66 : f32 to vector<64x1xf32>
    %120 = arith.divf %118, %119 : vector<64x1xf32>
    %cst_67 = arith.constant 9.99999997E-7 : f32
    %121 = vector.broadcast %cst_67 : f32 to vector<64x1xf32>
    %122 = arith.addf %120, %121 : vector<64x1xf32>
    %123 = math.rsqrt %122 : vector<64x1xf32>
    %124 = vector.broadcast %123 : vector<64x1xf32> to vector<64x128xf32>
    %125 = arith.mulf %115, %124 : vector<64x128xf32>
    %126 = vector.broadcast %107 : vector<1x128xf32> to vector<64x128xf32>
    %127 = arith.mulf %125, %126 : vector<64x128xf32>
    %128 = vector.broadcast %109 : vector<1x128xf32> to vector<64x128xf32>
    %129 = arith.addf %127, %128 : vector<64x128xf32>
    %cst_68 = arith.constant 1.000000e+00 : f32
    %130 = vector.broadcast %cst_68 : f32 to vector<64x128xf32>
    %131 = arith.addf %104, %130 : vector<64x128xf32>
    %132 = arith.mulf %129, %131 : vector<64x128xf32>
    %133 = arith.addf %132, %103 : vector<64x128xf32>
    %c1_69 = arith.constant 1 : index
    %c0_70 = arith.constant 0 : index
    %c0_71 = arith.constant 0 : index
    %134 = vector.load %arg16[%c1_69, %c0_70, %c0_71] : memref<2x128x128xbf16, #tpu.memory_space<vmem>>, vector<1x128x128xbf16>
    %135 = vector.shape_cast %134 : vector<1x128x128xbf16> to vector<128x128xbf16>
    %136 = arith.truncf %133 : vector<64x128xf32> to vector<64x128xbf16>
    %cst_72 = arith.constant dense<0.000000e+00> : vector<64x128xf32>
    %137 = tpu.matmul %136, %135, %cst_72 {dimension_numbers = #tpu.dot_dimension_numbers<[1], [0], [0], [1], [0, 0, 1, 1], [], []>} : vector<64x128xbf16>, vector<128x128xbf16>, vector<64x128xf32> -> vector<64x128xf32>
    %c1_73 = arith.constant 1 : index
    %c0_74 = arith.constant 0 : index
    %c0_75 = arith.constant 0 : index
    %138 = vector.load %arg17[%c1_73, %c0_74, %c0_75] : memref<2x1x128xf32, #tpu.memory_space<vmem>>, vector<1x1x128xf32>
    %139 = vector.shape_cast %138 : vector<1x1x128xf32> to vector<1x128xf32>
    %140 = vector.broadcast %139 : vector<1x128xf32> to vector<64x128xf32>
    %141 = arith.addf %137, %140 : vector<64x128xf32>
    %142 = arith.negf %141 : vector<64x128xf32>
    %143 = math.exp %142 : vector<64x128xf32>
    %cst_76 = arith.constant 1.000000e+00 : f32
    %144 = vector.broadcast %cst_76 : f32 to vector<64x128xf32>
    %145 = arith.addf %144, %143 : vector<64x128xf32>
    %146 = arith.divf %144, %145 : vector<64x128xf32>
    %147 = arith.mulf %141, %146 : vector<64x128xf32>
    %c1_77 = arith.constant 1 : index
    %c0_78 = arith.constant 0 : index
    %c0_79 = arith.constant 0 : index
    %148 = vector.load %arg18[%c1_77, %c0_78, %c0_79] : memref<2x128x128xbf16, #tpu.memory_space<vmem>>, vector<1x128x128xbf16>
    %149 = vector.shape_cast %148 : vector<1x128x128xbf16> to vector<128x128xbf16>
    %150 = arith.truncf %147 : vector<64x128xf32> to vector<64x128xbf16>
    %cst_80 = arith.constant dense<0.000000e+00> : vector<64x128xf32>
    %151 = tpu.matmul %150, %149, %cst_80 {dimension_numbers = #tpu.dot_dimension_numbers<[1], [0], [0], [1], [0, 0, 1, 1], [], []>} : vector<64x128xbf16>, vector<128x128xbf16>, vector<64x128xf32> -> vector<64x128xf32>
    %c1_81 = arith.constant 1 : index
    %c0_82 = arith.constant 0 : index
    %c0_83 = arith.constant 0 : index
    %152 = vector.load %arg19[%c1_81, %c0_82, %c0_83] : memref<2x1x128xf32, #tpu.memory_space<vmem>>, vector<1x1x128xf32>
    %153 = vector.shape_cast %152 : vector<1x1x128xf32> to vector<1x128xf32>
    %154 = vector.broadcast %153 : vector<1x128xf32> to vector<64x128xf32>
    %155 = arith.addf %151, %154 : vector<64x128xf32>
    %156 = arith.mulf %105, %155 : vector<64x128xf32>
    %157 = arith.addf %101, %156 : vector<64x128xf32>
    %158 = vector.extract_strided_slice %45 {offsets = [0, 768], sizes = [64, 256], strides = [1, 1]} : vector<64x1024xf32> to vector<64x256xf32>
    %159 = vector.extract_strided_slice %158 {offsets = [0, 0], sizes = [64, 128], strides = [1, 1]} : vector<64x256xf32> to vector<64x128xf32>
    %160 = vector.extract_strided_slice %158 {offsets = [0, 128], sizes = [64, 128], strides = [1, 1]} : vector<64x256xf32> to vector<64x128xf32>
    %cst_84 = arith.constant dense<0.000000e+00> : vector<64xf32>
    %161 = vector.multi_reduction <add>, %157, %cst_84 [1] : vector<64x128xf32> to vector<64xf32>
    %162 = vector.shape_cast %161 : vector<64xf32> to vector<64x1xf32>
    %cst_85 = arith.constant 1.280000e+02 : f32
    %163 = vector.broadcast %cst_85 : f32 to vector<64x1xf32>
    %164 = arith.divf %162, %163 : vector<64x1xf32>
    %165 = vector.broadcast %164 : vector<64x1xf32> to vector<64x128xf32>
    %166 = arith.subf %157, %165 : vector<64x128xf32>
    %167 = arith.mulf %166, %166 : vector<64x128xf32>
    %cst_86 = arith.constant dense<0.000000e+00> : vector<64xf32>
    %168 = vector.multi_reduction <add>, %167, %cst_86 [1] : vector<64x128xf32> to vector<64xf32>
    %169 = vector.shape_cast %168 : vector<64xf32> to vector<64x1xf32>
    %cst_87 = arith.constant 1.280000e+02 : f32
    %170 = vector.broadcast %cst_87 : f32 to vector<64x1xf32>
    %171 = arith.divf %169, %170 : vector<64x1xf32>
    %cst_88 = arith.constant 9.99999997E-7 : f32
    %172 = vector.broadcast %cst_88 : f32 to vector<64x1xf32>
    %173 = arith.addf %171, %172 : vector<64x1xf32>
    %174 = math.rsqrt %173 : vector<64x1xf32>
    %175 = vector.broadcast %174 : vector<64x1xf32> to vector<64x128xf32>
    %176 = arith.mulf %166, %175 : vector<64x128xf32>
    %cst_89 = arith.constant 1.000000e+00 : f32
    %177 = vector.broadcast %cst_89 : f32 to vector<64x128xf32>
    %178 = arith.addf %160, %177 : vector<64x128xf32>
    %179 = arith.mulf %176, %178 : vector<64x128xf32>
    %180 = arith.addf %179, %159 : vector<64x128xf32>
    %c0_90 = arith.constant 0 : index
    %c0_91 = arith.constant 0 : index
    %181 = vector.load %arg20[%c0_90, %c0_91] : memref<128x32xbf16, #tpu.memory_space<vmem>>, vector<128x32xbf16>
    %182 = arith.truncf %180 : vector<64x128xf32> to vector<64x128xbf16>
    %cst_92 = arith.constant dense<0.000000e+00> : vector<64x32xf32>
    %183 = tpu.matmul %182, %181, %cst_92 {dimension_numbers = #tpu.dot_dimension_numbers<[1], [0], [0], [1], [0, 0, 1, 1], [], []>} : vector<64x128xbf16>, vector<128x32xbf16>, vector<64x32xf32> -> vector<64x32xf32>
    %c0_93 = arith.constant 0 : index
    %c0_94 = arith.constant 0 : index
    %184 = vector.load %arg21[%c0_93, %c0_94] : memref<1x32xf32, #tpu.memory_space<vmem>>, vector<1x32xf32>
    %185 = vector.broadcast %184 : vector<1x32xf32> to vector<64x32xf32>
    %186 = arith.addf %183, %185 : vector<64x32xf32>
    %c0_95 = arith.constant 0 : index
    %c0_96 = arith.constant 0 : index
    %187 = vector.load %arg22[%c0_95, %c0_96] : memref<64x32xf32, #tpu.memory_space<vmem>>, vector<64x32xf32>
    tpu.vector_store %arg22[%c0_95, %c0_96], %186 {strides = array<i32>} : memref<64x32xf32, #tpu.memory_space<vmem>>, vector<64x32xf32>,
    return
  }
  func.func @transform_0(%arg0: i32) -> (i32, i32) {
    %c0_i32 = arith.constant 0 : i32
    %c0_i32_0 = arith.constant 0 : i32
    return %arg0, %c0_i32 : i32, i32
  }
  func.func @transform_1(%arg0: i32) -> (i32, i32) {
    %c0_i32 = arith.constant 0 : i32
    %c0_i32_0 = arith.constant 0 : i32
    return %arg0, %c0_i32 : i32, i32
  }
  func.func @transform_2(%arg0: i32) -> (i32, i32) {
    %c0_i32 = arith.constant 0 : i32
    %c0_i32_0 = arith.constant 0 : i32
    return %arg0, %c0_i32 : i32, i32
  }
  func.func @transform_3(%arg0: i32) -> (i32, i32) {
    %c0_i32 = arith.constant 0 : i32
    %c0_i32_0 = arith.constant 0 : i32
    %c0_i32_1 = arith.constant 0 : i32
    return %c0_i32, %c0_i32_0 : i32, i32
  }
  func.func @transform_4(%arg0: i32) -> (i32, i32) {
    %c0_i32 = arith.constant 0 : i32
    %c0_i32_0 = arith.constant 0 : i32
    %c0_i32_1 = arith.constant 0 : i32
    return %c0_i32, %c0_i32_0 : i32, i32
  }
  func.func @transform_5(%arg0: i32) -> (i32, i32) {
    %c0_i32 = arith.constant 0 : i32
    %c0_i32_0 = arith.constant 0 : i32
    %c0_i32_1 = arith.constant 0 : i32
    return %c0_i32, %c0_i32_0 : i32, i32
  }
  func.func @transform_6(%arg0: i32) -> (i32, i32) {
    %c0_i32 = arith.constant 0 : i32
    %c0_i32_0 = arith.constant 0 : i32
    %c0_i32_1 = arith.constant 0 : i32
    return %c0_i32, %c0_i32_0 : i32, i32
  }
  func.func @transform_7(%arg0: i32) -> (i32, i32) {
    %c0_i32 = arith.constant 0 : i32
    %c0_i32_0 = arith.constant 0 : i32
    %c0_i32_1 = arith.constant 0 : i32
    return %c0_i32, %c0_i32_0 : i32, i32
  }
  func.func @transform_8(%arg0: i32) -> (i32, i32) {
    %c0_i32 = arith.constant 0 : i32
    %c0_i32_0 = arith.constant 0 : i32
    %c0_i32_1 = arith.constant 0 : i32
    return %c0_i32, %c0_i32_0 : i32, i32
  }
  func.func @transform_9(%arg0: i32) -> (i32, i32) {
    %c0_i32 = arith.constant 0 : i32
    %c0_i32_0 = arith.constant 0 : i32
    %c0_i32_1 = arith.constant 0 : i32
    return %c0_i32, %c0_i32_0 : i32, i32
  }
  func.func @transform_10(%arg0: i32) -> (i32, i32) {
    %c0_i32 = arith.constant 0 : i32
    %c0_i32_0 = arith.constant 0 : i32
    %c0_i32_1 = arith.constant 0 : i32
    return %c0_i32, %c0_i32_0 : i32, i32
  }
  func.func @transform_11(%arg0: i32) -> (i32, i32, i32) {
    %c0_i32 = arith.constant 0 : i32
    %c0_i32_0 = arith.constant 0 : i32
    %c0_i32_1 = arith.constant 0 : i32
    %c0_i32_2 = arith.constant 0 : i32
    return %c0_i32, %c0_i32_0, %c0_i32_1 : i32, i32, i32
  }
  func.func @transform_12(%arg0: i32) -> (i32, i32, i32) {
    %c0_i32 = arith.constant 0 : i32
    %c0_i32_0 = arith.constant 0 : i32
    %c0_i32_1 = arith.constant 0 : i32
    %c0_i32_2 = arith.constant 0 : i32
    return %c0_i32, %c0_i32_0, %c0_i32_1 : i32, i32, i32
  }
  func.func @transform_13(%arg0: i32) -> (i32, i32) {
    %c0_i32 = arith.constant 0 : i32
    %c0_i32_0 = arith.constant 0 : i32
    %c0_i32_1 = arith.constant 0 : i32
    return %c0_i32, %c0_i32_0 : i32, i32
  }
  func.func @transform_14(%arg0: i32) -> (i32, i32) {
    %c0_i32 = arith.constant 0 : i32
    %c0_i32_0 = arith.constant 0 : i32
    %c0_i32_1 = arith.constant 0 : i32
    return %c0_i32, %c0_i32_0 : i32, i32
  }
  func.func @transform_15(%arg0: i32) -> (i32, i32, i32) {
    %c0_i32 = arith.constant 0 : i32
    %c0_i32_0 = arith.constant 0 : i32
    %c0_i32_1 = arith.constant 0 : i32
    %c0_i32_2 = arith.constant 0 : i32
    return %c0_i32, %c0_i32_0, %c0_i32_1 : i32, i32, i32
  }
  func.func @transform_16(%arg0: i32) -> (i32, i32, i32) {
    %c0_i32 = arith.constant 0 : i32
    %c0_i32_0 = arith.constant 0 : i32
    %c0_i32_1 = arith.constant 0 : i32
    %c0_i32_2 = arith.constant 0 : i32
    return %c0_i32, %c0_i32_0, %c0_i32_1 : i32, i32, i32
  }
  func.func @transform_17(%arg0: i32) -> (i32, i32, i32) {
    %c0_i32 = arith.constant 0 : i32
    %c0_i32_0 = arith.constant 0 : i32
    %c0_i32_1 = arith.constant 0 : i32
    %c0_i32_2 = arith.constant 0 : i32
    return %c0_i32, %c0_i32_0, %c0_i32_1 : i32, i32, i32
  }
  func.func @transform_18(%arg0: i32) -> (i32, i32, i32) {
    %c0_i32 = arith.constant 0 : i32
    %c0_i32_0 = arith.constant 0 : i32
    %c0_i32_1 = arith.constant 0 : i32
    %c0_i32_2 = arith.constant 0 : i32
    return %c0_i32, %c0_i32_0, %c0_i32_1 : i32, i32, i32
  }
  func.func @transform_19(%arg0: i32) -> (i32, i32) {
    %c0_i32 = arith.constant 0 : i32
    %c0_i32_0 = arith.constant 0 : i32
    %c0_i32_1 = arith.constant 0 : i32
    return %c0_i32, %c0_i32_0 : i32, i32
  }
  func.func @transform_20(%arg0: i32) -> (i32, i32) {
    %c0_i32 = arith.constant 0 : i32
    %c0_i32_0 = arith.constant 0 : i32
    %c0_i32_1 = arith.constant 0 : i32
    return %c0_i32, %c0_i32_0 : i32, i32
  }
  func.func @transform_21(%arg0: i32) -> (i32, i32) {
    %c0_i32 = arith.constant 0 : i32
    %c0_i32_0 = arith.constant 0 : i32
    return %arg0, %c0_i32 : i32, i32
  }
}

</mosaic_0001>

<llo_original>
// kernel: simple_mlp_adaln_forward.1
$region0: #{simple_mlp_adaln_forward.1}
  #allocation0 [shape = 'u32[]', space=smem, size = 0x4, offset = 0x4, fixed_abs, tag = 'smem constant byte address 0x4 - core index']
  #allocation1 [shape = 'u32[144,128]{1,0:T(1,128)}', space=vmem, size = 0x12000, scoped, tag = 'internal scratch']
  %s0 = inlined_call_operand.vmem [shape: f32[128,16], index: 0, kind: input, shape index: {}]
  %s1 = inlined_call_operand.vmem [shape: f32[128,256], index: 1, kind: input, shape index: {}]
  %s2 = inlined_call_operand.vmem [shape: f32[128,64], index: 2, kind: input, shape index: {}]
  %s3 = inlined_call_operand.vmem [shape: bf16[16,128], index: 3, kind: input, shape index: {}]
  %s4 = inlined_call_operand.vmem [shape: f32[1,128], index: 4, kind: input, shape index: {}]
  %s5 = inlined_call_operand.vmem [shape: bf16[256,128], index: 5, kind: input, shape index: {}]
  %s6 = inlined_call_operand.vmem [shape: f32[1,128], index: 6, kind: input, shape index: {}]
  %s7 = inlined_call_operand.vmem [shape: bf16[128,128], index: 7, kind: input, shape index: {}]
  %s8 = inlined_call_operand.vmem [shape: f32[1,128], index: 8, kind: input, shape index: {}]
  %s9 = inlined_call_operand.vmem [shape: bf16[64,128], index: 9, kind: input, shape index: {}]
  %s10 = inlined_call_operand.vmem [shape: f32[1,128], index: 10, kind: input, shape index: {}]
  %s11 = inlined_call_operand.vmem [shape: f32[2,1,128], index: 11, kind: input, shape index: {}]
  %s12 = inlined_call_operand.vmem [shape: f32[2,1,128], index: 12, kind: input, shape index: {}]
  %s13 = inlined_call_operand.vmem [shape: bf16[128,1024], index: 13, kind: input, shape index: {}]
  %s14 = inlined_call_operand.vmem [shape: f32[1,1024], index: 14, kind: input, shape index: {}]
  %s15 = inlined_call_operand.vmem [shape: bf16[2,128,128], index: 15, kind: input, shape index: {}]
  %s16 = inlined_call_operand.vmem [shape: f32[2,1,128], index: 16, kind: input, shape index: {}]
  %s17 = inlined_call_operand.vmem [shape: bf16[2,128,128], index: 17, kind: input, shape index: {}]
  %s18 = inlined_call_operand.vmem [shape: f32[2,1,128], index: 18, kind: input, shape index: {}]
  %s19 = inlined_call_operand.vmem [shape: bf16[128,32], index: 19, kind: input, shape index: {}]
  %s20 = inlined_call_operand.vmem [shape: f32[1,32], index: 20, kind: input, shape index: {}]
  %s21 = inlined_call_operand.vmem [shape: f32[128,32], index: 21, kind: output, shape index: {}]
  %s22 = sld [smem:[#allocation0]]
  $region117: #{simple_mlp_adaln_forward.1} parent=0
    _
  %s24 = ssub.s32 1, %s22
  %s25 = scalar_select 0, %s24, %s22
  loop: start=0, step=1, limit=4
  $region2: #{simple_mlp_adaln_forward.1} parent=0 // loop_pre_header
    _
  $region3: #{simple_mlp_adaln_forward.1} parent=0 // loop_header
    %s27 = sphi 0, %s31
    %p28 = scmp.ge.s32.totalorder %s27, 4
    %s37 = sphi 0, %s39
    %s40 = sphi 0, %s37
    %s41 = sphi 0, %s40
    %s57 = sphi 0, %s41
    %s63 = sphi 0, %s65
    %s66 = sphi 0, %s63
    %s67 = sphi 0, %s66
    %s83 = sphi 0, %s67
    %s89 = sphi 0, %s91
    %s92 = sphi 0, %s89
    %s93 = sphi 0, %s92
    %s109 = sphi 0, %s93
    %s113 = sphi 0, %s113
    %s115 = sphi 0, %s113
    %s116 = sphi 0, %s115
    %s130 = sphi 0, %s116
    %s134 = sphi 0, %s134
    %s136 = sphi 0, %s134
    %s137 = sphi 0, %s136
    %s151 = sphi 0, %s137
    %s155 = sphi 0, %s155
    %s157 = sphi 0, %s155
    %s158 = sphi 0, %s157
    %s172 = sphi 0, %s158
    %s176 = sphi 0, %s176
    %s178 = sphi 0, %s176
    %s179 = sphi 0, %s178
    %s193 = sphi 0, %s179
    %s197 = sphi 0, %s197
    %s199 = sphi 0, %s197
    %s200 = sphi 0, %s199
    %s214 = sphi 0, %s200
    %s218 = sphi 0, %s218
    %s220 = sphi 0, %s218
    %s221 = sphi 0, %s220
    %s235 = sphi 0, %s221
    %s239 = sphi 0, %s239
    %s241 = sphi 0, %s239
    %s242 = sphi 0, %s241
    %s256 = sphi 0, %s242
    %s260 = sphi 0, %s260
    %s262 = sphi 0, %s260
    %s263 = sphi 0, %s262
    %s277 = sphi 0, %s263
    %s281 = sphi 0, %s281
    %s283 = sphi 0, %s281
    %s284 = sphi 0, %s283
    %s298 = sphi 0, %s284
    %s302 = sphi 0, %s302
    %s304 = sphi 0, %s302
    %s305 = sphi 0, %s304
    %s319 = sphi 0, %s305
    %s323 = sphi 0, %s323
    %s325 = sphi 0, %s323
    %s326 = sphi 0, %s325
    %s340 = sphi 0, %s326
    %s344 = sphi 0, %s344
    %s346 = sphi 0, %s344
    %s347 = sphi 0, %s346
    %s361 = sphi 0, %s347
    %s365 = sphi 0, %s365
    %s367 = sphi 0, %s365
    %s368 = sphi 0, %s367
    %s382 = sphi 0, %s368
    %s386 = sphi 0, %s386
    %s388 = sphi 0, %s386
    %s389 = sphi 0, %s388
    %s403 = sphi 0, %s389
    %s407 = sphi 0, %s407
    %s409 = sphi 0, %s407
    %s410 = sphi 0, %s409
    %s424 = sphi 0, %s410
    %s428 = sphi 0, %s428
    %s430 = sphi 0, %s428
    %s431 = sphi 0, %s430
    %s445 = sphi 0, %s431
    %s449 = sphi 0, %s449
    %s451 = sphi 0, %s449
    %s452 = sphi 0, %s451
    %s466 = sphi 0, %s452
    %s470 = sphi 0, %s470
    %s472 = sphi 0, %s470
    %s473 = sphi 0, %s472
    %s487 = sphi 0, %s473
    %s493 = sphi 0, %s495
    %s496 = sphi 0, %s493
    %s497 = sphi 0, %s496
    %s513 = sphi 0, %s497
  $region4: #{simple_mlp_adaln_forward.1} parent=0 // loop_header_branch
    %30 = sbr.rel (%p28) target = $region8
  $region5: #{simple_mlp_adaln_forward.1} parent=0 // loop_body
    %s32 = ssub.s32 %s27, 1
    %s33 = ssub.s32 %s27, 2
    %s34 = sadd.s32 %s27, 1
    %s35 = ssub.s32 %s27, %s34
    %p36 = scmp.eq.s32.totalorder %s35, 0
    %s38 = sadd.s32 %s37, 1
    %s39 = scalar_select %p36, %s37, %s38
    %p42 = pneg %p36
    %p43 = scmp.eq.s32.totalorder %s27, 1
    %p44 = por %p42, %p43
    %p45 = scmp.ne.s32.totalorder %s37, %s40
    %p46 = scmp.eq.s32.totalorder %s27, 0
    %p47 = por %p45, %p46
    %p48 = scmp.ne.s32.totalorder %s37, %s40
    %p49 = scmp.eq.s32.totalorder %s32, 1
    %p50 = por %p48, %p49
    %p51 = scmp.ne.s32.totalorder %s40, %s41
    %p52 = scmp.eq.s32.totalorder %s32, 0
    %p53 = por %p51, %p52
    %p54 = scmp.ne.s32.totalorder %s40, %s41
    %p55 = scmp.eq.s32.totalorder %s33, 1
    %p56 = por %p54, %p55
    %p58 = scmp.ne.s32.totalorder %s41, %s57
    %p59 = scmp.eq.s32.totalorder %s33, 0
    %p60 = por %p58, %p59
    %s61 = ssub.s32 %s27, %s34
    %p62 = scmp.eq.s32.totalorder %s61, 0
    %s64 = sadd.s32 %s63, 1
    %s65 = scalar_select %p62, %s63, %s64
    %p68 = pneg %p62
    %p69 = scmp.eq.s32.totalorder %s27, 1
    %p70 = por %p68, %p69
    %p71 = scmp.ne.s32.totalorder %s63, %s66
    %p72 = scmp.eq.s32.totalorder %s27, 0
    %p73 = por %p71, %p72
    %p74 = scmp.ne.s32.totalorder %s63, %s66
    %p75 = scmp.eq.s32.totalorder %s32, 1
    %p76 = por %p74, %p75
    %p77 = scmp.ne.s32.totalorder %s66, %s67
    %p78 = scmp.eq.s32.totalorder %s32, 0
    %p79 = por %p77, %p78
    %p80 = scmp.ne.s32.totalorder %s66, %s67
    %p81 = scmp.eq.s32.totalorder %s33, 1
    %p82 = por %p80, %p81
    %p84 = scmp.ne.s32.totalorder %s67, %s83
    %p85 = scmp.eq.s32.totalorder %s33, 0
    %p86 = por %p84, %p85
    %s87 = ssub.s32 %s27, %s34
    %p88 = scmp.eq.s32.totalorder %s87, 0
    %s90 = sadd.s32 %s89, 1
    %s91 = scalar_select %p88, %s89, %s90
    %p94 = pneg %p88
    %p95 = scmp.eq.s32.totalorder %s27, 1
    %p96 = por %p94, %p95
    %p97 = scmp.ne.s32.totalorder %s89, %s92
    %p98 = scmp.eq.s32.totalorder %s27, 0
    %p99 = por %p97, %p98
    %p100 = scmp.ne.s32.totalorder %s89, %s92
    %p101 = scmp.eq.s32.totalorder %s32, 1
    %p102 = por %p100, %p101
    %p103 = scmp.ne.s32.totalorder %s92, %s93
    %p104 = scmp.eq.s32.totalorder %s32, 0
    %p105 = por %p103, %p104
    %p106 = scmp.ne.s32.totalorder %s92, %s93
    %p107 = scmp.eq.s32.totalorder %s33, 1
    %p108 = por %p106, %p107
    %p110 = scmp.ne.s32.totalorder %s93, %s109
    %p111 = scmp.eq.s32.totalorder %s33, 0
    %p112 = por %p110, %p111
    %s114 = sadd.s32 %s113, 1
    %p117 = scmp.eq.s32.totalorder %s27, 1
    %p118 = scmp.ne.s32.totalorder %s113, %s115
    %p119 = scmp.eq.s32.totalorder %s27, 0
    %p120 = por %p118, %p119
    %p121 = scmp.ne.s32.totalorder %s113, %s115
    %p122 = scmp.eq.s32.totalorder %s32, 1
    %p123 = por %p121, %p122
    %p124 = scmp.ne.s32.totalorder %s115, %s116
    %p125 = scmp.eq.s32.totalorder %s32, 0
    %p126 = por %p124, %p125
    %p127 = scmp.ne.s32.totalorder %s115, %s116
    %p128 = scmp.eq.s32.totalorder %s33, 1
    %p129 = por %p127, %p128
    %p131 = scmp.ne.s32.totalorder %s116, %s130
    %p132 = scmp.eq.s32.totalorder %s33, 0
    %p133 = por %p131, %p132
    %s135 = sadd.s32 %s134, 1
    %p138 = scmp.eq.s32.totalorder %s27, 1
    %p139 = scmp.ne.s32.totalorder %s134, %s136
    %p140 = scmp.eq.s32.totalorder %s27, 0
    %p141 = por %p139, %p140
    %p142 = scmp.ne.s32.totalorder %s134, %s136
    %p143 = scmp.eq.s32.totalorder %s32, 1
    %p144 = por %p142, %p143
    %p145 = scmp.ne.s32.totalorder %s136, %s137
    %p146 = scmp.eq.s32.totalorder %s32, 0
    %p147 = por %p145, %p146
    %p148 = scmp.ne.s32.totalorder %s136, %s137
    %p149 = scmp.eq.s32.totalorder %s33, 1
    %p150 = por %p148, %p149
    %p152 = scmp.ne.s32.totalorder %s137, %s151
    %p153 = scmp.eq.s32.totalorder %s33, 0
    %p154 = por %p152, %p153
    %s156 = sadd.s32 %s155, 1
    %p159 = scmp.eq.s32.totalorder %s27, 1
    %p160 = scmp.ne.s32.totalorder %s155, %s157
    %p161 = scmp.eq.s32.totalorder %s27, 0
    %p162 = por %p160, %p161
    %p163 = scmp.ne.s32.totalorder %s155, %s157
    %p164 = scmp.eq.s32.totalorder %s32, 1
    %p165 = por %p163, %p164
    %p166 = scmp.ne.s32.totalorder %s157, %s158
    %p167 = scmp.eq.s32.totalorder %s32, 0
    %p168 = por %p166, %p167
    %p169 = scmp.ne.s32.totalorder %s157, %s158
    %p170 = scmp.eq.s32.totalorder %s33, 1
    %p171 = por %p169, %p170
    %p173 = scmp.ne.s32.totalorder %s158, %s172
    %p174 = scmp.eq.s32.totalorder %s33, 0
    %p175 = por %p173, %p174
    %s177 = sadd.s32 %s176, 1
    %p180 = scmp.eq.s32.totalorder %s27, 1
    %p181 = scmp.ne.s32.totalorder %s176, %s178
    %p182 = scmp.eq.s32.totalorder %s27, 0
    %p183 = por %p181, %p182
    %p184 = scmp.ne.s32.totalorder %s176, %s178
    %p185 = scmp.eq.s32.totalorder %s32, 1
    %p186 = por %p184, %p185
    %p187 = scmp.ne.s32.totalorder %s178, %s179
    %p188 = scmp.eq.s32.totalorder %s32, 0
    %p189 = por %p187, %p188
    %p190 = scmp.ne.s32.totalorder %s178, %s179
    %p191 = scmp.eq.s32.totalorder %s33, 1
    %p192 = por %p190, %p191
    %p194 = scmp.ne.s32.totalorder %s179, %s193
    %p195 = scmp.eq.s32.totalorder %s33, 0
    %p196 = por %p194, %p195
    %s198 = sadd.s32 %s197, 1
    %p201 = scmp.eq.s32.totalorder %s27, 1
    %p202 = scmp.ne.s32.totalorder %s197, %s199
    %p203 = scmp.eq.s32.totalorder %s27, 0
    %p204 = por %p202, %p203
    %p205 = scmp.ne.s32.totalorder %s197, %s199
    %p206 = scmp.eq.s32.totalorder %s32, 1
    %p207 = por %p205, %p206
    %p208 = scmp.ne.s32.totalorder %s199, %s200
    %p209 = scmp.eq.s32.totalorder %s32, 0
    %p210 = por %p208, %p209
    %p211 = scmp.ne.s32.totalorder %s199, %s200
    %p212 = scmp.eq.s32.totalorder %s33, 1
    %p213 = por %p211, %p212
    %p215 = scmp.ne.s32.totalorder %s200, %s214
    %p216 = scmp.eq.s32.totalorder %s33, 0
    %p217 = por %p215, %p216
    %s219 = sadd.s32 %s218, 1
    %p222 = scmp.eq.s32.totalorder %s27, 1
    %p223 = scmp.ne.s32.totalorder %s218, %s220
    %p224 = scmp.eq.s32.totalorder %s27, 0
    %p225 = por %p223, %p224
    %p226 = scmp.ne.s32.totalorder %s218, %s220
    %p227 = scmp.eq.s32.totalorder %s32, 1
    %p228 = por %p226, %p227
    %p229 = scmp.ne.s32.totalorder %s220, %s221
    %p230 = scmp.eq.s32.totalorder %s32, 0
    %p231 = por %p229, %p230
    %p232 = scmp.ne.s32.totalorder %s220, %s221
    %p233 = scmp.eq.s32.totalorder %s33, 1
    %p234 = por %p232, %p233
    %p236 = scmp.ne.s32.totalorder %s221, %s235
    %p237 = scmp.eq.s32.totalorder %s33, 0
    %p238 = por %p236, %p237
    %s240 = sadd.s32 %s239, 1
    %p243 = scmp.eq.s32.totalorder %s27, 1
    %p244 = scmp.ne.s32.totalorder %s239, %s241
    %p245 = scmp.eq.s32.totalorder %s27, 0
    %p246 = por %p244, %p245
    %p247 = scmp.ne.s32.totalorder %s239, %s241
    %p248 = scmp.eq.s32.totalorder %s32, 1
    %p249 = por %p247, %p248
    %p250 = scmp.ne.s32.totalorder %s241, %s242
    %p251 = scmp.eq.s32.totalorder %s32, 0
    %p252 = por %p250, %p251
    %p253 = scmp.ne.s32.totalorder %s241, %s242
    %p254 = scmp.eq.s32.totalorder %s33, 1
    %p255 = por %p253, %p254
    %p257 = scmp.ne.s32.totalorder %s242, %s256
    %p258 = scmp.eq.s32.totalorder %s33, 0
    %p259 = por %p257, %p258
    %s261 = sadd.s32 %s260, 1
    %p264 = scmp.eq.s32.totalorder %s27, 1
    %p265 = scmp.ne.s32.totalorder %s260, %s262
    %p266 = scmp.eq.s32.totalorder %s27, 0
    %p267 = por %p265, %p266
    %p268 = scmp.ne.s32.totalorder %s260, %s262
    %p269 = scmp.eq.s32.totalorder %s32, 1
    %p270 = por %p268, %p269
    %p271 = scmp.ne.s32.totalorder %s262, %s263
    %p272 = scmp.eq.s32.totalorder %s32, 0
    %p273 = por %p271, %p272
    %p274 = scmp.ne.s32.totalorder %s262, %s263
    %p275 = scmp.eq.s32.totalorder %s33, 1
    %p276 = por %p274, %p275
    %p278 = scmp.ne.s32.totalorder %s263, %s277
    %p279 = scmp.eq.s32.totalorder %s33, 0
    %p280 = por %p278, %p279
    %s282 = sadd.s32 %s281, 1
    %p285 = scmp.eq.s32.totalorder %s27, 1
    %p286 = scmp.ne.s32.totalorder %s281, %s283
    %p287 = scmp.eq.s32.totalorder %s27, 0
    %p288 = por %p286, %p287
    %p289 = scmp.ne.s32.totalorder %s281, %s283
    %p290 = scmp.eq.s32.totalorder %s32, 1
    %p291 = por %p289, %p290
    %p292 = scmp.ne.s32.totalorder %s283, %s284
    %p293 = scmp.eq.s32.totalorder %s32, 0
    %p294 = por %p292, %p293
    %p295 = scmp.ne.s32.totalorder %s283, %s284
    %p296 = scmp.eq.s32.totalorder %s33, 1
    %p297 = por %p295, %p296
    %p299 = scmp.ne.s32.totalorder %s284, %s298
    %p300 = scmp.eq.s32.totalorder %s33, 0
    %p301 = por %p299, %p300
    %s303 = sadd.s32 %s302, 1
    %p306 = scmp.eq.s32.totalorder %s27, 1
    %p307 = scmp.ne.s32.totalorder %s302, %s304
    %p308 = scmp.eq.s32.totalorder %s27, 0
    %p309 = por %p307, %p308
    %p310 = scmp.ne.s32.totalorder %s302, %s304
    %p311 = scmp.eq.s32.totalorder %s32, 1
    %p312 = por %p310, %p311
    %p313 = scmp.ne.s32.totalorder %s304, %s305
    %p314 = scmp.eq.s32.totalorder %s32, 0
    %p315 = por %p313, %p314
    %p316 = scmp.ne.s32.totalorder %s304, %s305
    %p317 = scmp.eq.s32.totalorder %s33, 1
    %p318 = por %p316, %p317
    %p320 = scmp.ne.s32.totalorder %s305, %s319
    %p321 = scmp.eq.s32.totalorder %s33, 0
    %p322 = por %p320, %p321
    %s324 = sadd.s32 %s323, 1
    %p327 = scmp.eq.s32.totalorder %s27, 1
    %p328 = scmp.ne.s32.totalorder %s323, %s325
    %p329 = scmp.eq.s32.totalorder %s27, 0
    %p330 = por %p328, %p329
    %p331 = scmp.ne.s32.totalorder %s323, %s325
    %p332 = scmp.eq.s32.totalorder %s32, 1
    %p333 = por %p331, %p332
    %p334 = scmp.ne.s32.totalorder %s325, %s326
    %p335 = scmp.eq.s32.totalorder %s32, 0
    %p336 = por %p334, %p335
    %p337 = scmp.ne.s32.totalorder %s325, %s326
    %p338 = scmp.eq.s32.totalorder %s33, 1
    %p339 = por %p337, %p338
    %p341 = scmp.ne.s32.totalorder %s326, %s340
    %p342 = scmp.eq.s32.totalorder %s33, 0
    %p343 = por %p341, %p342
    %s345 = sadd.s32 %s344, 1
    %p348 = scmp.eq.s32.totalorder %s27, 1
    %p349 = scmp.ne.s32.totalorder %s344, %s346
    %p350 = scmp.eq.s32.totalorder %s27, 0
    %p351 = por %p349, %p350
    %p352 = scmp.ne.s32.totalorder %s344, %s346
    %p353 = scmp.eq.s32.totalorder %s32, 1
    %p354 = por %p352, %p353
    %p355 = scmp.ne.s32.totalorder %s346, %s347
    %p356 = scmp.eq.s32.totalorder %s32, 0
    %p357 = por %p355, %p356
    %p358 = scmp.ne.s32.totalorder %s346, %s347
    %p359 = scmp.eq.s32.totalorder %s33, 1
    %p360 = por %p358, %p359
    %p362 = scmp.ne.s32.totalorder %s347, %s361
    %p363 = scmp.eq.s32.totalorder %s33, 0
    %p364 = por %p362, %p363
    %s366 = sadd.s32 %s365, 1
    %p369 = scmp.eq.s32.totalorder %s27, 1
    %p370 = scmp.ne.s32.totalorder %s365, %s367
    %p371 = scmp.eq.s32.totalorder %s27, 0
    %p372 = por %p370, %p371
    %p373 = scmp.ne.s32.totalorder %s365, %s367
    %p374 = scmp.eq.s32.totalorder %s32, 1
    %p375 = por %p373, %p374
    %p376 = scmp.ne.s32.totalorder %s367, %s368
    %p377 = scmp.eq.s32.totalorder %s32, 0
    %p378 = por %p376, %p377
    %p379 = scmp.ne.s32.totalorder %s367, %s368
    %p380 = scmp.eq.s32.totalorder %s33, 1
    %p381 = por %p379, %p380
    %p383 = scmp.ne.s32.totalorder %s368, %s382
    %p384 = scmp.eq.s32.totalorder %s33, 0
    %p385 = por %p383, %p384
    %s387 = sadd.s32 %s386, 1
    %p390 = scmp.eq.s32.totalorder %s27, 1
    %p391 = scmp.ne.s32.totalorder %s386, %s388
    %p392 = scmp.eq.s32.totalorder %s27, 0
    %p393 = por %p391, %p392
    %p394 = scmp.ne.s32.totalorder %s386, %s388
    %p395 = scmp.eq.s32.totalorder %s32, 1
    %p396 = por %p394, %p395
    %p397 = scmp.ne.s32.totalorder %s388, %s389
    %p398 = scmp.eq.s32.totalorder %s32, 0
    %p399 = por %p397, %p398
    %p400 = scmp.ne.s32.totalorder %s388, %s389
    %p401 = scmp.eq.s32.totalorder %s33, 1
    %p402 = por %p400, %p401
    %p404 = scmp.ne.s32.totalorder %s389, %s403
    %p405 = scmp.eq.s32.totalorder %s33, 0
    %p406 = por %p404, %p405
    %s408 = sadd.s32 %s407, 1
    %p411 = scmp.eq.s32.totalorder %s27, 1
    %p412 = scmp.ne.s32.totalorder %s407, %s409
    %p413 = scmp.eq.s32.totalorder %s27, 0
    %p414 = por %p412, %p413
    %p415 = scmp.ne.s32.totalorder %s407, %s409
    %p416 = scmp.eq.s32.totalorder %s32, 1
    %p417 = por %p415, %p416
    %p418 = scmp.ne.s32.totalorder %s409, %s410
    %p419 = scmp.eq.s32.totalorder %s32, 0
    %p420 = por %p418, %p419
    %p421 = scmp.ne.s32.totalorder %s409, %s410
    %p422 = scmp.eq.s32.totalorder %s33, 1
    %p423 = por %p421, %p422
    %p425 = scmp.ne.s32.totalorder %s410, %s424
    %p426 = scmp.eq.s32.totalorder %s33, 0
    %p427 = por %p425, %p426
    %s429 = sadd.s32 %s428, 1
    %p432 = scmp.eq.s32.totalorder %s27, 1
    %p433 = scmp.ne.s32.totalorder %s428, %s430
    %p434 = scmp.eq.s32.totalorder %s27, 0
    %p435 = por %p433, %p434
    %p436 = scmp.ne.s32.totalorder %s428, %s430
    %p437 = scmp.eq.s32.totalorder %s32, 1
    %p438 = por %p436, %p437
    %p439 = scmp.ne.s32.totalorder %s430, %s431
    %p440 = scmp.eq.s32.totalorder %s32, 0
    %p441 = por %p439, %p440
    %p442 = scmp.ne.s32.totalorder %s430, %s431
    %p443 = scmp.eq.s32.totalorder %s33, 1
    %p444 = por %p442, %p443
    %p446 = scmp.ne.s32.totalorder %s431, %s445
    %p447 = scmp.eq.s32.totalorder %s33, 0
    %p448 = por %p446, %p447
    %s450 = sadd.s32 %s449, 1
    %p453 = scmp.eq.s32.totalorder %s27, 1
    %p454 = scmp.ne.s32.totalorder %s449, %s451
    %p455 = scmp.eq.s32.totalorder %s27, 0
    %p456 = por %p454, %p455
    %p457 = scmp.ne.s32.totalorder %s449, %s451
    %p458 = scmp.eq.s32.totalorder %s32, 1
    %p459 = por %p457, %p458
    %p460 = scmp.ne.s32.totalorder %s451, %s452
    %p461 = scmp.eq.s32.totalorder %s32, 0
    %p462 = por %p460, %p461
    %p463 = scmp.ne.s32.totalorder %s451, %s452
    %p464 = scmp.eq.s32.totalorder %s33, 1
    %p465 = por %p463, %p464
    %p467 = scmp.ne.s32.totalorder %s452, %s466
    %p468 = scmp.eq.s32.totalorder %s33, 0
    %p469 = por %p467, %p468
    %s471 = sadd.s32 %s470, 1
    %p474 = scmp.eq.s32.totalorder %s27, 1
    %p475 = scmp.ne.s32.totalorder %s470, %s472
    %p476 = scmp.eq.s32.totalorder %s27, 0
    %p477 = por %p475, %p476
    %p478 = scmp.ne.s32.totalorder %s470, %s472
    %p479 = scmp.eq.s32.totalorder %s32, 1
    %p480 = por %p478, %p479
    %p481 = scmp.ne.s32.totalorder %s472, %s473
    %p482 = scmp.eq.s32.totalorder %s32, 0
    %p483 = por %p481, %p482
    %p484 = scmp.ne.s32.totalorder %s472, %s473
    %p485 = scmp.eq.s32.totalorder %s33, 1
    %p486 = por %p484, %p485
    %p488 = scmp.ne.s32.totalorder %s473, %s487
    %p489 = scmp.eq.s32.totalorder %s33, 0
    %p490 = por %p488, %p489
    %s491 = ssub.s32 %s27, %s34
    %p492 = scmp.eq.s32.totalorder %s491, 0
    %s494 = sadd.s32 %s493, 1
    %s495 = scalar_select %p492, %s493, %s494
    %p498 = pneg %p492
    %p499 = scmp.eq.s32.totalorder %s27, 1
    %p500 = por %p498, %p499
    %p501 = scmp.ne.s32.totalorder %s493, %s496
    %p502 = scmp.eq.s32.totalorder %s27, 0
    %p503 = por %p501, %p502
    %p504 = scmp.ne.s32.totalorder %s493, %s496
    %p505 = scmp.eq.s32.totalorder %s32, 1
    %p506 = por %p504, %p505
    %p507 = scmp.ne.s32.totalorder %s496, %s497
    %p508 = scmp.eq.s32.totalorder %s32, 0
    %p509 = por %p507, %p508
    %p510 = scmp.ne.s32.totalorder %s496, %s497
    %p511 = scmp.eq.s32.totalorder %s33, 1
    %p512 = por %p510, %p511
    %p514 = scmp.ne.s32.totalorder %s497, %s513
    %p515 = scmp.eq.s32.totalorder %s33, 0
    %p516 = por %p514, %p515
    %p517 = scmp.le.s32.totalorder 1, %s27
    %p518 = scmp.lt.s32.totalorder %s27, 3
    %p519 = pnand %p517, %p518
    %p520 = pneg %p519
    // Predicated region
    $region9: #{simple_mlp_adaln_forward.1} parent=5 // pred_check
      _
    $region10: #{simple_mlp_adaln_forward.1} parent=5 // pred_check_branch
      %522 = sbr.rel (%p519) target = $region12
    $region11: #{simple_mlp_adaln_forward.1} parent=5 // pred_region
      %s523 = ssub.s32 %s27, 1
      // Predicated region
      $region13: #{simple_mlp_adaln_forward.1} parent=11 // pred_check
        %p524 = pneg %p126
      $region14: #{simple_mlp_adaln_forward.1} parent=11 // pred_check_branch
        %526 = sbr.rel (%p524) target = $region16
      $region15: #{simple_mlp_adaln_forward.1} parent=11 // pred_region
        _
      $region16: #{simple_mlp_adaln_forward.1} parent=11 // pred_fallthru
        _
      // Predicated region
      $region17: #{simple_mlp_adaln_forward.1} parent=11 // pred_check
        %p527 = pneg %p147
      $region18: #{simple_mlp_adaln_forward.1} parent=11 // pred_check_branch
        %529 = sbr.rel (%p527) target = $region20
      $region19: #{simple_mlp_adaln_forward.1} parent=11 // pred_region
        _
      $region20: #{simple_mlp_adaln_forward.1} parent=11 // pred_fallthru
        _
      // Predicated region
      $region21: #{simple_mlp_adaln_forward.1} parent=11 // pred_check
        %p530 = pneg %p168
      $region22: #{simple_mlp_adaln_forward.1} parent=11 // pred_check_branch
        %532 = sbr.rel (%p530) target = $region24
      $region23: #{simple_mlp_adaln_forward.1} parent=11 // pred_region
        _
      $region24: #{simple_mlp_adaln_forward.1} parent=11 // pred_fallthru
        _
      // Predicated region
      $region25: #{simple_mlp_adaln_forward.1} parent=11 // pred_check
        %p533 = pneg %p189
      $region26: #{simple_mlp_adaln_forward.1} parent=11 // pred_check_branch
        %535 = sbr.rel (%p533) target = $region28
      $region27: #{simple_mlp_adaln_forward.1} parent=11 // pred_region
        _
      $region28: #{simple_mlp_adaln_forward.1} parent=11 // pred_fallthru
        _
      // Predicated region
      $region29: #{simple_mlp_adaln_forward.1} parent=11 // pred_check
        %p536 = pneg %p210
      $region30: #{simple_mlp_adaln_forward.1} parent=11 // pred_check_branch
        %538 = sbr.rel (%p536) target = $region32
      $region31: #{simple_mlp_adaln_forward.1} parent=11 // pred_region
        _
      $region32: #{simple_mlp_adaln_forward.1} parent=11 // pred_fallthru
        _
      // Predicated region
      $region33: #{simple_mlp_adaln_forward.1} parent=11 // pred_check
        %p539 = pneg %p231
      $region34: #{simple_mlp_adaln_forward.1} parent=11 // pred_check_branch
        %541 = sbr.rel (%p539) target = $region36
      $region35: #{simple_mlp_adaln_forward.1} parent=11 // pred_region
        _
      $region36: #{simple_mlp_adaln_forward.1} parent=11 // pred_fallthru
        _
      // Predicated region
      $region37: #{simple_mlp_adaln_forward.1} parent=11 // pred_check
        %p542 = pneg %p252
      $region38: #{simple_mlp_adaln_forward.1} parent=11 // pred_check_branch
        %544 = sbr.rel (%p542) target = $region40
      $region39: #{simple_mlp_adaln_forward.1} parent=11 // pred_region
        _
      $region40: #{simple_mlp_adaln_forward.1} parent=11 // pred_fallthru
        _
      // Predicated region
      $region41: #{simple_mlp_adaln_forward.1} parent=11 // pred_check
        %p545 = pneg %p273
      $region42: #{simple_mlp_adaln_forward.1} parent=11 // pred_check_branch
        %547 = sbr.rel (%p545) target = $region44
      $region43: #{simple_mlp_adaln_forward.1} parent=11 // pred_region
        _
      $region44: #{simple_mlp_adaln_forward.1} parent=11 // pred_fallthru
        _
      // Predicated region
      $region45: #{simple_mlp_adaln_forward.1} parent=11 // pred_check
        %p548 = pneg %p294
      $region46: #{simple_mlp_adaln_forward.1} parent=11 // pred_check_branch
        %550 = sbr.rel (%p548) target = $region48
      $region47: #{simple_mlp_adaln_forward.1} parent=11 // pred_region
        _
      $region48: #{simple_mlp_adaln_forward.1} parent=11 // pred_fallthru
        _
      // Predicated region
      $region49: #{simple_mlp_adaln_forward.1} parent=11 // pred_check
        %p551 = pneg %p315
      $region50: #{simple_mlp_adaln_forward.1} parent=11 // pred_check_branch
        %553 = sbr.rel (%p551) target = $region52
      $region51: #{simple_mlp_adaln_forward.1} parent=11 // pred_region
        _
      $region52: #{simple_mlp_adaln_forward.1} parent=11 // pred_fallthru
        _
      // Predicated region
      $region53: #{simple_mlp_adaln_forward.1} parent=11 // pred_check
        %p554 = pneg %p336
      $region54: #{simple_mlp_adaln_forward.1} parent=11 // pred_check_branch
        %556 = sbr.rel (%p554) target = $region56
      $region55: #{simple_mlp_adaln_forward.1} parent=11 // pred_region
        _
      $region56: #{simple_mlp_adaln_forward.1} parent=11 // pred_fallthru
        _
      // Predicated region
      $region57: #{simple_mlp_adaln_forward.1} parent=11 // pred_check
        %p557 = pneg %p357
      $region58: #{simple_mlp_adaln_forward.1} parent=11 // pred_check_branch
        %559 = sbr.rel (%p557) target = $region60
      $region59: #{simple_mlp_adaln_forward.1} parent=11 // pred_region
        _
      $region60: #{simple_mlp_adaln_forward.1} parent=11 // pred_fallthru
        _
      // Predicated region
      $region61: #{simple_mlp_adaln_forward.1} parent=11 // pred_check
        %p560 = pneg %p378
      $region62: #{simple_mlp_adaln_forward.1} parent=11 // pred_check_branch
        %562 = sbr.rel (%p560) target = $region64
      $region63: #{simple_mlp_adaln_forward.1} parent=11 // pred_region
        _
      $region64: #{simple_mlp_adaln_forward.1} parent=11 // pred_fallthru
        _
      // Predicated region
      $region65: #{simple_mlp_adaln_forward.1} parent=11 // pred_check
        %p563 = pneg %p399
      $region66: #{simple_mlp_adaln_forward.1} parent=11 // pred_check_branch
        %565 = sbr.rel (%p563) target = $region68
      $region67: #{simple_mlp_adaln_forward.1} parent=11 // pred_region
        _
      $region68: #{simple_mlp_adaln_forward.1} parent=11 // pred_fallthru
        _
      // Predicated region
      $region69: #{simple_mlp_adaln_forward.1} parent=11 // pred_check
        %p566 = pneg %p420
      $region70: #{simple_mlp_adaln_forward.1} parent=11 // pred_check_branch
        %568 = sbr.rel (%p566) target = $region72
      $region71: #{simple_mlp_adaln_forward.1} parent=11 // pred_region
        _
      $region72: #{simple_mlp_adaln_forward.1} parent=11 // pred_fallthru
        _
      // Predicated region
      $region73: #{simple_mlp_adaln_forward.1} parent=11 // pred_check
        %p569 = pneg %p441
      $region74: #{simple_mlp_adaln_forward.1} parent=11 // pred_check_branch
        %571 = sbr.rel (%p569) target = $region76
      $region75: #{simple_mlp_adaln_forward.1} parent=11 // pred_region
        _
      $region76: #{simple_mlp_adaln_forward.1} parent=11 // pred_fallthru
        _
      // Predicated region
      $region77: #{simple_mlp_adaln_forward.1} parent=11 // pred_check
        %p572 = pneg %p462
      $region78: #{simple_mlp_adaln_forward.1} parent=11 // pred_check_branch
        %574 = sbr.rel (%p572) target = $region80
      $region79: #{simple_mlp_adaln_forward.1} parent=11 // pred_region
        _
      $region80: #{simple_mlp_adaln_forward.1} parent=11 // pred_fallthru
        _
      // Predicated region
      $region81: #{simple_mlp_adaln_forward.1} parent=11 // pred_check
        %p575 = pneg %p483
      $region82: #{simple_mlp_adaln_forward.1} parent=11 // pred_check_branch
        %577 = sbr.rel (%p575) target = $region84
      $region83: #{simple_mlp_adaln_forward.1} parent=11 // pred_region
        _
      $region84: #{simple_mlp_adaln_forward.1} parent=11 // pred_fallthru
        _
    $region12: #{simple_mlp_adaln_forward.1} parent=5 // pred_fallthru
      _
    %p578 = scmp.lt.s32.totalorder %s27, 2
    // Predicated region
    $region85: #{simple_mlp_adaln_forward.1} parent=5 // pred_check
      %p579 = pneg %p578
    $region86: #{simple_mlp_adaln_forward.1} parent=5 // pred_check_branch
      %581 = sbr.rel (%p579) target = $region88
    $region87: #{simple_mlp_adaln_forward.1} parent=5 // pred_region
      // Predicated region
      $region89: #{simple_mlp_adaln_forward.1} parent=87 // pred_check
        %p582 = pneg %p47
      $region90: #{simple_mlp_adaln_forward.1} parent=87 // pred_check_branch
        %584 = sbr.rel (%p582) target = $region92
      $region91: #{simple_mlp_adaln_forward.1} parent=87 // pred_region
        %s585 = smul.u32 8, %s27
        %p586 = scmp.lt.s32.totalorder %s585, 15
        %s587 = scalar_select %p586, %s585, 15
        %s588 = smul.addr %s587, 8
        %s589 = scalar_lea.vmem %s0, %s588
        %s590 = smul.u32 8, %s27
      $region92: #{simple_mlp_adaln_forward.1} parent=87 // pred_fallthru
        _
      // Predicated region
      $region93: #{simple_mlp_adaln_forward.1} parent=87 // pred_check
        %p591 = pneg %p73
      $region94: #{simple_mlp_adaln_forward.1} parent=87 // pred_check_branch
        %593 = sbr.rel (%p591) target = $region96
      $region95: #{simple_mlp_adaln_forward.1} parent=87 // pred_region
        %s594 = smul.u32 8, %s27
        %p595 = scmp.lt.s32.totalorder %s594, 15
        %s596 = scalar_select %p595, %s594, 15
        %s597 = smul.addr %s596, 2
        %s598 = smul.addr %s597, 8
        %s599 = scalar_lea.vmem %s1, %s598
        %s600 = smul.u32 8, %s27
      $region96: #{simple_mlp_adaln_forward.1} parent=87 // pred_fallthru
        _
      // Predicated region
      $region97: #{simple_mlp_adaln_forward.1} parent=87 // pred_check
        %p601 = pneg %p99
      $region98: #{simple_mlp_adaln_forward.1} parent=87 // pred_check_branch
        %603 = sbr.rel (%p601) target = $region100
      $region99: #{simple_mlp_adaln_forward.1} parent=87 // pred_region
        %s604 = smul.u32 8, %s27
        %p605 = scmp.lt.s32.totalorder %s604, 15
        %s606 = scalar_select %p605, %s604, 15
        %s607 = smul.addr %s606, 8
        %s608 = scalar_lea.vmem %s2, %s607
        %s609 = smul.u32 8, %s27
      $region100: #{simple_mlp_adaln_forward.1} parent=87 // pred_fallthru
        _
    $region88: #{simple_mlp_adaln_forward.1} parent=5 // pred_fallthru
      _
    %p610 = scmp.le.s32.totalorder 1, %s27
    %p611 = scmp.lt.s32.totalorder %s27, 3
    %p612 = pnand %p610, %p611
    %p613 = pneg %p612
    // Predicated region
    $region101: #{simple_mlp_adaln_forward.1} parent=5 // pred_check
      _
    $region102: #{simple_mlp_adaln_forward.1} parent=5 // pred_check_branch
      %615 = sbr.rel (%p612) target = $region104
    $region103: #{simple_mlp_adaln_forward.1} parent=5 // pred_region
      %s616 = ssub.s32 %s27, 1
      %s617 = smul.u32 8, %s32
      %p618 = scmp.lt.s32.totalorder %s617, 15
      %s619 = scalar_select %p618, %s617, 15
      %s620 = smul.addr %s619, 8
      %s621 = scalar_lea.vmem %s0, %s620
      %p622 = pneg %p53
      %p623 = pneg %p50
      %s624 = smul.u32 8, %s32
      %p625 = scmp.lt.s32.totalorder %s624, 15
      %s626 = scalar_select %p625, %s624, 15
      %s627 = smul.addr %s626, 2
      %s628 = smul.addr %s627, 8
      %s629 = scalar_lea.vmem %s1, %s628
      %p630 = pneg %p79
      %p631 = pneg %p76
      %s632 = smul.u32 8, %s32
      %p633 = scmp.lt.s32.totalorder %s632, 15
      %s634 = scalar_select %p633, %s632, 15
      %s635 = smul.addr %s634, 8
      %s636 = scalar_lea.vmem %s2, %s635
      %p637 = pneg %p105
      %p638 = pneg %p102
      %p639 = pneg %p126
      %p640 = pneg %p123
      %p641 = pneg %p147
      %p642 = pneg %p144
      %p643 = pneg %p168
      %p644 = pneg %p165
      %p645 = pneg %p189
      %p646 = pneg %p186
      %p647 = pneg %p210
      %p648 = pneg %p207
      %p649 = pneg %p231
      %p650 = pneg %p228
      %p651 = pneg %p252
      %p652 = pneg %p249
      %p653 = pneg %p273
      %p654 = pneg %p270
      %p655 = pneg %p294
      %p656 = pneg %p291
      %p657 = pneg %p315
      %p658 = pneg %p312
      %p659 = pneg %p336
      %p660 = pneg %p333
      %p661 = pneg %p357
      %p662 = pneg %p354
      %p663 = pneg %p378
      %p664 = pneg %p375
      %p665 = pneg %p399
      %p666 = pneg %p396
      %p667 = pneg %p420
      %p668 = pneg %p417
      %p669 = pneg %p441
      %p670 = pneg %p438
      %p671 = pneg %p462
      %p672 = pneg %p459
      %p673 = pneg %p483
      %p674 = pneg %p480
      %p675 = pneg %p509
      %p676 = pneg %p506
      %s677 = smul.u32 8, %s32
      %p678 = scmp.lt.s32.totalorder %s677, 15
      %s679 = scalar_select %p678, %s677, 15
      %s680 = smul.addr %s679, 8
      %s681 = scalar_lea.vmem %s21, %s680
      %s682 = smul.u32 8, %s32
      %p683 = scmp.lt.s32.totalorder %s682, 15
      %s684 = scalar_select %p683, %s682, 15
      %s685 = smul.addr %s684, 8
      %s686 = scalar_lea.vmem %s0, %s685
      %s687 = smul.u32 8, %s32
      %s688 = smul.u32 8, %s32
      %p689 = scmp.lt.s32.totalorder %s688, 15
      %s690 = scalar_select %p689, %s688, 15
      %s691 = smul.addr %s690, 2
      %s692 = smul.addr %s691, 8
      %s693 = scalar_lea.vmem %s1, %s692
      %s694 = smul.u32 8, %s32
      %s695 = smul.u32 8, %s32
      %p696 = scmp.lt.s32.totalorder %s695, 15
      %s697 = scalar_select %p696, %s695, 15
      %s698 = smul.addr %s697, 8
      %s699 = scalar_lea.vmem %s2, %s698
      %s700 = smul.u32 8, %s32
      %s701 = smul.u32 8, %s32
      %p702 = scmp.lt.s32.totalorder %s701, 15
      %s703 = scalar_select %p702, %s701, 15
      %s704 = smul.addr %s703, 8
      %s705 = scalar_lea.vmem %s21, %s704
      %s706 = smul.u32 8, %s32
      %v708 = vld [vmem:[%s686] sm:$0xff]
      %v709 = vld [vmem:[%s686 + $0x8] sm:$0xff]
      %v710 = vld [vmem:[%s686 + $0x10] sm:$0xff]
      %v711 = vld [vmem:[%s686 + $0x18] sm:$0xff]
      %v712 = vld [vmem:[%s686 + $0x20] sm:$0xff]
      %v713 = vld [vmem:[%s686 + $0x28] sm:$0xff]
      %v714 = vld [vmem:[%s686 + $0x30] sm:$0xff]
      %v715 = vld [vmem:[%s686 + $0x38] sm:$0xff]
      %v716 = vld [vmem:[%s3] sm:$0xf]
      %v717 = vld [vmem:[%s3 + $0x4] sm:$0xf]
      %v718 = vpack.c.bf16 %v709, %v708
      %v719 = vpack.c.bf16 %v711, %v710
      %v720 = vpack.c.bf16 %v713, %v712
      %v721 = vpack.c.bf16 %v715, %v714
      %v722 = vld [vmem:[%s4] sm:$0x1]
      %v724 = vlaneseq
      %v725 = vshrl.u32 %v724, 7
      %v726 = vsub.s32 0, %v725
      %v727 = vrot.slane %v722, %v726
      %v731 = vunpack.c.l.b16 %v716
      %v732 = vunpack.c.l.b16 %v717
      %v733 = vpack.c.b16 %v732, %v731
      %vm735 = vcmask 130048
      %v737 = vsel %vm735, %v718, 0
      %v740 = vsel %vm735, %v719, 0
      %v743 = vsel %vm735, %v720, 0
      %v746 = vsel %vm735, %v721, 0
      %748 = vmatprep.subr.bf16.mxu0 0
      %749 = vmatpush1.bf16.msra.mxu0 0
      %750 = vmatprep.subr.bf16.mxu0 0
      %751 = vmatpush1.bf16.msra.mxu0 0
      %752 = vmatprep.subr.bf16.mxu0 0
      %753 = vmatpush1.bf16.msra.mxu0 0
      %754 = vmatprep.subr.bf16.mxu0 0
      %755 = vmatpush1.bf16.msra.mxu0 0
      %756 = vmatprep.subr.bf16.mxu0 0
      %757 = vmatpush1.bf16.msra.mxu0 0
      %758 = vmatprep.subr.bf16.mxu0 0
      %759 = vmatpush1.bf16.msra.mxu0 0
      %760 = vmatprep.subr.bf16.mxu0 0
      %761 = vmatpush1.bf16.msra.mxu0 0
      %762 = vmatprep.subr.bf16.mxu0 0
      %763 = vmatpush1.bf16.msra.mxu0 %v733
      %764 = vmatprep.subr.bf16.mxu0 0
      %765 = vmatpush2.bf16.msra.mxu0 0
      %766 = vmatprep.subr.bf16.mxu0 0
      %767 = vmatpush2.bf16.msra.mxu0 0
      %768 = vmatprep.subr.bf16.mxu0 0
      %769 = vmatpush2.bf16.msra.mxu0 0
      %770 = vmatprep.subr.bf16.mxu0 0
      %771 = vmatpush2.bf16.msra.mxu0 0
      %772 = vmatprep.subr.bf16.mxu0 0
      %773 = vmatpush2.bf16.msra.mxu0 0
      %774 = vmatprep.subr.bf16.mxu0 0
      %775 = vmatpush2.bf16.msra.mxu0 0
      %776 = vmatprep.subr.bf16.mxu0 0
      %777 = vmatpush2.bf16.msra.mxu0 0
      %778 = vmatprep.subr.bf16.mxu0 0
      %779 = vmatpush2.bf16.msra.mxu0 0
      %780 = vmatprep.mubr.bf16.mxu0 0
      %781 = vmatmul.mubr.bf16.gmra.mxu0 %v737
      %v782 = vpop.f32.mrf.mxu0
      %v783 = vadd.f32 %v727, %v782
      %v784 = vpop.f32.mrf.mxu0
      %v785 = vpop.f32.mrf.mxu0
      %v786 = vadd.f32 %v727, %v785
      %v787 = vpop.f32.mrf.mxu0
      %788 = vmatprep.mubr.bf16.mxu0 0
      %789 = vmatmul.mubr.bf16.gmra.mxu0 %v740
      %v790 = vpop.f32.mrf.mxu0
      %v791 = vadd.f32 %v727, %v790
      %v792 = vpop.f32.mrf.mxu0
      %v793 = vpop.f32.mrf.mxu0
      %v794 = vadd.f32 %v727, %v793
      %v795 = vpop.f32.mrf.mxu0
      %796 = vmatprep.mubr.bf16.mxu0 0
      %797 = vmatmul.mubr.bf16.gmra.mxu0 %v743
      %v798 = vpop.f32.mrf.mxu0
      %v799 = vadd.f32 %v727, %v798
      %v800 = vpop.f32.mrf.mxu0
      %v801 = vpop.f32.mrf.mxu0
      %v802 = vadd.f32 %v727, %v801
      %v803 = vpop.f32.mrf.mxu0
      %804 = vmatprep.mubr.bf16.mxu0 0
      %805 = vmatmul.mubr.bf16.gmra.mxu0 %v746
      %v806 = vpop.f32.mrf.mxu0
      %v807 = vadd.f32 %v727, %v806
      %v808 = vpop.f32.mrf.mxu0
      %v809 = vpop.f32.mrf.mxu0
      %v810 = vadd.f32 %v727, %v809
      %v811 = vpop.f32.mrf.mxu0
      %812 = vdwg.mxu0
      %v813 = vld [vmem:[%s693] sm:$0xff]
      %v814 = vld [vmem:[%s693 + $0x8] sm:$0xff]
      %v815 = vld [vmem:[%s693 + $0x10] sm:$0xff]
      %v816 = vld [vmem:[%s693 + $0x18] sm:$0xff]
      %v817 = vld [vmem:[%s693 + $0x20] sm:$0xff]
      %v818 = vld [vmem:[%s693 + $0x28] sm:$0xff]
      %v819 = vld [vmem:[%s693 + $0x30] sm:$0xff]
      %v820 = vld [vmem:[%s693 + $0x38] sm:$0xff]
      %v821 = vld [vmem:[%s693 + $0x40] sm:$0xff]
      %v822 = vld [vmem:[%s693 + $0x48] sm:$0xff]
      %v823 = vld [vmem:[%s693 + $0x50] sm:$0xff]
      %v824 = vld [vmem:[%s693 + $0x58] sm:$0xff]
      %v825 = vld [vmem:[%s693 + $0x60] sm:$0xff]
      %v826 = vld [vmem:[%s693 + $0x68] sm:$0xff]
      %v827 = vld [vmem:[%s693 + $0x70] sm:$0xff]
      %v828 = vld [vmem:[%s693 + $0x78] sm:$0xff]
      %v829 = vld [vmem:[%s5] sm:$0xf]
      %v830 = vld [vmem:[%s5 + $0x4] sm:$0xf]
      %v831 = vld [vmem:[%s5 + $0x8] sm:$0xf]
      %v832 = vld [vmem:[%s5 + $0xc] sm:$0xf]
      %v833 = vld [vmem:[%s5 + $0x10] sm:$0xf]
      %v834 = vld [vmem:[%s5 + $0x14] sm:$0xf]
      %v835 = vld [vmem:[%s5 + $0x18] sm:$0xf]
      %v836 = vld [vmem:[%s5 + $0x1c] sm:$0xf]
      %v837 = vld [vmem:[%s5 + $0x20] sm:$0xf]
      %v838 = vld [vmem:[%s5 + $0x24] sm:$0xf]
      %v839 = vld [vmem:[%s5 + $0x28] sm:$0xf]
      %v840 = vld [vmem:[%s5 + $0x2c] sm:$0xf]
      %v841 = vld [vmem:[%s5 + $0x30] sm:$0xf]
      %v842 = vld [vmem:[%s5 + $0x34] sm:$0xf]
      %v843 = vld [vmem:[%s5 + $0x38] sm:$0xf]
      %v844 = vld [vmem:[%s5 + $0x3c] sm:$0xf]
      %v845 = vld [vmem:[%s5 + $0x40] sm:$0xf]
      %v846 = vld [vmem:[%s5 + $0x44] sm:$0xf]
      %v847 = vld [vmem:[%s5 + $0x48] sm:$0xf]
      %v848 = vld [vmem:[%s5 + $0x4c] sm:$0xf]
      %v849 = vld [vmem:[%s5 + $0x50] sm:$0xf]
      %v850 = vld [vmem:[%s5 + $0x54] sm:$0xf]
      %v851 = vld [vmem:[%s5 + $0x58] sm:$0xf]
      %v852 = vld [vmem:[%s5 + $0x5c] sm:$0xf]
      %v853 = vld [vmem:[%s5 + $0x60] sm:$0xf]
      %v854 = vld [vmem:[%s5 + $0x64] sm:$0xf]
      %v855 = vld [vmem:[%s5 + $0x68] sm:$0xf]
      %v856 = vld [vmem:[%s5 + $0x6c] sm:$0xf]
      %v857 = vld [vmem:[%s5 + $0x70] sm:$0xf]
      %v858 = vld [vmem:[%s5 + $0x74] sm:$0xf]
      %v859 = vld [vmem:[%s5 + $0x78] sm:$0xf]
      %v860 = vld [vmem:[%s5 + $0x7c] sm:$0xf]
      %v861 = vpack.c.bf16 %v815, %v813
      %v862 = vpack.c.bf16 %v816, %v814
      %v863 = vpack.c.bf16 %v819, %v817
      %v864 = vpack.c.bf16 %v820, %v818
      %v865 = vpack.c.bf16 %v823, %v821
      %v866 = vpack.c.bf16 %v824, %v822
      %v867 = vpack.c.bf16 %v827, %v825
      %v868 = vpack.c.bf16 %v828, %v826
      %v869 = vld [vmem:[%s6] sm:$0x1]
      %v871 = vlaneseq
      %v872 = vshrl.u32 %v871, 7
      %v873 = vsub.s32 0, %v872
      %v874 = vrot.slane %v869, %v873
      %v908 = vunpack.c.l.b16 %v829
      %v909 = vunpack.c.l.b16 %v830
      %v910 = vunpack.c.l.b16 %v831
      %v911 = vunpack.c.l.b16 %v832
      %v912 = vunpack.c.l.b16 %v833
      %v913 = vunpack.c.l.b16 %v834
      %v914 = vunpack.c.l.b16 %v835
      %v915 = vunpack.c.l.b16 %v836
      %v916 = vunpack.c.l.b16 %v837
      %v917 = vunpack.c.l.b16 %v838
      %v918 = vunpack.c.l.b16 %v839
      %v919 = vunpack.c.l.b16 %v840
      %v920 = vunpack.c.l.b16 %v841
      %v921 = vunpack.c.l.b16 %v842
      %v922 = vunpack.c.l.b16 %v843
      %v923 = vunpack.c.l.b16 %v844
      %v924 = vunpack.c.l.b16 %v845
      %v925 = vunpack.c.l.b16 %v846
      %v926 = vunpack.c.l.b16 %v847
      %v927 = vunpack.c.l.b16 %v848
      %v928 = vunpack.c.l.b16 %v849
      %v929 = vunpack.c.l.b16 %v850
      %v930 = vunpack.c.l.b16 %v851
      %v931 = vunpack.c.l.b16 %v852
      %v932 = vunpack.c.l.b16 %v853
      %v933 = vunpack.c.l.b16 %v854
      %v934 = vunpack.c.l.b16 %v855
      %v935 = vunpack.c.l.b16 %v856
      %v936 = vunpack.c.l.b16 %v857
      %v937 = vunpack.c.l.b16 %v858
      %v938 = vunpack.c.l.b16 %v859
      %v939 = vunpack.c.l.b16 %v860
      %v940 = vpack.c.b16 %v909, %v908
      %v941 = vpack.c.b16 %v911, %v910
      %v942 = vpack.c.b16 %v913, %v912
      %v943 = vpack.c.b16 %v915, %v914
      %v944 = vpack.c.b16 %v917, %v916
      %v945 = vpack.c.b16 %v919, %v918
      %v946 = vpack.c.b16 %v921, %v920
      %v947 = vpack.c.b16 %v923, %v922
      %v948 = vpack.c.b16 %v925, %v924
      %v949 = vpack.c.b16 %v927, %v926
      %v950 = vpack.c.b16 %v929, %v928
      %v951 = vpack.c.b16 %v931, %v930
      %v952 = vpack.c.b16 %v933, %v932
      %v953 = vpack.c.b16 %v935, %v934
      %v954 = vpack.c.b16 %v937, %v936
      %v955 = vpack.c.b16 %v939, %v938
      %972 = vmatprep.subr.bf16.mxu0 0
      %973 = vmatpush1.bf16.msra.mxu0 %v947
      %974 = vmatprep.subr.bf16.mxu0 0
      %975 = vmatpush1.bf16.msra.mxu0 %v946
      %976 = vmatprep.subr.bf16.mxu0 0
      %977 = vmatpush1.bf16.msra.mxu0 %v945
      %978 = vmatprep.subr.bf16.mxu0 0
      %979 = vmatpush1.bf16.msra.mxu0 %v944
      %980 = vmatprep.subr.bf16.mxu0 0
      %981 = vmatpush1.bf16.msra.mxu0 %v943
      %982 = vmatprep.subr.bf16.mxu0 0
      %983 = vmatpush1.bf16.msra.mxu0 %v942
      %984 = vmatprep.subr.bf16.mxu0 0
      %985 = vmatpush1.bf16.msra.mxu0 %v941
      %986 = vmatprep.subr.bf16.mxu0 0
      %987 = vmatpush1.bf16.msra.mxu0 %v940
      %988 = vmatprep.subr.bf16.mxu0 0
      %989 = vmatpush2.bf16.msra.mxu0 %v955
      %990 = vmatprep.subr.bf16.mxu0 0
      %991 = vmatpush2.bf16.msra.mxu0 %v954
      %992 = vmatprep.subr.bf16.mxu0 0
      %993 = vmatpush2.bf16.msra.mxu0 %v953
      %994 = vmatprep.subr.bf16.mxu0 0
      %995 = vmatpush2.bf16.msra.mxu0 %v952
      %996 = vmatprep.subr.bf16.mxu0 0
      %997 = vmatpush2.bf16.msra.mxu0 %v951
      %998 = vmatprep.subr.bf16.mxu0 0
      %999 = vmatpush2.bf16.msra.mxu0 %v950
      %1000 = vmatprep.subr.bf16.mxu0 0
      %1001 = vmatpush2.bf16.msra.mxu0 %v949
      %1002 = vmatprep.subr.bf16.mxu0 0
      %1003 = vmatpush2.bf16.msra.mxu0 %v948
      %1004 = vmatprep.mubr.bf16.mxu0 %v862
      %1005 = vmatmul.mubr.bf16.gmra.mxu0 %v861
      %v1006 = vpop.f32.mrf.mxu0
      %v1007 = vadd.f32 %v874, %v1006
      %v1008 = vpop.f32.mrf.mxu0
      %v1009 = vpop.f32.mrf.mxu0
      %v1010 = vadd.f32 %v874, %v1009
      %v1011 = vpop.f32.mrf.mxu0
      %1012 = vmatprep.mubr.bf16.mxu0 %v864
      %1013 = vmatmul.mubr.bf16.gmra.mxu0 %v863
      %v1014 = vpop.f32.mrf.mxu0
      %v1015 = vadd.f32 %v874, %v1014
      %v1016 = vpop.f32.mrf.mxu0
      %v1017 = vpop.f32.mrf.mxu0
      %v1018 = vadd.f32 %v874, %v1017
      %v1019 = vpop.f32.mrf.mxu0
      %1020 = vmatprep.mubr.bf16.mxu0 %v866
      %1021 = vmatmul.mubr.bf16.gmra.mxu0 %v865
      %v1022 = vpop.f32.mrf.mxu0
      %v1023 = vadd.f32 %v874, %v1022
      %v1024 = vpop.f32.mrf.mxu0
      %v1025 = vpop.f32.mrf.mxu0
      %v1026 = vadd.f32 %v874, %v1025
      %v1027 = vpop.f32.mrf.mxu0
      %1028 = vmatprep.mubr.bf16.mxu0 %v868
      %1029 = vmatmul.mubr.bf16.gmra.mxu0 %v867
      %v1030 = vpop.f32.mrf.mxu0
      %v1031 = vadd.f32 %v874, %v1030
      %v1032 = vpop.f32.mrf.mxu0
      %v1033 = vpop.f32.mrf.mxu0
      %v1034 = vadd.f32 %v874, %v1033
      %v1035 = vpop.f32.mrf.mxu0
      %1036 = vdwg.mxu0
      %v1037 = vxor.u32 %v1007, 2147483648
      %v1038 = vxor.u32 %v1010, 2147483648
      %v1039 = vxor.u32 %v1015, 2147483648
      %v1040 = vxor.u32 %v1018, 2147483648
      %v1041 = vxor.u32 %v1023, 2147483648
      %v1042 = vxor.u32 %v1026, 2147483648
      %v1043 = vxor.u32 %v1031, 2147483648
      %v1044 = vxor.u32 %v1034, 2147483648
      %v1045 = vmul.f32 %v1037, 1.442695
      %v1046 = vpow.pop %v1045
      %v1047 = vmul.f32 %v1038, 1.442695
      %v1048 = vpow.pop %v1047
      %v1049 = vmul.f32 %v1039, 1.442695
      %v1050 = vpow.pop %v1049
      %v1051 = vmul.f32 %v1040, 1.442695
      %v1052 = vpow.pop %v1051
      %v1053 = vmul.f32 %v1041, 1.442695
      %v1054 = vpow.pop %v1053
      %v1055 = vmul.f32 %v1042, 1.442695
      %v1056 = vpow.pop %v1055
      %v1057 = vmul.f32 %v1043, 1.442695
      %v1058 = vpow.pop %v1057
      %v1059 = vmul.f32 %v1044, 1.442695
      %v1060 = vpow.pop %v1059
      %v1061 = vadd.f32 %v1046, 1.0
      %v1062 = vadd.f32 %v1048, 1.0
      %v1063 = vadd.f32 %v1050, 1.0
      %v1064 = vadd.f32 %v1052, 1.0
      %v1065 = vadd.f32 %v1054, 1.0
      %v1066 = vadd.f32 %v1056, 1.0
      %v1067 = vadd.f32 %v1058, 1.0
      %v1068 = vadd.f32 %v1060, 1.0
      %v1069 = vrcp.pop %v1061
      %v1070 = vmul.f32 1.0, %v1069
      %v1071 = vrcp.pop %v1062
      %v1072 = vmul.f32 1.0, %v1071
      %v1073 = vrcp.pop %v1063
      %v1074 = vmul.f32 1.0, %v1073
      %v1075 = vrcp.pop %v1064
      %v1076 = vmul.f32 1.0, %v1075
      %v1077 = vrcp.pop %v1065
      %v1078 = vmul.f32 1.0, %v1077
      %v1079 = vrcp.pop %v1066
      %v1080 = vmul.f32 1.0, %v1079
      %v1081 = vrcp.pop %v1067
      %v1082 = vmul.f32 1.0, %v1081
      %v1083 = vrcp.pop %v1068
      %v1084 = vmul.f32 1.0, %v1083
      %v1085 = vmul.f32 %v1007, %v1070
      %v1086 = vmul.f32 %v1010, %v1072
      %v1087 = vmul.f32 %v1015, %v1074
      %v1088 = vmul.f32 %v1018, %v1076
      %v1089 = vmul.f32 %v1023, %v1078
      %v1090 = vmul.f32 %v1026, %v1080
      %v1091 = vmul.f32 %v1031, %v1082
      %v1092 = vmul.f32 %v1034, %v1084
      %v1093 = vld [vmem:[%s7] sm:$0xf]
      %v1094 = vld [vmem:[%s7 + $0x4] sm:$0xf]
      %v1095 = vld [vmem:[%s7 + $0x8] sm:$0xf]
      %v1096 = vld [vmem:[%s7 + $0xc] sm:$0xf]
      %v1097 = vld [vmem:[%s7 + $0x10] sm:$0xf]
      %v1098 = vld [vmem:[%s7 + $0x14] sm:$0xf]
      %v1099 = vld [vmem:[%s7 + $0x18] sm:$0xf]
      %v1100 = vld [vmem:[%s7 + $0x1c] sm:$0xf]
      %v1101 = vld [vmem:[%s7 + $0x20] sm:$0xf]
      %v1102 = vld [vmem:[%s7 + $0x24] sm:$0xf]
      %v1103 = vld [vmem:[%s7 + $0x28] sm:$0xf]
      %v1104 = vld [vmem:[%s7 + $0x2c] sm:$0xf]
      %v1105 = vld [vmem:[%s7 + $0x30] sm:$0xf]
      %v1106 = vld [vmem:[%s7 + $0x34] sm:$0xf]
      %v1107 = vld [vmem:[%s7 + $0x38] sm:$0xf]
      %v1108 = vld [vmem:[%s7 + $0x3c] sm:$0xf]
      %v1109 = vpack.c.bf16 %v1086, %v1085
      %v1110 = vpack.c.bf16 %v1088, %v1087
      %v1111 = vpack.c.bf16 %v1090, %v1089
      %v1112 = vpack.c.bf16 %v1092, %v1091
      %v1113 = vld [vmem:[%s8] sm:$0x1]
      %v1115 = vlaneseq
      %v1116 = vshrl.u32 %v1115, 7
      %v1117 = vsub.s32 0, %v1116
      %v1118 = vrot.slane %v1113, %v1117
      %v1136 = vunpack.c.l.b16 %v1093
      %v1137 = vunpack.c.l.b16 %v1094
      %v1138 = vunpack.c.l.b16 %v1095
      %v1139 = vunpack.c.l.b16 %v1096
      %v1140 = vunpack.c.l.b16 %v1097
      %v1141 = vunpack.c.l.b16 %v1098
      %v1142 = vunpack.c.l.b16 %v1099
      %v1143 = vunpack.c.l.b16 %v1100
      %v1144 = vunpack.c.l.b16 %v1101
      %v1145 = vunpack.c.l.b16 %v1102
      %v1146 = vunpack.c.l.b16 %v1103
      %v1147 = vunpack.c.l.b16 %v1104
      %v1148 = vunpack.c.l.b16 %v1105
      %v1149 = vunpack.c.l.b16 %v1106
      %v1150 = vunpack.c.l.b16 %v1107
      %v1151 = vunpack.c.l.b16 %v1108
      %v1152 = vpack.c.b16 %v1137, %v1136
      %v1153 = vpack.c.b16 %v1139, %v1138
      %v1154 = vpack.c.b16 %v1141, %v1140
      %v1155 = vpack.c.b16 %v1143, %v1142
      %v1156 = vpack.c.b16 %v1145, %v1144
      %v1157 = vpack.c.b16 %v1147, %v1146
      %v1158 = vpack.c.b16 %v1149, %v1148
      %v1159 = vpack.c.b16 %v1151, %v1150
      %1168 = vmatprep.subr.bf16.mxu0 0
      %1169 = vmatpush1.bf16.msra.mxu0 %v1159
      %1170 = vmatprep.subr.bf16.mxu0 0
      %1171 = vmatpush1.bf16.msra.mxu0 %v1158
      %1172 = vmatprep.subr.bf16.mxu0 0
      %1173 = vmatpush1.bf16.msra.mxu0 %v1157
      %1174 = vmatprep.subr.bf16.mxu0 0
      %1175 = vmatpush1.bf16.msra.mxu0 %v1156
      %1176 = vmatprep.subr.bf16.mxu0 0
      %1177 = vmatpush1.bf16.msra.mxu0 %v1155
      %1178 = vmatprep.subr.bf16.mxu0 0
      %1179 = vmatpush1.bf16.msra.mxu0 %v1154
      %1180 = vmatprep.subr.bf16.mxu0 0
      %1181 = vmatpush1.bf16.msra.mxu0 %v1153
      %1182 = vmatprep.subr.bf16.mxu0 0
      %1183 = vmatpush1.bf16.msra.mxu0 %v1152
      %1184 = vmatprep.subr.bf16.mxu0 0
      %1185 = vmatpush2.bf16.msra.mxu0 0
      %1186 = vmatprep.subr.bf16.mxu0 0
      %1187 = vmatpush2.bf16.msra.mxu0 0
      %1188 = vmatprep.subr.bf16.mxu0 0
      %1189 = vmatpush2.bf16.msra.mxu0 0
      %1190 = vmatprep.subr.bf16.mxu0 0
      %1191 = vmatpush2.bf16.msra.mxu0 0
      %1192 = vmatprep.subr.bf16.mxu0 0
      %1193 = vmatpush2.bf16.msra.mxu0 0
      %1194 = vmatprep.subr.bf16.mxu0 0
      %1195 = vmatpush2.bf16.msra.mxu0 0
      %1196 = vmatprep.subr.bf16.mxu0 0
      %1197 = vmatpush2.bf16.msra.mxu0 0
      %1198 = vmatprep.subr.bf16.mxu0 0
      %1199 = vmatpush2.bf16.msra.mxu0 0
      %1200 = vmatprep.mubr.bf16.mxu0 0
      %1201 = vmatmul.mubr.bf16.gmra.mxu0 %v1109
      %v1202 = vpop.f32.mrf.mxu0
      %v1203 = vadd.f32 %v1118, %v1202
      %v1204 = vpop.f32.mrf.mxu0
      %v1205 = vpop.f32.mrf.mxu0
      %v1206 = vadd.f32 %v1118, %v1205
      %v1207 = vpop.f32.mrf.mxu0
      %1208 = vmatprep.mubr.bf16.mxu0 0
      %1209 = vmatmul.mubr.bf16.gmra.mxu0 %v1110
      %v1210 = vpop.f32.mrf.mxu0
      %v1211 = vadd.f32 %v1118, %v1210
      %v1212 = vpop.f32.mrf.mxu0
      %v1213 = vpop.f32.mrf.mxu0
      %v1214 = vadd.f32 %v1118, %v1213
      %v1215 = vpop.f32.mrf.mxu0
      %1216 = vmatprep.mubr.bf16.mxu0 0
      %1217 = vmatmul.mubr.bf16.gmra.mxu0 %v1111
      %v1218 = vpop.f32.mrf.mxu0
      %v1219 = vadd.f32 %v1118, %v1218
      %v1220 = vpop.f32.mrf.mxu0
      %v1221 = vpop.f32.mrf.mxu0
      %v1222 = vadd.f32 %v1118, %v1221
      %v1223 = vpop.f32.mrf.mxu0
      %1224 = vmatprep.mubr.bf16.mxu0 0
      %1225 = vmatmul.mubr.bf16.gmra.mxu0 %v1112
      %v1226 = vpop.f32.mrf.mxu0
      %v1227 = vadd.f32 %v1118, %v1226
      %v1228 = vpop.f32.mrf.mxu0
      %v1229 = vpop.f32.mrf.mxu0
      %v1230 = vadd.f32 %v1118, %v1229
      %v1231 = vpop.f32.mrf.mxu0
      %1232 = vdwg.mxu0
      %v1233 = vld [vmem:[%s699] sm:$0xff]
      %v1234 = vld [vmem:[%s699 + $0x8] sm:$0xff]
      %v1235 = vld [vmem:[%s699 + $0x10] sm:$0xff]
      %v1236 = vld [vmem:[%s699 + $0x18] sm:$0xff]
      %v1237 = vld [vmem:[%s699 + $0x20] sm:$0xff]
      %v1238 = vld [vmem:[%s699 + $0x28] sm:$0xff]
      %v1239 = vld [vmem:[%s699 + $0x30] sm:$0xff]
      %v1240 = vld [vmem:[%s699 + $0x38] sm:$0xff]
      %v1241 = vld [vmem:[%s9] sm:$0xf]
      %v1242 = vld [vmem:[%s9 + $0x4] sm:$0xf]
      %v1243 = vld [vmem:[%s9 + $0x8] sm:$0xf]
      %v1244 = vld [vmem:[%s9 + $0xc] sm:$0xf]
      %v1245 = vld [vmem:[%s9 + $0x10] sm:$0xf]
      %v1246 = vld [vmem:[%s9 + $0x14] sm:$0xf]
      %v1247 = vld [vmem:[%s9 + $0x18] sm:$0xf]
      %v1248 = vld [vmem:[%s9 + $0x1c] sm:$0xf]
      %v1249 = vpack.c.bf16 %v1234, %v1233
      %v1250 = vpack.c.bf16 %v1236, %v1235
      %v1251 = vpack.c.bf16 %v1238, %v1237
      %v1252 = vpack.c.bf16 %v1240, %v1239
      %v1261 = vunpack.c.l.b16 %v1241
      %v1262 = vunpack.c.l.b16 %v1242
      %v1263 = vunpack.c.l.b16 %v1243
      %v1264 = vunpack.c.l.b16 %v1244
      %v1265 = vunpack.c.l.b16 %v1245
      %v1266 = vunpack.c.l.b16 %v1246
      %v1267 = vunpack.c.l.b16 %v1247
      %v1268 = vunpack.c.l.b16 %v1248
      %v1269 = vpack.c.b16 %v1262, %v1261
      %v1270 = vpack.c.b16 %v1264, %v1263
      %v1271 = vpack.c.b16 %v1266, %v1265
      %v1272 = vpack.c.b16 %v1268, %v1267
      %vm1277 = vcmask 523264
      %v1279 = vsel %vm1277, %v1249, 0
      %v1282 = vsel %vm1277, %v1250, 0
      %v1285 = vsel %vm1277, %v1251, 0
      %v1288 = vsel %vm1277, %v1252, 0
      %1290 = vmatprep.subr.bf16.mxu0 0
      %1291 = vmatpush1.bf16.msra.mxu0 0
      %1292 = vmatprep.subr.bf16.mxu0 0
      %1293 = vmatpush1.bf16.msra.mxu0 0
      %1294 = vmatprep.subr.bf16.mxu0 0
      %1295 = vmatpush1.bf16.msra.mxu0 0
      %1296 = vmatprep.subr.bf16.mxu0 0
      %1297 = vmatpush1.bf16.msra.mxu0 0
      %1298 = vmatprep.subr.bf16.mxu0 0
      %1299 = vmatpush1.bf16.msra.mxu0 %v1272
      %1300 = vmatprep.subr.bf16.mxu0 0
      %1301 = vmatpush1.bf16.msra.mxu0 %v1271
      %1302 = vmatprep.subr.bf16.mxu0 0
      %1303 = vmatpush1.bf16.msra.mxu0 %v1270
      %1304 = vmatprep.subr.bf16.mxu0 0
      %1305 = vmatpush1.bf16.msra.mxu0 %v1269
      %1306 = vmatprep.subr.bf16.mxu0 0
      %1307 = vmatpush2.bf16.msra.mxu0 0
      %1308 = vmatprep.subr.bf16.mxu0 0
      %1309 = vmatpush2.bf16.msra.mxu0 0
      %1310 = vmatprep.subr.bf16.mxu0 0
      %1311 = vmatpush2.bf16.msra.mxu0 0
      %1312 = vmatprep.subr.bf16.mxu0 0
      %1313 = vmatpush2.bf16.msra.mxu0 0
      %1314 = vmatprep.subr.bf16.mxu0 0
      %1315 = vmatpush2.bf16.msra.mxu0 0
      %1316 = vmatprep.subr.bf16.mxu0 0
      %1317 = vmatpush2.bf16.msra.mxu0 0
      %1318 = vmatprep.subr.bf16.mxu0 0
      %1319 = vmatpush2.bf16.msra.mxu0 0
      %1320 = vmatprep.subr.bf16.mxu0 0
      %1321 = vmatpush2.bf16.msra.mxu0 0
      %1322 = vmatprep.mubr.bf16.mxu0 0
      %1323 = vmatmul.mubr.bf16.gmra.mxu0 %v1279
      %v1324 = vpop.f32.mrf.mxu0
      %v1325 = vadd.f32 0.0, %v1324
      %v1326 = vpop.f32.mrf.mxu0
      %v1327 = vpop.f32.mrf.mxu0
      %v1328 = vadd.f32 0.0, %v1327
      %v1329 = vpop.f32.mrf.mxu0
      %1330 = vmatprep.mubr.bf16.mxu0 0
      %1331 = vmatmul.mubr.bf16.gmra.mxu0 %v1282
      %v1332 = vpop.f32.mrf.mxu0
      %v1333 = vadd.f32 0.0, %v1332
      %v1334 = vpop.f32.mrf.mxu0
      %v1335 = vpop.f32.mrf.mxu0
      %v1336 = vadd.f32 0.0, %v1335
      %v1337 = vpop.f32.mrf.mxu0
      %1338 = vmatprep.mubr.bf16.mxu0 0
      %1339 = vmatmul.mubr.bf16.gmra.mxu0 %v1285
      %v1340 = vpop.f32.mrf.mxu0
      %v1341 = vadd.f32 0.0, %v1340
      %v1342 = vpop.f32.mrf.mxu0
      %v1343 = vpop.f32.mrf.mxu0
      %v1344 = vadd.f32 0.0, %v1343
      %v1345 = vpop.f32.mrf.mxu0
      %1346 = vmatprep.mubr.bf16.mxu0 0
      %1347 = vmatmul.mubr.bf16.gmra.mxu0 %v1288
      %v1348 = vpop.f32.mrf.mxu0
      %v1349 = vadd.f32 0.0, %v1348
      %v1350 = vpop.f32.mrf.mxu0
      %v1351 = vpop.f32.mrf.mxu0
      %v1352 = vadd.f32 0.0, %v1351
      %v1353 = vpop.f32.mrf.mxu0
      %1354 = vdwg.mxu0
      %v1355 = vadd.f32 %v1203, %v1325
      %v1356 = vadd.f32 %v1206, %v1328
      %v1357 = vadd.f32 %v1211, %v1333
      %v1358 = vadd.f32 %v1214, %v1336
      %v1359 = vadd.f32 %v1219, %v1341
      %v1360 = vadd.f32 %v1222, %v1344
      %v1361 = vadd.f32 %v1227, %v1349
      %v1362 = vadd.f32 %v1230, %v1352
      %v1363 = vld [vmem:[%s10] sm:$0x1]
      %v1365 = vlaneseq
      %v1366 = vshrl.u32 %v1365, 7
      %v1367 = vsub.s32 0, %v1366
      %v1368 = vrot.slane %v1363, %v1367
      %v1370 = vadd.f32 %v1355, %v1368
      %v1371 = vadd.f32 %v1356, %v1368
      %v1372 = vadd.f32 %v1357, %v1368
      %v1373 = vadd.f32 %v1358, %v1368
      %v1374 = vadd.f32 %v1359, %v1368
      %v1375 = vadd.f32 %v1360, %v1368
      %v1376 = vadd.f32 %v1361, %v1368
      %v1377 = vadd.f32 %v1362, %v1368
      %v1378 = vxor.u32 %v1370, 2147483648
      %v1379 = vxor.u32 %v1371, 2147483648
      %v1380 = vxor.u32 %v1372, 2147483648
      %v1381 = vxor.u32 %v1373, 2147483648
      %v1382 = vxor.u32 %v1374, 2147483648
      %v1383 = vxor.u32 %v1375, 2147483648
      %v1384 = vxor.u32 %v1376, 2147483648
      %v1385 = vxor.u32 %v1377, 2147483648
      %v1386 = vmul.f32 %v1378, 1.442695
      %v1387 = vpow.pop %v1386
      %v1388 = vmul.f32 %v1379, 1.442695
      %v1389 = vpow.pop %v1388
      %v1390 = vmul.f32 %v1380, 1.442695
      %v1391 = vpow.pop %v1390
      %v1392 = vmul.f32 %v1381, 1.442695
      %v1393 = vpow.pop %v1392
      %v1394 = vmul.f32 %v1382, 1.442695
      %v1395 = vpow.pop %v1394
      %v1396 = vmul.f32 %v1383, 1.442695
      %v1397 = vpow.pop %v1396
      %v1398 = vmul.f32 %v1384, 1.442695
      %v1399 = vpow.pop %v1398
      %v1400 = vmul.f32 %v1385, 1.442695
      %v1401 = vpow.pop %v1400
      %v1402 = vadd.f32 %v1387, 1.0
      %v1403 = vadd.f32 %v1389, 1.0
      %v1404 = vadd.f32 %v1391, 1.0
      %v1405 = vadd.f32 %v1393, 1.0
      %v1406 = vadd.f32 %v1395, 1.0
      %v1407 = vadd.f32 %v1397, 1.0
      %v1408 = vadd.f32 %v1399, 1.0
      %v1409 = vadd.f32 %v1401, 1.0
      %v1410 = vrcp.pop %v1402
      %v1411 = vmul.f32 1.0, %v1410
      %v1412 = vrcp.pop %v1403
      %v1413 = vmul.f32 1.0, %v1412
      %v1414 = vrcp.pop %v1404
      %v1415 = vmul.f32 1.0, %v1414
      %v1416 = vrcp.pop %v1405
      %v1417 = vmul.f32 1.0, %v1416
      %v1418 = vrcp.pop %v1406
      %v1419 = vmul.f32 1.0, %v1418
      %v1420 = vrcp.pop %v1407
      %v1421 = vmul.f32 1.0, %v1420
      %v1422 = vrcp.pop %v1408
      %v1423 = vmul.f32 1.0, %v1422
      %v1424 = vrcp.pop %v1409
      %v1425 = vmul.f32 1.0, %v1424
      %v1426 = vmul.f32 %v1370, %v1411
      %v1427 = vmul.f32 %v1371, %v1413
      %v1428 = vmul.f32 %v1372, %v1415
      %v1429 = vmul.f32 %v1373, %v1417
      %v1430 = vmul.f32 %v1374, %v1419
      %v1431 = vmul.f32 %v1375, %v1421
      %v1432 = vmul.f32 %v1376, %v1423
      %v1433 = vmul.f32 %v1377, %v1425
      %v1434 = vpack.c.bf16 %v1427, %v1426
      %v1435 = vpack.c.bf16 %v1429, %v1428
      %v1436 = vpack.c.bf16 %v1431, %v1430
      %v1437 = vpack.c.bf16 %v1433, %v1432
      %v1438 = vld [vmem:[%s13] sm:$0xff]
      %v1439 = vld [vmem:[%s13 + $0x8] sm:$0xff]
      %v1440 = vld [vmem:[%s13 + $0x10] sm:$0xff]
      %v1441 = vld [vmem:[%s13 + $0x18] sm:$0xff]
      %v1442 = vld [vmem:[%s13 + $0x20] sm:$0xff]
      %v1443 = vld [vmem:[%s13 + $0x28] sm:$0xff]
      %v1444 = vld [vmem:[%s13 + $0x30] sm:$0xff]
      %v1445 = vld [vmem:[%s13 + $0x38] sm:$0xff]
      %v1446 = vld [vmem:[%s13 + $0x40] sm:$0xff]
      %v1447 = vld [vmem:[%s13 + $0x48] sm:$0xff]
      %v1448 = vld [vmem:[%s13 + $0x50] sm:$0xff]
      %v1449 = vld [vmem:[%s13 + $0x58] sm:$0xff]
      %v1450 = vld [vmem:[%s13 + $0x60] sm:$0xff]
      %v1451 = vld [vmem:[%s13 + $0x68] sm:$0xff]
      %v1452 = vld [vmem:[%s13 + $0x70] sm:$0xff]
      %v1453 = vld [vmem:[%s13 + $0x78] sm:$0xff]
      %v1454 = vld [vmem:[%s13 + $0x80] sm:$0xff]
      %v1455 = vld [vmem:[%s13 + $0x88] sm:$0xff]
      %v1456 = vld [vmem:[%s13 + $0x90] sm:$0xff]
      %v1457 = vld [vmem:[%s13 + $0x98] sm:$0xff]
      %v1458 = vld [vmem:[%s13 + $0xa0] sm:$0xff]
      %v1459 = vld [vmem:[%s13 + $0xa8] sm:$0xff]
      %v1460 = vld [vmem:[%s13 + $0xb0] sm:$0xff]
      %v1461 = vld [vmem:[%s13 + $0xb8] sm:$0xff]
      %v1462 = vld [vmem:[%s13 + $0xc0] sm:$0xff]
      %v1463 = vld [vmem:[%s13 + $0xc8] sm:$0xff]
      %v1464 = vld [vmem:[%s13 + $0xd0] sm:$0xff]
      %v1465 = vld [vmem:[%s13 + $0xd8] sm:$0xff]
      %v1466 = vld [vmem:[%s13 + $0xe0] sm:$0xff]
      %v1467 = vld [vmem:[%s13 + $0xe8] sm:$0xff]
      %v1468 = vld [vmem:[%s13 + $0xf0] sm:$0xff]
      %v1469 = vld [vmem:[%s13 + $0xf8] sm:$0xff]
      %v1470 = vld [vmem:[%s13 + $0x100] sm:$0xff]
      %v1471 = vld [vmem:[%s13 + $0x108] sm:$0xff]
      %v1472 = vld [vmem:[%s13 + $0x110] sm:$0xff]
      %v1473 = vld [vmem:[%s13 + $0x118] sm:$0xff]
      %v1474 = vld [vmem:[%s13 + $0x120] sm:$0xff]
      %v1475 = vld [vmem:[%s13 + $0x128] sm:$0xff]
      %v1476 = vld [vmem:[%s13 + $0x130] sm:$0xff]
      %v1477 = vld [vmem:[%s13 + $0x138] sm:$0xff]
      %v1478 = vld [vmem:[%s13 + $0x140] sm:$0xff]
      %v1479 = vld [vmem:[%s13 + $0x148] sm:$0xff]
      %v1480 = vld [vmem:[%s13 + $0x150] sm:$0xff]
      %v1481 = vld [vmem:[%s13 + $0x158] sm:$0xff]
      %v1482 = vld [vmem:[%s13 + $0x160] sm:$0xff]
      %v1483 = vld [vmem:[%s13 + $0x168] sm:$0xff]
      %v1484 = vld [vmem:[%s13 + $0x170] sm:$0xff]
      %v1485 = vld [vmem:[%s13 + $0x178] sm:$0xff]
      %v1486 = vld [vmem:[%s13 + $0x180] sm:$0xff]
      %v1487 = vld [vmem:[%s13 + $0x188] sm:$0xff]
      %v1488 = vld [vmem:[%s13 + $0x190] sm:$0xff]
      %v1489 = vld [vmem:[%s13 + $0x198] sm:$0xff]
      %v1490 = vld [vmem:[%s13 + $0x1a0] sm:$0xff]
      %v1491 = vld [vmem:[%s13 + $0x1a8] sm:$0xff]
      %v1492 = vld [vmem:[%s13 + $0x1b0] sm:$0xff]
      %v1493 = vld [vmem:[%s13 + $0x1b8] sm:$0xff]
      %v1494 = vld [vmem:[%s13 + $0x1c0] sm:$0xff]
      %v1495 = vld [vmem:[%s13 + $0x1c8] sm:$0xff]
      %v1496 = vld [vmem:[%s13 + $0x1d0] sm:$0xff]
      %v1497 = vld [vmem:[%s13 + $0x1d8] sm:$0xff]
      %v1498 = vld [vmem:[%s13 + $0x1e0] sm:$0xff]
      %v1499 = vld [vmem:[%s13 + $0x1e8] sm:$0xff]
      %v1500 = vld [vmem:[%s13 + $0x1f0] sm:$0xff]
      %v1501 = vld [vmem:[%s13 + $0x1f8] sm:$0xff]
      %v1502 = vld [vmem:[%s14] sm:$0xff]
      %v1504 = vlaneseq
      %v1505 = vshrl.u32 %v1504, 7
      %v1506 = vsub.s32 0, %v1505
      %v1507 = vrot.slane %v1502, %v1506
      %v1508 = vlaneseq
      %v1509 = vshrl.u32 %v1508, 7
      %v1510 = vsub.s32 1, %v1509
      %v1511 = vrot.slane %v1502, %v1510
      %v1512 = vlaneseq
      %v1513 = vshrl.u32 %v1512, 7
      %v1514 = vsub.s32 2, %v1513
      %v1515 = vrot.slane %v1502, %v1514
      %v1516 = vlaneseq
      %v1517 = vshrl.u32 %v1516, 7
      %v1518 = vsub.s32 3, %v1517
      %v1519 = vrot.slane %v1502, %v1518
      %v1520 = vlaneseq
      %v1521 = vshrl.u32 %v1520, 7
      %v1522 = vsub.s32 4, %v1521
      %v1523 = vrot.slane %v1502, %v1522
      %v1524 = vlaneseq
      %v1525 = vshrl.u32 %v1524, 7
      %v1526 = vsub.s32 5, %v1525
      %v1527 = vrot.slane %v1502, %v1526
      %v1528 = vlaneseq
      %v1529 = vshrl.u32 %v1528, 7
      %v1530 = vsub.s32 6, %v1529
      %v1531 = vrot.slane %v1502, %v1530
      %v1532 = vlaneseq
      %v1533 = vshrl.u32 %v1532, 7
      %v1534 = vsub.s32 7, %v1533
      %v1535 = vrot.slane %v1502, %v1534
      %v1608 = vunpack.c.l.b16 %v1438
      %v1609 = vunpack.c.h.b16 %v1438
      %v1610 = vunpack.c.l.b16 %v1439
      %v1611 = vunpack.c.h.b16 %v1439
      %v1612 = vunpack.c.l.b16 %v1440
      %v1613 = vunpack.c.h.b16 %v1440
      %v1614 = vunpack.c.l.b16 %v1441
      %v1615 = vunpack.c.h.b16 %v1441
      %v1616 = vunpack.c.l.b16 %v1442
      %v1617 = vunpack.c.h.b16 %v1442
      %v1618 = vunpack.c.l.b16 %v1443
      %v1619 = vunpack.c.h.b16 %v1443
      %v1620 = vunpack.c.l.b16 %v1444
      %v1621 = vunpack.c.h.b16 %v1444
      %v1622 = vunpack.c.l.b16 %v1445
      %v1623 = vunpack.c.h.b16 %v1445
      %v1624 = vunpack.c.l.b16 %v1446
      %v1625 = vunpack.c.h.b16 %v1446
      %v1626 = vunpack.c.l.b16 %v1447
      %v1627 = vunpack.c.h.b16 %v1447
      %v1628 = vunpack.c.l.b16 %v1448
      %v1629 = vunpack.c.h.b16 %v1448
      %v1630 = vunpack.c.l.b16 %v1449
      %v1631 = vunpack.c.h.b16 %v1449
      %v1632 = vunpack.c.l.b16 %v1450
      %v1633 = vunpack.c.h.b16 %v1450
      %v1634 = vunpack.c.l.b16 %v1451
      %v1635 = vunpack.c.h.b16 %v1451
      %v1636 = vunpack.c.l.b16 %v1452
      %v1637 = vunpack.c.h.b16 %v1452
      %v1638 = vunpack.c.l.b16 %v1453
      %v1639 = vunpack.c.h.b16 %v1453
      %v1640 = vunpack.c.l.b16 %v1454
      %v1641 = vunpack.c.h.b16 %v1454
      %v1642 = vunpack.c.l.b16 %v1455
      %v1643 = vunpack.c.h.b16 %v1455
      %v1644 = vunpack.c.l.b16 %v1456
      %v1645 = vunpack.c.h.b16 %v1456
      %v1646 = vunpack.c.l.b16 %v1457
      %v1647 = vunpack.c.h.b16 %v1457
      %v1648 = vunpack.c.l.b16 %v1458
      %v1649 = vunpack.c.h.b16 %v1458
      %v1650 = vunpack.c.l.b16 %v1459
      %v1651 = vunpack.c.h.b16 %v1459
      %v1652 = vunpack.c.l.b16 %v1460
      %v1653 = vunpack.c.h.b16 %v1460
      %v1654 = vunpack.c.l.b16 %v1461
      %v1655 = vunpack.c.h.b16 %v1461
      %v1656 = vunpack.c.l.b16 %v1462
      %v1657 = vunpack.c.h.b16 %v1462
      %v1658 = vunpack.c.l.b16 %v1463
      %v1659 = vunpack.c.h.b16 %v1463
      %v1660 = vunpack.c.l.b16 %v1464
      %v1661 = vunpack.c.h.b16 %v1464
      %v1662 = vunpack.c.l.b16 %v1465
      %v1663 = vunpack.c.h.b16 %v1465
      %v1664 = vunpack.c.l.b16 %v1466
      %v1665 = vunpack.c.h.b16 %v1466
      %v1666 = vunpack.c.l.b16 %v1467
      %v1667 = vunpack.c.h.b16 %v1467
      %v1668 = vunpack.c.l.b16 %v1468
      %v1669 = vunpack.c.h.b16 %v1468
      %v1670 = vunpack.c.l.b16 %v1469
      %v1671 = vunpack.c.h.b16 %v1469
      %v1672 = vunpack.c.l.b16 %v1470
      %v1673 = vunpack.c.h.b16 %v1470
      %v1674 = vunpack.c.l.b16 %v1471
      %v1675 = vunpack.c.h.b16 %v1471
      %v1676 = vunpack.c.l.b16 %v1472
      %v1677 = vunpack.c.h.b16 %v1472
      %v1678 = vunpack.c.l.b16 %v1473
      %v1679 = vunpack.c.h.b16 %v1473
      %v1680 = vunpack.c.l.b16 %v1474
      %v1681 = vunpack.c.h.b16 %v1474
      %v1682 = vunpack.c.l.b16 %v1475
      %v1683 = vunpack.c.h.b16 %v1475
      %v1684 = vunpack.c.l.b16 %v1476
      %v1685 = vunpack.c.h.b16 %v1476
      %v1686 = vunpack.c.l.b16 %v1477
      %v1687 = vunpack.c.h.b16 %v1477
      %v1688 = vunpack.c.l.b16 %v1478
      %v1689 = vunpack.c.h.b16 %v1478
      %v1690 = vunpack.c.l.b16 %v1479
      %v1691 = vunpack.c.h.b16 %v1479
      %v1692 = vunpack.c.l.b16 %v1480
      %v1693 = vunpack.c.h.b16 %v1480
      %v1694 = vunpack.c.l.b16 %v1481
      %v1695 = vunpack.c.h.b16 %v1481
      %v1696 = vunpack.c.l.b16 %v1482
      %v1697 = vunpack.c.h.b16 %v1482
      %v1698 = vunpack.c.l.b16 %v1483
      %v1699 = vunpack.c.h.b16 %v1483
      %v1700 = vunpack.c.l.b16 %v1484
      %v1701 = vunpack.c.h.b16 %v1484
      %v1702 = vunpack.c.l.b16 %v1485
      %v1703 = vunpack.c.h.b16 %v1485
      %v1704 = vunpack.c.l.b16 %v1486
      %v1705 = vunpack.c.h.b16 %v1486
      %v1706 = vunpack.c.l.b16 %v1487
      %v1707 = vunpack.c.h.b16 %v1487
      %v1708 = vunpack.c.l.b16 %v1488
      %v1709 = vunpack.c.h.b16 %v1488
      %v1710 = vunpack.c.l.b16 %v1489
      %v1711 = vunpack.c.h.b16 %v1489
      %v1712 = vunpack.c.l.b16 %v1490
      %v1713 = vunpack.c.h.b16 %v1490
      %v1714 = vunpack.c.l.b16 %v1491
      %v1715 = vunpack.c.h.b16 %v1491
      %v1716 = vunpack.c.l.b16 %v1492
      %v1717 = vunpack.c.h.b16 %v1492
      %v1718 = vunpack.c.l.b16 %v1493
      %v1719 = vunpack.c.h.b16 %v1493
      %v1720 = vunpack.c.l.b16 %v1494
      %v1721 = vunpack.c.h.b16 %v1494
      %v1722 = vunpack.c.l.b16 %v1495
      %v1723 = vunpack.c.h.b16 %v1495
      %v1724 = vunpack.c.l.b16 %v1496
      %v1725 = vunpack.c.h.b16 %v1496
      %v1726 = vunpack.c.l.b16 %v1497
      %v1727 = vunpack.c.h.b16 %v1497
      %v1728 = vunpack.c.l.b16 %v1498
      %v1729 = vunpack.c.h.b16 %v1498
      %v1730 = vunpack.c.l.b16 %v1499
      %v1731 = vunpack.c.h.b16 %v1499
      %v1732 = vunpack.c.l.b16 %v1500
      %v1733 = vunpack.c.h.b16 %v1500
      %v1734 = vunpack.c.l.b16 %v1501
      %v1735 = vunpack.c.h.b16 %v1501
      %v1736 = vpack.c.b16 %v1616, %v1608
      %v1737 = vpack.c.b16 %v1617, %v1609
      %v1738 = vpack.c.b16 %v1618, %v1610
      %v1739 = vpack.c.b16 %v1619, %v1611
      %v1740 = vpack.c.b16 %v1620, %v1612
      %v1741 = vpack.c.b16 %v1621, %v1613
      %v1742 = vpack.c.b16 %v1622, %v1614
      %v1743 = vpack.c.b16 %v1623, %v1615
      %v1744 = vpack.c.b16 %v1632, %v1624
      %v1745 = vpack.c.b16 %v1633, %v1625
      %v1746 = vpack.c.b16 %v1634, %v1626
      %v1747 = vpack.c.b16 %v1635, %v1627
      %v1748 = vpack.c.b16 %v1636, %v1628
      %v1749 = vpack.c.b16 %v1637, %v1629
      %v1750 = vpack.c.b16 %v1638, %v1630
      %v1751 = vpack.c.b16 %v1639, %v1631
      %v1752 = vpack.c.b16 %v1648, %v1640
      %v1753 = vpack.c.b16 %v1649, %v1641
      %v1754 = vpack.c.b16 %v1650, %v1642
      %v1755 = vpack.c.b16 %v1651, %v1643
      %v1756 = vpack.c.b16 %v1652, %v1644
      %v1757 = vpack.c.b16 %v1653, %v1645
      %v1758 = vpack.c.b16 %v1654, %v1646
      %v1759 = vpack.c.b16 %v1655, %v1647
      %v1760 = vpack.c.b16 %v1664, %v1656
      %v1761 = vpack.c.b16 %v1665, %v1657
      %v1762 = vpack.c.b16 %v1666, %v1658
      %v1763 = vpack.c.b16 %v1667, %v1659
      %v1764 = vpack.c.b16 %v1668, %v1660
      %v1765 = vpack.c.b16 %v1669, %v1661
      %v1766 = vpack.c.b16 %v1670, %v1662
      %v1767 = vpack.c.b16 %v1671, %v1663
      %v1768 = vpack.c.b16 %v1680, %v1672
      %v1769 = vpack.c.b16 %v1681, %v1673
      %v1770 = vpack.c.b16 %v1682, %v1674
      %v1771 = vpack.c.b16 %v1683, %v1675
      %v1772 = vpack.c.b16 %v1684, %v1676
      %v1773 = vpack.c.b16 %v1685, %v1677
      %v1774 = vpack.c.b16 %v1686, %v1678
      %v1775 = vpack.c.b16 %v1687, %v1679
      %v1776 = vpack.c.b16 %v1696, %v1688
      %v1777 = vpack.c.b16 %v1697, %v1689
      %v1778 = vpack.c.b16 %v1698, %v1690
      %v1779 = vpack.c.b16 %v1699, %v1691
      %v1780 = vpack.c.b16 %v1700, %v1692
      %v1781 = vpack.c.b16 %v1701, %v1693
      %v1782 = vpack.c.b16 %v1702, %v1694
      %v1783 = vpack.c.b16 %v1703, %v1695
      %v1784 = vpack.c.b16 %v1712, %v1704
      %v1785 = vpack.c.b16 %v1713, %v1705
      %v1786 = vpack.c.b16 %v1714, %v1706
      %v1787 = vpack.c.b16 %v1715, %v1707
      %v1788 = vpack.c.b16 %v1716, %v1708
      %v1789 = vpack.c.b16 %v1717, %v1709
      %v1790 = vpack.c.b16 %v1718, %v1710
      %v1791 = vpack.c.b16 %v1719, %v1711
      %v1792 = vpack.c.b16 %v1728, %v1720
      %v1793 = vpack.c.b16 %v1729, %v1721
      %v1794 = vpack.c.b16 %v1730, %v1722
      %v1795 = vpack.c.b16 %v1731, %v1723
      %v1796 = vpack.c.b16 %v1732, %v1724
      %v1797 = vpack.c.b16 %v1733, %v1725
      %v1798 = vpack.c.b16 %v1734, %v1726
      %v1799 = vpack.c.b16 %v1735, %v1727
      %1864 = vmatprep.subr.bf16.mxu0 %v1793
      %1865 = vmatpush1.bf16.msra.mxu0 %v1792
      %1866 = vmatprep.subr.bf16.mxu0 %v1785
      %1867 = vmatpush1.bf16.msra.mxu0 %v1784
      %1868 = vmatprep.subr.bf16.mxu0 %v1777
      %1869 = vmatpush1.bf16.msra.mxu0 %v1776
      %1870 = vmatprep.subr.bf16.mxu0 %v1769
      %1871 = vmatpush1.bf16.msra.mxu0 %v1768
      %1872 = vmatprep.subr.bf16.mxu0 %v1761
      %1873 = vmatpush1.bf16.msra.mxu0 %v1760
      %1874 = vmatprep.subr.bf16.mxu0 %v1753
      %1875 = vmatpush1.bf16.msra.mxu0 %v1752
      %1876 = vmatprep.subr.bf16.mxu0 %v1745
      %1877 = vmatpush1.bf16.msra.mxu0 %v1744
      %1878 = vmatprep.subr.bf16.mxu0 %v1737
      %1879 = vmatpush1.bf16.msra.mxu0 %v1736
      %1880 = vmatprep.subr.bf16.mxu0 0
      %1881 = vmatpush2.bf16.msra.mxu0 0
      %1882 = vmatprep.subr.bf16.mxu0 0
      %1883 = vmatpush2.bf16.msra.mxu0 0
      %1884 = vmatprep.subr.bf16.mxu0 0
      %1885 = vmatpush2.bf16.msra.mxu0 0
      %1886 = vmatprep.subr.bf16.mxu0 0
      %1887 = vmatpush2.bf16.msra.mxu0 0
      %1888 = vmatprep.subr.bf16.mxu0 0
      %1889 = vmatpush2.bf16.msra.mxu0 0
      %1890 = vmatprep.subr.bf16.mxu0 0
      %1891 = vmatpush2.bf16.msra.mxu0 0
      %1892 = vmatprep.subr.bf16.mxu0 0
      %1893 = vmatpush2.bf16.msra.mxu0 0
      %1894 = vmatprep.subr.bf16.mxu0 0
      %1895 = vmatpush2.bf16.msra.mxu0 0
      %1896 = vmatprep.mubr.bf16.mxu0 0
      %1897 = vmatmul.mubr.bf16.gmra.mxu0 %v1434
      %v1898 = vpop.f32.mrf.mxu0
      %v1899 = vadd.f32 %v1507, %v1898
      %v1900 = vpop.f32.mrf.mxu0
      %v1901 = vadd.f32 %v1511, %v1900
      %v1902 = vpop.f32.mrf.mxu0
      %v1903 = vadd.f32 %v1507, %v1902
      %v1904 = vpop.f32.mrf.mxu0
      %v1905 = vadd.f32 %v1511, %v1904
      %1906 = vmatprep.mubr.bf16.mxu0 0
      %1907 = vmatmul.mubr.bf16.gmra.mxu0 %v1435
      %v1908 = vpop.f32.mrf.mxu0
      %v1909 = vadd.f32 %v1507, %v1908
      %v1910 = vpop.f32.mrf.mxu0
      %v1911 = vadd.f32 %v1511, %v1910
      %v1912 = vpop.f32.mrf.mxu0
      %v1913 = vadd.f32 %v1507, %v1912
      %v1914 = vpop.f32.mrf.mxu0
      %v1915 = vadd.f32 %v1511, %v1914
      %1916 = vmatprep.mubr.bf16.mxu0 0
      %1917 = vmatmul.mubr.bf16.gmra.mxu0 %v1436
      %v1918 = vpop.f32.mrf.mxu0
      %v1919 = vadd.f32 %v1507, %v1918
      %v1920 = vpop.f32.mrf.mxu0
      %v1921 = vadd.f32 %v1511, %v1920
      %v1922 = vpop.f32.mrf.mxu0
      %v1923 = vadd.f32 %v1507, %v1922
      %v1924 = vpop.f32.mrf.mxu0
      %v1925 = vadd.f32 %v1511, %v1924
      %1926 = vmatprep.mubr.bf16.mxu0 0
      %1927 = vmatmul.mubr.bf16.gmra.mxu0 %v1437
      %v1928 = vpop.f32.mrf.mxu0
      %v1929 = vadd.f32 %v1507, %v1928
      %v1930 = vpop.f32.mrf.mxu0
      %v1931 = vadd.f32 %v1511, %v1930
      %v1932 = vpop.f32.mrf.mxu0
      %v1933 = vadd.f32 %v1507, %v1932
      %v1934 = vpop.f32.mrf.mxu0
      %v1935 = vadd.f32 %v1511, %v1934
      %1936 = vdwg.mxu0
      %1937 = vmatprep.subr.bf16.mxu0 %v1795
      %1938 = vmatpush1.bf16.msra.mxu0 %v1794
      %1939 = vmatprep.subr.bf16.mxu0 %v1787
      %1940 = vmatpush1.bf16.msra.mxu0 %v1786
      %1941 = vmatprep.subr.bf16.mxu0 %v1779
      %1942 = vmatpush1.bf16.msra.mxu0 %v1778
      %1943 = vmatprep.subr.bf16.mxu0 %v1771
      %1944 = vmatpush1.bf16.msra.mxu0 %v1770
      %1945 = vmatprep.subr.bf16.mxu0 %v1763
      %1946 = vmatpush1.bf16.msra.mxu0 %v1762
      %1947 = vmatprep.subr.bf16.mxu0 %v1755
      %1948 = vmatpush1.bf16.msra.mxu0 %v1754
      %1949 = vmatprep.subr.bf16.mxu0 %v1747
      %1950 = vmatpush1.bf16.msra.mxu0 %v1746
      %1951 = vmatprep.subr.bf16.mxu0 %v1739
      %1952 = vmatpush1.bf16.msra.mxu0 %v1738
      %1953 = vmatprep.subr.bf16.mxu0 0
      %1954 = vmatpush2.bf16.msra.mxu0 0
      %1955 = vmatprep.subr.bf16.mxu0 0
      %1956 = vmatpush2.bf16.msra.mxu0 0
      %1957 = vmatprep.subr.bf16.mxu0 0
      %1958 = vmatpush2.bf16.msra.mxu0 0
      %1959 = vmatprep.subr.bf16.mxu0 0
      %1960 = vmatpush2.bf16.msra.mxu0 0
      %1961 = vmatprep.subr.bf16.mxu0 0
      %1962 = vmatpush2.bf16.msra.mxu0 0
      %1963 = vmatprep.subr.bf16.mxu0 0
      %1964 = vmatpush2.bf16.msra.mxu0 0
      %1965 = vmatprep.subr.bf16.mxu0 0
      %1966 = vmatpush2.bf16.msra.mxu0 0
      %1967 = vmatprep.subr.bf16.mxu0 0
      %1968 = vmatpush2.bf16.msra.mxu0 0
      %1969 = vmatprep.mubr.bf16.mxu0 0
      %1970 = vmatmul.mubr.bf16.gmra.mxu0 %v1434
      %v1971 = vpop.f32.mrf.mxu0
      %v1972 = vadd.f32 %v1515, %v1971
      %v1973 = vpop.f32.mrf.mxu0
      %v1974 = vadd.f32 %v1519, %v1973
      %v1975 = vpop.f32.mrf.mxu0
      %v1976 = vadd.f32 %v1515, %v1975
      %v1977 = vpop.f32.mrf.mxu0
      %v1978 = vadd.f32 %v1519, %v1977
      %1979 = vmatprep.mubr.bf16.mxu0 0
      %1980 = vmatmul.mubr.bf16.gmra.mxu0 %v1435
      %v1981 = vpop.f32.mrf.mxu0
      %v1982 = vadd.f32 %v1515, %v1981
      %v1983 = vpop.f32.mrf.mxu0
      %v1984 = vadd.f32 %v1519, %v1983
      %v1985 = vpop.f32.mrf.mxu0
      %v1986 = vadd.f32 %v1515, %v1985
      %v1987 = vpop.f32.mrf.mxu0
      %v1988 = vadd.f32 %v1519, %v1987
      %1989 = vmatprep.mubr.bf16.mxu0 0
      %1990 = vmatmul.mubr.bf16.gmra.mxu0 %v1436
      %v1991 = vpop.f32.mrf.mxu0
      %v1992 = vadd.f32 %v1515, %v1991
      %v1993 = vpop.f32.mrf.mxu0
      %v1994 = vadd.f32 %v1519, %v1993
      %v1995 = vpop.f32.mrf.mxu0
      %v1996 = vadd.f32 %v1515, %v1995
      %v1997 = vpop.f32.mrf.mxu0
      %v1998 = vadd.f32 %v1519, %v1997
      %1999 = vmatprep.mubr.bf16.mxu0 0
      %2000 = vmatmul.mubr.bf16.gmra.mxu0 %v1437
      %v2001 = vpop.f32.mrf.mxu0
      %v2002 = vadd.f32 %v1515, %v2001
      %v2003 = vpop.f32.mrf.mxu0
      %v2004 = vadd.f32 %v1519, %v2003
      %v2005 = vpop.f32.mrf.mxu0
      %v2006 = vadd.f32 %v1515, %v2005
      %v2007 = vpop.f32.mrf.mxu0
      %v2008 = vadd.f32 %v1519, %v2007
      %2009 = vdwg.mxu0
      %2010 = vmatprep.subr.bf16.mxu0 %v1797
      %2011 = vmatpush1.bf16.msra.mxu0 %v1796
      %2012 = vmatprep.subr.bf16.mxu0 %v1789
      %2013 = vmatpush1.bf16.msra.mxu0 %v1788
      %2014 = vmatprep.subr.bf16.mxu0 %v1781
      %2015 = vmatpush1.bf16.msra.mxu0 %v1780
      %2016 = vmatprep.subr.bf16.mxu0 %v1773
      %2017 = vmatpush1.bf16.msra.mxu0 %v1772
      %2018 = vmatprep.subr.bf16.mxu0 %v1765
      %2019 = vmatpush1.bf16.msra.mxu0 %v1764
      %2020 = vmatprep.subr.bf16.mxu0 %v1757
      %2021 = vmatpush1.bf16.msra.mxu0 %v1756
      %2022 = vmatprep.subr.bf16.mxu0 %v1749
      %2023 = vmatpush1.bf16.msra.mxu0 %v1748
      %2024 = vmatprep.subr.bf16.mxu0 %v1741
      %2025 = vmatpush1.bf16.msra.mxu0 %v1740
      %2026 = vmatprep.subr.bf16.mxu0 0
      %2027 = vmatpush2.bf16.msra.mxu0 0
      %2028 = vmatprep.subr.bf16.mxu0 0
      %2029 = vmatpush2.bf16.msra.mxu0 0
      %2030 = vmatprep.subr.bf16.mxu0 0
      %2031 = vmatpush2.bf16.msra.mxu0 0
      %2032 = vmatprep.subr.bf16.mxu0 0
      %2033 = vmatpush2.bf16.msra.mxu0 0
      %2034 = vmatprep.subr.bf16.mxu0 0
      %2035 = vmatpush2.bf16.msra.mxu0 0
      %2036 = vmatprep.subr.bf16.mxu0 0
      %2037 = vmatpush2.bf16.msra.mxu0 0
      %2038 = vmatprep.subr.bf16.mxu0 0
      %2039 = vmatpush2.bf16.msra.mxu0 0
      %2040 = vmatprep.subr.bf16.mxu0 0
      %2041 = vmatpush2.bf16.msra.mxu0 0
      %2042 = vmatprep.mubr.bf16.mxu0 0
      %2043 = vmatmul.mubr.bf16.gmra.mxu0 %v1434
      %v2044 = vpop.f32.mrf.mxu0
      %v2045 = vadd.f32 %v1523, %v2044
      %v2046 = vpop.f32.mrf.mxu0
      %v2047 = vadd.f32 %v1527, %v2046
      %v2048 = vpop.f32.mrf.mxu0
      %v2049 = vadd.f32 %v1523, %v2048
      %v2050 = vpop.f32.mrf.mxu0
      %v2051 = vadd.f32 %v1527, %v2050
      %2052 = vmatprep.mubr.bf16.mxu0 0
      %2053 = vmatmul.mubr.bf16.gmra.mxu0 %v1435
      %v2054 = vpop.f32.mrf.mxu0
      %v2055 = vadd.f32 %v1523, %v2054
      %v2056 = vpop.f32.mrf.mxu0
      %v2057 = vadd.f32 %v1527, %v2056
      %v2058 = vpop.f32.mrf.mxu0
      %v2059 = vadd.f32 %v1523, %v2058
      %v2060 = vpop.f32.mrf.mxu0
      %v2061 = vadd.f32 %v1527, %v2060
      %2062 = vmatprep.mubr.bf16.mxu0 0
      %2063 = vmatmul.mubr.bf16.gmra.mxu0 %v1436
      %v2064 = vpop.f32.mrf.mxu0
      %v2065 = vadd.f32 %v1523, %v2064
      %v2066 = vpop.f32.mrf.mxu0
      %v2067 = vadd.f32 %v1527, %v2066
      %v2068 = vpop.f32.mrf.mxu0
      %v2069 = vadd.f32 %v1523, %v2068
      %v2070 = vpop.f32.mrf.mxu0
      %v2071 = vadd.f32 %v1527, %v2070
      %2072 = vmatprep.mubr.bf16.mxu0 0
      %2073 = vmatmul.mubr.bf16.gmra.mxu0 %v1437
      %v2074 = vpop.f32.mrf.mxu0
      %v2075 = vadd.f32 %v1523, %v2074
      %v2076 = vpop.f32.mrf.mxu0
      %v2077 = vadd.f32 %v1527, %v2076
      %v2078 = vpop.f32.mrf.mxu0
      %v2079 = vadd.f32 %v1523, %v2078
      %v2080 = vpop.f32.mrf.mxu0
      %v2081 = vadd.f32 %v1527, %v2080
      %2082 = vdwg.mxu0
      %2083 = vmatprep.subr.bf16.mxu0 %v1799
      %2084 = vmatpush1.bf16.msra.mxu0 %v1798
      %2085 = vmatprep.subr.bf16.mxu0 %v1791
      %2086 = vmatpush1.bf16.msra.mxu0 %v1790
      %2087 = vmatprep.subr.bf16.mxu0 %v1783
      %2088 = vmatpush1.bf16.msra.mxu0 %v1782
      %2089 = vmatprep.subr.bf16.mxu0 %v1775
      %2090 = vmatpush1.bf16.msra.mxu0 %v1774
      %2091 = vmatprep.subr.bf16.mxu0 %v1767
      %2092 = vmatpush1.bf16.msra.mxu0 %v1766
      %2093 = vmatprep.subr.bf16.mxu0 %v1759
      %2094 = vmatpush1.bf16.msra.mxu0 %v1758
      %2095 = vmatprep.subr.bf16.mxu0 %v1751
      %2096 = vmatpush1.bf16.msra.mxu0 %v1750
      %2097 = vmatprep.subr.bf16.mxu0 %v1743
      %2098 = vmatpush1.bf16.msra.mxu0 %v1742
      %2099 = vmatprep.subr.bf16.mxu0 0
      %2100 = vmatpush2.bf16.msra.mxu0 0
      %2101 = vmatprep.subr.bf16.mxu0 0
      %2102 = vmatpush2.bf16.msra.mxu0 0
      %2103 = vmatprep.subr.bf16.mxu0 0
      %2104 = vmatpush2.bf16.msra.mxu0 0
      %2105 = vmatprep.subr.bf16.mxu0 0
      %2106 = vmatpush2.bf16.msra.mxu0 0
      %2107 = vmatprep.subr.bf16.mxu0 0
      %2108 = vmatpush2.bf16.msra.mxu0 0
      %2109 = vmatprep.subr.bf16.mxu0 0
      %2110 = vmatpush2.bf16.msra.mxu0 0
      %2111 = vmatprep.subr.bf16.mxu0 0
      %2112 = vmatpush2.bf16.msra.mxu0 0
      %2113 = vmatprep.subr.bf16.mxu0 0
      %2114 = vmatpush2.bf16.msra.mxu0 0
      %2115 = vmatprep.mubr.bf16.mxu0 0
      %2116 = vmatmul.mubr.bf16.gmra.mxu0 %v1434
      %v2117 = vpop.f32.mrf.mxu0
      %v2118 = vadd.f32 %v1531, %v2117
      %v2119 = vpop.f32.mrf.mxu0
      %v2120 = vadd.f32 %v1535, %v2119
      %v2121 = vpop.f32.mrf.mxu0
      %v2122 = vadd.f32 %v1531, %v2121
      %v2123 = vpop.f32.mrf.mxu0
      %v2124 = vadd.f32 %v1535, %v2123
      %2125 = vmatprep.mubr.bf16.mxu0 0
      %2126 = vmatmul.mubr.bf16.gmra.mxu0 %v1435
      %v2127 = vpop.f32.mrf.mxu0
      %v2128 = vadd.f32 %v1531, %v2127
      %v2129 = vpop.f32.mrf.mxu0
      %v2130 = vadd.f32 %v1535, %v2129
      %v2131 = vpop.f32.mrf.mxu0
      %v2132 = vadd.f32 %v1531, %v2131
      %v2133 = vpop.f32.mrf.mxu0
      %v2134 = vadd.f32 %v1535, %v2133
      %2135 = vmatprep.mubr.bf16.mxu0 0
      %2136 = vmatmul.mubr.bf16.gmra.mxu0 %v1436
      %v2137 = vpop.f32.mrf.mxu0
      %v2138 = vadd.f32 %v1531, %v2137
      %v2139 = vpop.f32.mrf.mxu0
      %v2140 = vadd.f32 %v1535, %v2139
      %v2141 = vpop.f32.mrf.mxu0
      %v2142 = vadd.f32 %v1531, %v2141
      %v2143 = vpop.f32.mrf.mxu0
      %v2144 = vadd.f32 %v1535, %v2143
      %2145 = vmatprep.mubr.bf16.mxu0 0
      %2146 = vmatmul.mubr.bf16.gmra.mxu0 %v1437
      %v2147 = vpop.f32.mrf.mxu0
      %v2148 = vadd.f32 %v1531, %v2147
      %v2149 = vpop.f32.mrf.mxu0
      %v2150 = vadd.f32 %v1535, %v2149
      %v2151 = vpop.f32.mrf.mxu0
      %v2152 = vadd.f32 %v1531, %v2151
      %v2153 = vpop.f32.mrf.mxu0
      %v2154 = vadd.f32 %v1535, %v2153
      %2155 = vdwg.mxu0
      %v2156 = vld [vmem:[%s11] sm:$0x1]
      %v2157 = vld [vmem:[%s12] sm:$0x1]
      %2158 = vadd.xlane.f32.xlu0 %v783
      %v2159 = vpop.xlane.xlu0 %2158
      %2160 = vadd.xlane.f32.xlu0 %v786
      %v2161 = vpop.xlane.xlu0 %2160
      %2162 = vadd.xlane.f32.xlu0 %v791
      %v2163 = vpop.xlane.xlu0 %2162
      %2164 = vadd.xlane.f32.xlu0 %v794
      %v2165 = vpop.xlane.xlu0 %2164
      %2166 = vadd.xlane.f32.xlu0 %v799
      %v2167 = vpop.xlane.xlu0 %2166
      %2168 = vadd.xlane.f32.xlu0 %v802
      %v2169 = vpop.xlane.xlu0 %2168
      %2170 = vadd.xlane.f32.xlu0 %v807
      %v2171 = vpop.xlane.xlu0 %2170
      %2172 = vadd.xlane.f32.xlu0 %v810
      %v2173 = vpop.xlane.xlu0 %2172
      %v2174 = vrcp.pop 128.0
      %v2175 = vmul.f32 %v2159, %v2174
      %v2176 = vmul.f32 %v2161, %v2174
      %v2177 = vmul.f32 %v2163, %v2174
      %v2178 = vmul.f32 %v2165, %v2174
      %v2179 = vmul.f32 %v2167, %v2174
      %v2180 = vmul.f32 %v2169, %v2174
      %v2181 = vmul.f32 %v2171, %v2174
      %v2182 = vmul.f32 %v2173, %v2174
      %v2183 = vsub.f32 %v783, %v2175
      %v2184 = vsub.f32 %v786, %v2176
      %v2185 = vsub.f32 %v791, %v2177
      %v2186 = vsub.f32 %v794, %v2178
      %v2187 = vsub.f32 %v799, %v2179
      %v2188 = vsub.f32 %v802, %v2180
      %v2189 = vsub.f32 %v807, %v2181
      %v2190 = vsub.f32 %v810, %v2182
      %v2191 = vmul.f32 %v2183, %v2183
      %v2192 = vmul.f32 %v2184, %v2184
      %v2193 = vmul.f32 %v2185, %v2185
      %v2194 = vmul.f32 %v2186, %v2186
      %v2195 = vmul.f32 %v2187, %v2187
      %v2196 = vmul.f32 %v2188, %v2188
      %v2197 = vmul.f32 %v2189, %v2189
      %v2198 = vmul.f32 %v2190, %v2190
      %2199 = vadd.xlane.f32.xlu0 %v2191
      %v2200 = vpop.xlane.xlu0 %2199
      %2201 = vadd.xlane.f32.xlu0 %v2192
      %v2202 = vpop.xlane.xlu0 %2201
      %2203 = vadd.xlane.f32.xlu0 %v2193
      %v2204 = vpop.xlane.xlu0 %2203
      %2205 = vadd.xlane.f32.xlu0 %v2194
      %v2206 = vpop.xlane.xlu0 %2205
      %2207 = vadd.xlane.f32.xlu0 %v2195
      %v2208 = vpop.xlane.xlu0 %2207
      %2209 = vadd.xlane.f32.xlu0 %v2196
      %v2210 = vpop.xlane.xlu0 %2209
      %2211 = vadd.xlane.f32.xlu0 %v2197
      %v2212 = vpop.xlane.xlu0 %2211
      %2213 = vadd.xlane.f32.xlu0 %v2198
      %v2214 = vpop.xlane.xlu0 %2213
      %v2215 = vmul.f32 %v2200, %v2174
      %v2216 = vmul.f32 %v2202, %v2174
      %v2217 = vmul.f32 %v2204, %v2174
      %v2218 = vmul.f32 %v2206, %v2174
      %v2219 = vmul.f32 %v2208, %v2174
      %v2220 = vmul.f32 %v2210, %v2174
      %v2221 = vmul.f32 %v2212, %v2174
      %v2222 = vmul.f32 %v2214, %v2174
      %v2223 = vadd.f32 %v2215, 1e-06
      %v2224 = vadd.f32 %v2216, 1e-06
      %v2225 = vadd.f32 %v2217, 1e-06
      %v2226 = vadd.f32 %v2218, 1e-06
      %v2227 = vadd.f32 %v2219, 1e-06
      %v2228 = vadd.f32 %v2220, 1e-06
      %v2229 = vadd.f32 %v2221, 1e-06
      %v2230 = vadd.f32 %v2222, 1e-06
      %v2231 = vrsqrt.pop %v2223
      %v2232 = vrsqrt.pop %v2224
      %v2233 = vrsqrt.pop %v2225
      %v2234 = vrsqrt.pop %v2226
      %v2235 = vrsqrt.pop %v2227
      %v2236 = vrsqrt.pop %v2228
      %v2237 = vrsqrt.pop %v2229
      %v2238 = vrsqrt.pop %v2230
      %v2239 = vmul.f32 %v2183, %v2231
      %v2240 = vmul.f32 %v2184, %v2232
      %v2241 = vmul.f32 %v2185, %v2233
      %v2242 = vmul.f32 %v2186, %v2234
      %v2243 = vmul.f32 %v2187, %v2235
      %v2244 = vmul.f32 %v2188, %v2236
      %v2245 = vmul.f32 %v2189, %v2237
      %v2246 = vmul.f32 %v2190, %v2238
      %v2248 = vlaneseq
      %v2249 = vshrl.u32 %v2248, 7
      %v2250 = vsub.s32 0, %v2249
      %v2251 = vrot.slane %v2156, %v2250
      %v2253 = vmul.f32 %v2239, %v2251
      %v2254 = vmul.f32 %v2240, %v2251
      %v2255 = vmul.f32 %v2241, %v2251
      %v2256 = vmul.f32 %v2242, %v2251
      %v2257 = vmul.f32 %v2243, %v2251
      %v2258 = vmul.f32 %v2244, %v2251
      %v2259 = vmul.f32 %v2245, %v2251
      %v2260 = vmul.f32 %v2246, %v2251
      %v2262 = vlaneseq
      %v2263 = vshrl.u32 %v2262, 7
      %v2264 = vsub.s32 0, %v2263
      %v2265 = vrot.slane %v2157, %v2264
      %v2267 = vadd.f32 %v2253, %v2265
      %v2268 = vadd.f32 %v2254, %v2265
      %v2269 = vadd.f32 %v2255, %v2265
      %v2270 = vadd.f32 %v2256, %v2265
      %v2271 = vadd.f32 %v2257, %v2265
      %v2272 = vadd.f32 %v2258, %v2265
      %v2273 = vadd.f32 %v2259, %v2265
      %v2274 = vadd.f32 %v2260, %v2265
      %v2275 = vadd.f32 %v1901, 1.0
      %v2276 = vadd.f32 %v1905, 1.0
      %v2277 = vadd.f32 %v1911, 1.0
      %v2278 = vadd.f32 %v1915, 1.0
      %v2279 = vadd.f32 %v1921, 1.0
      %v2280 = vadd.f32 %v1925, 1.0
      %v2281 = vadd.f32 %v1931, 1.0
      %v2282 = vadd.f32 %v1935, 1.0
      %v2283 = vmul.f32 %v2267, %v2275
      %v2284 = vmul.f32 %v2268, %v2276
      %v2285 = vmul.f32 %v2269, %v2277
      %v2286 = vmul.f32 %v2270, %v2278
      %v2287 = vmul.f32 %v2271, %v2279
      %v2288 = vmul.f32 %v2272, %v2280
      %v2289 = vmul.f32 %v2273, %v2281
      %v2290 = vmul.f32 %v2274, %v2282
      %v2291 = vadd.f32 %v2283, %v1899
      %v2292 = vadd.f32 %v2284, %v1903
      %v2293 = vadd.f32 %v2285, %v1909
      %v2294 = vadd.f32 %v2286, %v1913
      %v2295 = vadd.f32 %v2287, %v1919
      %v2296 = vadd.f32 %v2288, %v1923
      %v2297 = vadd.f32 %v2289, %v1929
      %v2298 = vadd.f32 %v2290, %v1933
      %v2299 = vld [vmem:[%s15] sm:$0xf]
      %v2300 = vld [vmem:[%s15 + $0x4] sm:$0xf]
      %v2301 = vld [vmem:[%s15 + $0x8] sm:$0xf]
      %v2302 = vld [vmem:[%s15 + $0xc] sm:$0xf]
      %v2303 = vld [vmem:[%s15 + $0x10] sm:$0xf]
      %v2304 = vld [vmem:[%s15 + $0x14] sm:$0xf]
      %v2305 = vld [vmem:[%s15 + $0x18] sm:$0xf]
      %v2306 = vld [vmem:[%s15 + $0x1c] sm:$0xf]
      %v2307 = vld [vmem:[%s15 + $0x20] sm:$0xf]
      %v2308 = vld [vmem:[%s15 + $0x24] sm:$0xf]
      %v2309 = vld [vmem:[%s15 + $0x28] sm:$0xf]
      %v2310 = vld [vmem:[%s15 + $0x2c] sm:$0xf]
      %v2311 = vld [vmem:[%s15 + $0x30] sm:$0xf]
      %v2312 = vld [vmem:[%s15 + $0x34] sm:$0xf]
      %v2313 = vld [vmem:[%s15 + $0x38] sm:$0xf]
      %v2314 = vld [vmem:[%s15 + $0x3c] sm:$0xf]
      %v2315 = vpack.c.bf16 %v2292, %v2291
      %v2316 = vpack.c.bf16 %v2294, %v2293
      %v2317 = vpack.c.bf16 %v2296, %v2295
      %v2318 = vpack.c.bf16 %v2298, %v2297
      %v2319 = vld [vmem:[%s16] sm:$0x1]
      %v2321 = vlaneseq
      %v2322 = vshrl.u32 %v2321, 7
      %v2323 = vsub.s32 0, %v2322
      %v2324 = vrot.slane %v2319, %v2323
      %v2342 = vunpack.c.l.b16 %v2299
      %v2343 = vunpack.c.l.b16 %v2300
      %v2344 = vunpack.c.l.b16 %v2301
      %v2345 = vunpack.c.l.b16 %v2302
      %v2346 = vunpack.c.l.b16 %v2303
      %v2347 = vunpack.c.l.b16 %v2304
      %v2348 = vunpack.c.l.b16 %v2305
      %v2349 = vunpack.c.l.b16 %v2306
      %v2350 = vunpack.c.l.b16 %v2307
      %v2351 = vunpack.c.l.b16 %v2308
      %v2352 = vunpack.c.l.b16 %v2309
      %v2353 = vunpack.c.l.b16 %v2310
      %v2354 = vunpack.c.l.b16 %v2311
      %v2355 = vunpack.c.l.b16 %v2312
      %v2356 = vunpack.c.l.b16 %v2313
      %v2357 = vunpack.c.l.b16 %v2314
      %v2358 = vpack.c.b16 %v2343, %v2342
      %v2359 = vpack.c.b16 %v2345, %v2344
      %v2360 = vpack.c.b16 %v2347, %v2346
      %v2361 = vpack.c.b16 %v2349, %v2348
      %v2362 = vpack.c.b16 %v2351, %v2350
      %v2363 = vpack.c.b16 %v2353, %v2352
      %v2364 = vpack.c.b16 %v2355, %v2354
      %v2365 = vpack.c.b16 %v2357, %v2356
      %2374 = vmatprep.subr.bf16.mxu0 0
      %2375 = vmatpush1.bf16.msra.mxu0 %v2365
      %2376 = vmatprep.subr.bf16.mxu0 0
      %2377 = vmatpush1.bf16.msra.mxu0 %v2364
      %2378 = vmatprep.subr.bf16.mxu0 0
      %2379 = vmatpush1.bf16.msra.mxu0 %v2363
      %2380 = vmatprep.subr.bf16.mxu0 0
      %2381 = vmatpush1.bf16.msra.mxu0 %v2362
      %2382 = vmatprep.subr.bf16.mxu0 0
      %2383 = vmatpush1.bf16.msra.mxu0 %v2361
      %2384 = vmatprep.subr.bf16.mxu0 0
      %2385 = vmatpush1.bf16.msra.mxu0 %v2360
      %2386 = vmatprep.subr.bf16.mxu0 0
      %2387 = vmatpush1.bf16.msra.mxu0 %v2359
      %2388 = vmatprep.subr.bf16.mxu0 0
      %2389 = vmatpush1.bf16.msra.mxu0 %v2358
      %2390 = vmatprep.subr.bf16.mxu0 0
      %2391 = vmatpush2.bf16.msra.mxu0 0
      %2392 = vmatprep.subr.bf16.mxu0 0
      %2393 = vmatpush2.bf16.msra.mxu0 0
      %2394 = vmatprep.subr.bf16.mxu0 0
      %2395 = vmatpush2.bf16.msra.mxu0 0
      %2396 = vmatprep.subr.bf16.mxu0 0
      %2397 = vmatpush2.bf16.msra.mxu0 0
      %2398 = vmatprep.subr.bf16.mxu0 0
      %2399 = vmatpush2.bf16.msra.mxu0 0
      %2400 = vmatprep.subr.bf16.mxu0 0
      %2401 = vmatpush2.bf16.msra.mxu0 0
      %2402 = vmatprep.subr.bf16.mxu0 0
      %2403 = vmatpush2.bf16.msra.mxu0 0
      %2404 = vmatprep.subr.bf16.mxu0 0
      %2405 = vmatpush2.bf16.msra.mxu0 0
      %2406 = vmatprep.mubr.bf16.mxu0 0
      %2407 = vmatmul.mubr.bf16.gmra.mxu0 %v2315
      %v2408 = vpop.f32.mrf.mxu0
      %v2409 = vadd.f32 %v2324, %v2408
      %v2410 = vpop.f32.mrf.mxu0
      %v2411 = vpop.f32.mrf.mxu0
      %v2412 = vadd.f32 %v2324, %v2411
      %v2413 = vpop.f32.mrf.mxu0
      %2414 = vmatprep.mubr.bf16.mxu0 0
      %2415 = vmatmul.mubr.bf16.gmra.mxu0 %v2316
      %v2416 = vpop.f32.mrf.mxu0
      %v2417 = vadd.f32 %v2324, %v2416
      %v2418 = vpop.f32.mrf.mxu0
      %v2419 = vpop.f32.mrf.mxu0
      %v2420 = vadd.f32 %v2324, %v2419
      %v2421 = vpop.f32.mrf.mxu0
      %2422 = vmatprep.mubr.bf16.mxu0 0
      %2423 = vmatmul.mubr.bf16.gmra.mxu0 %v2317
      %v2424 = vpop.f32.mrf.mxu0
      %v2425 = vadd.f32 %v2324, %v2424
      %v2426 = vpop.f32.mrf.mxu0
      %v2427 = vpop.f32.mrf.mxu0
      %v2428 = vadd.f32 %v2324, %v2427
      %v2429 = vpop.f32.mrf.mxu0
      %2430 = vmatprep.mubr.bf16.mxu0 0
      %2431 = vmatmul.mubr.bf16.gmra.mxu0 %v2318
      %v2432 = vpop.f32.mrf.mxu0
      %v2433 = vadd.f32 %v2324, %v2432
      %v2434 = vpop.f32.mrf.mxu0
      %v2435 = vpop.f32.mrf.mxu0
      %v2436 = vadd.f32 %v2324, %v2435
      %v2437 = vpop.f32.mrf.mxu0
      %2438 = vdwg.mxu0
      %v2439 = vxor.u32 %v2409, 2147483648
      %v2440 = vxor.u32 %v2412, 2147483648
      %v2441 = vxor.u32 %v2417, 2147483648
      %v2442 = vxor.u32 %v2420, 2147483648
      %v2443 = vxor.u32 %v2425, 2147483648
      %v2444 = vxor.u32 %v2428, 2147483648
      %v2445 = vxor.u32 %v2433, 2147483648
      %v2446 = vxor.u32 %v2436, 2147483648
      %v2447 = vmul.f32 %v2439, 1.442695
      %v2448 = vpow.pop %v2447
      %v2449 = vmul.f32 %v2440, 1.442695
      %v2450 = vpow.pop %v2449
      %v2451 = vmul.f32 %v2441, 1.442695
      %v2452 = vpow.pop %v2451
      %v2453 = vmul.f32 %v2442, 1.442695
      %v2454 = vpow.pop %v2453
      %v2455 = vmul.f32 %v2443, 1.442695
      %v2456 = vpow.pop %v2455
      %v2457 = vmul.f32 %v2444, 1.442695
      %v2458 = vpow.pop %v2457
      %v2459 = vmul.f32 %v2445, 1.442695
      %v2460 = vpow.pop %v2459
      %v2461 = vmul.f32 %v2446, 1.442695
      %v2462 = vpow.pop %v2461
      %v2463 = vadd.f32 %v2448, 1.0
      %v2464 = vadd.f32 %v2450, 1.0
      %v2465 = vadd.f32 %v2452, 1.0
      %v2466 = vadd.f32 %v2454, 1.0
      %v2467 = vadd.f32 %v2456, 1.0
      %v2468 = vadd.f32 %v2458, 1.0
      %v2469 = vadd.f32 %v2460, 1.0
      %v2470 = vadd.f32 %v2462, 1.0
      %v2471 = vrcp.pop %v2463
      %v2472 = vmul.f32 1.0, %v2471
      %v2473 = vrcp.pop %v2464
      %v2474 = vmul.f32 1.0, %v2473
      %v2475 = vrcp.pop %v2465
      %v2476 = vmul.f32 1.0, %v2475
      %v2477 = vrcp.pop %v2466
      %v2478 = vmul.f32 1.0, %v2477
      %v2479 = vrcp.pop %v2467
      %v2480 = vmul.f32 1.0, %v2479
      %v2481 = vrcp.pop %v2468
      %v2482 = vmul.f32 1.0, %v2481
      %v2483 = vrcp.pop %v2469
      %v2484 = vmul.f32 1.0, %v2483
      %v2485 = vrcp.pop %v2470
      %v2486 = vmul.f32 1.0, %v2485
      %v2487 = vmul.f32 %v2409, %v2472
      %v2488 = vmul.f32 %v2412, %v2474
      %v2489 = vmul.f32 %v2417, %v2476
      %v2490 = vmul.f32 %v2420, %v2478
      %v2491 = vmul.f32 %v2425, %v2480
      %v2492 = vmul.f32 %v2428, %v2482
      %v2493 = vmul.f32 %v2433, %v2484
      %v2494 = vmul.f32 %v2436, %v2486
      %v2495 = vld [vmem:[%s17] sm:$0xf]
      %v2496 = vld [vmem:[%s17 + $0x4] sm:$0xf]
      %v2497 = vld [vmem:[%s17 + $0x8] sm:$0xf]
      %v2498 = vld [vmem:[%s17 + $0xc] sm:$0xf]
      %v2499 = vld [vmem:[%s17 + $0x10] sm:$0xf]
      %v2500 = vld [vmem:[%s17 + $0x14] sm:$0xf]
      %v2501 = vld [vmem:[%s17 + $0x18] sm:$0xf]
      %v2502 = vld [vmem:[%s17 + $0x1c] sm:$0xf]
      %v2503 = vld [vmem:[%s17 + $0x20] sm:$0xf]
      %v2504 = vld [vmem:[%s17 + $0x24] sm:$0xf]
      %v2505 = vld [vmem:[%s17 + $0x28] sm:$0xf]
      %v2506 = vld [vmem:[%s17 + $0x2c] sm:$0xf]
      %v2507 = vld [vmem:[%s17 + $0x30] sm:$0xf]
      %v2508 = vld [vmem:[%s17 + $0x34] sm:$0xf]
      %v2509 = vld [vmem:[%s17 + $0x38] sm:$0xf]
      %v2510 = vld [vmem:[%s17 + $0x3c] sm:$0xf]
      %v2511 = vpack.c.bf16 %v2488, %v2487
      %v2512 = vpack.c.bf16 %v2490, %v2489
      %v2513 = vpack.c.bf16 %v2492, %v2491
      %v2514 = vpack.c.bf16 %v2494, %v2493
      %v2515 = vld [vmem:[%s18] sm:$0x1]
      %v2517 = vlaneseq
      %v2518 = vshrl.u32 %v2517, 7
      %v2519 = vsub.s32 0, %v2518
      %v2520 = vrot.slane %v2515, %v2519
      %v2538 = vunpack.c.l.b16 %v2495
      %v2539 = vunpack.c.l.b16 %v2496
      %v2540 = vunpack.c.l.b16 %v2497
      %v2541 = vunpack.c.l.b16 %v2498
      %v2542 = vunpack.c.l.b16 %v2499
      %v2543 = vunpack.c.l.b16 %v2500
      %v2544 = vunpack.c.l.b16 %v2501
      %v2545 = vunpack.c.l.b16 %v2502
      %v2546 = vunpack.c.l.b16 %v2503
      %v2547 = vunpack.c.l.b16 %v2504
      %v2548 = vunpack.c.l.b16 %v2505
      %v2549 = vunpack.c.l.b16 %v2506
      %v2550 = vunpack.c.l.b16 %v2507
      %v2551 = vunpack.c.l.b16 %v2508
      %v2552 = vunpack.c.l.b16 %v2509
      %v2553 = vunpack.c.l.b16 %v2510
      %v2554 = vpack.c.b16 %v2539, %v2538
      %v2555 = vpack.c.b16 %v2541, %v2540
      %v2556 = vpack.c.b16 %v2543, %v2542
      %v2557 = vpack.c.b16 %v2545, %v2544
      %v2558 = vpack.c.b16 %v2547, %v2546
      %v2559 = vpack.c.b16 %v2549, %v2548
      %v2560 = vpack.c.b16 %v2551, %v2550
      %v2561 = vpack.c.b16 %v2553, %v2552
      %2570 = vmatprep.subr.bf16.mxu0 0
      %2571 = vmatpush1.bf16.msra.mxu0 %v2561
      %2572 = vmatprep.subr.bf16.mxu0 0
      %2573 = vmatpush1.bf16.msra.mxu0 %v2560
      %2574 = vmatprep.subr.bf16.mxu0 0
      %2575 = vmatpush1.bf16.msra.mxu0 %v2559
      %2576 = vmatprep.subr.bf16.mxu0 0
      %2577 = vmatpush1.bf16.msra.mxu0 %v2558
      %2578 = vmatprep.subr.bf16.mxu0 0
      %2579 = vmatpush1.bf16.msra.mxu0 %v2557
      %2580 = vmatprep.subr.bf16.mxu0 0
      %2581 = vmatpush1.bf16.msra.mxu0 %v2556
      %2582 = vmatprep.subr.bf16.mxu0 0
      %2583 = vmatpush1.bf16.msra.mxu0 %v2555
      %2584 = vmatprep.subr.bf16.mxu0 0
      %2585 = vmatpush1.bf16.msra.mxu0 %v2554
      %2586 = vmatprep.subr.bf16.mxu0 0
      %2587 = vmatpush2.bf16.msra.mxu0 0
      %2588 = vmatprep.subr.bf16.mxu0 0
      %2589 = vmatpush2.bf16.msra.mxu0 0
      %2590 = vmatprep.subr.bf16.mxu0 0
      %2591 = vmatpush2.bf16.msra.mxu0 0
      %2592 = vmatprep.subr.bf16.mxu0 0
      %2593 = vmatpush2.bf16.msra.mxu0 0
      %2594 = vmatprep.subr.bf16.mxu0 0
      %2595 = vmatpush2.bf16.msra.mxu0 0
      %2596 = vmatprep.subr.bf16.mxu0 0
      %2597 = vmatpush2.bf16.msra.mxu0 0
      %2598 = vmatprep.subr.bf16.mxu0 0
      %2599 = vmatpush2.bf16.msra.mxu0 0
      %2600 = vmatprep.subr.bf16.mxu0 0
      %2601 = vmatpush2.bf16.msra.mxu0 0
      %2602 = vmatprep.mubr.bf16.mxu0 0
      %2603 = vmatmul.mubr.bf16.gmra.mxu0 %v2511
      %v2604 = vpop.f32.mrf.mxu0
      %v2605 = vadd.f32 %v2520, %v2604
      %v2606 = vpop.f32.mrf.mxu0
      %v2607 = vpop.f32.mrf.mxu0
      %v2608 = vadd.f32 %v2520, %v2607
      %v2609 = vpop.f32.mrf.mxu0
      %2610 = vmatprep.mubr.bf16.mxu0 0
      %2611 = vmatmul.mubr.bf16.gmra.mxu0 %v2512
      %v2612 = vpop.f32.mrf.mxu0
      %v2613 = vadd.f32 %v2520, %v2612
      %v2614 = vpop.f32.mrf.mxu0
      %v2615 = vpop.f32.mrf.mxu0
      %v2616 = vadd.f32 %v2520, %v2615
      %v2617 = vpop.f32.mrf.mxu0
      %2618 = vmatprep.mubr.bf16.mxu0 0
      %2619 = vmatmul.mubr.bf16.gmra.mxu0 %v2513
      %v2620 = vpop.f32.mrf.mxu0
      %v2621 = vadd.f32 %v2520, %v2620
      %v2622 = vpop.f32.mrf.mxu0
      %v2623 = vpop.f32.mrf.mxu0
      %v2624 = vadd.f32 %v2520, %v2623
      %v2625 = vpop.f32.mrf.mxu0
      %2626 = vmatprep.mubr.bf16.mxu0 0
      %2627 = vmatmul.mubr.bf16.gmra.mxu0 %v2514
      %v2628 = vpop.f32.mrf.mxu0
      %v2629 = vadd.f32 %v2520, %v2628
      %v2630 = vpop.f32.mrf.mxu0
      %v2631 = vpop.f32.mrf.mxu0
      %v2632 = vadd.f32 %v2520, %v2631
      %v2633 = vpop.f32.mrf.mxu0
      %2634 = vdwg.mxu0
      %v2635 = vmul.f32 %v1972, %v2605
      %v2636 = vmul.f32 %v1976, %v2608
      %v2637 = vmul.f32 %v1982, %v2613
      %v2638 = vmul.f32 %v1986, %v2616
      %v2639 = vmul.f32 %v1992, %v2621
      %v2640 = vmul.f32 %v1996, %v2624
      %v2641 = vmul.f32 %v2002, %v2629
      %v2642 = vmul.f32 %v2006, %v2632
      %v2643 = vadd.f32 %v783, %v2635
      %v2644 = vadd.f32 %v786, %v2636
      %v2645 = vadd.f32 %v791, %v2637
      %v2646 = vadd.f32 %v794, %v2638
      %v2647 = vadd.f32 %v799, %v2639
      %v2648 = vadd.f32 %v802, %v2640
      %v2649 = vadd.f32 %v807, %v2641
      %v2650 = vadd.f32 %v810, %v2642
      %s2651 = scalar_lea.vmem %s11, 1
      %v2652 = vld [vmem:[%s2651] sm:$0x1]
      %s2653 = scalar_lea.vmem %s12, 1
      %v2654 = vld [vmem:[%s2653] sm:$0x1]
      %2655 = vadd.xlane.f32.xlu0 %v2643
      %v2656 = vpop.xlane.xlu0 %2655
      %2657 = vadd.xlane.f32.xlu0 %v2644
      %v2658 = vpop.xlane.xlu0 %2657
      %2659 = vadd.xlane.f32.xlu0 %v2645
      %v2660 = vpop.xlane.xlu0 %2659
      %2661 = vadd.xlane.f32.xlu0 %v2646
      %v2662 = vpop.xlane.xlu0 %2661
      %2663 = vadd.xlane.f32.xlu0 %v2647
      %v2664 = vpop.xlane.xlu0 %2663
      %2665 = vadd.xlane.f32.xlu0 %v2648
      %v2666 = vpop.xlane.xlu0 %2665
      %2667 = vadd.xlane.f32.xlu0 %v2649
      %v2668 = vpop.xlane.xlu0 %2667
      %2669 = vadd.xlane.f32.xlu0 %v2650
      %v2670 = vpop.xlane.xlu0 %2669
      %v2671 = vmul.f32 %v2656, %v2174
      %v2672 = vmul.f32 %v2658, %v2174
      %v2673 = vmul.f32 %v2660, %v2174
      %v2674 = vmul.f32 %v2662, %v2174
      %v2675 = vmul.f32 %v2664, %v2174
      %v2676 = vmul.f32 %v2666, %v2174
      %v2677 = vmul.f32 %v2668, %v2174
      %v2678 = vmul.f32 %v2670, %v2174
      %v2679 = vsub.f32 %v2643, %v2671
      %v2680 = vsub.f32 %v2644, %v2672
      %v2681 = vsub.f32 %v2645, %v2673
      %v2682 = vsub.f32 %v2646, %v2674
      %v2683 = vsub.f32 %v2647, %v2675
      %v2684 = vsub.f32 %v2648, %v2676
      %v2685 = vsub.f32 %v2649, %v2677
      %v2686 = vsub.f32 %v2650, %v2678
      %v2687 = vmul.f32 %v2679, %v2679
      %v2688 = vmul.f32 %v2680, %v2680
      %v2689 = vmul.f32 %v2681, %v2681
      %v2690 = vmul.f32 %v2682, %v2682
      %v2691 = vmul.f32 %v2683, %v2683
      %v2692 = vmul.f32 %v2684, %v2684
      %v2693 = vmul.f32 %v2685, %v2685
      %v2694 = vmul.f32 %v2686, %v2686
      %2695 = vadd.xlane.f32.xlu0 %v2687
      %v2696 = vpop.xlane.xlu0 %2695
      %2697 = vadd.xlane.f32.xlu0 %v2688
      %v2698 = vpop.xlane.xlu0 %2697
      %2699 = vadd.xlane.f32.xlu0 %v2689
      %v2700 = vpop.xlane.xlu0 %2699
      %2701 = vadd.xlane.f32.xlu0 %v2690
      %v2702 = vpop.xlane.xlu0 %2701
      %2703 = vadd.xlane.f32.xlu0 %v2691
      %v2704 = vpop.xlane.xlu0 %2703
      %2705 = vadd.xlane.f32.xlu0 %v2692
      %v2706 = vpop.xlane.xlu0 %2705
      %2707 = vadd.xlane.f32.xlu0 %v2693
      %v2708 = vpop.xlane.xlu0 %2707
      %2709 = vadd.xlane.f32.xlu0 %v2694
      %v2710 = vpop.xlane.xlu0 %2709
      %v2711 = vmul.f32 %v2696, %v2174
      %v2712 = vmul.f32 %v2698, %v2174
      %v2713 = vmul.f32 %v2700, %v2174
      %v2714 = vmul.f32 %v2702, %v2174
      %v2715 = vmul.f32 %v2704, %v2174
      %v2716 = vmul.f32 %v2706, %v2174
      %v2717 = vmul.f32 %v2708, %v2174
      %v2718 = vmul.f32 %v2710, %v2174
      %v2719 = vadd.f32 %v2711, 1e-06
      %v2720 = vadd.f32 %v2712, 1e-06
      %v2721 = vadd.f32 %v2713, 1e-06
      %v2722 = vadd.f32 %v2714, 1e-06
      %v2723 = vadd.f32 %v2715, 1e-06
      %v2724 = vadd.f32 %v2716, 1e-06
      %v2725 = vadd.f32 %v2717, 1e-06
      %v2726 = vadd.f32 %v2718, 1e-06
      %v2727 = vrsqrt.pop %v2719
      %v2728 = vrsqrt.pop %v2720
      %v2729 = vrsqrt.pop %v2721
      %v2730 = vrsqrt.pop %v2722
      %v2731 = vrsqrt.pop %v2723
      %v2732 = vrsqrt.pop %v2724
      %v2733 = vrsqrt.pop %v2725
      %v2734 = vrsqrt.pop %v2726
      %v2735 = vmul.f32 %v2679, %v2727
      %v2736 = vmul.f32 %v2680, %v2728
      %v2737 = vmul.f32 %v2681, %v2729
      %v2738 = vmul.f32 %v2682, %v2730
      %v2739 = vmul.f32 %v2683, %v2731
      %v2740 = vmul.f32 %v2684, %v2732
      %v2741 = vmul.f32 %v2685, %v2733
      %v2742 = vmul.f32 %v2686, %v2734
      %v2744 = vlaneseq
      %v2745 = vshrl.u32 %v2744, 7
      %v2746 = vsub.s32 0, %v2745
      %v2747 = vrot.slane %v2652, %v2746
      %v2749 = vmul.f32 %v2735, %v2747
      %v2750 = vmul.f32 %v2736, %v2747
      %v2751 = vmul.f32 %v2737, %v2747
      %v2752 = vmul.f32 %v2738, %v2747
      %v2753 = vmul.f32 %v2739, %v2747
      %v2754 = vmul.f32 %v2740, %v2747
      %v2755 = vmul.f32 %v2741, %v2747
      %v2756 = vmul.f32 %v2742, %v2747
      %v2758 = vlaneseq
      %v2759 = vshrl.u32 %v2758, 7
      %v2760 = vsub.s32 0, %v2759
      %v2761 = vrot.slane %v2654, %v2760
      %v2763 = vadd.f32 %v2749, %v2761
      %v2764 = vadd.f32 %v2750, %v2761
      %v2765 = vadd.f32 %v2751, %v2761
      %v2766 = vadd.f32 %v2752, %v2761
      %v2767 = vadd.f32 %v2753, %v2761
      %v2768 = vadd.f32 %v2754, %v2761
      %v2769 = vadd.f32 %v2755, %v2761
      %v2770 = vadd.f32 %v2756, %v2761
      %v2771 = vadd.f32 %v2045, 1.0
      %v2772 = vadd.f32 %v2049, 1.0
      %v2773 = vadd.f32 %v2055, 1.0
      %v2774 = vadd.f32 %v2059, 1.0
      %v2775 = vadd.f32 %v2065, 1.0
      %v2776 = vadd.f32 %v2069, 1.0
      %v2777 = vadd.f32 %v2075, 1.0
      %v2778 = vadd.f32 %v2079, 1.0
      %v2779 = vmul.f32 %v2763, %v2771
      %v2780 = vmul.f32 %v2764, %v2772
      %v2781 = vmul.f32 %v2765, %v2773
      %v2782 = vmul.f32 %v2766, %v2774
      %v2783 = vmul.f32 %v2767, %v2775
      %v2784 = vmul.f32 %v2768, %v2776
      %v2785 = vmul.f32 %v2769, %v2777
      %v2786 = vmul.f32 %v2770, %v2778
      %v2787 = vadd.f32 %v2779, %v1974
      %v2788 = vadd.f32 %v2780, %v1978
      %v2789 = vadd.f32 %v2781, %v1984
      %v2790 = vadd.f32 %v2782, %v1988
      %v2791 = vadd.f32 %v2783, %v1994
      %v2792 = vadd.f32 %v2784, %v1998
      %v2793 = vadd.f32 %v2785, %v2004
      %v2794 = vadd.f32 %v2786, %v2008
      %s2795 = scalar_lea.vmem %s15, 64
      %v2796 = vld [vmem:[%s2795] sm:$0xf]
      %v2797 = vld [vmem:[%s2795 + $0x4] sm:$0xf]
      %v2798 = vld [vmem:[%s2795 + $0x8] sm:$0xf]
      %v2799 = vld [vmem:[%s2795 + $0xc] sm:$0xf]
      %v2800 = vld [vmem:[%s2795 + $0x10] sm:$0xf]
      %v2801 = vld [vmem:[%s2795 + $0x14] sm:$0xf]
      %v2802 = vld [vmem:[%s2795 + $0x18] sm:$0xf]
      %v2803 = vld [vmem:[%s2795 + $0x1c] sm:$0xf]
      %v2804 = vld [vmem:[%s2795 + $0x20] sm:$0xf]
      %v2805 = vld [vmem:[%s2795 + $0x24] sm:$0xf]
      %v2806 = vld [vmem:[%s2795 + $0x28] sm:$0xf]
      %v2807 = vld [vmem:[%s2795 + $0x2c] sm:$0xf]
      %v2808 = vld [vmem:[%s2795 + $0x30] sm:$0xf]
      %v2809 = vld [vmem:[%s2795 + $0x34] sm:$0xf]
      %v2810 = vld [vmem:[%s2795 + $0x38] sm:$0xf]
      %v2811 = vld [vmem:[%s2795 + $0x3c] sm:$0xf]
      %v2812 = vpack.c.bf16 %v2788, %v2787
      %v2813 = vpack.c.bf16 %v2790, %v2789
      %v2814 = vpack.c.bf16 %v2792, %v2791
      %v2815 = vpack.c.bf16 %v2794, %v2793
      %s2816 = scalar_lea.vmem %s16, 1
      %v2817 = vld [vmem:[%s2816] sm:$0x1]
      %v2819 = vlaneseq
      %v2820 = vshrl.u32 %v2819, 7
      %v2821 = vsub.s32 0, %v2820
      %v2822 = vrot.slane %v2817, %v2821
      %v2840 = vunpack.c.l.b16 %v2796
      %v2841 = vunpack.c.l.b16 %v2797
      %v2842 = vunpack.c.l.b16 %v2798
      %v2843 = vunpack.c.l.b16 %v2799
      %v2844 = vunpack.c.l.b16 %v2800
      %v2845 = vunpack.c.l.b16 %v2801
      %v2846 = vunpack.c.l.b16 %v2802
      %v2847 = vunpack.c.l.b16 %v2803
      %v2848 = vunpack.c.l.b16 %v2804
      %v2849 = vunpack.c.l.b16 %v2805
      %v2850 = vunpack.c.l.b16 %v2806
      %v2851 = vunpack.c.l.b16 %v2807
      %v2852 = vunpack.c.l.b16 %v2808
      %v2853 = vunpack.c.l.b16 %v2809
      %v2854 = vunpack.c.l.b16 %v2810
      %v2855 = vunpack.c.l.b16 %v2811
      %v2856 = vpack.c.b16 %v2841, %v2840
      %v2857 = vpack.c.b16 %v2843, %v2842
      %v2858 = vpack.c.b16 %v2845, %v2844
      %v2859 = vpack.c.b16 %v2847, %v2846
      %v2860 = vpack.c.b16 %v2849, %v2848
      %v2861 = vpack.c.b16 %v2851, %v2850
      %v2862 = vpack.c.b16 %v2853, %v2852
      %v2863 = vpack.c.b16 %v2855, %v2854
      %2872 = vmatprep.subr.bf16.mxu0 0
      %2873 = vmatpush1.bf16.msra.mxu0 %v2863
      %2874 = vmatprep.subr.bf16.mxu0 0
      %2875 = vmatpush1.bf16.msra.mxu0 %v2862
      %2876 = vmatprep.subr.bf16.mxu0 0
      %2877 = vmatpush1.bf16.msra.mxu0 %v2861
      %2878 = vmatprep.subr.bf16.mxu0 0
      %2879 = vmatpush1.bf16.msra.mxu0 %v2860
      %2880 = vmatprep.subr.bf16.mxu0 0
      %2881 = vmatpush1.bf16.msra.mxu0 %v2859
      %2882 = vmatprep.subr.bf16.mxu0 0
      %2883 = vmatpush1.bf16.msra.mxu0 %v2858
      %2884 = vmatprep.subr.bf16.mxu0 0
      %2885 = vmatpush1.bf16.msra.mxu0 %v2857
      %2886 = vmatprep.subr.bf16.mxu0 0
      %2887 = vmatpush1.bf16.msra.mxu0 %v2856
      %2888 = vmatprep.subr.bf16.mxu0 0
      %2889 = vmatpush2.bf16.msra.mxu0 0
      %2890 = vmatprep.subr.bf16.mxu0 0
      %2891 = vmatpush2.bf16.msra.mxu0 0
      %2892 = vmatprep.subr.bf16.mxu0 0
      %2893 = vmatpush2.bf16.msra.mxu0 0
      %2894 = vmatprep.subr.bf16.mxu0 0
      %2895 = vmatpush2.bf16.msra.mxu0 0
      %2896 = vmatprep.subr.bf16.mxu0 0
      %2897 = vmatpush2.bf16.msra.mxu0 0
      %2898 = vmatprep.subr.bf16.mxu0 0
      %2899 = vmatpush2.bf16.msra.mxu0 0
      %2900 = vmatprep.subr.bf16.mxu0 0
      %2901 = vmatpush2.bf16.msra.mxu0 0
      %2902 = vmatprep.subr.bf16.mxu0 0
      %2903 = vmatpush2.bf16.msra.mxu0 0
      %2904 = vmatprep.mubr.bf16.mxu0 0
      %2905 = vmatmul.mubr.bf16.gmra.mxu0 %v2812
      %v2906 = vpop.f32.mrf.mxu0
      %v2907 = vadd.f32 %v2822, %v2906
      %v2908 = vpop.f32.mrf.mxu0
      %v2909 = vpop.f32.mrf.mxu0
      %v2910 = vadd.f32 %v2822, %v2909
      %v2911 = vpop.f32.mrf.mxu0
      %2912 = vmatprep.mubr.bf16.mxu0 0
      %2913 = vmatmul.mubr.bf16.gmra.mxu0 %v2813
      %v2914 = vpop.f32.mrf.mxu0
      %v2915 = vadd.f32 %v2822, %v2914
      %v2916 = vpop.f32.mrf.mxu0
      %v2917 = vpop.f32.mrf.mxu0
      %v2918 = vadd.f32 %v2822, %v2917
      %v2919 = vpop.f32.mrf.mxu0
      %2920 = vmatprep.mubr.bf16.mxu0 0
      %2921 = vmatmul.mubr.bf16.gmra.mxu0 %v2814
      %v2922 = vpop.f32.mrf.mxu0
      %v2923 = vadd.f32 %v2822, %v2922
      %v2924 = vpop.f32.mrf.mxu0
      %v2925 = vpop.f32.mrf.mxu0
      %v2926 = vadd.f32 %v2822, %v2925
      %v2927 = vpop.f32.mrf.mxu0
      %2928 = vmatprep.mubr.bf16.mxu0 0
      %2929 = vmatmul.mubr.bf16.gmra.mxu0 %v2815
      %v2930 = vpop.f32.mrf.mxu0
      %v2931 = vadd.f32 %v2822, %v2930
      %v2932 = vpop.f32.mrf.mxu0
      %v2933 = vpop.f32.mrf.mxu0
      %v2934 = vadd.f32 %v2822, %v2933
      %v2935 = vpop.f32.mrf.mxu0
      %2936 = vdwg.mxu0
      %v2937 = vxor.u32 %v2907, 2147483648
      %v2938 = vxor.u32 %v2910, 2147483648
      %v2939 = vxor.u32 %v2915, 2147483648
      %v2940 = vxor.u32 %v2918, 2147483648
      %v2941 = vxor.u32 %v2923, 2147483648
      %v2942 = vxor.u32 %v2926, 2147483648
      %v2943 = vxor.u32 %v2931, 2147483648
      %v2944 = vxor.u32 %v2934, 2147483648
      %v2945 = vmul.f32 %v2937, 1.442695
      %v2946 = vpow.pop %v2945
      %v2947 = vmul.f32 %v2938, 1.442695
      %v2948 = vpow.pop %v2947
      %v2949 = vmul.f32 %v2939, 1.442695
      %v2950 = vpow.pop %v2949
      %v2951 = vmul.f32 %v2940, 1.442695
      %v2952 = vpow.pop %v2951
      %v2953 = vmul.f32 %v2941, 1.442695
      %v2954 = vpow.pop %v2953
      %v2955 = vmul.f32 %v2942, 1.442695
      %v2956 = vpow.pop %v2955
      %v2957 = vmul.f32 %v2943, 1.442695
      %v2958 = vpow.pop %v2957
      %v2959 = vmul.f32 %v2944, 1.442695
      %v2960 = vpow.pop %v2959
      %v2961 = vadd.f32 %v2946, 1.0
      %v2962 = vadd.f32 %v2948, 1.0
      %v2963 = vadd.f32 %v2950, 1.0
      %v2964 = vadd.f32 %v2952, 1.0
      %v2965 = vadd.f32 %v2954, 1.0
      %v2966 = vadd.f32 %v2956, 1.0
      %v2967 = vadd.f32 %v2958, 1.0
      %v2968 = vadd.f32 %v2960, 1.0
      %v2969 = vrcp.pop %v2961
      %v2970 = vmul.f32 1.0, %v2969
      %v2971 = vrcp.pop %v2962
      %v2972 = vmul.f32 1.0, %v2971
      %v2973 = vrcp.pop %v2963
      %v2974 = vmul.f32 1.0, %v2973
      %v2975 = vrcp.pop %v2964
      %v2976 = vmul.f32 1.0, %v2975
      %v2977 = vrcp.pop %v2965
      %v2978 = vmul.f32 1.0, %v2977
      %v2979 = vrcp.pop %v2966
      %v2980 = vmul.f32 1.0, %v2979
      %v2981 = vrcp.pop %v2967
      %v2982 = vmul.f32 1.0, %v2981
      %v2983 = vrcp.pop %v2968
      %v2984 = vmul.f32 1.0, %v2983
      %v2985 = vmul.f32 %v2907, %v2970
      %v2986 = vmul.f32 %v2910, %v2972
      %v2987 = vmul.f32 %v2915, %v2974
      %v2988 = vmul.f32 %v2918, %v2976
      %v2989 = vmul.f32 %v2923, %v2978
      %v2990 = vmul.f32 %v2926, %v2980
      %v2991 = vmul.f32 %v2931, %v2982
      %v2992 = vmul.f32 %v2934, %v2984
      %s2993 = scalar_lea.vmem %s17, 64
      %v2994 = vld [vmem:[%s2993] sm:$0xf]
      %v2995 = vld [vmem:[%s2993 + $0x4] sm:$0xf]
      %v2996 = vld [vmem:[%s2993 + $0x8] sm:$0xf]
      %v2997 = vld [vmem:[%s2993 + $0xc] sm:$0xf]
      %v2998 = vld [vmem:[%s2993 + $0x10] sm:$0xf]
      %v2999 = vld [vmem:[%s2993 + $0x14] sm:$0xf]
      %v3000 = vld [vmem:[%s2993 + $0x18] sm:$0xf]
      %v3001 = vld [vmem:[%s2993 + $0x1c] sm:$0xf]
      %v3002 = vld [vmem:[%s2993 + $0x20] sm:$0xf]
      %v3003 = vld [vmem:[%s2993 + $0x24] sm:$0xf]
      %v3004 = vld [vmem:[%s2993 + $0x28] sm:$0xf]
      %v3005 = vld [vmem:[%s2993 + $0x2c] sm:$0xf]
      %v3006 = vld [vmem:[%s2993 + $0x30] sm:$0xf]
      %v3007 = vld [vmem:[%s2993 + $0x34] sm:$0xf]
      %v3008 = vld [vmem:[%s2993 + $0x38] sm:$0xf]
      %v3009 = vld [vmem:[%s2993 + $0x3c] sm:$0xf]
      %v3010 = vpack.c.bf16 %v2986, %v2985
      %v3011 = vpack.c.bf16 %v2988, %v2987
      %v3012 = vpack.c.bf16 %v2990, %v2989
      %v3013 = vpack.c.bf16 %v2992, %v2991
      %s3014 = scalar_lea.vmem %s18, 1
      %v3015 = vld [vmem:[%s3014] sm:$0x1]
      %v3017 = vlaneseq
      %v3018 = vshrl.u32 %v3017, 7
      %v3019 = vsub.s32 0, %v3018
      %v3020 = vrot.slane %v3015, %v3019
      %v3038 = vunpack.c.l.b16 %v2994
      %v3039 = vunpack.c.l.b16 %v2995
      %v3040 = vunpack.c.l.b16 %v2996
      %v3041 = vunpack.c.l.b16 %v2997
      %v3042 = vunpack.c.l.b16 %v2998
      %v3043 = vunpack.c.l.b16 %v2999
      %v3044 = vunpack.c.l.b16 %v3000
      %v3045 = vunpack.c.l.b16 %v3001
      %v3046 = vunpack.c.l.b16 %v3002
      %v3047 = vunpack.c.l.b16 %v3003
      %v3048 = vunpack.c.l.b16 %v3004
      %v3049 = vunpack.c.l.b16 %v3005
      %v3050 = vunpack.c.l.b16 %v3006
      %v3051 = vunpack.c.l.b16 %v3007
      %v3052 = vunpack.c.l.b16 %v3008
      %v3053 = vunpack.c.l.b16 %v3009
      %v3054 = vpack.c.b16 %v3039, %v3038
      %v3055 = vpack.c.b16 %v3041, %v3040
      %v3056 = vpack.c.b16 %v3043, %v3042
      %v3057 = vpack.c.b16 %v3045, %v3044
      %v3058 = vpack.c.b16 %v3047, %v3046
      %v3059 = vpack.c.b16 %v3049, %v3048
      %v3060 = vpack.c.b16 %v3051, %v3050
      %v3061 = vpack.c.b16 %v3053, %v3052
      %3070 = vmatprep.subr.bf16.mxu0 0
      %3071 = vmatpush1.bf16.msra.mxu0 %v3061
      %3072 = vmatprep.subr.bf16.mxu0 0
      %3073 = vmatpush1.bf16.msra.mxu0 %v3060
      %3074 = vmatprep.subr.bf16.mxu0 0
      %3075 = vmatpush1.bf16.msra.mxu0 %v3059
      %3076 = vmatprep.subr.bf16.mxu0 0
      %3077 = vmatpush1.bf16.msra.mxu0 %v3058
      %3078 = vmatprep.subr.bf16.mxu0 0
      %3079 = vmatpush1.bf16.msra.mxu0 %v3057
      %3080 = vmatprep.subr.bf16.mxu0 0
      %3081 = vmatpush1.bf16.msra.mxu0 %v3056
      %3082 = vmatprep.subr.bf16.mxu0 0
      %3083 = vmatpush1.bf16.msra.mxu0 %v3055
      %3084 = vmatprep.subr.bf16.mxu0 0
      %3085 = vmatpush1.bf16.msra.mxu0 %v3054
      %3086 = vmatprep.subr.bf16.mxu0 0
      %3087 = vmatpush2.bf16.msra.mxu0 0
      %3088 = vmatprep.subr.bf16.mxu0 0
      %3089 = vmatpush2.bf16.msra.mxu0 0
      %3090 = vmatprep.subr.bf16.mxu0 0
      %3091 = vmatpush2.bf16.msra.mxu0 0
      %3092 = vmatprep.subr.bf16.mxu0 0
      %3093 = vmatpush2.bf16.msra.mxu0 0
      %3094 = vmatprep.subr.bf16.mxu0 0
      %3095 = vmatpush2.bf16.msra.mxu0 0
      %3096 = vmatprep.subr.bf16.mxu0 0
      %3097 = vmatpush2.bf16.msra.mxu0 0
      %3098 = vmatprep.subr.bf16.mxu0 0
      %3099 = vmatpush2.bf16.msra.mxu0 0
      %3100 = vmatprep.subr.bf16.mxu0 0
      %3101 = vmatpush2.bf16.msra.mxu0 0
      %3102 = vmatprep.mubr.bf16.mxu0 0
      %3103 = vmatmul.mubr.bf16.gmra.mxu0 %v3010
      %v3104 = vpop.f32.mrf.mxu0
      %v3105 = vadd.f32 %v3020, %v3104
      %v3106 = vpop.f32.mrf.mxu0
      %v3107 = vpop.f32.mrf.mxu0
      %v3108 = vadd.f32 %v3020, %v3107
      %v3109 = vpop.f32.mrf.mxu0
      %3110 = vmatprep.mubr.bf16.mxu0 0
      %3111 = vmatmul.mubr.bf16.gmra.mxu0 %v3011
      %v3112 = vpop.f32.mrf.mxu0
      %v3113 = vadd.f32 %v3020, %v3112
      %v3114 = vpop.f32.mrf.mxu0
      %v3115 = vpop.f32.mrf.mxu0
      %v3116 = vadd.f32 %v3020, %v3115
      %v3117 = vpop.f32.mrf.mxu0
      %3118 = vmatprep.mubr.bf16.mxu0 0
      %3119 = vmatmul.mubr.bf16.gmra.mxu0 %v3012
      %v3120 = vpop.f32.mrf.mxu0
      %v3121 = vadd.f32 %v3020, %v3120
      %v3122 = vpop.f32.mrf.mxu0
      %v3123 = vpop.f32.mrf.mxu0
      %v3124 = vadd.f32 %v3020, %v3123
      %v3125 = vpop.f32.mrf.mxu0
      %3126 = vmatprep.mubr.bf16.mxu0 0
      %3127 = vmatmul.mubr.bf16.gmra.mxu0 %v3013
      %v3128 = vpop.f32.mrf.mxu0
      %v3129 = vadd.f32 %v3020, %v3128
      %v3130 = vpop.f32.mrf.mxu0
      %v3131 = vpop.f32.mrf.mxu0
      %v3132 = vadd.f32 %v3020, %v3131
      %v3133 = vpop.f32.mrf.mxu0
      %3134 = vdwg.mxu0
      %v3135 = vmul.f32 %v2047, %v3105
      %v3136 = vmul.f32 %v2051, %v3108
      %v3137 = vmul.f32 %v2057, %v3113
      %v3138 = vmul.f32 %v2061, %v3116
      %v3139 = vmul.f32 %v2067, %v3121
      %v3140 = vmul.f32 %v2071, %v3124
      %v3141 = vmul.f32 %v2077, %v3129
      %v3142 = vmul.f32 %v2081, %v3132
      %v3143 = vadd.f32 %v2643, %v3135
      %v3144 = vadd.f32 %v2644, %v3136
      %v3145 = vadd.f32 %v2645, %v3137
      %v3146 = vadd.f32 %v2646, %v3138
      %v3147 = vadd.f32 %v2647, %v3139
      %v3148 = vadd.f32 %v2648, %v3140
      %v3149 = vadd.f32 %v2649, %v3141
      %v3150 = vadd.f32 %v2650, %v3142
      %3151 = vadd.xlane.f32.xlu0 %v3143
      %v3152 = vpop.xlane.xlu0 %3151
      %3153 = vadd.xlane.f32.xlu0 %v3144
      %v3154 = vpop.xlane.xlu0 %3153
      %3155 = vadd.xlane.f32.xlu0 %v3145
      %v3156 = vpop.xlane.xlu0 %3155
      %3157 = vadd.xlane.f32.xlu0 %v3146
      %v3158 = vpop.xlane.xlu0 %3157
      %3159 = vadd.xlane.f32.xlu0 %v3147
      %v3160 = vpop.xlane.xlu0 %3159
      %3161 = vadd.xlane.f32.xlu0 %v3148
      %v3162 = vpop.xlane.xlu0 %3161
      %3163 = vadd.xlane.f32.xlu0 %v3149
      %v3164 = vpop.xlane.xlu0 %3163
      %3165 = vadd.xlane.f32.xlu0 %v3150
      %v3166 = vpop.xlane.xlu0 %3165
      %v3167 = vmul.f32 %v3152, %v2174
      %v3168 = vmul.f32 %v3154, %v2174
      %v3169 = vmul.f32 %v3156, %v2174
      %v3170 = vmul.f32 %v3158, %v2174
      %v3171 = vmul.f32 %v3160, %v2174
      %v3172 = vmul.f32 %v3162, %v2174
      %v3173 = vmul.f32 %v3164, %v2174
      %v3174 = vmul.f32 %v3166, %v2174
      %v3175 = vsub.f32 %v3143, %v3167
      %v3176 = vsub.f32 %v3144, %v3168
      %v3177 = vsub.f32 %v3145, %v3169
      %v3178 = vsub.f32 %v3146, %v3170
      %v3179 = vsub.f32 %v3147, %v3171
      %v3180 = vsub.f32 %v3148, %v3172
      %v3181 = vsub.f32 %v3149, %v3173
      %v3182 = vsub.f32 %v3150, %v3174
      %v3183 = vmul.f32 %v3175, %v3175
      %v3184 = vmul.f32 %v3176, %v3176
      %v3185 = vmul.f32 %v3177, %v3177
      %v3186 = vmul.f32 %v3178, %v3178
      %v3187 = vmul.f32 %v3179, %v3179
      %v3188 = vmul.f32 %v3180, %v3180
      %v3189 = vmul.f32 %v3181, %v3181
      %v3190 = vmul.f32 %v3182, %v3182
      %3191 = vadd.xlane.f32.xlu0 %v3183
      %v3192 = vpop.xlane.xlu0 %3191
      %3193 = vadd.xlane.f32.xlu0 %v3184
      %v3194 = vpop.xlane.xlu0 %3193
      %3195 = vadd.xlane.f32.xlu0 %v3185
      %v3196 = vpop.xlane.xlu0 %3195
      %3197 = vadd.xlane.f32.xlu0 %v3186
      %v3198 = vpop.xlane.xlu0 %3197
      %3199 = vadd.xlane.f32.xlu0 %v3187
      %v3200 = vpop.xlane.xlu0 %3199
      %3201 = vadd.xlane.f32.xlu0 %v3188
      %v3202 = vpop.xlane.xlu0 %3201
      %3203 = vadd.xlane.f32.xlu0 %v3189
      %v3204 = vpop.xlane.xlu0 %3203
      %3205 = vadd.xlane.f32.xlu0 %v3190
      %v3206 = vpop.xlane.xlu0 %3205
      %v3207 = vmul.f32 %v3192, %v2174
      %v3208 = vmul.f32 %v3194, %v2174
      %v3209 = vmul.f32 %v3196, %v2174
      %v3210 = vmul.f32 %v3198, %v2174
      %v3211 = vmul.f32 %v3200, %v2174
      %v3212 = vmul.f32 %v3202, %v2174
      %v3213 = vmul.f32 %v3204, %v2174
      %v3214 = vmul.f32 %v3206, %v2174
      %v3215 = vadd.f32 %v3207, 1e-06
      %v3216 = vadd.f32 %v3208, 1e-06
      %v3217 = vadd.f32 %v3209, 1e-06
      %v3218 = vadd.f32 %v3210, 1e-06
      %v3219 = vadd.f32 %v3211, 1e-06
      %v3220 = vadd.f32 %v3212, 1e-06
      %v3221 = vadd.f32 %v3213, 1e-06
      %v3222 = vadd.f32 %v3214, 1e-06
      %v3223 = vrsqrt.pop %v3215
      %v3224 = vrsqrt.pop %v3216
      %v3225 = vrsqrt.pop %v3217
      %v3226 = vrsqrt.pop %v3218
      %v3227 = vrsqrt.pop %v3219
      %v3228 = vrsqrt.pop %v3220
      %v3229 = vrsqrt.pop %v3221
      %v3230 = vrsqrt.pop %v3222
      %v3231 = vmul.f32 %v3175, %v3223
      %v3232 = vmul.f32 %v3176, %v3224
      %v3233 = vmul.f32 %v3177, %v3225
      %v3234 = vmul.f32 %v3178, %v3226
      %v3235 = vmul.f32 %v3179, %v3227
      %v3236 = vmul.f32 %v3180, %v3228
      %v3237 = vmul.f32 %v3181, %v3229
      %v3238 = vmul.f32 %v3182, %v3230
      %v3239 = vadd.f32 %v2120, 1.0
      %v3240 = vadd.f32 %v2124, 1.0
      %v3241 = vadd.f32 %v2130, 1.0
      %v3242 = vadd.f32 %v2134, 1.0
      %v3243 = vadd.f32 %v2140, 1.0
      %v3244 = vadd.f32 %v2144, 1.0
      %v3245 = vadd.f32 %v2150, 1.0
      %v3246 = vadd.f32 %v2154, 1.0
      %v3247 = vmul.f32 %v3231, %v3239
      %v3248 = vmul.f32 %v3232, %v3240
      %v3249 = vmul.f32 %v3233, %v3241
      %v3250 = vmul.f32 %v3234, %v3242
      %v3251 = vmul.f32 %v3235, %v3243
      %v3252 = vmul.f32 %v3236, %v3244
      %v3253 = vmul.f32 %v3237, %v3245
      %v3254 = vmul.f32 %v3238, %v3246
      %v3255 = vadd.f32 %v3247, %v2118
      %v3256 = vadd.f32 %v3248, %v2122
      %v3257 = vadd.f32 %v3249, %v2128
      %v3258 = vadd.f32 %v3250, %v2132
      %v3259 = vadd.f32 %v3251, %v2138
      %v3260 = vadd.f32 %v3252, %v2142
      %v3261 = vadd.f32 %v3253, %v2148
      %v3262 = vadd.f32 %v3254, %v2152
      %v3263 = vld [vmem:[%s19] sm:$0xf]
      %v3264 = vld [vmem:[%s19 + $0x4] sm:$0xf]
      %v3265 = vld [vmem:[%s19 + $0x8] sm:$0xf]
      %v3266 = vld [vmem:[%s19 + $0xc] sm:$0xf]
      %v3267 = vld [vmem:[%s19 + $0x10] sm:$0xf]
      %v3268 = vld [vmem:[%s19 + $0x14] sm:$0xf]
      %v3269 = vld [vmem:[%s19 + $0x18] sm:$0xf]
      %v3270 = vld [vmem:[%s19 + $0x1c] sm:$0xf]
      %v3271 = vld [vmem:[%s19 + $0x20] sm:$0xf]
      %v3272 = vld [vmem:[%s19 + $0x24] sm:$0xf]
      %v3273 = vld [vmem:[%s19 + $0x28] sm:$0xf]
      %v3274 = vld [vmem:[%s19 + $0x2c] sm:$0xf]
      %v3275 = vld [vmem:[%s19 + $0x30] sm:$0xf]
      %v3276 = vld [vmem:[%s19 + $0x34] sm:$0xf]
      %v3277 = vld [vmem:[%s19 + $0x38] sm:$0xf]
      %v3278 = vld [vmem:[%s19 + $0x3c] sm:$0xf]
      %v3279 = vpack.c.bf16 %v3256, %v3255
      %v3280 = vpack.c.bf16 %v3258, %v3257
      %v3281 = vpack.c.bf16 %v3260, %v3259
      %v3282 = vpack.c.bf16 %v3262, %v3261
      %v3283 = vld [vmem:[%s20] sm:$0x1]
      %v3285 = vlaneseq
      %v3286 = vshrl.u32 %v3285, 7
      %v3287 = vsub.s32 0, %v3286
      %v3288 = vrot.slane %v3283, %v3287
      %v3306 = vunpack.c.l.b16 %v3263
      %v3307 = vunpack.c.l.b16 %v3264
      %v3308 = vunpack.c.l.b16 %v3265
      %v3309 = vunpack.c.l.b16 %v3266
      %v3310 = vunpack.c.l.b16 %v3267
      %v3311 = vunpack.c.l.b16 %v3268
      %v3312 = vunpack.c.l.b16 %v3269
      %v3313 = vunpack.c.l.b16 %v3270
      %v3314 = vunpack.c.l.b16 %v3271
      %v3315 = vunpack.c.l.b16 %v3272
      %v3316 = vunpack.c.l.b16 %v3273
      %v3317 = vunpack.c.l.b16 %v3274
      %v3318 = vunpack.c.l.b16 %v3275
      %v3319 = vunpack.c.l.b16 %v3276
      %v3320 = vunpack.c.l.b16 %v3277
      %v3321 = vunpack.c.l.b16 %v3278
      %v3322 = vpack.c.b16 %v3307, %v3306
      %v3323 = vpack.c.b16 %v3309, %v3308
      %v3324 = vpack.c.b16 %v3311, %v3310
      %v3325 = vpack.c.b16 %v3313, %v3312
      %v3326 = vpack.c.b16 %v3315, %v3314
      %v3327 = vpack.c.b16 %v3317, %v3316
      %v3328 = vpack.c.b16 %v3319, %v3318
      %v3329 = vpack.c.b16 %v3321, %v3320
      %3338 = vmatprep.subr.bf16.mxu0 0
      %3339 = vmatpush1.bf16.msra.mxu0 %v3329
      %3340 = vmatprep.subr.bf16.mxu0 0
      %3341 = vmatpush1.bf16.msra.mxu0 %v3328
      %3342 = vmatprep.subr.bf16.mxu0 0
      %3343 = vmatpush1.bf16.msra.mxu0 %v3327
      %3344 = vmatprep.subr.bf16.mxu0 0
      %3345 = vmatpush1.bf16.msra.mxu0 %v3326
      %3346 = vmatprep.subr.bf16.mxu0 0
      %3347 = vmatpush1.bf16.msra.mxu0 %v3325
      %3348 = vmatprep.subr.bf16.mxu0 0
      %3349 = vmatpush1.bf16.msra.mxu0 %v3324
      %3350 = vmatprep.subr.bf16.mxu0 0
      %3351 = vmatpush1.bf16.msra.mxu0 %v3323
      %3352 = vmatprep.subr.bf16.mxu0 0
      %3353 = vmatpush1.bf16.msra.mxu0 %v3322
      %3354 = vmatprep.subr.bf16.mxu0 0
      %3355 = vmatpush2.bf16.msra.mxu0 0
      %3356 = vmatprep.subr.bf16.mxu0 0
      %3357 = vmatpush2.bf16.msra.mxu0 0
      %3358 = vmatprep.subr.bf16.mxu0 0
      %3359 = vmatpush2.bf16.msra.mxu0 0
      %3360 = vmatprep.subr.bf16.mxu0 0
      %3361 = vmatpush2.bf16.msra.mxu0 0
      %3362 = vmatprep.subr.bf16.mxu0 0
      %3363 = vmatpush2.bf16.msra.mxu0 0
      %3364 = vmatprep.subr.bf16.mxu0 0
      %3365 = vmatpush2.bf16.msra.mxu0 0
      %3366 = vmatprep.subr.bf16.mxu0 0
      %3367 = vmatpush2.bf16.msra.mxu0 0
      %3368 = vmatprep.subr.bf16.mxu0 0
      %3369 = vmatpush2.bf16.msra.mxu0 0
      %3370 = vmatprep.mubr.bf16.mxu0 0
      %3371 = vmatmul.mubr.bf16.gmra.mxu0 %v3279
      %v3372 = vpop.f32.mrf.mxu0
      %v3373 = vadd.f32 %v3288, %v3372
      %v3374 = vpop.f32.mrf.mxu0
      %v3375 = vpop.f32.mrf.mxu0
      %v3376 = vadd.f32 %v3288, %v3375
      %v3377 = vpop.f32.mrf.mxu0
      %3378 = vmatprep.mubr.bf16.mxu0 0
      %3379 = vmatmul.mubr.bf16.gmra.mxu0 %v3280
      %v3380 = vpop.f32.mrf.mxu0
      %v3381 = vadd.f32 %v3288, %v3380
      %v3382 = vpop.f32.mrf.mxu0
      %v3383 = vpop.f32.mrf.mxu0
      %v3384 = vadd.f32 %v3288, %v3383
      %v3385 = vpop.f32.mrf.mxu0
      %3386 = vmatprep.mubr.bf16.mxu0 0
      %3387 = vmatmul.mubr.bf16.gmra.mxu0 %v3281
      %v3388 = vpop.f32.mrf.mxu0
      %v3389 = vadd.f32 %v3288, %v3388
      %v3390 = vpop.f32.mrf.mxu0
      %v3391 = vpop.f32.mrf.mxu0
      %v3392 = vadd.f32 %v3288, %v3391
      %v3393 = vpop.f32.mrf.mxu0
      %3394 = vmatprep.mubr.bf16.mxu0 0
      %3395 = vmatmul.mubr.bf16.gmra.mxu0 %v3282
      %v3396 = vpop.f32.mrf.mxu0
      %v3397 = vadd.f32 %v3288, %v3396
      %v3398 = vpop.f32.mrf.mxu0
      %v3399 = vpop.f32.mrf.mxu0
      %v3400 = vadd.f32 %v3288, %v3399
      %v3401 = vpop.f32.mrf.mxu0
      %3402 = vdwg.mxu0
      %vm3403 = vcmask 261120
      %3404 = vst.msk [vmem:[%s705] sm:$0xff] %vm3403, %v3373
      %3405 = vst.msk [vmem:[%s705 + $0x8] sm:$0xff] %vm3403, %v3376
      %3406 = vst.msk [vmem:[%s705 + $0x10] sm:$0xff] %vm3403, %v3381
      %3407 = vst.msk [vmem:[%s705 + $0x18] sm:$0xff] %vm3403, %v3384
      %3408 = vst.msk [vmem:[%s705 + $0x20] sm:$0xff] %vm3403, %v3389
      %3409 = vst.msk [vmem:[%s705 + $0x28] sm:$0xff] %vm3403, %v3392
      %3410 = vst.msk [vmem:[%s705 + $0x30] sm:$0xff] %vm3403, %v3397
      %3411 = vst.msk [vmem:[%s705 + $0x38] sm:$0xff] %vm3403, %v3400
      %s3412 = smul.u32 8, %s32
      %p3413 = scmp.lt.s32.totalorder %s3412, 15
      %s3414 = scalar_select %p3413, %s3412, 15
      %s3415 = smul.addr %s3414, 8
      %s3416 = scalar_lea.vmem %s21, %s3415
      // Predicated region
      $region105: #{simple_mlp_adaln_forward.1} parent=103 // pred_check
        %p3417 = pneg %p506
      $region106: #{simple_mlp_adaln_forward.1} parent=103 // pred_check_branch
        %3419 = sbr.rel (%p3417) target = $region108
      $region107: #{simple_mlp_adaln_forward.1} parent=103 // pred_region
        %s3420 = smul.u32 8, %s32
      $region108: #{simple_mlp_adaln_forward.1} parent=103 // pred_fallthru
        _
    $region104: #{simple_mlp_adaln_forward.1} parent=5 // pred_fallthru
      _
    %p3421 = scmp.le.s32.totalorder 2, %s27
    // Predicated region
    $region109: #{simple_mlp_adaln_forward.1} parent=5 // pred_check
      %p3422 = pneg %p3421
    $region110: #{simple_mlp_adaln_forward.1} parent=5 // pred_check_branch
      %3424 = sbr.rel (%p3422) target = $region112
    $region111: #{simple_mlp_adaln_forward.1} parent=5 // pred_region
      %s3425 = ssub.s32 %s27, 2
      // Predicated region
      $region113: #{simple_mlp_adaln_forward.1} parent=111 // pred_check
        %p3426 = pneg %p512
      $region114: #{simple_mlp_adaln_forward.1} parent=111 // pred_check_branch
        %3428 = sbr.rel (%p3426) target = $region116
      $region115: #{simple_mlp_adaln_forward.1} parent=111 // pred_region
        %s3429 = smul.u32 8, %s33
        %p3430 = scmp.lt.s32.totalorder %s3429, 15
        %s3431 = scalar_select %p3430, %s3429, 15
        %s3432 = smul.addr %s3431, 8
        %s3433 = scalar_lea.vmem %s21, %s3432
      $region116: #{simple_mlp_adaln_forward.1} parent=111 // pred_fallthru
        _
    $region112: #{simple_mlp_adaln_forward.1} parent=5 // pred_fallthru
      _
  $region6: #{simple_mlp_adaln_forward.1} parent=0 // loop_footer
    %s31 = sadd.s32 1, %s27
  $region7: #{simple_mlp_adaln_forward.1} parent=0 // loop_footer_branch
    %26 = sbr.rel target = $region3
  $region8: #{simple_mlp_adaln_forward.1} parent=0 // loop_exit
    _

// kernel: simple_mlp_adaln_forward.1
$region0: #{simple_mlp_adaln_forward.1}
  #allocation0 [shape = 'u32[]', space=smem, size = 0x4, offset = 0x4, fixed_abs, tag = 'smem constant byte address 0x4 - core index']
  #allocation1 [shape = 'u32[144,128]{1,0:T(1,128)}', space=vmem, size = 0x12000, scoped, tag = 'internal scratch']
  %s0 = inlined_call_operand.vmem [shape: f32[128,16], index: 0, kind: input, shape index: {}]
  %s1 = inlined_call_operand.vmem [shape: f32[128,256], index: 1, kind: input, shape index: {}]
  %s2 = inlined_call_operand.vmem [shape: f32[128,64], index: 2, kind: input, shape index: {}]
  %s3 = inlined_call_operand.vmem [shape: bf16[16,128], index: 3, kind: input, shape index: {}]
  %s4 = inlined_call_operand.vmem [shape: f32[1,128], index: 4, kind: input, shape index: {}]
  %s5 = inlined_call_operand.vmem [shape: bf16[256,128], index: 5, kind: input, shape index: {}]
  %s6 = inlined_call_operand.vmem [shape: f32[1,128], index: 6, kind: input, shape index: {}]
  %s7 = inlined_call_operand.vmem [shape: bf16[128,128], index: 7, kind: input, shape index: {}]
  %s8 = inlined_call_operand.vmem [shape: f32[1,128], index: 8, kind: input, shape index: {}]
  %s9 = inlined_call_operand.vmem [shape: bf16[64,128], index: 9, kind: input, shape index: {}]
  %s10 = inlined_call_operand.vmem [shape: f32[1,128], index: 10, kind: input, shape index: {}]
  %s11 = inlined_call_operand.vmem [shape: f32[2,1,128], index: 11, kind: input, shape index: {}]
  %s12 = inlined_call_operand.vmem [shape: f32[2,1,128], index: 12, kind: input, shape index: {}]
  %s13 = inlined_call_operand.vmem [shape: bf16[128,1024], index: 13, kind: input, shape index: {}]
  %s14 = inlined_call_operand.vmem [shape: f32[1,1024], index: 14, kind: input, shape index: {}]
  %s15 = inlined_call_operand.vmem [shape: bf16[2,128,128], index: 15, kind: input, shape index: {}]
  %s16 = inlined_call_operand.vmem [shape: f32[2,1,128], index: 16, kind: input, shape index: {}]
  %s17 = inlined_call_operand.vmem [shape: bf16[2,128,128], index: 17, kind: input, shape index: {}]
  %s18 = inlined_call_operand.vmem [shape: f32[2,1,128], index: 18, kind: input, shape index: {}]
  %s19 = inlined_call_operand.vmem [shape: bf16[128,32], index: 19, kind: input, shape index: {}]
  %s20 = inlined_call_operand.vmem [shape: f32[1,32], index: 20, kind: input, shape index: {}]
  %s21 = inlined_call_operand.vmem [shape: f32[128,32], index: 21, kind: output, shape index: {}]
  %s22 = sld [smem:[#allocation0]]
  $region117: #{simple_mlp_adaln_forward.1} parent=0
    _
  %s24 = ssub.s32 1, %s22
  %s25 = scalar_select 0, %s24, %s22
  loop: start=0, step=1, limit=4
  $region2: #{simple_mlp_adaln_forward.1} parent=0 // loop_pre_header
    _
  $region3: #{simple_mlp_adaln_forward.1} parent=0 // loop_header
    %s27 = sphi 0, %s31
    %p28 = scmp.ge.s32.totalorder %s27, 4
    %s37 = sphi 0, %s39
    %s40 = sphi 0, %s37
    %s41 = sphi 0, %s40
    %s57 = sphi 0, %s41
    %s63 = sphi 0, %s65
    %s66 = sphi 0, %s63
    %s67 = sphi 0, %s66
    %s83 = sphi 0, %s67
    %s89 = sphi 0, %s91
    %s92 = sphi 0, %s89
    %s93 = sphi 0, %s92
    %s109 = sphi 0, %s93
    %s113 = sphi 0, %s113
    %s115 = sphi 0, %s113
    %s116 = sphi 0, %s115
    %s130 = sphi 0, %s116
    %s134 = sphi 0, %s134
    %s136 = sphi 0, %s134
    %s137 = sphi 0, %s136
    %s151 = sphi 0, %s137
    %s155 = sphi 0, %s155
    %s157 = sphi 0, %s155
    %s158 = sphi 0, %s157
    %s172 = sphi 0, %s158
    %s176 = sphi 0, %s176
    %s178 = sphi 0, %s176
    %s179 = sphi 0, %s178
    %s193 = sphi 0, %s179
    %s197 = sphi 0, %s197
    %s199 = sphi 0, %s197
    %s200 = sphi 0, %s199
    %s214 = sphi 0, %s200
    %s218 = sphi 0, %s218
    %s220 = sphi 0, %s218
    %s221 = sphi 0, %s220
    %s235 = sphi 0, %s221
    %s239 = sphi 0, %s239
    %s241 = sphi 0, %s239
    %s242 = sphi 0, %s241
    %s256 = sphi 0, %s242
    %s260 = sphi 0, %s260
    %s262 = sphi 0, %s260
    %s263 = sphi 0, %s262
    %s277 = sphi 0, %s263
    %s281 = sphi 0, %s281
    %s283 = sphi 0, %s281
    %s284 = sphi 0, %s283
    %s298 = sphi 0, %s284
    %s302 = sphi 0, %s302
    %s304 = sphi 0, %s302
    %s305 = sphi 0, %s304
    %s319 = sphi 0, %s305
    %s323 = sphi 0, %s323
    %s325 = sphi 0, %s323
    %s326 = sphi 0, %s325
    %s340 = sphi 0, %s326
    %s344 = sphi 0, %s344
    %s346 = sphi 0, %s344
    %s347 = sphi 0, %s346
    %s361 = sphi 0, %s347
    %s365 = sphi 0, %s365
    %s367 = sphi 0, %s365
    %s368 = sphi 0, %s367
    %s382 = sphi 0, %s368
    %s386 = sphi 0, %s386
    %s388 = sphi 0, %s386
    %s389 = sphi 0, %s388
    %s403 = sphi 0, %s389
    %s407 = sphi 0, %s407
    %s409 = sphi 0, %s407
    %s410 = sphi 0, %s409
    %s424 = sphi 0, %s410
    %s428 = sphi 0, %s428
    %s430 = sphi 0, %s428
    %s431 = sphi 0, %s430
    %s445 = sphi 0, %s431
    %s449 = sphi 0, %s449
    %s451 = sphi 0, %s449
    %s452 = sphi 0, %s451
    %s466 = sphi 0, %s452
    %s470 = sphi 0, %s470
    %s472 = sphi 0, %s470
    %s473 = sphi 0, %s472
    %s487 = sphi 0, %s473
    %s493 = sphi 0, %s495
    %s496 = sphi 0, %s493
    %s497 = sphi 0, %s496
    %s513 = sphi 0, %s497
  $region4: #{simple_mlp_adaln_forward.1} parent=0 // loop_header_branch
    %30 = sbr.rel (%p28) target = $region8
  $region5: #{simple_mlp_adaln_forward.1} parent=0 // loop_body
    %s32 = ssub.s32 %s27, 1
    %s33 = ssub.s32 %s27, 2
    %s34 = sadd.s32 %s27, 1
    %s35 = ssub.s32 %s27, %s34
    %p36 = scmp.eq.s32.totalorder %s35, 0
    %s38 = sadd.s32 %s37, 1
    %s39 = scalar_select %p36, %s37, %s38
    %p42 = pneg %p36
    %p43 = scmp.eq.s32.totalorder %s27, 1
    %p44 = por %p42, %p43
    %p45 = scmp.ne.s32.totalorder %s37, %s40
    %p46 = scmp.eq.s32.totalorder %s27, 0
    %p47 = por %p45, %p46
    %p48 = scmp.ne.s32.totalorder %s37, %s40
    %p49 = scmp.eq.s32.totalorder %s32, 1
    %p50 = por %p48, %p49
    %p51 = scmp.ne.s32.totalorder %s40, %s41
    %p52 = scmp.eq.s32.totalorder %s32, 0
    %p53 = por %p51, %p52
    %p54 = scmp.ne.s32.totalorder %s40, %s41
    %p55 = scmp.eq.s32.totalorder %s33, 1
    %p56 = por %p54, %p55
    %p58 = scmp.ne.s32.totalorder %s41, %s57
    %p59 = scmp.eq.s32.totalorder %s33, 0
    %p60 = por %p58, %p59
    %s61 = ssub.s32 %s27, %s34
    %p62 = scmp.eq.s32.totalorder %s61, 0
    %s64 = sadd.s32 %s63, 1
    %s65 = scalar_select %p62, %s63, %s64
    %p68 = pneg %p62
    %p69 = scmp.eq.s32.totalorder %s27, 1
    %p70 = por %p68, %p69
    %p71 = scmp.ne.s32.totalorder %s63, %s66
    %p72 = scmp.eq.s32.totalorder %s27, 0
    %p73 = por %p71, %p72
    %p74 = scmp.ne.s32.totalorder %s63, %s66
    %p75 = scmp.eq.s32.totalorder %s32, 1
    %p76 = por %p74, %p75
    %p77 = scmp.ne.s32.totalorder %s66, %s67
    %p78 = scmp.eq.s32.totalorder %s32, 0
    %p79 = por %p77, %p78
    %p80 = scmp.ne.s32.totalorder %s66, %s67
    %p81 = scmp.eq.s32.totalorder %s33, 1
    %p82 = por %p80, %p81
    %p84 = scmp.ne.s32.totalorder %s67, %s83
    %p85 = scmp.eq.s32.totalorder %s33, 0
    %p86 = por %p84, %p85
    %s87 = ssub.s32 %s27, %s34
    %p88 = scmp.eq.s32.totalorder %s87, 0
    %s90 = sadd.s32 %s89, 1
    %s91 = scalar_select %p88, %s89, %s90
    %p94 = pneg %p88
    %p95 = scmp.eq.s32.totalorder %s27, 1
    %p96 = por %p94, %p95
    %p97 = scmp.ne.s32.totalorder %s89, %s92
    %p98 = scmp.eq.s32.totalorder %s27, 0
    %p99 = por %p97, %p98
    %p100 = scmp.ne.s32.totalorder %s89, %s92
    %p101 = scmp.eq.s32.totalorder %s32, 1
    %p102 = por %p100, %p101
    %p103 = scmp.ne.s32.totalorder %s92, %s93
    %p104 = scmp.eq.s32.totalorder %s32, 0
    %p105 = por %p103, %p104
    %p106 = scmp.ne.s32.totalorder %s92, %s93
    %p107 = scmp.eq.s32.totalorder %s33, 1
    %p108 = por %p106, %p107
    %p110 = scmp.ne.s32.totalorder %s93, %s109
    %p111 = scmp.eq.s32.totalorder %s33, 0
    %p112 = por %p110, %p111
    %s114 = sadd.s32 %s113, 1
    %p117 = scmp.eq.s32.totalorder %s27, 1
    %p118 = scmp.ne.s32.totalorder %s113, %s115
    %p119 = scmp.eq.s32.totalorder %s27, 0
    %p120 = por %p118, %p119
    %p121 = scmp.ne.s32.totalorder %s113, %s115
    %p122 = scmp.eq.s32.totalorder %s32, 1
    %p123 = por %p121, %p122
    %p124 = scmp.ne.s32.totalorder %s115, %s116
    %p125 = scmp.eq.s32.totalorder %s32, 0
    %p126 = por %p124, %p125
    %p127 = scmp.ne.s32.totalorder %s115, %s116
    %p128 = scmp.eq.s32.totalorder %s33, 1
    %p129 = por %p127, %p128
    %p131 = scmp.ne.s32.totalorder %s116, %s130
    %p132 = scmp.eq.s32.totalorder %s33, 0
    %p133 = por %p131, %p132
    %s135 = sadd.s32 %s134, 1
    %p138 = scmp.eq.s32.totalorder %s27, 1
    %p139 = scmp.ne.s32.totalorder %s134, %s136
    %p140 = scmp.eq.s32.totalorder %s27, 0
    %p141 = por %p139, %p140
    %p142 = scmp.ne.s32.totalorder %s134, %s136
    %p143 = scmp.eq.s32.totalorder %s32, 1
    %p144 = por %p142, %p143
    %p145 = scmp.ne.s32.totalorder %s136, %s137
    %p146 = scmp.eq.s32.totalorder %s32, 0
    %p147 = por %p145, %p146
    %p148 = scmp.ne.s32.totalorder %s136, %s137
    %p149 = scmp.eq.s32.totalorder %s33, 1
    %p150 = por %p148, %p149
    %p152 = scmp.ne.s32.totalorder %s137, %s151
    %p153 = scmp.eq.s32.totalorder %s33, 0
    %p154 = por %p152, %p153
    %s156 = sadd.s32 %s155, 1
    %p159 = scmp.eq.s32.totalorder %s27, 1
    %p160 = scmp.ne.s32.totalorder %s155, %s157
    %p161 = scmp.eq.s32.totalorder %s27, 0
    %p162 = por %p160, %p161
    %p163 = scmp.ne.s32.totalorder %s155, %s157
    %p164 = scmp.eq.s32.totalorder %s32, 1
    %p165 = por %p163, %p164
    %p166 = scmp.ne.s32.totalorder %s157, %s158
    %p167 = scmp.eq.s32.totalorder %s32, 0
    %p168 = por %p166, %p167
    %p169 = scmp.ne.s32.totalorder %s157, %s158
    %p170 = scmp.eq.s32.totalorder %s33, 1
    %p171 = por %p169, %p170
    %p173 = scmp.ne.s32.totalorder %s158, %s172
    %p174 = scmp.eq.s32.totalorder %s33, 0
    %p175 = por %p173, %p174
    %s177 = sadd.s32 %s176, 1
    %p180 = scmp.eq.s32.totalorder %s27, 1
    %p181 = scmp.ne.s32.totalorder %s176, %s178
    %p182 = scmp.eq.s32.totalorder %s27, 0
    %p183 = por %p181, %p182
    %p184 = scmp.ne.s32.totalorder %s176, %s178
    %p185 = scmp.eq.s32.totalorder %s32, 1
    %p186 = por %p184, %p185
    %p187 = scmp.ne.s32.totalorder %s178, %s179
    %p188 = scmp.eq.s32.totalorder %s32, 0
    %p189 = por %p187, %p188
    %p190 = scmp.ne.s32.totalorder %s178, %s179
    %p191 = scmp.eq.s32.totalorder %s33, 1
    %p192 = por %p190, %p191
    %p194 = scmp.ne.s32.totalorder %s179, %s193
    %p195 = scmp.eq.s32.totalorder %s33, 0
    %p196 = por %p194, %p195
    %s198 = sadd.s32 %s197, 1
    %p201 = scmp.eq.s32.totalorder %s27, 1
    %p202 = scmp.ne.s32.totalorder %s197, %s199
    %p203 = scmp.eq.s32.totalorder %s27, 0
    %p204 = por %p202, %p203
    %p205 = scmp.ne.s32.totalorder %s197, %s199
    %p206 = scmp.eq.s32.totalorder %s32, 1
    %p207 = por %p205, %p206
    %p208 = scmp.ne.s32.totalorder %s199, %s200
    %p209 = scmp.eq.s32.totalorder %s32, 0
    %p210 = por %p208, %p209
    %p211 = scmp.ne.s32.totalorder %s199, %s200
    %p212 = scmp.eq.s32.totalorder %s33, 1
    %p213 = por %p211, %p212
    %p215 = scmp.ne.s32.totalorder %s200, %s214
    %p216 = scmp.eq.s32.totalorder %s33, 0
    %p217 = por %p215, %p216
    %s219 = sadd.s32 %s218, 1
    %p222 = scmp.eq.s32.totalorder %s27, 1
    %p223 = scmp.ne.s32.totalorder %s218, %s220
    %p224 = scmp.eq.s32.totalorder %s27, 0
    %p225 = por %p223, %p224
    %p226 = scmp.ne.s32.totalorder %s218, %s220
    %p227 = scmp.eq.s32.totalorder %s32, 1
    %p228 = por %p226, %p227
    %p229 = scmp.ne.s32.totalorder %s220, %s221
    %p230 = scmp.eq.s32.totalorder %s32, 0
    %p231 = por %p229, %p230
    %p232 = scmp.ne.s32.totalorder %s220, %s221
    %p233 = scmp.eq.s32.totalorder %s33, 1
    %p234 = por %p232, %p233
    %p236 = scmp.ne.s32.totalorder %s221, %s235
    %p237 = scmp.eq.s32.totalorder %s33, 0
    %p238 = por %p236, %p237
    %s240 = sadd.s32 %s239, 1
    %p243 = scmp.eq.s32.totalorder %s27, 1
    %p244 = scmp.ne.s32.totalorder %s239, %s241
    %p245 = scmp.eq.s32.totalorder %s27, 0
    %p246 = por %p244, %p245
    %p247 = scmp.ne.s32.totalorder %s239, %s241
    %p248 = scmp.eq.s32.totalorder %s32, 1
    %p249 = por %p247, %p248
    %p250 = scmp.ne.s32.totalorder %s241, %s242
    %p251 = scmp.eq.s32.totalorder %s32, 0
    %p252 = por %p250, %p251
    %p253 = scmp.ne.s32.totalorder %s241, %s242
    %p254 = scmp.eq.s32.totalorder %s33, 1
    %p255 = por %p253, %p254
    %p257 = scmp.ne.s32.totalorder %s242, %s256
    %p258 = scmp.eq.s32.totalorder %s33, 0
    %p259 = por %p257, %p258
    %s261 = sadd.s32 %s260, 1
    %p264 = scmp.eq.s32.totalorder %s27, 1
    %p265 = scmp.ne.s32.totalorder %s260, %s262
    %p266 = scmp.eq.s32.totalorder %s27, 0
    %p267 = por %p265, %p266
    %p268 = scmp.ne.s32.totalorder %s260, %s262
    %p269 = scmp.eq.s32.totalorder %s32, 1
    %p270 = por %p268, %p269
    %p271 = scmp.ne.s32.totalorder %s262, %s263
    %p272 = scmp.eq.s32.totalorder %s32, 0
    %p273 = por %p271, %p272
    %p274 = scmp.ne.s32.totalorder %s262, %s263
    %p275 = scmp.eq.s32.totalorder %s33, 1
    %p276 = por %p274, %p275
    %p278 = scmp.ne.s32.totalorder %s263, %s277
    %p279 = scmp.eq.s32.totalorder %s33, 0
    %p280 = por %p278, %p279
    %s282 = sadd.s32 %s281, 1
    %p285 = scmp.eq.s32.totalorder %s27, 1
    %p286 = scmp.ne.s32.totalorder %s281, %s283
    %p287 = scmp.eq.s32.totalorder %s27, 0
    %p288 = por %p286, %p287
    %p289 = scmp.ne.s32.totalorder %s281, %s283
    %p290 = scmp.eq.s32.totalorder %s32, 1
    %p291 = por %p289, %p290
    %p292 = scmp.ne.s32.totalorder %s283, %s284
    %p293 = scmp.eq.s32.totalorder %s32, 0
    %p294 = por %p292, %p293
    %p295 = scmp.ne.s32.totalorder %s283, %s284
    %p296 = scmp.eq.s32.totalorder %s33, 1
    %p297 = por %p295, %p296
    %p299 = scmp.ne.s32.totalorder %s284, %s298
    %p300 = scmp.eq.s32.totalorder %s33, 0
    %p301 = por %p299, %p300
    %s303 = sadd.s32 %s302, 1
    %p306 = scmp.eq.s32.totalorder %s27, 1
    %p307 = scmp.ne.s32.totalorder %s302, %s304
    %p308 = scmp.eq.s32.totalorder %s27, 0
    %p309 = por %p307, %p308
    %p310 = scmp.ne.s32.totalorder %s302, %s304
    %p311 = scmp.eq.s32.totalorder %s32, 1
    %p312 = por %p310, %p311
    %p313 = scmp.ne.s32.totalorder %s304, %s305
    %p314 = scmp.eq.s32.totalorder %s32, 0
    %p315 = por %p313, %p314
    %p316 = scmp.ne.s32.totalorder %s304, %s305
    %p317 = scmp.eq.s32.totalorder %s33, 1
    %p318 = por %p316, %p317
    %p320 = scmp.ne.s32.totalorder %s305, %s319
    %p321 = scmp.eq.s32.totalorder %s33, 0
    %p322 = por %p320, %p321
    %s324 = sadd.s32 %s323, 1
    %p327 = scmp.eq.s32.totalorder %s27, 1
    %p328 = scmp.ne.s32.totalorder %s323, %s325
    %p329 = scmp.eq.s32.totalorder %s27, 0
    %p330 = por %p328, %p329
    %p331 = scmp.ne.s32.totalorder %s323, %s325
    %p332 = scmp.eq.s32.totalorder %s32, 1
    %p333 = por %p331, %p332
    %p334 = scmp.ne.s32.totalorder %s325, %s326
    %p335 = scmp.eq.s32.totalorder %s32, 0
    %p336 = por %p334, %p335
    %p337 = scmp.ne.s32.totalorder %s325, %s326
    %p338 = scmp.eq.s32.totalorder %s33, 1
    %p339 = por %p337, %p338
    %p341 = scmp.ne.s32.totalorder %s326, %s340
    %p342 = scmp.eq.s32.totalorder %s33, 0
    %p343 = por %p341, %p342
    %s345 = sadd.s32 %s344, 1
    %p348 = scmp.eq.s32.totalorder %s27, 1
    %p349 = scmp.ne.s32.totalorder %s344, %s346
    %p350 = scmp.eq.s32.totalorder %s27, 0
    %p351 = por %p349, %p350
    %p352 = scmp.ne.s32.totalorder %s344, %s346
    %p353 = scmp.eq.s32.totalorder %s32, 1
    %p354 = por %p352, %p353
    %p355 = scmp.ne.s32.totalorder %s346, %s347
    %p356 = scmp.eq.s32.totalorder %s32, 0
    %p357 = por %p355, %p356
    %p358 = scmp.ne.s32.totalorder %s346, %s347
    %p359 = scmp.eq.s32.totalorder %s33, 1
    %p360 = por %p358, %p359
    %p362 = scmp.ne.s32.totalorder %s347, %s361
    %p363 = scmp.eq.s32.totalorder %s33, 0
    %p364 = por %p362, %p363
    %s366 = sadd.s32 %s365, 1
    %p369 = scmp.eq.s32.totalorder %s27, 1
    %p370 = scmp.ne.s32.totalorder %s365, %s367
    %p371 = scmp.eq.s32.totalorder %s27, 0
    %p372 = por %p370, %p371
    %p373 = scmp.ne.s32.totalorder %s365, %s367
    %p374 = scmp.eq.s32.totalorder %s32, 1
    %p375 = por %p373, %p374
    %p376 = scmp.ne.s32.totalorder %s367, %s368
    %p377 = scmp.eq.s32.totalorder %s32, 0
    %p378 = por %p376, %p377
    %p379 = scmp.ne.s32.totalorder %s367, %s368
    %p380 = scmp.eq.s32.totalorder %s33, 1
    %p381 = por %p379, %p380
    %p383 = scmp.ne.s32.totalorder %s368, %s382
    %p384 = scmp.eq.s32.totalorder %s33, 0
    %p385 = por %p383, %p384
    %s387 = sadd.s32 %s386, 1
    %p390 = scmp.eq.s32.totalorder %s27, 1
    %p391 = scmp.ne.s32.totalorder %s386, %s388
    %p392 = scmp.eq.s32.totalorder %s27, 0
    %p393 = por %p391, %p392
    %p394 = scmp.ne.s32.totalorder %s386, %s388
    %p395 = scmp.eq.s32.totalorder %s32, 1
    %p396 = por %p394, %p395
    %p397 = scmp.ne.s32.totalorder %s388, %s389
    %p398 = scmp.eq.s32.totalorder %s32, 0
    %p399 = por %p397, %p398
    %p400 = scmp.ne.s32.totalorder %s388, %s389
    %p401 = scmp.eq.s32.totalorder %s33, 1
    %p402 = por %p400, %p401
    %p404 = scmp.ne.s32.totalorder %s389, %s403
    %p405 = scmp.eq.s32.totalorder %s33, 0
    %p406 = por %p404, %p405
    %s408 = sadd.s32 %s407, 1
    %p411 = scmp.eq.s32.totalorder %s27, 1
    %p412 = scmp.ne.s32.totalorder %s407, %s409
    %p413 = scmp.eq.s32.totalorder %s27, 0
    %p414 = por %p412, %p413
    %p415 = scmp.ne.s32.totalorder %s407, %s409
    %p416 = scmp.eq.s32.totalorder %s32, 1
    %p417 = por %p415, %p416
    %p418 = scmp.ne.s32.totalorder %s409, %s410
    %p419 = scmp.eq.s32.totalorder %s32, 0
    %p420 = por %p418, %p419
    %p421 = scmp.ne.s32.totalorder %s409, %s410
    %p422 = scmp.eq.s32.totalorder %s33, 1
    %p423 = por %p421, %p422
    %p425 = scmp.ne.s32.totalorder %s410, %s424
    %p426 = scmp.eq.s32.totalorder %s33, 0
    %p427 = por %p425, %p426
    %s429 = sadd.s32 %s428, 1
    %p432 = scmp.eq.s32.totalorder %s27, 1
    %p433 = scmp.ne.s32.totalorder %s428, %s430
    %p434 = scmp.eq.s32.totalorder %s27, 0
    %p435 = por %p433, %p434
    %p436 = scmp.ne.s32.totalorder %s428, %s430
    %p437 = scmp.eq.s32.totalorder %s32, 1
    %p438 = por %p436, %p437
    %p439 = scmp.ne.s32.totalorder %s430, %s431
    %p440 = scmp.eq.s32.totalorder %s32, 0
    %p441 = por %p439, %p440
    %p442 = scmp.ne.s32.totalorder %s430, %s431
    %p443 = scmp.eq.s32.totalorder %s33, 1
    %p444 = por %p442, %p443
    %p446 = scmp.ne.s32.totalorder %s431, %s445
    %p447 = scmp.eq.s32.totalorder %s33, 0
    %p448 = por %p446, %p447
    %s450 = sadd.s32 %s449, 1
    %p453 = scmp.eq.s32.totalorder %s27, 1
    %p454 = scmp.ne.s32.totalorder %s449, %s451
    %p455 = scmp.eq.s32.totalorder %s27, 0
    %p456 = por %p454, %p455
    %p457 = scmp.ne.s32.totalorder %s449, %s451
    %p458 = scmp.eq.s32.totalorder %s32, 1
    %p459 = por %p457, %p458
    %p460 = scmp.ne.s32.totalorder %s451, %s452
    %p461 = scmp.eq.s32.totalorder %s32, 0
    %p462 = por %p460, %p461
    %p463 = scmp.ne.s32.totalorder %s451, %s452
    %p464 = scmp.eq.s32.totalorder %s33, 1
    %p465 = por %p463, %p464
    %p467 = scmp.ne.s32.totalorder %s452, %s466
    %p468 = scmp.eq.s32.totalorder %s33, 0
    %p469 = por %p467, %p468
    %s471 = sadd.s32 %s470, 1
    %p474 = scmp.eq.s32.totalorder %s27, 1
    %p475 = scmp.ne.s32.totalorder %s470, %s472
    %p476 = scmp.eq.s32.totalorder %s27, 0
    %p477 = por %p475, %p476
    %p478 = scmp.ne.s32.totalorder %s470, %s472
    %p479 = scmp.eq.s32.totalorder %s32, 1
    %p480 = por %p478, %p479
    %p481 = scmp.ne.s32.totalorder %s472, %s473
    %p482 = scmp.eq.s32.totalorder %s32, 0
    %p483 = por %p481, %p482
    %p484 = scmp.ne.s32.totalorder %s472, %s473
    %p485 = scmp.eq.s32.totalorder %s33, 1
    %p486 = por %p484, %p485
    %p488 = scmp.ne.s32.totalorder %s473, %s487
    %p489 = scmp.eq.s32.totalorder %s33, 0
    %p490 = por %p488, %p489
    %s491 = ssub.s32 %s27, %s34
    %p492 = scmp.eq.s32.totalorder %s491, 0
    %s494 = sadd.s32 %s493, 1
    %s495 = scalar_select %p492, %s493, %s494
    %p498 = pneg %p492
    %p499 = scmp.eq.s32.totalorder %s27, 1
    %p500 = por %p498, %p499
    %p501 = scmp.ne.s32.totalorder %s493, %s496
    %p502 = scmp.eq.s32.totalorder %s27, 0
    %p503 = por %p501, %p502
    %p504 = scmp.ne.s32.totalorder %s493, %s496
    %p505 = scmp.eq.s32.totalorder %s32, 1
    %p506 = por %p504, %p505
    %p507 = scmp.ne.s32.totalorder %s496, %s497
    %p508 = scmp.eq.s32.totalorder %s32, 0
    %p509 = por %p507, %p508
    %p510 = scmp.ne.s32.totalorder %s496, %s497
    %p511 = scmp.eq.s32.totalorder %s33, 1
    %p512 = por %p510, %p511
    %p514 = scmp.ne.s32.totalorder %s497, %s513
    %p515 = scmp.eq.s32.totalorder %s33, 0
    %p516 = por %p514, %p515
    %p517 = scmp.le.s32.totalorder 1, %s27
    %p518 = scmp.lt.s32.totalorder %s27, 3
    %p519 = pnand %p517, %p518
    %p520 = pneg %p519
    // Predicated region
    $region9: #{simple_mlp_adaln_forward.1} parent=5 // pred_check
      _
    $region10: #{simple_mlp_adaln_forward.1} parent=5 // pred_check_branch
      %522 = sbr.rel (%p519) target = $region12
    $region11: #{simple_mlp_adaln_forward.1} parent=5 // pred_region
      %s523 = ssub.s32 %s27, 1
      // Predicated region
      $region13: #{simple_mlp_adaln_forward.1} parent=11 // pred_check
        %p524 = pneg %p126
      $region14: #{simple_mlp_adaln_forward.1} parent=11 // pred_check_branch
        %526 = sbr.rel (%p524) target = $region16
      $region15: #{simple_mlp_adaln_forward.1} parent=11 // pred_region
        _
      $region16: #{simple_mlp_adaln_forward.1} parent=11 // pred_fallthru
        _
      // Predicated region
      $region17: #{simple_mlp_adaln_forward.1} parent=11 // pred_check
        %p527 = pneg %p147
      $region18: #{simple_mlp_adaln_forward.1} parent=11 // pred_check_branch
        %529 = sbr.rel (%p527) target = $region20
      $region19: #{simple_mlp_adaln_forward.1} parent=11 // pred_region
        _
      $region20: #{simple_mlp_adaln_forward.1} parent=11 // pred_fallthru
        _
      // Predicated region
      $region21: #{simple_mlp_adaln_forward.1} parent=11 // pred_check
        %p530 = pneg %p168
      $region22: #{simple_mlp_adaln_forward.1} parent=11 // pred_check_branch
        %532 = sbr.rel (%p530) target = $region24
      $region23: #{simple_mlp_adaln_forward.1} parent=11 // pred_region
        _
      $region24: #{simple_mlp_adaln_forward.1} parent=11 // pred_fallthru
        _
      // Predicated region
      $region25: #{simple_mlp_adaln_forward.1} parent=11 // pred_check
        %p533 = pneg %p189
      $region26: #{simple_mlp_adaln_forward.1} parent=11 // pred_check_branch
        %535 = sbr.rel (%p533) target = $region28
      $region27: #{simple_mlp_adaln_forward.1} parent=11 // pred_region
        _
      $region28: #{simple_mlp_adaln_forward.1} parent=11 // pred_fallthru
        _
      // Predicated region
      $region29: #{simple_mlp_adaln_forward.1} parent=11 // pred_check
        %p536 = pneg %p210
      $region30: #{simple_mlp_adaln_forward.1} parent=11 // pred_check_branch
        %538 = sbr.rel (%p536) target = $region32
      $region31: #{simple_mlp_adaln_forward.1} parent=11 // pred_region
        _
      $region32: #{simple_mlp_adaln_forward.1} parent=11 // pred_fallthru
        _
      // Predicated region
      $region33: #{simple_mlp_adaln_forward.1} parent=11 // pred_check
        %p539 = pneg %p231
      $region34: #{simple_mlp_adaln_forward.1} parent=11 // pred_check_branch
        %541 = sbr.rel (%p539) target = $region36
      $region35: #{simple_mlp_adaln_forward.1} parent=11 // pred_region
        _
      $region36: #{simple_mlp_adaln_forward.1} parent=11 // pred_fallthru
        _
      // Predicated region
      $region37: #{simple_mlp_adaln_forward.1} parent=11 // pred_check
        %p542 = pneg %p252
      $region38: #{simple_mlp_adaln_forward.1} parent=11 // pred_check_branch
        %544 = sbr.rel (%p542) target = $region40
      $region39: #{simple_mlp_adaln_forward.1} parent=11 // pred_region
        _
      $region40: #{simple_mlp_adaln_forward.1} parent=11 // pred_fallthru
        _
      // Predicated region
      $region41: #{simple_mlp_adaln_forward.1} parent=11 // pred_check
        %p545 = pneg %p273
      $region42: #{simple_mlp_adaln_forward.1} parent=11 // pred_check_branch
        %547 = sbr.rel (%p545) target = $region44
      $region43: #{simple_mlp_adaln_forward.1} parent=11 // pred_region
        _
      $region44: #{simple_mlp_adaln_forward.1} parent=11 // pred_fallthru
        _
      // Predicated region
      $region45: #{simple_mlp_adaln_forward.1} parent=11 // pred_check
        %p548 = pneg %p294
      $region46: #{simple_mlp_adaln_forward.1} parent=11 // pred_check_branch
        %550 = sbr.rel (%p548) target = $region48
      $region47: #{simple_mlp_adaln_forward.1} parent=11 // pred_region
        _
      $region48: #{simple_mlp_adaln_forward.1} parent=11 // pred_fallthru
        _
      // Predicated region
      $region49: #{simple_mlp_adaln_forward.1} parent=11 // pred_check
        %p551 = pneg %p315
      $region50: #{simple_mlp_adaln_forward.1} parent=11 // pred_check_branch
        %553 = sbr.rel (%p551) target = $region52
      $region51: #{simple_mlp_adaln_forward.1} parent=11 // pred_region
        _
      $region52: #{simple_mlp_adaln_forward.1} parent=11 // pred_fallthru
        _
      // Predicated region
      $region53: #{simple_mlp_adaln_forward.1} parent=11 // pred_check
        %p554 = pneg %p336
      $region54: #{simple_mlp_adaln_forward.1} parent=11 // pred_check_branch
        %556 = sbr.rel (%p554) target = $region56
      $region55: #{simple_mlp_adaln_forward.1} parent=11 // pred_region
        _
      $region56: #{simple_mlp_adaln_forward.1} parent=11 // pred_fallthru
        _
      // Predicated region
      $region57: #{simple_mlp_adaln_forward.1} parent=11 // pred_check
        %p557 = pneg %p357
      $region58: #{simple_mlp_adaln_forward.1} parent=11 // pred_check_branch
        %559 = sbr.rel (%p557) target = $region60
      $region59: #{simple_mlp_adaln_forward.1} parent=11 // pred_region
        _
      $region60: #{simple_mlp_adaln_forward.1} parent=11 // pred_fallthru
        _
      // Predicated region
      $region61: #{simple_mlp_adaln_forward.1} parent=11 // pred_check
        %p560 = pneg %p378
      $region62: #{simple_mlp_adaln_forward.1} parent=11 // pred_check_branch
        %562 = sbr.rel (%p560) target = $region64
      $region63: #{simple_mlp_adaln_forward.1} parent=11 // pred_region
        _
      $region64: #{simple_mlp_adaln_forward.1} parent=11 // pred_fallthru
        _
      // Predicated region
      $region65: #{simple_mlp_adaln_forward.1} parent=11 // pred_check
        %p563 = pneg %p399
      $region66: #{simple_mlp_adaln_forward.1} parent=11 // pred_check_branch
        %565 = sbr.rel (%p563) target = $region68
      $region67: #{simple_mlp_adaln_forward.1} parent=11 // pred_region
        _
      $region68: #{simple_mlp_adaln_forward.1} parent=11 // pred_fallthru
        _
      // Predicated region
      $region69: #{simple_mlp_adaln_forward.1} parent=11 // pred_check
        %p566 = pneg %p420
      $region70: #{simple_mlp_adaln_forward.1} parent=11 // pred_check_branch
        %568 = sbr.rel (%p566) target = $region72
      $region71: #{simple_mlp_adaln_forward.1} parent=11 // pred_region
        _
      $region72: #{simple_mlp_adaln_forward.1} parent=11 // pred_fallthru
        _
      // Predicated region
      $region73: #{simple_mlp_adaln_forward.1} parent=11 // pred_check
        %p569 = pneg %p441
      $region74: #{simple_mlp_adaln_forward.1} parent=11 // pred_check_branch
        %571 = sbr.rel (%p569) target = $region76
      $region75: #{simple_mlp_adaln_forward.1} parent=11 // pred_region
        _
      $region76: #{simple_mlp_adaln_forward.1} parent=11 // pred_fallthru
        _
      // Predicated region
      $region77: #{simple_mlp_adaln_forward.1} parent=11 // pred_check
        %p572 = pneg %p462
      $region78: #{simple_mlp_adaln_forward.1} parent=11 // pred_check_branch
        %574 = sbr.rel (%p572) target = $region80
      $region79: #{simple_mlp_adaln_forward.1} parent=11 // pred_region
        _
      $region80: #{simple_mlp_adaln_forward.1} parent=11 // pred_fallthru
        _
      // Predicated region
      $region81: #{simple_mlp_adaln_forward.1} parent=11 // pred_check
        %p575 = pneg %p483
      $region82: #{simple_mlp_adaln_forward.1} parent=11 // pred_check_branch
        %577 = sbr.rel (%p575) target = $region84
      $region83: #{simple_mlp_adaln_forward.1} parent=11 // pred_region
        _
      $region84: #{simple_mlp_adaln_forward.1} parent=11 // pred_fallthru
        _
    $region12: #{simple_mlp_adaln_forward.1} parent=5 // pred_fallthru
      _
    %p578 = scmp.lt.s32.totalorder %s27, 2
    // Predicated region
    $region85: #{simple_mlp_adaln_forward.1} parent=5 // pred_check
      %p579 = pneg %p578
    $region86: #{simple_mlp_adaln_forward.1} parent=5 // pred_check_branch
      %581 = sbr.rel (%p579) target = $region88
    $region87: #{simple_mlp_adaln_forward.1} parent=5 // pred_region
      // Predicated region
      $region89: #{simple_mlp_adaln_forward.1} parent=87 // pred_check
        %p582 = pneg %p47
      $region90: #{simple_mlp_adaln_forward.1} parent=87 // pred_check_branch
        %584 = sbr.rel (%p582) target = $region92
      $region91: #{simple_mlp_adaln_forward.1} parent=87 // pred_region
        %s585 = smul.u32 8, %s27
        %p586 = scmp.lt.s32.totalorder %s585, 15
        %s587 = scalar_select %p586, %s585, 15
        %s588 = smul.addr %s587, 8
        %s589 = scalar_lea.vmem %s0, %s588
        %s590 = smul.u32 8, %s27
      $region92: #{simple_mlp_adaln_forward.1} parent=87 // pred_fallthru
        _
      // Predicated region
      $region93: #{simple_mlp_adaln_forward.1} parent=87 // pred_check
        %p591 = pneg %p73
      $region94: #{simple_mlp_adaln_forward.1} parent=87 // pred_check_branch
        %593 = sbr.rel (%p591) target = $region96
      $region95: #{simple_mlp_adaln_forward.1} parent=87 // pred_region
        %s594 = smul.u32 8, %s27
        %p595 = scmp.lt.s32.totalorder %s594, 15
        %s596 = scalar_select %p595, %s594, 15
        %s597 = smul.addr %s596, 2
        %s598 = smul.addr %s597, 8
        %s599 = scalar_lea.vmem %s1, %s598
        %s600 = smul.u32 8, %s27
      $region96: #{simple_mlp_adaln_forward.1} parent=87 // pred_fallthru
        _
      // Predicated region
      $region97: #{simple_mlp_adaln_forward.1} parent=87 // pred_check
        %p601 = pneg %p99
      $region98: #{simple_mlp_adaln_forward.1} parent=87 // pred_check_branch
        %603 = sbr.rel (%p601) target = $region100
      $region99: #{simple_mlp_adaln_forward.1} parent=87 // pred_region
        %s604 = smul.u32 8, %s27
        %p605 = scmp.lt.s32.totalorder %s604, 15
        %s606 = scalar_select %p605, %s604, 15
        %s607 = smul.addr %s606, 8
        %s608 = scalar_lea.vmem %s2, %s607
        %s609 = smul.u32 8, %s27
      $region100: #{simple_mlp_adaln_forward.1} parent=87 // pred_fallthru
        _
    $region88: #{simple_mlp_adaln_forward.1} parent=5 // pred_fallthru
      _
    %p610 = scmp.le.s32.totalorder 1, %s27
    %p611 = scmp.lt.s32.totalorder %s27, 3
    %p612 = pnand %p610, %p611
    %p613 = pneg %p612
    // Predicated region
    $region101: #{simple_mlp_adaln_forward.1} parent=5 // pred_check
      _
    $region102: #{simple_mlp_adaln_forward.1} parent=5 // pred_check_branch
      %615 = sbr.rel (%p612) target = $region104
    $region103: #{simple_mlp_adaln_forward.1} parent=5 // pred_region
      %s616 = ssub.s32 %s27, 1
      %s617 = smul.u32 8, %s32
      %p618 = scmp.lt.s32.totalorder %s617, 15
      %s619 = scalar_select %p618, %s617, 15
      %s620 = smul.addr %s619, 8
      %s621 = scalar_lea.vmem %s0, %s620
      %p622 = pneg %p53
      %p623 = pneg %p50
      %s624 = smul.u32 8, %s32
      %p625 = scmp.lt.s32.totalorder %s624, 15
      %s626 = scalar_select %p625, %s624, 15
      %s627 = smul.addr %s626, 2
      %s628 = smul.addr %s627, 8
      %s629 = scalar_lea.vmem %s1, %s628
      %p630 = pneg %p79
      %p631 = pneg %p76
      %s632 = smul.u32 8, %s32
      %p633 = scmp.lt.s32.totalorder %s632, 15
      %s634 = scalar_select %p633, %s632, 15
      %s635 = smul.addr %s634, 8
      %s636 = scalar_lea.vmem %s2, %s635
      %p637 = pneg %p105
      %p638 = pneg %p102
      %p639 = pneg %p126
      %p640 = pneg %p123
      %p641 = pneg %p147
      %p642 = pneg %p144
      %p643 = pneg %p168
      %p644 = pneg %p165
      %p645 = pneg %p189
      %p646 = pneg %p186
      %p647 = pneg %p210
      %p648 = pneg %p207
      %p649 = pneg %p231
      %p650 = pneg %p228
      %p651 = pneg %p252
      %p652 = pneg %p249
      %p653 = pneg %p273
      %p654 = pneg %p270
      %p655 = pneg %p294
      %p656 = pneg %p291
      %p657 = pneg %p315
      %p658 = pneg %p312
      %p659 = pneg %p336
      %p660 = pneg %p333
      %p661 = pneg %p357
      %p662 = pneg %p354
      %p663 = pneg %p378
      %p664 = pneg %p375
      %p665 = pneg %p399
      %p666 = pneg %p396
      %p667 = pneg %p420
      %p668 = pneg %p417
      %p669 = pneg %p441
      %p670 = pneg %p438
      %p671 = pneg %p462
      %p672 = pneg %p459
      %p673 = pneg %p483
      %p674 = pneg %p480
      %p675 = pneg %p509
      %p676 = pneg %p506
      %s677 = smul.u32 8, %s32
      %p678 = scmp.lt.s32.totalorder %s677, 15
      %s679 = scalar_select %p678, %s677, 15
      %s680 = smul.addr %s679, 8
      %s681 = scalar_lea.vmem %s21, %s680
      %s682 = smul.u32 8, %s32
      %p683 = scmp.lt.s32.totalorder %s682, 15
      %s684 = scalar_select %p683, %s682, 15
      %s685 = smul.addr %s684, 8
      %s686 = scalar_lea.vmem %s0, %s685
      %s687 = smul.u32 8, %s32
      %s688 = smul.u32 8, %s32
      %p689 = scmp.lt.s32.totalorder %s688, 15
      %s690 = scalar_select %p689, %s688, 15
      %s691 = smul.addr %s690, 2
      %s692 = smul.addr %s691, 8
      %s693 = scalar_lea.vmem %s1, %s692
      %s694 = smul.u32 8, %s32
      %s695 = smul.u32 8, %s32
      %p696 = scmp.lt.s32.totalorder %s695, 15
      %s697 = scalar_select %p696, %s695, 15
      %s698 = smul.addr %s697, 8
      %s699 = scalar_lea.vmem %s2, %s698
      %s700 = smul.u32 8, %s32
      %s701 = smul.u32 8, %s32
      %p702 = scmp.lt.s32.totalorder %s701, 15
      %s703 = scalar_select %p702, %s701, 15
      %s704 = smul.addr %s703, 8
      %s705 = scalar_lea.vmem %s21, %s704
      %s706 = smul.u32 8, %s32
      %v708 = vld [vmem:[%s686] sm:$0xff]
      %v709 = vld [vmem:[%s686 + $0x8] sm:$0xff]
      %v710 = vld [vmem:[%s686 + $0x10] sm:$0xff]
      %v711 = vld [vmem:[%s686 + $0x18] sm:$0xff]
      %v712 = vld [vmem:[%s686 + $0x20] sm:$0xff]
      %v713 = vld [vmem:[%s686 + $0x28] sm:$0xff]
      %v714 = vld [vmem:[%s686 + $0x30] sm:$0xff]
      %v715 = vld [vmem:[%s686 + $0x38] sm:$0xff]
      %v716 = vld [vmem:[%s3] sm:$0xf]
      %v717 = vld [vmem:[%s3 + $0x4] sm:$0xf]
      %v718 = vpack.c.bf16 %v709, %v708
      %v719 = vpack.c.bf16 %v711, %v710
      %v720 = vpack.c.bf16 %v713, %v712
      %v721 = vpack.c.bf16 %v715, %v714
      %v722 = vld [vmem:[%s4] sm:$0x1]
      %v724 = vlaneseq
      %v725 = vshrl.u32 %v724, 7
      %v726 = vsub.s32 0, %v725
      %v727 = vrot.slane %v722, %v726
      %v731 = vunpack.c.l.b16 %v716
      %v732 = vunpack.c.l.b16 %v717
      %v733 = vpack.c.b16 %v732, %v731
      %vm735 = vcmask 130048
      %v737 = vsel %vm735, %v718, 0
      %v740 = vsel %vm735, %v719, 0
      %v743 = vsel %vm735, %v720, 0
      %v746 = vsel %vm735, %v721, 0
      %748 = vmatprep.subr.bf16.mxu0 0
      %749 = vmatpush1.bf16.msra.mxu0 0
      %750 = vmatprep.subr.bf16.mxu0 0
      %751 = vmatpush1.bf16.msra.mxu0 0
      %752 = vmatprep.subr.bf16.mxu0 0
      %753 = vmatpush1.bf16.msra.mxu0 0
      %754 = vmatprep.subr.bf16.mxu0 0
      %755 = vmatpush1.bf16.msra.mxu0 0
      %756 = vmatprep.subr.bf16.mxu0 0
      %757 = vmatpush1.bf16.msra.mxu0 0
      %758 = vmatprep.subr.bf16.mxu0 0
      %759 = vmatpush1.bf16.msra.mxu0 0
      %760 = vmatprep.subr.bf16.mxu0 0
      %761 = vmatpush1.bf16.msra.mxu0 0
      %762 = vmatprep.subr.bf16.mxu0 0
      %763 = vmatpush1.bf16.msra.mxu0 %v733
      %764 = vmatprep.subr.bf16.mxu0 0
      %765 = vmatpush2.bf16.msra.mxu0 0
      %766 = vmatprep.subr.bf16.mxu0 0
      %767 = vmatpush2.bf16.msra.mxu0 0
      %768 = vmatprep.subr.bf16.mxu0 0
      %769 = vmatpush2.bf16.msra.mxu0 0
      %770 = vmatprep.subr.bf16.mxu0 0
      %771 = vmatpush2.bf16.msra.mxu0 0
      %772 = vmatprep.subr.bf16.mxu0 0
      %773 = vmatpush2.bf16.msra.mxu0 0
      %774 = vmatprep.subr.bf16.mxu0 0
      %775 = vmatpush2.bf16.msra.mxu0 0
      %776 = vmatprep.subr.bf16.mxu0 0
      %777 = vmatpush2.bf16.msra.mxu0 0
      %778 = vmatprep.subr.bf16.mxu0 0
      %779 = vmatpush2.bf16.msra.mxu0 0
      %780 = vmatprep.mubr.bf16.mxu0 0
      %781 = vmatmul.mubr.bf16.gmra.mxu0 %v737
      %v782 = vpop.f32.mrf.mxu0
      %v783 = vadd.f32 %v727, %v782
      %v784 = vpop.f32.mrf.mxu0
      %v785 = vpop.f32.mrf.mxu0
      %v786 = vadd.f32 %v727, %v785
      %v787 = vpop.f32.mrf.mxu0
      %788 = vmatprep.mubr.bf16.mxu0 0
      %789 = vmatmul.mubr.bf16.gmra.mxu0 %v740
      %v790 = vpop.f32.mrf.mxu0
      %v791 = vadd.f32 %v727, %v790
      %v792 = vpop.f32.mrf.mxu0
      %v793 = vpop.f32.mrf.mxu0
      %v794 = vadd.f32 %v727, %v793
      %v795 = vpop.f32.mrf.mxu0
      %796 = vmatprep.mubr.bf16.mxu0 0
      %797 = vmatmul.mubr.bf16.gmra.mxu0 %v743
      %v798 = vpop.f32.mrf.mxu0
      %v799 = vadd.f32 %v727, %v798
      %v800 = vpop.f32.mrf.mxu0
      %v801 = vpop.f32.mrf.mxu0
      %v802 = vadd.f32 %v727, %v801
      %v803 = vpop.f32.mrf.mxu0
      %804 = vmatprep.mubr.bf16.mxu0 0
      %805 = vmatmul.mubr.bf16.gmra.mxu0 %v746
      %v806 = vpop.f32.mrf.mxu0
      %v807 = vadd.f32 %v727, %v806
      %v808 = vpop.f32.mrf.mxu0
      %v809 = vpop.f32.mrf.mxu0
      %v810 = vadd.f32 %v727, %v809
      %v811 = vpop.f32.mrf.mxu0
      %812 = vdwg.mxu0
      %v813 = vld [vmem:[%s693] sm:$0xff]
      %v814 = vld [vmem:[%s693 + $0x8] sm:$0xff]
      %v815 = vld [vmem:[%s693 + $0x10] sm:$0xff]
      %v816 = vld [vmem:[%s693 + $0x18] sm:$0xff]
      %v817 = vld [vmem:[%s693 + $0x20] sm:$0xff]
      %v818 = vld [vmem:[%s693 + $0x28] sm:$0xff]
      %v819 = vld [vmem:[%s693 + $0x30] sm:$0xff]
      %v820 = vld [vmem:[%s693 + $0x38] sm:$0xff]
      %v821 = vld [vmem:[%s693 + $0x40] sm:$0xff]
      %v822 = vld [vmem:[%s693 + $0x48] sm:$0xff]
      %v823 = vld [vmem:[%s693 + $0x50] sm:$0xff]
      %v824 = vld [vmem:[%s693 + $0x58] sm:$0xff]
      %v825 = vld [vmem:[%s693 + $0x60] sm:$0xff]
      %v826 = vld [vmem:[%s693 + $0x68] sm:$0xff]
      %v827 = vld [vmem:[%s693 + $0x70] sm:$0xff]
      %v828 = vld [vmem:[%s693 + $0x78] sm:$0xff]
      %v829 = vld [vmem:[%s5] sm:$0xf]
      %v830 = vld [vmem:[%s5 + $0x4] sm:$0xf]
      %v831 = vld [vmem:[%s5 + $0x8] sm:$0xf]
      %v832 = vld [vmem:[%s5 + $0xc] sm:$0xf]
      %v833 = vld [vmem:[%s5 + $0x10] sm:$0xf]
      %v834 = vld [vmem:[%s5 + $0x14] sm:$0xf]
      %v835 = vld [vmem:[%s5 + $0x18] sm:$0xf]
      %v836 = vld [vmem:[%s5 + $0x1c] sm:$0xf]
      %v837 = vld [vmem:[%s5 + $0x20] sm:$0xf]
      %v838 = vld [vmem:[%s5 + $0x24] sm:$0xf]
      %v839 = vld [vmem:[%s5 + $0x28] sm:$0xf]
      %v840 = vld [vmem:[%s5 + $0x2c] sm:$0xf]
      %v841 = vld [vmem:[%s5 + $0x30] sm:$0xf]
      %v842 = vld [vmem:[%s5 + $0x34] sm:$0xf]
      %v843 = vld [vmem:[%s5 + $0x38] sm:$0xf]
      %v844 = vld [vmem:[%s5 + $0x3c] sm:$0xf]
      %v845 = vld [vmem:[%s5 + $0x40] sm:$0xf]
      %v846 = vld [vmem:[%s5 + $0x44] sm:$0xf]
      %v847 = vld [vmem:[%s5 + $0x48] sm:$0xf]
      %v848 = vld [vmem:[%s5 + $0x4c] sm:$0xf]
      %v849 = vld [vmem:[%s5 + $0x50] sm:$0xf]
      %v850 = vld [vmem:[%s5 + $0x54] sm:$0xf]
      %v851 = vld [vmem:[%s5 + $0x58] sm:$0xf]
      %v852 = vld [vmem:[%s5 + $0x5c] sm:$0xf]
      %v853 = vld [vmem:[%s5 + $0x60] sm:$0xf]
      %v854 = vld [vmem:[%s5 + $0x64] sm:$0xf]
      %v855 = vld [vmem:[%s5 + $0x68] sm:$0xf]
      %v856 = vld [vmem:[%s5 + $0x6c] sm:$0xf]
      %v857 = vld [vmem:[%s5 + $0x70] sm:$0xf]
      %v858 = vld [vmem:[%s5 + $0x74] sm:$0xf]
      %v859 = vld [vmem:[%s5 + $0x78] sm:$0xf]
      %v860 = vld [vmem:[%s5 + $0x7c] sm:$0xf]
      %v861 = vpack.c.bf16 %v815, %v813
      %v862 = vpack.c.bf16 %v816, %v814
      %v863 = vpack.c.bf16 %v819, %v817
      %v864 = vpack.c.bf16 %v820, %v818
      %v865 = vpack.c.bf16 %v823, %v821
      %v866 = vpack.c.bf16 %v824, %v822
      %v867 = vpack.c.bf16 %v827, %v825
      %v868 = vpack.c.bf16 %v828, %v826
      %v869 = vld [vmem:[%s6] sm:$0x1]
      %v871 = vlaneseq
      %v872 = vshrl.u32 %v871, 7
      %v873 = vsub.s32 0, %v872
      %v874 = vrot.slane %v869, %v873
      %v908 = vunpack.c.l.b16 %v829
      %v909 = vunpack.c.l.b16 %v830
      %v910 = vunpack.c.l.b16 %v831
      %v911 = vunpack.c.l.b16 %v832
      %v912 = vunpack.c.l.b16 %v833
      %v913 = vunpack.c.l.b16 %v834
      %v914 = vunpack.c.l.b16 %v835
      %v915 = vunpack.c.l.b16 %v836
      %v916 = vunpack.c.l.b16 %v837
      %v917 = vunpack.c.l.b16 %v838
      %v918 = vunpack.c.l.b16 %v839
      %v919 = vunpack.c.l.b16 %v840
      %v920 = vunpack.c.l.b16 %v841
      %v921 = vunpack.c.l.b16 %v842
      %v922 = vunpack.c.l.b16 %v843
      %v923 = vunpack.c.l.b16 %v844
      %v924 = vunpack.c.l.b16 %v845
      %v925 = vunpack.c.l.b16 %v846
      %v926 = vunpack.c.l.b16 %v847
      %v927 = vunpack.c.l.b16 %v848
      %v928 = vunpack.c.l.b16 %v849
      %v929 = vunpack.c.l.b16 %v850
      %v930 = vunpack.c.l.b16 %v851
      %v931 = vunpack.c.l.b16 %v852
      %v932 = vunpack.c.l.b16 %v853
      %v933 = vunpack.c.l.b16 %v854
      %v934 = vunpack.c.l.b16 %v855
      %v935 = vunpack.c.l.b16 %v856
      %v936 = vunpack.c.l.b16 %v857
      %v937 = vunpack.c.l.b16 %v858
      %v938 = vunpack.c.l.b16 %v859
      %v939 = vunpack.c.l.b16 %v860
      %v940 = vpack.c.b16 %v909, %v908
      %v941 = vpack.c.b16 %v911, %v910
      %v942 = vpack.c.b16 %v913, %v912
      %v943 = vpack.c.b16 %v915, %v914
      %v944 = vpack.c.b16 %v917, %v916
      %v945 = vpack.c.b16 %v919, %v918
      %v946 = vpack.c.b16 %v921, %v920
      %v947 = vpack.c.b16 %v923, %v922
      %v948 = vpack.c.b16 %v925, %v924
      %v949 = vpack.c.b16 %v927, %v926
      %v950 = vpack.c.b16 %v929, %v928
      %v951 = vpack.c.b16 %v931, %v930
      %v952 = vpack.c.b16 %v933, %v932
      %v953 = vpack.c.b16 %v935, %v934
      %v954 = vpack.c.b16 %v937, %v936
      %v955 = vpack.c.b16 %v939, %v938
      %972 = vmatprep.subr.bf16.mxu0 0
      %973 = vmatpush1.bf16.msra.mxu0 %v947
      %974 = vmatprep.subr.bf16.mxu0 0
      %975 = vmatpush1.bf16.msra.mxu0 %v946
      %976 = vmatprep.subr.bf16.mxu0 0
      %977 = vmatpush1.bf16.msra.mxu0 %v945
      %978 = vmatprep.subr.bf16.mxu0 0
      %979 = vmatpush1.bf16.msra.mxu0 %v944
      %980 = vmatprep.subr.bf16.mxu0 0
      %981 = vmatpush1.bf16.msra.mxu0 %v943
      %982 = vmatprep.subr.bf16.mxu0 0
      %983 = vmatpush1.bf16.msra.mxu0 %v942
      %984 = vmatprep.subr.bf16.mxu0 0
      %985 = vmatpush1.bf16.msra.mxu0 %v941
      %986 = vmatprep.subr.bf16.mxu0 0
      %987 = vmatpush1.bf16.msra.mxu0 %v940
      %988 = vmatprep.subr.bf16.mxu0 0
      %989 = vmatpush2.bf16.msra.mxu0 %v955
      %990 = vmatprep.subr.bf16.mxu0 0
      %991 = vmatpush2.bf16.msra.mxu0 %v954
      %992 = vmatprep.subr.bf16.mxu0 0
      %993 = vmatpush2.bf16.msra.mxu0 %v953
      %994 = vmatprep.subr.bf16.mxu0 0
      %995 = vmatpush2.bf16.msra.mxu0 %v952
      %996 = vmatprep.subr.bf16.mxu0 0
      %997 = vmatpush2.bf16.msra.mxu0 %v951
      %998 = vmatprep.subr.bf16.mxu0 0
      %999 = vmatpush2.bf16.msra.mxu0 %v950
      %1000 = vmatprep.subr.bf16.mxu0 0
      %1001 = vmatpush2.bf16.msra.mxu0 %v949
      %1002 = vmatprep.subr.bf16.mxu0 0
      %1003 = vmatpush2.bf16.msra.mxu0 %v948
      %1004 = vmatprep.mubr.bf16.mxu0 %v862
      %1005 = vmatmul.mubr.bf16.gmra.mxu0 %v861
      %v1006 = vpop.f32.mrf.mxu0
      %v1007 = vadd.f32 %v874, %v1006
      %v1008 = vpop.f32.mrf.mxu0
      %v1009 = vpop.f32.mrf.mxu0
      %v1010 = vadd.f32 %v874, %v1009
      %v1011 = vpop.f32.mrf.mxu0
      %1012 = vmatprep.mubr.bf16.mxu0 %v864
      %1013 = vmatmul.mubr.bf16.gmra.mxu0 %v863
      %v1014 = vpop.f32.mrf.mxu0
      %v1015 = vadd.f32 %v874, %v1014
      %v1016 = vpop.f32.mrf.mxu0
      %v1017 = vpop.f32.mrf.mxu0
      %v1018 = vadd.f32 %v874, %v1017
      %v1019 = vpop.f32.mrf.mxu0
      %1020 = vmatprep.mubr.bf16.mxu0 %v866
      %1021 = vmatmul.mubr.bf16.gmra.mxu0 %v865
      %v1022 = vpop.f32.mrf.mxu0
      %v1023 = vadd.f32 %v874, %v1022
      %v1024 = vpop.f32.mrf.mxu0
      %v1025 = vpop.f32.mrf.mxu0
      %v1026 = vadd.f32 %v874, %v1025
      %v1027 = vpop.f32.mrf.mxu0
      %1028 = vmatprep.mubr.bf16.mxu0 %v868
      %1029 = vmatmul.mubr.bf16.gmra.mxu0 %v867
      %v1030 = vpop.f32.mrf.mxu0
      %v1031 = vadd.f32 %v874, %v1030
      %v1032 = vpop.f32.mrf.mxu0
      %v1033 = vpop.f32.mrf.mxu0
      %v1034 = vadd.f32 %v874, %v1033
      %v1035 = vpop.f32.mrf.mxu0
      %1036 = vdwg.mxu0
      %v1037 = vxor.u32 %v1007, 2147483648
      %v1038 = vxor.u32 %v1010, 2147483648
      %v1039 = vxor.u32 %v1015, 2147483648
      %v1040 = vxor.u32 %v1018, 2147483648
      %v1041 = vxor.u32 %v1023, 2147483648
      %v1042 = vxor.u32 %v1026, 2147483648
      %v1043 = vxor.u32 %v1031, 2147483648
      %v1044 = vxor.u32 %v1034, 2147483648
      %v1045 = vmul.f32 %v1037, 1.442695
      %v1046 = vpow.pop %v1045
      %v1047 = vmul.f32 %v1038, 1.442695
      %v1048 = vpow.pop %v1047
      %v1049 = vmul.f32 %v1039, 1.442695
      %v1050 = vpow.pop %v1049
      %v1051 = vmul.f32 %v1040, 1.442695
      %v1052 = vpow.pop %v1051
      %v1053 = vmul.f32 %v1041, 1.442695
      %v1054 = vpow.pop %v1053
      %v1055 = vmul.f32 %v1042, 1.442695
      %v1056 = vpow.pop %v1055
      %v1057 = vmul.f32 %v1043, 1.442695
      %v1058 = vpow.pop %v1057
      %v1059 = vmul.f32 %v1044, 1.442695
      %v1060 = vpow.pop %v1059
      %v1061 = vadd.f32 %v1046, 1.0
      %v1062 = vadd.f32 %v1048, 1.0
      %v1063 = vadd.f32 %v1050, 1.0
      %v1064 = vadd.f32 %v1052, 1.0
      %v1065 = vadd.f32 %v1054, 1.0
      %v1066 = vadd.f32 %v1056, 1.0
      %v1067 = vadd.f32 %v1058, 1.0
      %v1068 = vadd.f32 %v1060, 1.0
      %v1069 = vrcp.pop %v1061
      %v1070 = vmul.f32 1.0, %v1069
      %v1071 = vrcp.pop %v1062
      %v1072 = vmul.f32 1.0, %v1071
      %v1073 = vrcp.pop %v1063
      %v1074 = vmul.f32 1.0, %v1073
      %v1075 = vrcp.pop %v1064
      %v1076 = vmul.f32 1.0, %v1075
      %v1077 = vrcp.pop %v1065
      %v1078 = vmul.f32 1.0, %v1077
      %v1079 = vrcp.pop %v1066
      %v1080 = vmul.f32 1.0, %v1079
      %v1081 = vrcp.pop %v1067
      %v1082 = vmul.f32 1.0, %v1081
      %v1083 = vrcp.pop %v1068
      %v1084 = vmul.f32 1.0, %v1083
      %v1085 = vmul.f32 %v1007, %v1070
      %v1086 = vmul.f32 %v1010, %v1072
      %v1087 = vmul.f32 %v1015, %v1074
      %v1088 = vmul.f32 %v1018, %v1076
      %v1089 = vmul.f32 %v1023, %v1078
      %v1090 = vmul.f32 %v1026, %v1080
      %v1091 = vmul.f32 %v1031, %v1082
      %v1092 = vmul.f32 %v1034, %v1084
      %v1093 = vld [vmem:[%s7] sm:$0xf]
      %v1094 = vld [vmem:[%s7 + $0x4] sm:$0xf]
      %v1095 = vld [vmem:[%s7 + $0x8] sm:$0xf]
      %v1096 = vld [vmem:[%s7 + $0xc] sm:$0xf]
      %v1097 = vld [vmem:[%s7 + $0x10] sm:$0xf]
      %v1098 = vld [vmem:[%s7 + $0x14] sm:$0xf]
      %v1099 = vld [vmem:[%s7 + $0x18] sm:$0xf]
      %v1100 = vld [vmem:[%s7 + $0x1c] sm:$0xf]
      %v1101 = vld [vmem:[%s7 + $0x20] sm:$0xf]
      %v1102 = vld [vmem:[%s7 + $0x24] sm:$0xf]
      %v1103 = vld [vmem:[%s7 + $0x28] sm:$0xf]
      %v1104 = vld [vmem:[%s7 + $0x2c] sm:$0xf]
      %v1105 = vld [vmem:[%s7 + $0x30] sm:$0xf]
      %v1106 = vld [vmem:[%s7 + $0x34] sm:$0xf]
      %v1107 = vld [vmem:[%s7 + $0x38] sm:$0xf]
      %v1108 = vld [vmem:[%s7 + $0x3c] sm:$0xf]
      %v1109 = vpack.c.bf16 %v1086, %v1085
      %v1110 = vpack.c.bf16 %v1088, %v1087
      %v1111 = vpack.c.bf16 %v1090, %v1089
      %v1112 = vpack.c.bf16 %v1092, %v1091
      %v1113 = vld [vmem:[%s8] sm:$0x1]
      %v1115 = vlaneseq
      %v1116 = vshrl.u32 %v1115, 7
      %v1117 = vsub.s32 0, %v1116
      %v1118 = vrot.slane %v1113, %v1117
      %v1136 = vunpack.c.l.b16 %v1093
      %v1137 = vunpack.c.l.b16 %v1094
      %v1138 = vunpack.c.l.b16 %v1095
      %v1139 = vunpack.c.l.b16 %v1096
      %v1140 = vunpack.c.l.b16 %v1097
      %v1141 = vunpack.c.l.b16 %v1098
      %v1142 = vunpack.c.l.b16 %v1099
      %v1143 = vunpack.c.l.b16 %v1100
      %v1144 = vunpack.c.l.b16 %v1101
      %v1145 = vunpack.c.l.b16 %v1102
      %v1146 = vunpack.c.l.b16 %v1103
      %v1147 = vunpack.c.l.b16 %v1104
      %v1148 = vunpack.c.l.b16 %v1105
      %v1149 = vunpack.c.l.b16 %v1106
      %v1150 = vunpack.c.l.b16 %v1107
      %v1151 = vunpack.c.l.b16 %v1108
      %v1152 = vpack.c.b16 %v1137, %v1136
      %v1153 = vpack.c.b16 %v1139, %v1138
      %v1154 = vpack.c.b16 %v1141, %v1140
      %v1155 = vpack.c.b16 %v1143, %v1142
      %v1156 = vpack.c.b16 %v1145, %v1144
      %v1157 = vpack.c.b16 %v1147, %v1146
      %v1158 = vpack.c.b16 %v1149, %v1148
      %v1159 = vpack.c.b16 %v1151, %v1150
      %1168 = vmatprep.subr.bf16.mxu0 0
      %1169 = vmatpush1.bf16.msra.mxu0 %v1159
      %1170 = vmatprep.subr.bf16.mxu0 0
      %1171 = vmatpush1.bf16.msra.mxu0 %v1158
      %1172 = vmatprep.subr.bf16.mxu0 0
      %1173 = vmatpush1.bf16.msra.mxu0 %v1157
      %1174 = vmatprep.subr.bf16.mxu0 0
      %1175 = vmatpush1.bf16.msra.mxu0 %v1156
      %1176 = vmatprep.subr.bf16.mxu0 0
      %1177 = vmatpush1.bf16.msra.mxu0 %v1155
      %1178 = vmatprep.subr.bf16.mxu0 0
      %1179 = vmatpush1.bf16.msra.mxu0 %v1154
      %1180 = vmatprep.subr.bf16.mxu0 0
      %1181 = vmatpush1.bf16.msra.mxu0 %v1153
      %1182 = vmatprep.subr.bf16.mxu0 0
      %1183 = vmatpush1.bf16.msra.mxu0 %v1152
      %1184 = vmatprep.subr.bf16.mxu0 0
      %1185 = vmatpush2.bf16.msra.mxu0 0
      %1186 = vmatprep.subr.bf16.mxu0 0
      %1187 = vmatpush2.bf16.msra.mxu0 0
      %1188 = vmatprep.subr.bf16.mxu0 0
      %1189 = vmatpush2.bf16.msra.mxu0 0
      %1190 = vmatprep.subr.bf16.mxu0 0
      %1191 = vmatpush2.bf16.msra.mxu0 0
      %1192 = vmatprep.subr.bf16.mxu0 0
      %1193 = vmatpush2.bf16.msra.mxu0 0
      %1194 = vmatprep.subr.bf16.mxu0 0
      %1195 = vmatpush2.bf16.msra.mxu0 0
      %1196 = vmatprep.subr.bf16.mxu0 0
      %1197 = vmatpush2.bf16.msra.mxu0 0
      %1198 = vmatprep.subr.bf16.mxu0 0
      %1199 = vmatpush2.bf16.msra.mxu0 0
      %1200 = vmatprep.mubr.bf16.mxu0 0
      %1201 = vmatmul.mubr.bf16.gmra.mxu0 %v1109
      %v1202 = vpop.f32.mrf.mxu0
      %v1203 = vadd.f32 %v1118, %v1202
      %v1204 = vpop.f32.mrf.mxu0
      %v1205 = vpop.f32.mrf.mxu0
      %v1206 = vadd.f32 %v1118, %v1205
      %v1207 = vpop.f32.mrf.mxu0
      %1208 = vmatprep.mubr.bf16.mxu0 0
      %1209 = vmatmul.mubr.bf16.gmra.mxu0 %v1110
      %v1210 = vpop.f32.mrf.mxu0
      %v1211 = vadd.f32 %v1118, %v1210
      %v1212 = vpop.f32.mrf.mxu0
      %v1213 = vpop.f32.mrf.mxu0
      %v1214 = vadd.f32 %v1118, %v1213
      %v1215 = vpop.f32.mrf.mxu0
      %1216 = vmatprep.mubr.bf16.mxu0 0
      %1217 = vmatmul.mubr.bf16.gmra.mxu0 %v1111
      %v1218 = vpop.f32.mrf.mxu0
      %v1219 = vadd.f32 %v1118, %v1218
      %v1220 = vpop.f32.mrf.mxu0
      %v1221 = vpop.f32.mrf.mxu0
      %v1222 = vadd.f32 %v1118, %v1221
      %v1223 = vpop.f32.mrf.mxu0
      %1224 = vmatprep.mubr.bf16.mxu0 0
      %1225 = vmatmul.mubr.bf16.gmra.mxu0 %v1112
      %v1226 = vpop.f32.mrf.mxu0
      %v1227 = vadd.f32 %v1118, %v1226
      %v1228 = vpop.f32.mrf.mxu0
      %v1229 = vpop.f32.mrf.mxu0
      %v1230 = vadd.f32 %v1118, %v1229
      %v1231 = vpop.f32.mrf.mxu0
      %1232 = vdwg.mxu0
      %v1233 = vld [vmem:[%s699] sm:$0xff]
      %v1234 = vld [vmem:[%s699 + $0x8] sm:$0xff]
      %v1235 = vld [vmem:[%s699 + $0x10] sm:$0xff]
      %v1236 = vld [vmem:[%s699 + $0x18] sm:$0xff]
      %v1237 = vld [vmem:[%s699 + $0x20] sm:$0xff]
      %v1238 = vld [vmem:[%s699 + $0x28] sm:$0xff]
      %v1239 = vld [vmem:[%s699 + $0x30] sm:$0xff]
      %v1240 = vld [vmem:[%s699 + $0x38] sm:$0xff]
      %v1241 = vld [vmem:[%s9] sm:$0xf]
      %v1242 = vld [vmem:[%s9 + $0x4] sm:$0xf]
      %v1243 = vld [vmem:[%s9 + $0x8] sm:$0xf]
      %v1244 = vld [vmem:[%s9 + $0xc] sm:$0xf]
      %v1245 = vld [vmem:[%s9 + $0x10] sm:$0xf]
      %v1246 = vld [vmem:[%s9 + $0x14] sm:$0xf]
      %v1247 = vld [vmem:[%s9 + $0x18] sm:$0xf]
      %v1248 = vld [vmem:[%s9 + $0x1c] sm:$0xf]
      %v1249 = vpack.c.bf16 %v1234, %v1233
      %v1250 = vpack.c.bf16 %v1236, %v1235
      %v1251 = vpack.c.bf16 %v1238, %v1237
      %v1252 = vpack.c.bf16 %v1240, %v1239
      %v1261 = vunpack.c.l.b16 %v1241
      %v1262 = vunpack.c.l.b16 %v1242
      %v1263 = vunpack.c.l.b16 %v1243
      %v1264 = vunpack.c.l.b16 %v1244
      %v1265 = vunpack.c.l.b16 %v1245
      %v1266 = vunpack.c.l.b16 %v1246
      %v1267 = vunpack.c.l.b16 %v1247
      %v1268 = vunpack.c.l.b16 %v1248
      %v1269 = vpack.c.b16 %v1262, %v1261
      %v1270 = vpack.c.b16 %v1264, %v1263
      %v1271 = vpack.c.b16 %v1266, %v1265
      %v1272 = vpack.c.b16 %v1268, %v1267
      %vm1277 = vcmask 523264
      %v1279 = vsel %vm1277, %v1249, 0
      %v1282 = vsel %vm1277, %v1250, 0
      %v1285 = vsel %vm1277, %v1251, 0
      %v1288 = vsel %vm1277, %v1252, 0
      %1290 = vmatprep.subr.bf16.mxu0 0
      %1291 = vmatpush1.bf16.msra.mxu0 0
      %1292 = vmatprep.subr.bf16.mxu0 0
      %1293 = vmatpush1.bf16.msra.mxu0 0
      %1294 = vmatprep.subr.bf16.mxu0 0
      %1295 = vmatpush1.bf16.msra.mxu0 0
      %1296 = vmatprep.subr.bf16.mxu0 0
      %1297 = vmatpush1.bf16.msra.mxu0 0
      %1298 = vmatprep.subr.bf16.mxu0 0
      %1299 = vmatpush1.bf16.msra.mxu0 %v1272
      %1300 = vmatprep.subr.bf16.mxu0 0
      %1301 = vmatpush1.bf16.msra.mxu0 %v1271
      %1302 = vmatprep.subr.bf16.mxu0 0
      %1303 = vmatpush1.bf16.msra.mxu0 %v1270
      %1304 = vmatprep.subr.bf16.mxu0 0
      %1305 = vmatpush1.bf16.msra.mxu0 %v1269
      %1306 = vmatprep.subr.bf16.mxu0 0
      %1307 = vmatpush2.bf16.msra.mxu0 0
      %1308 = vmatprep.subr.bf16.mxu0 0
      %1309 = vmatpush2.bf16.msra.mxu0 0
      %1310 = vmatprep.subr.bf16.mxu0 0
      %1311 = vmatpush2.bf16.msra.mxu0 0
      %1312 = vmatprep.subr.bf16.mxu0 0
      %1313 = vmatpush2.bf16.msra.mxu0 0
      %1314 = vmatprep.subr.bf16.mxu0 0
      %1315 = vmatpush2.bf16.msra.mxu0 0
      %1316 = vmatprep.subr.bf16.mxu0 0
      %1317 = vmatpush2.bf16.msra.mxu0 0
      %1318 = vmatprep.subr.bf16.mxu0 0
      %1319 = vmatpush2.bf16.msra.mxu0 0
      %1320 = vmatprep.subr.bf16.mxu0 0
      %1321 = vmatpush2.bf16.msra.mxu0 0
      %1322 = vmatprep.mubr.bf16.mxu0 0
      %1323 = vmatmul.mubr.bf16.gmra.mxu0 %v1279
      %v1324 = vpop.f32.mrf.mxu0
      %v1325 = vadd.f32 0.0, %v1324
      %v1326 = vpop.f32.mrf.mxu0
      %v1327 = vpop.f32.mrf.mxu0
      %v1328 = vadd.f32 0.0, %v1327
      %v1329 = vpop.f32.mrf.mxu0
      %1330 = vmatprep.mubr.bf16.mxu0 0
      %1331 = vmatmul.mubr.bf16.gmra.mxu0 %v1282
      %v1332 = vpop.f32.mrf.mxu0
      %v1333 = vadd.f32 0.0, %v1332
      %v1334 = vpop.f32.mrf.mxu0
      %v1335 = vpop.f32.mrf.mxu0
      %v1336 = vadd.f32 0.0, %v1335
      %v1337 = vpop.f32.mrf.mxu0
      %1338 = vmatprep.mubr.bf16.mxu0 0
      %1339 = vmatmul.mubr.bf16.gmra.mxu0 %v1285
      %v1340 = vpop.f32.mrf.mxu0
      %v1341 = vadd.f32 0.0, %v1340
      %v1342 = vpop.f32.mrf.mxu0
      %v1343 = vpop.f32.mrf.mxu0
      %v1344 = vadd.f32 0.0, %v1343
      %v1345 = vpop.f32.mrf.mxu0
      %1346 = vmatprep.mubr.bf16.mxu0 0
      %1347 = vmatmul.mubr.bf16.gmra.mxu0 %v1288
      %v1348 = vpop.f32.mrf.mxu0
      %v1349 = vadd.f32 0.0, %v1348
      %v1350 = vpop.f32.mrf.mxu0
      %v1351 = vpop.f32.mrf.mxu0
      %v1352 = vadd.f32 0.0, %v1351
      %v1353 = vpop.f32.mrf.mxu0
      %1354 = vdwg.mxu0
      %v1355 = vadd.f32 %v1203, %v1325
      %v1356 = vadd.f32 %v1206, %v1328
      %v1357 = vadd.f32 %v1211, %v1333
      %v1358 = vadd.f32 %v1214, %v1336
      %v1359 = vadd.f32 %v1219, %v1341
      %v1360 = vadd.f32 %v1222, %v1344
      %v1361 = vadd.f32 %v1227, %v1349
      %v1362 = vadd.f32 %v1230, %v1352
      %v1363 = vld [vmem:[%s10] sm:$0x1]
      %v1365 = vlaneseq
      %v1366 = vshrl.u32 %v1365, 7
      %v1367 = vsub.s32 0, %v1366
      %v1368 = vrot.slane %v1363, %v1367
      %v1370 = vadd.f32 %v1355, %v1368
      %v1371 = vadd.f32 %v1356, %v1368
      %v1372 = vadd.f32 %v1357, %v1368
      %v1373 = vadd.f32 %v1358, %v1368
      %v1374 = vadd.f32 %v1359, %v1368
      %v1375 = vadd.f32 %v1360, %v1368
      %v1376 = vadd.f32 %v1361, %v1368
      %v1377 = vadd.f32 %v1362, %v1368
      %v1378 = vxor.u32 %v1370, 2147483648
      %v1379 = vxor.u32 %v1371, 2147483648
      %v1380 = vxor.u32 %v1372, 2147483648
      %v1381 = vxor.u32 %v1373, 2147483648
      %v1382 = vxor.u32 %v1374, 2147483648
      %v1383 = vxor.u32 %v1375, 2147483648
      %v1384 = vxor.u32 %v1376, 2147483648
      %v1385 = vxor.u32 %v1377, 2147483648
      %v1386 = vmul.f32 %v1378, 1.442695
      %v1387 = vpow.pop %v1386
      %v1388 = vmul.f32 %v1379, 1.442695
      %v1389 = vpow.pop %v1388
      %v1390 = vmul.f32 %v1380, 1.442695
      %v1391 = vpow.pop %v1390
      %v1392 = vmul.f32 %v1381, 1.442695
      %v1393 = vpow.pop %v1392
      %v1394 = vmul.f32 %v1382, 1.442695
      %v1395 = vpow.pop %v1394
      %v1396 = vmul.f32 %v1383, 1.442695
      %v1397 = vpow.pop %v1396
      %v1398 = vmul.f32 %v1384, 1.442695
      %v1399 = vpow.pop %v1398
      %v1400 = vmul.f32 %v1385, 1.442695
      %v1401 = vpow.pop %v1400
      %v1402 = vadd.f32 %v1387, 1.0
      %v1403 = vadd.f32 %v1389, 1.0
      %v1404 = vadd.f32 %v1391, 1.0
      %v1405 = vadd.f32 %v1393, 1.0
      %v1406 = vadd.f32 %v1395, 1.0
      %v1407 = vadd.f32 %v1397, 1.0
      %v1408 = vadd.f32 %v1399, 1.0
      %v1409 = vadd.f32 %v1401, 1.0
      %v1410 = vrcp.pop %v1402
      %v1411 = vmul.f32 1.0, %v1410
      %v1412 = vrcp.pop %v1403
      %v1413 = vmul.f32 1.0, %v1412
      %v1414 = vrcp.pop %v1404
      %v1415 = vmul.f32 1.0, %v1414
      %v1416 = vrcp.pop %v1405
      %v1417 = vmul.f32 1.0, %v1416
      %v1418 = vrcp.pop %v1406
      %v1419 = vmul.f32 1.0, %v1418
      %v1420 = vrcp.pop %v1407
      %v1421 = vmul.f32 1.0, %v1420
      %v1422 = vrcp.pop %v1408
      %v1423 = vmul.f32 1.0, %v1422
      %v1424 = vrcp.pop %v1409
      %v1425 = vmul.f32 1.0, %v1424
      %v1426 = vmul.f32 %v1370, %v1411
      %v1427 = vmul.f32 %v1371, %v1413
      %v1428 = vmul.f32 %v1372, %v1415
      %v1429 = vmul.f32 %v1373, %v1417
      %v1430 = vmul.f32 %v1374, %v1419
      %v1431 = vmul.f32 %v1375, %v1421
      %v1432 = vmul.f32 %v1376, %v1423
      %v1433 = vmul.f32 %v1377, %v1425
      %v1434 = vpack.c.bf16 %v1427, %v1426
      %v1435 = vpack.c.bf16 %v1429, %v1428
      %v1436 = vpack.c.bf16 %v1431, %v1430
      %v1437 = vpack.c.bf16 %v1433, %v1432
      %v1438 = vld [vmem:[%s13] sm:$0xff]
      %v1439 = vld [vmem:[%s13 + $0x8] sm:$0xff]
      %v1440 = vld [vmem:[%s13 + $0x10] sm:$0xff]
      %v1441 = vld [vmem:[%s13 + $0x18] sm:$0xff]
      %v1442 = vld [vmem:[%s13 + $0x20] sm:$0xff]
      %v1443 = vld [vmem:[%s13 + $0x28] sm:$0xff]
      %v1444 = vld [vmem:[%s13 + $0x30] sm:$0xff]
      %v1445 = vld [vmem:[%s13 + $0x38] sm:$0xff]
      %v1446 = vld [vmem:[%s13 + $0x40] sm:$0xff]
      %v1447 = vld [vmem:[%s13 + $0x48] sm:$0xff]
      %v1448 = vld [vmem:[%s13 + $0x50] sm:$0xff]
      %v1449 = vld [vmem:[%s13 + $0x58] sm:$0xff]
      %v1450 = vld [vmem:[%s13 + $0x60] sm:$0xff]
      %v1451 = vld [vmem:[%s13 + $0x68] sm:$0xff]
      %v1452 = vld [vmem:[%s13 + $0x70] sm:$0xff]
      %v1453 = vld [vmem:[%s13 + $0x78] sm:$0xff]
      %v1454 = vld [vmem:[%s13 + $0x80] sm:$0xff]
      %v1455 = vld [vmem:[%s13 + $0x88] sm:$0xff]
      %v1456 = vld [vmem:[%s13 + $0x90] sm:$0xff]
      %v1457 = vld [vmem:[%s13 + $0x98] sm:$0xff]
      %v1458 = vld [vmem:[%s13 + $0xa0] sm:$0xff]
      %v1459 = vld [vmem:[%s13 + $0xa8] sm:$0xff]
      %v1460 = vld [vmem:[%s13 + $0xb0] sm:$0xff]
      %v1461 = vld [vmem:[%s13 + $0xb8] sm:$0xff]
      %v1462 = vld [vmem:[%s13 + $0xc0] sm:$0xff]
      %v1463 = vld [vmem:[%s13 + $0xc8] sm:$0xff]
      %v1464 = vld [vmem:[%s13 + $0xd0] sm:$0xff]
      %v1465 = vld [vmem:[%s13 + $0xd8] sm:$0xff]
      %v1466 = vld [vmem:[%s13 + $0xe0] sm:$0xff]
      %v1467 = vld [vmem:[%s13 + $0xe8] sm:$0xff]
      %v1468 = vld [vmem:[%s13 + $0xf0] sm:$0xff]
      %v1469 = vld [vmem:[%s13 + $0xf8] sm:$0xff]
      %v1470 = vld [vmem:[%s13 + $0x100] sm:$0xff]
      %v1471 = vld [vmem:[%s13 + $0x108] sm:$0xff]
      %v1472 = vld [vmem:[%s13 + $0x110] sm:$0xff]
      %v1473 = vld [vmem:[%s13 + $0x118] sm:$0xff]
      %v1474 = vld [vmem:[%s13 + $0x120] sm:$0xff]
      %v1475 = vld [vmem:[%s13 + $0x128] sm:$0xff]
      %v1476 = vld [vmem:[%s13 + $0x130] sm:$0xff]
      %v1477 = vld [vmem:[%s13 + $0x138] sm:$0xff]
      %v1478 = vld [vmem:[%s13 + $0x140] sm:$0xff]
      %v1479 = vld [vmem:[%s13 + $0x148] sm:$0xff]
      %v1480 = vld [vmem:[%s13 + $0x150] sm:$0xff]
      %v1481 = vld [vmem:[%s13 + $0x158] sm:$0xff]
      %v1482 = vld [vmem:[%s13 + $0x160] sm:$0xff]
      %v1483 = vld [vmem:[%s13 + $0x168] sm:$0xff]
      %v1484 = vld [vmem:[%s13 + $0x170] sm:$0xff]
      %v1485 = vld [vmem:[%s13 + $0x178] sm:$0xff]
      %v1486 = vld [vmem:[%s13 + $0x180] sm:$0xff]
      %v1487 = vld [vmem:[%s13 + $0x188] sm:$0xff]
      %v1488 = vld [vmem:[%s13 + $0x190] sm:$0xff]
      %v1489 = vld [vmem:[%s13 + $0x198] sm:$0xff]
      %v1490 = vld [vmem:[%s13 + $0x1a0] sm:$0xff]
      %v1491 = vld [vmem:[%s13 + $0x1a8] sm:$0xff]
      %v1492 = vld [vmem:[%s13 + $0x1b0] sm:$0xff]
      %v1493 = vld [vmem:[%s13 + $0x1b8] sm:$0xff]
      %v1494 = vld [vmem:[%s13 + $0x1c0] sm:$0xff]
      %v1495 = vld [vmem:[%s13 + $0x1c8] sm:$0xff]
      %v1496 = vld [vmem:[%s13 + $0x1d0] sm:$0xff]
      %v1497 = vld [vmem:[%s13 + $0x1d8] sm:$0xff]
      %v1498 = vld [vmem:[%s13 + $0x1e0] sm:$0xff]
      %v1499 = vld [vmem:[%s13 + $0x1e8] sm:$0xff]
      %v1500 = vld [vmem:[%s13 + $0x1f0] sm:$0xff]
      %v1501 = vld [vmem:[%s13 + $0x1f8] sm:$0xff]
      %v1502 = vld [vmem:[%s14] sm:$0xff]
      %v1504 = vlaneseq
      %v1505 = vshrl.u32 %v1504, 7
      %v1506 = vsub.s32 0, %v1505
      %v1507 = vrot.slane %v1502, %v1506
      %v1508 = vlaneseq
      %v1509 = vshrl.u32 %v1508, 7
      %v1510 = vsub.s32 1, %v1509
      %v1511 = vrot.slane %v1502, %v1510
      %v1512 = vlaneseq
      %v1513 = vshrl.u32 %v1512, 7
      %v1514 = vsub.s32 2, %v1513
      %v1515 = vrot.slane %v1502, %v1514
      %v1516 = vlaneseq
      %v1517 = vshrl.u32 %v1516, 7
      %v1518 = vsub.s32 3, %v1517
      %v1519 = vrot.slane %v1502, %v1518
      %v1520 = vlaneseq
      %v1521 = vshrl.u32 %v1520, 7
      %v1522 = vsub.s32 4, %v1521
      %v1523 = vrot.slane %v1502, %v1522
      %v1524 = vlaneseq
      %v1525 = vshrl.u32 %v1524, 7
      %v1526 = vsub.s32 5, %v1525
      %v1527 = vrot.slane %v1502, %v1526
      %v1528 = vlaneseq
      %v1529 = vshrl.u32 %v1528, 7
      %v1530 = vsub.s32 6, %v1529
      %v1531 = vrot.slane %v1502, %v1530
      %v1532 = vlaneseq
      %v1533 = vshrl.u32 %v1532, 7
      %v1534 = vsub.s32 7, %v1533
      %v1535 = vrot.slane %v1502, %v1534
      %v1608 = vunpack.c.l.b16 %v1438
      %v1609 = vunpack.c.h.b16 %v1438
      %v1610 = vunpack.c.l.b16 %v1439
      %v1611 = vunpack.c.h.b16 %v1439
      %v1612 = vunpack.c.l.b16 %v1440
      %v1613 = vunpack.c.h.b16 %v1440
      %v1614 = vunpack.c.l.b16 %v1441
      %v1615 = vunpack.c.h.b16 %v1441
      %v1616 = vunpack.c.l.b16 %v1442
      %v1617 = vunpack.c.h.b16 %v1442
      %v1618 = vunpack.c.l.b16 %v1443
      %v1619 = vunpack.c.h.b16 %v1443
      %v1620 = vunpack.c.l.b16 %v1444
      %v1621 = vunpack.c.h.b16 %v1444
      %v1622 = vunpack.c.l.b16 %v1445
      %v1623 = vunpack.c.h.b16 %v1445
      %v1624 = vunpack.c.l.b16 %v1446
      %v1625 = vunpack.c.h.b16 %v1446
      %v1626 = vunpack.c.l.b16 %v1447
      %v1627 = vunpack.c.h.b16 %v1447
      %v1628 = vunpack.c.l.b16 %v1448
      %v1629 = vunpack.c.h.b16 %v1448
      %v1630 = vunpack.c.l.b16 %v1449
      %v1631 = vunpack.c.h.b16 %v1449
      %v1632 = vunpack.c.l.b16 %v1450
      %v1633 = vunpack.c.h.b16 %v1450
      %v1634 = vunpack.c.l.b16 %v1451
      %v1635 = vunpack.c.h.b16 %v1451
      %v1636 = vunpack.c.l.b16 %v1452
      %v1637 = vunpack.c.h.b16 %v1452
      %v1638 = vunpack.c.l.b16 %v1453
      %v1639 = vunpack.c.h.b16 %v1453
      %v1640 = vunpack.c.l.b16 %v1454
      %v1641 = vunpack.c.h.b16 %v1454
      %v1642 = vunpack.c.l.b16 %v1455
      %v1643 = vunpack.c.h.b16 %v1455
      %v1644 = vunpack.c.l.b16 %v1456
      %v1645 = vunpack.c.h.b16 %v1456
      %v1646 = vunpack.c.l.b16 %v1457
      %v1647 = vunpack.c.h.b16 %v1457
      %v1648 = vunpack.c.l.b16 %v1458
      %v1649 = vunpack.c.h.b16 %v1458
      %v1650 = vunpack.c.l.b16 %v1459
      %v1651 = vunpack.c.h.b16 %v1459
      %v1652 = vunpack.c.l.b16 %v1460
      %v1653 = vunpack.c.h.b16 %v1460
      %v1654 = vunpack.c.l.b16 %v1461
      %v1655 = vunpack.c.h.b16 %v1461
      %v1656 = vunpack.c.l.b16 %v1462
      %v1657 = vunpack.c.h.b16 %v1462
      %v1658 = vunpack.c.l.b16 %v1463
      %v1659 = vunpack.c.h.b16 %v1463
      %v1660 = vunpack.c.l.b16 %v1464
      %v1661 = vunpack.c.h.b16 %v1464
      %v1662 = vunpack.c.l.b16 %v1465
      %v1663 = vunpack.c.h.b16 %v1465
      %v1664 = vunpack.c.l.b16 %v1466
      %v1665 = vunpack.c.h.b16 %v1466
      %v1666 = vunpack.c.l.b16 %v1467
      %v1667 = vunpack.c.h.b16 %v1467
      %v1668 = vunpack.c.l.b16 %v1468
      %v1669 = vunpack.c.h.b16 %v1468
      %v1670 = vunpack.c.l.b16 %v1469
      %v1671 = vunpack.c.h.b16 %v1469
      %v1672 = vunpack.c.l.b16 %v1470
      %v1673 = vunpack.c.h.b16 %v1470
      %v1674 = vunpack.c.l.b16 %v1471
      %v1675 = vunpack.c.h.b16 %v1471
      %v1676 = vunpack.c.l.b16 %v1472
      %v1677 = vunpack.c.h.b16 %v1472
      %v1678 = vunpack.c.l.b16 %v1473
      %v1679 = vunpack.c.h.b16 %v1473
      %v1680 = vunpack.c.l.b16 %v1474
      %v1681 = vunpack.c.h.b16 %v1474
      %v1682 = vunpack.c.l.b16 %v1475
      %v1683 = vunpack.c.h.b16 %v1475
      %v1684 = vunpack.c.l.b16 %v1476
      %v1685 = vunpack.c.h.b16 %v1476
      %v1686 = vunpack.c.l.b16 %v1477
      %v1687 = vunpack.c.h.b16 %v1477
      %v1688 = vunpack.c.l.b16 %v1478
      %v1689 = vunpack.c.h.b16 %v1478
      %v1690 = vunpack.c.l.b16 %v1479
      %v1691 = vunpack.c.h.b16 %v1479
      %v1692 = vunpack.c.l.b16 %v1480
      %v1693 = vunpack.c.h.b16 %v1480
      %v1694 = vunpack.c.l.b16 %v1481
      %v1695 = vunpack.c.h.b16 %v1481
      %v1696 = vunpack.c.l.b16 %v1482
      %v1697 = vunpack.c.h.b16 %v1482
      %v1698 = vunpack.c.l.b16 %v1483
      %v1699 = vunpack.c.h.b16 %v1483
      %v1700 = vunpack.c.l.b16 %v1484
      %v1701 = vunpack.c.h.b16 %v1484
      %v1702 = vunpack.c.l.b16 %v1485
      %v1703 = vunpack.c.h.b16 %v1485
      %v1704 = vunpack.c.l.b16 %v1486
      %v1705 = vunpack.c.h.b16 %v1486
      %v1706 = vunpack.c.l.b16 %v1487
      %v1707 = vunpack.c.h.b16 %v1487
      %v1708 = vunpack.c.l.b16 %v1488
      %v1709 = vunpack.c.h.b16 %v1488
      %v1710 = vunpack.c.l.b16 %v1489
      %v1711 = vunpack.c.h.b16 %v1489
      %v1712 = vunpack.c.l.b16 %v1490
      %v1713 = vunpack.c.h.b16 %v1490
      %v1714 = vunpack.c.l.b16 %v1491
      %v1715 = vunpack.c.h.b16 %v1491
      %v1716 = vunpack.c.l.b16 %v1492
      %v1717 = vunpack.c.h.b16 %v1492
      %v1718 = vunpack.c.l.b16 %v1493
      %v1719 = vunpack.c.h.b16 %v1493
      %v1720 = vunpack.c.l.b16 %v1494
      %v1721 = vunpack.c.h.b16 %v1494
      %v1722 = vunpack.c.l.b16 %v1495
      %v1723 = vunpack.c.h.b16 %v1495
      %v1724 = vunpack.c.l.b16 %v1496
      %v1725 = vunpack.c.h.b16 %v1496
      %v1726 = vunpack.c.l.b16 %v1497
      %v1727 = vunpack.c.h.b16 %v1497
      %v1728 = vunpack.c.l.b16 %v1498
      %v1729 = vunpack.c.h.b16 %v1498
      %v1730 = vunpack.c.l.b16 %v1499
      %v1731 = vunpack.c.h.b16 %v1499
      %v1732 = vunpack.c.l.b16 %v1500
      %v1733 = vunpack.c.h.b16 %v1500
      %v1734 = vunpack.c.l.b16 %v1501
      %v1735 = vunpack.c.h.b16 %v1501
      %v1736 = vpack.c.b16 %v1616, %v1608
      %v1737 = vpack.c.b16 %v1617, %v1609
      %v1738 = vpack.c.b16 %v1618, %v1610
      %v1739 = vpack.c.b16 %v1619, %v1611
      %v1740 = vpack.c.b16 %v1620, %v1612
      %v1741 = vpack.c.b16 %v1621, %v1613
      %v1742 = vpack.c.b16 %v1622, %v1614
      %v1743 = vpack.c.b16 %v1623, %v1615
      %v1744 = vpack.c.b16 %v1632, %v1624
      %v1745 = vpack.c.b16 %v1633, %v1625
      %v1746 = vpack.c.b16 %v1634, %v1626
      %v1747 = vpack.c.b16 %v1635, %v1627
      %v1748 = vpack.c.b16 %v1636, %v1628
      %v1749 = vpack.c.b16 %v1637, %v1629
      %v1750 = vpack.c.b16 %v1638, %v1630
      %v1751 = vpack.c.b16 %v1639, %v1631
      %v1752 = vpack.c.b16 %v1648, %v1640
      %v1753 = vpack.c.b16 %v1649, %v1641
      %v1754 = vpack.c.b16 %v1650, %v1642
      %v1755 = vpack.c.b16 %v1651, %v1643
      %v1756 = vpack.c.b16 %v1652, %v1644
      %v1757 = vpack.c.b16 %v1653, %v1645
      %v1758 = vpack.c.b16 %v1654, %v1646
      %v1759 = vpack.c.b16 %v1655, %v1647
      %v1760 = vpack.c.b16 %v1664, %v1656
      %v1761 = vpack.c.b16 %v1665, %v1657
      %v1762 = vpack.c.b16 %v1666, %v1658
      %v1763 = vpack.c.b16 %v1667, %v1659
      %v1764 = vpack.c.b16 %v1668, %v1660
      %v1765 = vpack.c.b16 %v1669, %v1661
      %v1766 = vpack.c.b16 %v1670, %v1662
      %v1767 = vpack.c.b16 %v1671, %v1663
      %v1768 = vpack.c.b16 %v1680, %v1672
      %v1769 = vpack.c.b16 %v1681, %v1673
      %v1770 = vpack.c.b16 %v1682, %v1674
      %v1771 = vpack.c.b16 %v1683, %v1675
      %v1772 = vpack.c.b16 %v1684, %v1676
      %v1773 = vpack.c.b16 %v1685, %v1677
      %v1774 = vpack.c.b16 %v1686, %v1678
      %v1775 = vpack.c.b16 %v1687, %v1679
      %v1776 = vpack.c.b16 %v1696, %v1688
      %v1777 = vpack.c.b16 %v1697, %v1689
      %v1778 = vpack.c.b16 %v1698, %v1690
      %v1779 = vpack.c.b16 %v1699, %v1691
      %v1780 = vpack.c.b16 %v1700, %v1692
      %v1781 = vpack.c.b16 %v1701, %v1693
      %v1782 = vpack.c.b16 %v1702, %v1694
      %v1783 = vpack.c.b16 %v1703, %v1695
      %v1784 = vpack.c.b16 %v1712, %v1704
      %v1785 = vpack.c.b16 %v1713, %v1705
      %v1786 = vpack.c.b16 %v1714, %v1706
      %v1787 = vpack.c.b16 %v1715, %v1707
      %v1788 = vpack.c.b16 %v1716, %v1708
      %v1789 = vpack.c.b16 %v1717, %v1709
      %v1790 = vpack.c.b16 %v1718, %v1710
      %v1791 = vpack.c.b16 %v1719, %v1711
      %v1792 = vpack.c.b16 %v1728, %v1720
      %v1793 = vpack.c.b16 %v1729, %v1721
      %v1794 = vpack.c.b16 %v1730, %v1722
      %v1795 = vpack.c.b16 %v1731, %v1723
      %v1796 = vpack.c.b16 %v1732, %v1724
      %v1797 = vpack.c.b16 %v1733, %v1725
      %v1798 = vpack.c.b16 %v1734, %v1726
      %v1799 = vpack.c.b16 %v1735, %v1727
      %1864 = vmatprep.subr.bf16.mxu0 %v1793
      %1865 = vmatpush1.bf16.msra.mxu0 %v1792
      %1866 = vmatprep.subr.bf16.mxu0 %v1785
      %1867 = vmatpush1.bf16.msra.mxu0 %v1784
      %1868 = vmatprep.subr.bf16.mxu0 %v1777
      %1869 = vmatpush1.bf16.msra.mxu0 %v1776
      %1870 = vmatprep.subr.bf16.mxu0 %v1769
      %1871 = vmatpush1.bf16.msra.mxu0 %v1768
      %1872 = vmatprep.subr.bf16.mxu0 %v1761
      %1873 = vmatpush1.bf16.msra.mxu0 %v1760
      %1874 = vmatprep.subr.bf16.mxu0 %v1753
      %1875 = vmatpush1.bf16.msra.mxu0 %v1752
      %1876 = vmatprep.subr.bf16.mxu0 %v1745
      %1877 = vmatpush1.bf16.msra.mxu0 %v1744
      %1878 = vmatprep.subr.bf16.mxu0 %v1737
      %1879 = vmatpush1.bf16.msra.mxu0 %v1736
      %1880 = vmatprep.subr.bf16.mxu0 0
      %1881 = vmatpush2.bf16.msra.mxu0 0
      %1882 = vmatprep.subr.bf16.mxu0 0
      %1883 = vmatpush2.bf16.msra.mxu0 0
      %1884 = vmatprep.subr.bf16.mxu0 0
      %1885 = vmatpush2.bf16.msra.mxu0 0
      %1886 = vmatprep.subr.bf16.mxu0 0
      %1887 = vmatpush2.bf16.msra.mxu0 0
      %1888 = vmatprep.subr.bf16.mxu0 0
      %1889 = vmatpush2.bf16.msra.mxu0 0
      %1890 = vmatprep.subr.bf16.mxu0 0
      %1891 = vmatpush2.bf16.msra.mxu0 0
      %1892 = vmatprep.subr.bf16.mxu0 0
      %1893 = vmatpush2.bf16.msra.mxu0 0
      %1894 = vmatprep.subr.bf16.mxu0 0
      %1895 = vmatpush2.bf16.msra.mxu0 0
      %1896 = vmatprep.mubr.bf16.mxu0 0
      %1897 = vmatmul.mubr.bf16.gmra.mxu0 %v1434
      %v1898 = vpop.f32.mrf.mxu0
      %v1899 = vadd.f32 %v1507, %v1898
      %v1900 = vpop.f32.mrf.mxu0
      %v1901 = vadd.f32 %v1511, %v1900
      %v1902 = vpop.f32.mrf.mxu0
      %v1903 = vadd.f32 %v1507, %v1902
      %v1904 = vpop.f32.mrf.mxu0
      %v1905 = vadd.f32 %v1511, %v1904
      %1906 = vmatprep.mubr.bf16.mxu0 0
      %1907 = vmatmul.mubr.bf16.gmra.mxu0 %v1435
      %v1908 = vpop.f32.mrf.mxu0
      %v1909 = vadd.f32 %v1507, %v1908
      %v1910 = vpop.f32.mrf.mxu0
      %v1911 = vadd.f32 %v1511, %v1910
      %v1912 = vpop.f32.mrf.mxu0
      %v1913 = vadd.f32 %v1507, %v1912
      %v1914 = vpop.f32.mrf.mxu0
      %v1915 = vadd.f32 %v1511, %v1914
      %1916 = vmatprep.mubr.bf16.mxu0 0
      %1917 = vmatmul.mubr.bf16.gmra.mxu0 %v1436
      %v1918 = vpop.f32.mrf.mxu0
      %v1919 = vadd.f32 %v1507, %v1918
      %v1920 = vpop.f32.mrf.mxu0
      %v1921 = vadd.f32 %v1511, %v1920
      %v1922 = vpop.f32.mrf.mxu0
      %v1923 = vadd.f32 %v1507, %v1922
      %v1924 = vpop.f32.mrf.mxu0
      %v1925 = vadd.f32 %v1511, %v1924
      %1926 = vmatprep.mubr.bf16.mxu0 0
      %1927 = vmatmul.mubr.bf16.gmra.mxu0 %v1437
      %v1928 = vpop.f32.mrf.mxu0
      %v1929 = vadd.f32 %v1507, %v1928
      %v1930 = vpop.f32.mrf.mxu0
      %v1931 = vadd.f32 %v1511, %v1930
      %v1932 = vpop.f32.mrf.mxu0
      %v1933 = vadd.f32 %v1507, %v1932
      %v1934 = vpop.f32.mrf.mxu0
      %v1935 = vadd.f32 %v1511, %v1934
      %1936 = vdwg.mxu0
      %1937 = vmatprep.subr.bf16.mxu0 %v1795
      %1938 = vmatpush1.bf16.msra.mxu0 %v1794
      %1939 = vmatprep.subr.bf16.mxu0 %v1787
      %1940 = vmatpush1.bf16.msra.mxu0 %v1786
      %1941 = vmatprep.subr.bf16.mxu0 %v1779
      %1942 = vmatpush1.bf16.msra.mxu0 %v1778
      %1943 = vmatprep.subr.bf16.mxu0 %v1771
      %1944 = vmatpush1.bf16.msra.mxu0 %v1770
      %1945 = vmatprep.subr.bf16.mxu0 %v1763
      %1946 = vmatpush1.bf16.msra.mxu0 %v1762
      %1947 = vmatprep.subr.bf16.mxu0 %v1755
      %1948 = vmatpush1.bf16.msra.mxu0 %v1754
      %1949 = vmatprep.subr.bf16.mxu0 %v1747
      %1950 = vmatpush1.bf16.msra.mxu0 %v1746
      %1951 = vmatprep.subr.bf16.mxu0 %v1739
      %1952 = vmatpush1.bf16.msra.mxu0 %v1738
      %1953 = vmatprep.subr.bf16.mxu0 0
      %1954 = vmatpush2.bf16.msra.mxu0 0
      %1955 = vmatprep.subr.bf16.mxu0 0
      %1956 = vmatpush2.bf16.msra.mxu0 0
      %1957 = vmatprep.subr.bf16.mxu0 0
      %1958 = vmatpush2.bf16.msra.mxu0 0
      %1959 = vmatprep.subr.bf16.mxu0 0
      %1960 = vmatpush2.bf16.msra.mxu0 0
      %1961 = vmatprep.subr.bf16.mxu0 0
      %1962 = vmatpush2.bf16.msra.mxu0 0
      %1963 = vmatprep.subr.bf16.mxu0 0
      %1964 = vmatpush2.bf16.msra.mxu0 0
      %1965 = vmatprep.subr.bf16.mxu0 0
      %1966 = vmatpush2.bf16.msra.mxu0 0
      %1967 = vmatprep.subr.bf16.mxu0 0
      %1968 = vmatpush2.bf16.msra.mxu0 0
      %1969 = vmatprep.mubr.bf16.mxu0 0
      %1970 = vmatmul.mubr.bf16.gmra.mxu0 %v1434
      %v1971 = vpop.f32.mrf.mxu0
      %v1972 = vadd.f32 %v1515, %v1971
      %v1973 = vpop.f32.mrf.mxu0
      %v1974 = vadd.f32 %v1519, %v1973
      %v1975 = vpop.f32.mrf.mxu0
      %v1976 = vadd.f32 %v1515, %v1975
      %v1977 = vpop.f32.mrf.mxu0
      %v1978 = vadd.f32 %v1519, %v1977
      %1979 = vmatprep.mubr.bf16.mxu0 0
      %1980 = vmatmul.mubr.bf16.gmra.mxu0 %v1435
      %v1981 = vpop.f32.mrf.mxu0
      %v1982 = vadd.f32 %v1515, %v1981
      %v1983 = vpop.f32.mrf.mxu0
      %v1984 = vadd.f32 %v1519, %v1983
      %v1985 = vpop.f32.mrf.mxu0
      %v1986 = vadd.f32 %v1515, %v1985
      %v1987 = vpop.f32.mrf.mxu0
      %v1988 = vadd.f32 %v1519, %v1987
      %1989 = vmatprep.mubr.bf16.mxu0 0
      %1990 = vmatmul.mubr.bf16.gmra.mxu0 %v1436
      %v1991 = vpop.f32.mrf.mxu0
      %v1992 = vadd.f32 %v1515, %v1991
      %v1993 = vpop.f32.mrf.mxu0
      %v1994 = vadd.f32 %v1519, %v1993
      %v1995 = vpop.f32.mrf.mxu0
      %v1996 = vadd.f32 %v1515, %v1995
      %v1997 = vpop.f32.mrf.mxu0
      %v1998 = vadd.f32 %v1519, %v1997
      %1999 = vmatprep.mubr.bf16.mxu0 0
      %2000 = vmatmul.mubr.bf16.gmra.mxu0 %v1437
      %v2001 = vpop.f32.mrf.mxu0
      %v2002 = vadd.f32 %v1515, %v2001
      %v2003 = vpop.f32.mrf.mxu0
      %v2004 = vadd.f32 %v1519, %v2003
      %v2005 = vpop.f32.mrf.mxu0
      %v2006 = vadd.f32 %v1515, %v2005
      %v2007 = vpop.f32.mrf.mxu0
      %v2008 = vadd.f32 %v1519, %v2007
      %2009 = vdwg.mxu0
      %2010 = vmatprep.subr.bf16.mxu0 %v1797
      %2011 = vmatpush1.bf16.msra.mxu0 %v1796
      %2012 = vmatprep.subr.bf16.mxu0 %v1789
      %2013 = vmatpush1.bf16.msra.mxu0 %v1788
      %2014 = vmatprep.subr.bf16.mxu0 %v1781
      %2015 = vmatpush1.bf16.msra.mxu0 %v1780
      %2016 = vmatprep.subr.bf16.mxu0 %v1773
      %2017 = vmatpush1.bf16.msra.mxu0 %v1772
      %2018 = vmatprep.subr.bf16.mxu0 %v1765
      %2019 = vmatpush1.bf16.msra.mxu0 %v1764
      %2020 = vmatprep.subr.bf16.mxu0 %v1757
      %2021 = vmatpush1.bf16.msra.mxu0 %v1756
      %2022 = vmatprep.subr.bf16.mxu0 %v1749
      %2023 = vmatpush1.bf16.msra.mxu0 %v1748
      %2024 = vmatprep.subr.bf16.mxu0 %v1741
      %2025 = vmatpush1.bf16.msra.mxu0 %v1740
      %2026 = vmatprep.subr.bf16.mxu0 0
      %2027 = vmatpush2.bf16.msra.mxu0 0
      %2028 = vmatprep.subr.bf16.mxu0 0
      %2029 = vmatpush2.bf16.msra.mxu0 0
      %2030 = vmatprep.subr.bf16.mxu0 0
      %2031 = vmatpush2.bf16.msra.mxu0 0
      %2032 = vmatprep.subr.bf16.mxu0 0
      %2033 = vmatpush2.bf16.msra.mxu0 0
      %2034 = vmatprep.subr.bf16.mxu0 0
      %2035 = vmatpush2.bf16.msra.mxu0 0
      %2036 = vmatprep.subr.bf16.mxu0 0
      %2037 = vmatpush2.bf16.msra.mxu0 0
      %2038 = vmatprep.subr.bf16.mxu0 0
      %2039 = vmatpush2.bf16.msra.mxu0 0
      %2040 = vmatprep.subr.bf16.mxu0 0
      %2041 = vmatpush2.bf16.msra.mxu0 0
      %2042 = vmatprep.mubr.bf16.mxu0 0
      %2043 = vmatmul.mubr.bf16.gmra.mxu0 %v1434
      %v2044 = vpop.f32.mrf.mxu0
      %v2045 = vadd.f32 %v1523, %v2044
      %v2046 = vpop.f32.mrf.mxu0
      %v2047 = vadd.f32 %v1527, %v2046
      %v2048 = vpop.f32.mrf.mxu0
      %v2049 = vadd.f32 %v1523, %v2048
      %v2050 = vpop.f32.mrf.mxu0
      %v2051 = vadd.f32 %v1527, %v2050
      %2052 = vmatprep.mubr.bf16.mxu0 0
      %2053 = vmatmul.mubr.bf16.gmra.mxu0 %v1435
      %v2054 = vpop.f32.mrf.mxu0
      %v2055 = vadd.f32 %v1523, %v2054
      %v2056 = vpop.f32.mrf.mxu0
      %v2057 = vadd.f32 %v1527, %v2056
      %v2058 = vpop.f32.mrf.mxu0
      %v2059 = vadd.f32 %v1523, %v2058
      %v2060 = vpop.f32.mrf.mxu0
      %v2061 = vadd.f32 %v1527, %v2060
      %2062 = vmatprep.mubr.bf16.mxu0 0
      %2063 = vmatmul.mubr.bf16.gmra.mxu0 %v1436
      %v2064 = vpop.f32.mrf.mxu0
      %v2065 = vadd.f32 %v1523, %v2064
      %v2066 = vpop.f32.mrf.mxu0
      %v2067 = vadd.f32 %v1527, %v2066
      %v2068 = vpop.f32.mrf.mxu0
      %v2069 = vadd.f32 %v1523, %v2068
      %v2070 = vpop.f32.mrf.mxu0
      %v2071 = vadd.f32 %v1527, %v2070
      %2072 = vmatprep.mubr.bf16.mxu0 0
      %2073 = vmatmul.mubr.bf16.gmra.mxu0 %v1437
      %v2074 = vpop.f32.mrf.mxu0
      %v2075 = vadd.f32 %v1523, %v2074
      %v2076 = vpop.f32.mrf.mxu0
      %v2077 = vadd.f32 %v1527, %v2076
      %v2078 = vpop.f32.mrf.mxu0
      %v2079 = vadd.f32 %v1523, %v2078
      %v2080 = vpop.f32.mrf.mxu0
      %v2081 = vadd.f32 %v1527, %v2080
      %2082 = vdwg.mxu0
      %2083 = vmatprep.subr.bf16.mxu0 %v1799
      %2084 = vmatpush1.bf16.msra.mxu0 %v1798
      %2085 = vmatprep.subr.bf16.mxu0 %v1791
      %2086 = vmatpush1.bf16.msra.mxu0 %v1790
      %2087 = vmatprep.subr.bf16.mxu0 %v1783
      %2088 = vmatpush1.bf16.msra.mxu0 %v1782
      %2089 = vmatprep.subr.bf16.mxu0 %v1775
      %2090 = vmatpush1.bf16.msra.mxu0 %v1774
      %2091 = vmatprep.subr.bf16.mxu0 %v1767
      %2092 = vmatpush1.bf16.msra.mxu0 %v1766
      %2093 = vmatprep.subr.bf16.mxu0 %v1759
      %2094 = vmatpush1.bf16.msra.mxu0 %v1758
      %2095 = vmatprep.subr.bf16.mxu0 %v1751
      %2096 = vmatpush1.bf16.msra.mxu0 %v1750
      %2097 = vmatprep.subr.bf16.mxu0 %v1743
      %2098 = vmatpush1.bf16.msra.mxu0 %v1742
      %2099 = vmatprep.subr.bf16.mxu0 0
      %2100 = vmatpush2.bf16.msra.mxu0 0
      %2101 = vmatprep.subr.bf16.mxu0 0
      %2102 = vmatpush2.bf16.msra.mxu0 0
      %2103 = vmatprep.subr.bf16.mxu0 0
      %2104 = vmatpush2.bf16.msra.mxu0 0
      %2105 = vmatprep.subr.bf16.mxu0 0
      %2106 = vmatpush2.bf16.msra.mxu0 0
      %2107 = vmatprep.subr.bf16.mxu0 0
      %2108 = vmatpush2.bf16.msra.mxu0 0
      %2109 = vmatprep.subr.bf16.mxu0 0
      %2110 = vmatpush2.bf16.msra.mxu0 0
      %2111 = vmatprep.subr.bf16.mxu0 0
      %2112 = vmatpush2.bf16.msra.mxu0 0
      %2113 = vmatprep.subr.bf16.mxu0 0
      %2114 = vmatpush2.bf16.msra.mxu0 0
      %2115 = vmatprep.mubr.bf16.mxu0 0
      %2116 = vmatmul.mubr.bf16.gmra.mxu0 %v1434
      %v2117 = vpop.f32.mrf.mxu0
      %v2118 = vadd.f32 %v1531, %v2117
      %v2119 = vpop.f32.mrf.mxu0
      %v2120 = vadd.f32 %v1535, %v2119
      %v2121 = vpop.f32.mrf.mxu0
      %v2122 = vadd.f32 %v1531, %v2121
      %v2123 = vpop.f32.mrf.mxu0
      %v2124 = vadd.f32 %v1535, %v2123
      %2125 = vmatprep.mubr.bf16.mxu0 0
      %2126 = vmatmul.mubr.bf16.gmra.mxu0 %v1435
      %v2127 = vpop.f32.mrf.mxu0
      %v2128 = vadd.f32 %v1531, %v2127
      %v2129 = vpop.f32.mrf.mxu0
      %v2130 = vadd.f32 %v1535, %v2129
      %v2131 = vpop.f32.mrf.mxu0
      %v2132 = vadd.f32 %v1531, %v2131
      %v2133 = vpop.f32.mrf.mxu0
      %v2134 = vadd.f32 %v1535, %v2133
      %2135 = vmatprep.mubr.bf16.mxu0 0
      %2136 = vmatmul.mubr.bf16.gmra.mxu0 %v1436
      %v2137 = vpop.f32.mrf.mxu0
      %v2138 = vadd.f32 %v1531, %v2137
      %v2139 = vpop.f32.mrf.mxu0
      %v2140 = vadd.f32 %v1535, %v2139
      %v2141 = vpop.f32.mrf.mxu0
      %v2142 = vadd.f32 %v1531, %v2141
      %v2143 = vpop.f32.mrf.mxu0
      %v2144 = vadd.f32 %v1535, %v2143
      %2145 = vmatprep.mubr.bf16.mxu0 0
      %2146 = vmatmul.mubr.bf16.gmra.mxu0 %v1437
      %v2147 = vpop.f32.mrf.mxu0
      %v2148 = vadd.f32 %v1531, %v2147
      %v2149 = vpop.f32.mrf.mxu0
      %v2150 = vadd.f32 %v1535, %v2149
      %v2151 = vpop.f32.mrf.mxu0
      %v2152 = vadd.f32 %v1531, %v2151
      %v2153 = vpop.f32.mrf.mxu0
      %v2154 = vadd.f32 %v1535, %v2153
      %2155 = vdwg.mxu0
      %v2156 = vld [vmem:[%s11] sm:$0x1]
      %v2157 = vld [vmem:[%s12] sm:$0x1]
      %2158 = vadd.xlane.f32.xlu0 %v783
      %v2159 = vpop.xlane.xlu0 %2158
      %2160 = vadd.xlane.f32.xlu0 %v786
      %v2161 = vpop.xlane.xlu0 %2160
      %2162 = vadd.xlane.f32.xlu0 %v791
      %v2163 = vpop.xlane.xlu0 %2162
      %2164 = vadd.xlane.f32.xlu0 %v794
      %v2165 = vpop.xlane.xlu0 %2164
      %2166 = vadd.xlane.f32.xlu0 %v799
      %v2167 = vpop.xlane.xlu0 %2166
      %2168 = vadd.xlane.f32.xlu0 %v802
      %v2169 = vpop.xlane.xlu0 %2168
      %2170 = vadd.xlane.f32.xlu0 %v807
      %v2171 = vpop.xlane.xlu0 %2170
      %2172 = vadd.xlane.f32.xlu0 %v810
      %v2173 = vpop.xlane.xlu0 %2172
      %v2174 = vrcp.pop 128.0
      %v2175 = vmul.f32 %v2159, %v2174
      %v2176 = vmul.f32 %v2161, %v2174
      %v2177 = vmul.f32 %v2163, %v2174
      %v2178 = vmul.f32 %v2165, %v2174
      %v2179 = vmul.f32 %v2167, %v2174
      %v2180 = vmul.f32 %v2169, %v2174
      %v2181 = vmul.f32 %v2171, %v2174
      %v2182 = vmul.f32 %v2173, %v2174
      %v2183 = vsub.f32 %v783, %v2175
      %v2184 = vsub.f32 %v786, %v2176
      %v2185 = vsub.f32 %v791, %v2177
      %v2186 = vsub.f32 %v794, %v2178
      %v2187 = vsub.f32 %v799, %v2179
      %v2188 = vsub.f32 %v802, %v2180
      %v2189 = vsub.f32 %v807, %v2181
      %v2190 = vsub.f32 %v810, %v2182
      %v2191 = vmul.f32 %v2183, %v2183
      %v2192 = vmul.f32 %v2184, %v2184
      %v2193 = vmul.f32 %v2185, %v2185
      %v2194 = vmul.f32 %v2186, %v2186
      %v2195 = vmul.f32 %v2187, %v2187
      %v2196 = vmul.f32 %v2188, %v2188
      %v2197 = vmul.f32 %v2189, %v2189
      %v2198 = vmul.f32 %v2190, %v2190
      %2199 = vadd.xlane.f32.xlu0 %v2191
      %v2200 = vpop.xlane.xlu0 %2199
      %2201 = vadd.xlane.f32.xlu0 %v2192
      %v2202 = vpop.xlane.xlu0 %2201
      %2203 = vadd.xlane.f32.xlu0 %v2193
      %v2204 = vpop.xlane.xlu0 %2203
      %2205 = vadd.xlane.f32.xlu0 %v2194
      %v2206 = vpop.xlane.xlu0 %2205
      %2207 = vadd.xlane.f32.xlu0 %v2195
      %v2208 = vpop.xlane.xlu0 %2207
      %2209 = vadd.xlane.f32.xlu0 %v2196
      %v2210 = vpop.xlane.xlu0 %2209
      %2211 = vadd.xlane.f32.xlu0 %v2197
      %v2212 = vpop.xlane.xlu0 %2211
      %2213 = vadd.xlane.f32.xlu0 %v2198
      %v2214 = vpop.xlane.xlu0 %2213
      %v2215 = vmul.f32 %v2200, %v2174
      %v2216 = vmul.f32 %v2202, %v2174
      %v2217 = vmul.f32 %v2204, %v2174
      %v2218 = vmul.f32 %v2206, %v2174
      %v2219 = vmul.f32 %v2208, %v2174
      %v2220 = vmul.f32 %v2210, %v2174
      %v2221 = vmul.f32 %v2212, %v2174
      %v2222 = vmul.f32 %v2214, %v2174
      %v2223 = vadd.f32 %v2215, 1e-06
      %v2224 = vadd.f32 %v2216, 1e-06
      %v2225 = vadd.f32 %v2217, 1e-06
      %v2226 = vadd.f32 %v2218, 1e-06
      %v2227 = vadd.f32 %v2219, 1e-06
      %v2228 = vadd.f32 %v2220, 1e-06
      %v2229 = vadd.f32 %v2221, 1e-06
      %v2230 = vadd.f32 %v2222, 1e-06
      %v2231 = vrsqrt.pop %v2223
      %v2232 = vrsqrt.pop %v2224
      %v2233 = vrsqrt.pop %v2225
      %v2234 = vrsqrt.pop %v2226
      %v2235 = vrsqrt.pop %v2227
      %v2236 = vrsqrt.pop %v2228
      %v2237 = vrsqrt.pop %v2229
      %v2238 = vrsqrt.pop %v2230
      %v2239 = vmul.f32 %v2183, %v2231
      %v2240 = vmul.f32 %v2184, %v2232
      %v2241 = vmul.f32 %v2185, %v2233
      %v2242 = vmul.f32 %v2186, %v2234
      %v2243 = vmul.f32 %v2187, %v2235
      %v2244 = vmul.f32 %v2188, %v2236
      %v2245 = vmul.f32 %v2189, %v2237
      %v2246 = vmul.f32 %v2190, %v2238
      %v2248 = vlaneseq
      %v2249 = vshrl.u32 %v2248, 7
      %v2250 = vsub.s32 0, %v2249
      %v2251 = vrot.slane %v2156, %v2250
      %v2253 = vmul.f32 %v2239, %v2251
      %v2254 = vmul.f32 %v2240, %v2251
      %v2255 = vmul.f32 %v2241, %v2251
      %v2256 = vmul.f32 %v2242, %v2251
      %v2257 = vmul.f32 %v2243, %v2251
      %v2258 = vmul.f32 %v2244, %v2251
      %v2259 = vmul.f32 %v2245, %v2251
      %v2260 = vmul.f32 %v2246, %v2251
      %v2262 = vlaneseq
      %v2263 = vshrl.u32 %v2262, 7
      %v2264 = vsub.s32 0, %v2263
      %v2265 = vrot.slane %v2157, %v2264
      %v2267 = vadd.f32 %v2253, %v2265
      %v2268 = vadd.f32 %v2254, %v2265
      %v2269 = vadd.f32 %v2255, %v2265
      %v2270 = vadd.f32 %v2256, %v2265
      %v2271 = vadd.f32 %v2257, %v2265
      %v2272 = vadd.f32 %v2258, %v2265
      %v2273 = vadd.f32 %v2259, %v2265
      %v2274 = vadd.f32 %v2260, %v2265
      %v2275 = vadd.f32 %v1901, 1.0
      %v2276 = vadd.f32 %v1905, 1.0
      %v2277 = vadd.f32 %v1911, 1.0
      %v2278 = vadd.f32 %v1915, 1.0
      %v2279 = vadd.f32 %v1921, 1.0
      %v2280 = vadd.f32 %v1925, 1.0
      %v2281 = vadd.f32 %v1931, 1.0
      %v2282 = vadd.f32 %v1935, 1.0
      %v2283 = vmul.f32 %v2267, %v2275
      %v2284 = vmul.f32 %v2268, %v2276
      %v2285 = vmul.f32 %v2269, %v2277
      %v2286 = vmul.f32 %v2270, %v2278
      %v2287 = vmul.f32 %v2271, %v2279
      %v2288 = vmul.f32 %v2272, %v2280
      %v2289 = vmul.f32 %v2273, %v2281
      %v2290 = vmul.f32 %v2274, %v2282
      %v2291 = vadd.f32 %v2283, %v1899
      %v2292 = vadd.f32 %v2284, %v1903
      %v2293 = vadd.f32 %v2285, %v1909
      %v2294 = vadd.f32 %v2286, %v1913
      %v2295 = vadd.f32 %v2287, %v1919
      %v2296 = vadd.f32 %v2288, %v1923
      %v2297 = vadd.f32 %v2289, %v1929
      %v2298 = vadd.f32 %v2290, %v1933
      %v2299 = vld [vmem:[%s15] sm:$0xf]
      %v2300 = vld [vmem:[%s15 + $0x4] sm:$0xf]
      %v2301 = vld [vmem:[%s15 + $0x8] sm:$0xf]
      %v2302 = vld [vmem:[%s15 + $0xc] sm:$0xf]
      %v2303 = vld [vmem:[%s15 + $0x10] sm:$0xf]
      %v2304 = vld [vmem:[%s15 + $0x14] sm:$0xf]
      %v2305 = vld [vmem:[%s15 + $0x18] sm:$0xf]
      %v2306 = vld [vmem:[%s15 + $0x1c] sm:$0xf]
      %v2307 = vld [vmem:[%s15 + $0x20] sm:$0xf]
      %v2308 = vld [vmem:[%s15 + $0x24] sm:$0xf]
      %v2309 = vld [vmem:[%s15 + $0x28] sm:$0xf]
      %v2310 = vld [vmem:[%s15 + $0x2c] sm:$0xf]
      %v2311 = vld [vmem:[%s15 + $0x30] sm:$0xf]
      %v2312 = vld [vmem:[%s15 + $0x34] sm:$0xf]
      %v2313 = vld [vmem:[%s15 + $0x38] sm:$0xf]
      %v2314 = vld [vmem:[%s15 + $0x3c] sm:$0xf]
      %v2315 = vpack.c.bf16 %v2292, %v2291
      %v2316 = vpack.c.bf16 %v2294, %v2293
      %v2317 = vpack.c.bf16 %v2296, %v2295
      %v2318 = vpack.c.bf16 %v2298, %v2297
      %v2319 = vld [vmem:[%s16] sm:$0x1]
      %v2321 = vlaneseq
      %v2322 = vshrl.u32 %v2321, 7
      %v2323 = vsub.s32 0, %v2322
      %v2324 = vrot.slane %v2319, %v2323
      %v2342 = vunpack.c.l.b16 %v2299
      %v2343 = vunpack.c.l.b16 %v2300
      %v2344 = vunpack.c.l.b16 %v2301
      %v2345 = vunpack.c.l.b16 %v2302
      %v2346 = vunpack.c.l.b16 %v2303
      %v2347 = vunpack.c.l.b16 %v2304
      %v2348 = vunpack.c.l.b16 %v2305
      %v2349 = vunpack.c.l.b16 %v2306
      %v2350 = vunpack.c.l.b16 %v2307
      %v2351 = vunpack.c.l.b16 %v2308
      %v2352 = vunpack.c.l.b16 %v2309
      %v2353 = vunpack.c.l.b16 %v2310
      %v2354 = vunpack.c.l.b16 %v2311
      %v2355 = vunpack.c.l.b16 %v2312
      %v2356 = vunpack.c.l.b16 %v2313
      %v2357 = vunpack.c.l.b16 %v2314
      %v2358 = vpack.c.b16 %v2343, %v2342
      %v2359 = vpack.c.b16 %v2345, %v2344
      %v2360 = vpack.c.b16 %v2347, %v2346
      %v2361 = vpack.c.b16 %v2349, %v2348
      %v2362 = vpack.c.b16 %v2351, %v2350
      %v2363 = vpack.c.b16 %v2353, %v2352
      %v2364 = vpack.c.b16 %v2355, %v2354
      %v2365 = vpack.c.b16 %v2357, %v2356
      %2374 = vmatprep.subr.bf16.mxu0 0
      %2375 = vmatpush1.bf16.msra.mxu0 %v2365
      %2376 = vmatprep.subr.bf16.mxu0 0
      %2377 = vmatpush1.bf16.msra.mxu0 %v2364
      %2378 = vmatprep.subr.bf16.mxu0 0
      %2379 = vmatpush1.bf16.msra.mxu0 %v2363
      %2380 = vmatprep.subr.bf16.mxu0 0
      %2381 = vmatpush1.bf16.msra.mxu0 %v2362
      %2382 = vmatprep.subr.bf16.mxu0 0
      %2383 = vmatpush1.bf16.msra.mxu0 %v2361
      %2384 = vmatprep.subr.bf16.mxu0 0
      %2385 = vmatpush1.bf16.msra.mxu0 %v2360
      %2386 = vmatprep.subr.bf16.mxu0 0
      %2387 = vmatpush1.bf16.msra.mxu0 %v2359
      %2388 = vmatprep.subr.bf16.mxu0 0
      %2389 = vmatpush1.bf16.msra.mxu0 %v2358
      %2390 = vmatprep.subr.bf16.mxu0 0
      %2391 = vmatpush2.bf16.msra.mxu0 0
      %2392 = vmatprep.subr.bf16.mxu0 0
      %2393 = vmatpush2.bf16.msra.mxu0 0
      %2394 = vmatprep.subr.bf16.mxu0 0
      %2395 = vmatpush2.bf16.msra.mxu0 0
      %2396 = vmatprep.subr.bf16.mxu0 0
      %2397 = vmatpush2.bf16.msra.mxu0 0
      %2398 = vmatprep.subr.bf16.mxu0 0
      %2399 = vmatpush2.bf16.msra.mxu0 0
      %2400 = vmatprep.subr.bf16.mxu0 0
      %2401 = vmatpush2.bf16.msra.mxu0 0
      %2402 = vmatprep.subr.bf16.mxu0 0
      %2403 = vmatpush2.bf16.msra.mxu0 0
      %2404 = vmatprep.subr.bf16.mxu0 0
      %2405 = vmatpush2.bf16.msra.mxu0 0
      %2406 = vmatprep.mubr.bf16.mxu0 0
      %2407 = vmatmul.mubr.bf16.gmra.mxu0 %v2315
      %v2408 = vpop.f32.mrf.mxu0
      %v2409 = vadd.f32 %v2324, %v2408
      %v2410 = vpop.f32.mrf.mxu0
      %v2411 = vpop.f32.mrf.mxu0
      %v2412 = vadd.f32 %v2324, %v2411
      %v2413 = vpop.f32.mrf.mxu0
      %2414 = vmatprep.mubr.bf16.mxu0 0
      %2415 = vmatmul.mubr.bf16.gmra.mxu0 %v2316
      %v2416 = vpop.f32.mrf.mxu0
      %v2417 = vadd.f32 %v2324, %v2416
      %v2418 = vpop.f32.mrf.mxu0
      %v2419 = vpop.f32.mrf.mxu0
      %v2420 = vadd.f32 %v2324, %v2419
      %v2421 = vpop.f32.mrf.mxu0
      %2422 = vmatprep.mubr.bf16.mxu0 0
      %2423 = vmatmul.mubr.bf16.gmra.mxu0 %v2317
      %v2424 = vpop.f32.mrf.mxu0
      %v2425 = vadd.f32 %v2324, %v2424
      %v2426 = vpop.f32.mrf.mxu0
      %v2427 = vpop.f32.mrf.mxu0
      %v2428 = vadd.f32 %v2324, %v2427
      %v2429 = vpop.f32.mrf.mxu0
      %2430 = vmatprep.mubr.bf16.mxu0 0
      %2431 = vmatmul.mubr.bf16.gmra.mxu0 %v2318
      %v2432 = vpop.f32.mrf.mxu0
      %v2433 = vadd.f32 %v2324, %v2432
      %v2434 = vpop.f32.mrf.mxu0
      %v2435 = vpop.f32.mrf.mxu0
      %v2436 = vadd.f32 %v2324, %v2435
      %v2437 = vpop.f32.mrf.mxu0
      %2438 = vdwg.mxu0
      %v2439 = vxor.u32 %v2409, 2147483648
      %v2440 = vxor.u32 %v2412, 2147483648
      %v2441 = vxor.u32 %v2417, 2147483648
      %v2442 = vxor.u32 %v2420, 2147483648
      %v2443 = vxor.u32 %v2425, 2147483648
      %v2444 = vxor.u32 %v2428, 2147483648
      %v2445 = vxor.u32 %v2433, 2147483648
      %v2446 = vxor.u32 %v2436, 2147483648
      %v2447 = vmul.f32 %v2439, 1.442695
      %v2448 = vpow.pop %v2447
      %v2449 = vmul.f32 %v2440, 1.442695
      %v2450 = vpow.pop %v2449
      %v2451 = vmul.f32 %v2441, 1.442695
      %v2452 = vpow.pop %v2451
      %v2453 = vmul.f32 %v2442, 1.442695
      %v2454 = vpow.pop %v2453
      %v2455 = vmul.f32 %v2443, 1.442695
      %v2456 = vpow.pop %v2455
      %v2457 = vmul.f32 %v2444, 1.442695
      %v2458 = vpow.pop %v2457
      %v2459 = vmul.f32 %v2445, 1.442695
      %v2460 = vpow.pop %v2459
      %v2461 = vmul.f32 %v2446, 1.442695
      %v2462 = vpow.pop %v2461
      %v2463 = vadd.f32 %v2448, 1.0
      %v2464 = vadd.f32 %v2450, 1.0
      %v2465 = vadd.f32 %v2452, 1.0
      %v2466 = vadd.f32 %v2454, 1.0
      %v2467 = vadd.f32 %v2456, 1.0
      %v2468 = vadd.f32 %v2458, 1.0
      %v2469 = vadd.f32 %v2460, 1.0
      %v2470 = vadd.f32 %v2462, 1.0
      %v2471 = vrcp.pop %v2463
      %v2472 = vmul.f32 1.0, %v2471
      %v2473 = vrcp.pop %v2464
      %v2474 = vmul.f32 1.0, %v2473
      %v2475 = vrcp.pop %v2465
      %v2476 = vmul.f32 1.0, %v2475
      %v2477 = vrcp.pop %v2466
      %v2478 = vmul.f32 1.0, %v2477
      %v2479 = vrcp.pop %v2467
      %v2480 = vmul.f32 1.0, %v2479
      %v2481 = vrcp.pop %v2468
      %v2482 = vmul.f32 1.0, %v2481
      %v2483 = vrcp.pop %v2469
      %v2484 = vmul.f32 1.0, %v2483
      %v2485 = vrcp.pop %v2470
      %v2486 = vmul.f32 1.0, %v2485
      %v2487 = vmul.f32 %v2409, %v2472
      %v2488 = vmul.f32 %v2412, %v2474
      %v2489 = vmul.f32 %v2417, %v2476
      %v2490 = vmul.f32 %v2420, %v2478
      %v2491 = vmul.f32 %v2425, %v2480
      %v2492 = vmul.f32 %v2428, %v2482
      %v2493 = vmul.f32 %v2433, %v2484
      %v2494 = vmul.f32 %v2436, %v2486
      %v2495 = vld [vmem:[%s17] sm:$0xf]
      %v2496 = vld [vmem:[%s17 + $0x4] sm:$0xf]
      %v2497 = vld [vmem:[%s17 + $0x8] sm:$0xf]
      %v2498 = vld [vmem:[%s17 + $0xc] sm:$0xf]
      %v2499 = vld [vmem:[%s17 + $0x10] sm:$0xf]
      %v2500 = vld [vmem:[%s17 + $0x14] sm:$0xf]
      %v2501 = vld [vmem:[%s17 + $0x18] sm:$0xf]
      %v2502 = vld [vmem:[%s17 + $0x1c] sm:$0xf]
      %v2503 = vld [vmem:[%s17 + $0x20] sm:$0xf]
      %v2504 = vld [vmem:[%s17 + $0x24] sm:$0xf]
      %v2505 = vld [vmem:[%s17 + $0x28] sm:$0xf]
      %v2506 = vld [vmem:[%s17 + $0x2c] sm:$0xf]
      %v2507 = vld [vmem:[%s17 + $0x30] sm:$0xf]
      %v2508 = vld [vmem:[%s17 + $0x34] sm:$0xf]
      %v2509 = vld [vmem:[%s17 + $0x38] sm:$0xf]
      %v2510 = vld [vmem:[%s17 + $0x3c] sm:$0xf]
      %v2511 = vpack.c.bf16 %v2488, %v2487
      %v2512 = vpack.c.bf16 %v2490, %v2489
      %v2513 = vpack.c.bf16 %v2492, %v2491
      %v2514 = vpack.c.bf16 %v2494, %v2493
      %v2515 = vld [vmem:[%s18] sm:$0x1]
      %v2517 = vlaneseq
      %v2518 = vshrl.u32 %v2517, 7
      %v2519 = vsub.s32 0, %v2518
      %v2520 = vrot.slane %v2515, %v2519
      %v2538 = vunpack.c.l.b16 %v2495
      %v2539 = vunpack.c.l.b16 %v2496
      %v2540 = vunpack.c.l.b16 %v2497
      %v2541 = vunpack.c.l.b16 %v2498
      %v2542 = vunpack.c.l.b16 %v2499
      %v2543 = vunpack.c.l.b16 %v2500
      %v2544 = vunpack.c.l.b16 %v2501
      %v2545 = vunpack.c.l.b16 %v2502
      %v2546 = vunpack.c.l.b16 %v2503
      %v2547 = vunpack.c.l.b16 %v2504
      %v2548 = vunpack.c.l.b16 %v2505
      %v2549 = vunpack.c.l.b16 %v2506
      %v2550 = vunpack.c.l.b16 %v2507
      %v2551 = vunpack.c.l.b16 %v2508
      %v2552 = vunpack.c.l.b16 %v2509
      %v2553 = vunpack.c.l.b16 %v2510
      %v2554 = vpack.c.b16 %v2539, %v2538
      %v2555 = vpack.c.b16 %v2541, %v2540
      %v2556 = vpack.c.b16 %v2543, %v2542
      %v2557 = vpack.c.b16 %v2545, %v2544
      %v2558 = vpack.c.b16 %v2547, %v2546
      %v2559 = vpack.c.b16 %v2549, %v2548
      %v2560 = vpack.c.b16 %v2551, %v2550
      %v2561 = vpack.c.b16 %v2553, %v2552
      %2570 = vmatprep.subr.bf16.mxu0 0
      %2571 = vmatpush1.bf16.msra.mxu0 %v2561
      %2572 = vmatprep.subr.bf16.mxu0 0
      %2573 = vmatpush1.bf16.msra.mxu0 %v2560
      %2574 = vmatprep.subr.bf16.mxu0 0
      %2575 = vmatpush1.bf16.msra.mxu0 %v2559
      %2576 = vmatprep.subr.bf16.mxu0 0
      %2577 = vmatpush1.bf16.msra.mxu0 %v2558
      %2578 = vmatprep.subr.bf16.mxu0 0
      %2579 = vmatpush1.bf16.msra.mxu0 %v2557
      %2580 = vmatprep.subr.bf16.mxu0 0
      %2581 = vmatpush1.bf16.msra.mxu0 %v2556
      %2582 = vmatprep.subr.bf16.mxu0 0
      %2583 = vmatpush1.bf16.msra.mxu0 %v2555
      %2584 = vmatprep.subr.bf16.mxu0 0
      %2585 = vmatpush1.bf16.msra.mxu0 %v2554
      %2586 = vmatprep.subr.bf16.mxu0 0
      %2587 = vmatpush2.bf16.msra.mxu0 0
      %2588 = vmatprep.subr.bf16.mxu0 0
      %2589 = vmatpush2.bf16.msra.mxu0 0
      %2590 = vmatprep.subr.bf16.mxu0 0
      %2591 = vmatpush2.bf16.msra.mxu0 0
      %2592 = vmatprep.subr.bf16.mxu0 0
      %2593 = vmatpush2.bf16.msra.mxu0 0
      %2594 = vmatprep.subr.bf16.mxu0 0
      %2595 = vmatpush2.bf16.msra.mxu0 0
      %2596 = vmatprep.subr.bf16.mxu0 0
      %2597 = vmatpush2.bf16.msra.mxu0 0
      %2598 = vmatprep.subr.bf16.mxu0 0
      %2599 = vmatpush2.bf16.msra.mxu0 0
      %2600 = vmatprep.subr.bf16.mxu0 0
      %2601 = vmatpush2.bf16.msra.mxu0 0
      %2602 = vmatprep.mubr.bf16.mxu0 0
      %2603 = vmatmul.mubr.bf16.gmra.mxu0 %v2511
      %v2604 = vpop.f32.mrf.mxu0
      %v2605 = vadd.f32 %v2520, %v2604
      %v2606 = vpop.f32.mrf.mxu0
      %v2607 = vpop.f32.mrf.mxu0
      %v2608 = vadd.f32 %v2520, %v2607
      %v2609 = vpop.f32.mrf.mxu0
      %2610 = vmatprep.mubr.bf16.mxu0 0
      %2611 = vmatmul.mubr.bf16.gmra.mxu0 %v2512
      %v2612 = vpop.f32.mrf.mxu0
      %v2613 = vadd.f32 %v2520, %v2612
      %v2614 = vpop.f32.mrf.mxu0
      %v2615 = vpop.f32.mrf.mxu0
      %v2616 = vadd.f32 %v2520, %v2615
      %v2617 = vpop.f32.mrf.mxu0
      %2618 = vmatprep.mubr.bf16.mxu0 0
      %2619 = vmatmul.mubr.bf16.gmra.mxu0 %v2513
      %v2620 = vpop.f32.mrf.mxu0
      %v2621 = vadd.f32 %v2520, %v2620
      %v2622 = vpop.f32.mrf.mxu0
      %v2623 = vpop.f32.mrf.mxu0
      %v2624 = vadd.f32 %v2520, %v2623
      %v2625 = vpop.f32.mrf.mxu0
      %2626 = vmatprep.mubr.bf16.mxu0 0
      %2627 = vmatmul.mubr.bf16.gmra.mxu0 %v2514
      %v2628 = vpop.f32.mrf.mxu0
      %v2629 = vadd.f32 %v2520, %v2628
      %v2630 = vpop.f32.mrf.mxu0
      %v2631 = vpop.f32.mrf.mxu0
      %v2632 = vadd.f32 %v2520, %v2631
      %v2633 = vpop.f32.mrf.mxu0
      %2634 = vdwg.mxu0
      %v2635 = vmul.f32 %v1972, %v2605
      %v2636 = vmul.f32 %v1976, %v2608
      %v2637 = vmul.f32 %v1982, %v2613
      %v2638 = vmul.f32 %v1986, %v2616
      %v2639 = vmul.f32 %v1992, %v2621
      %v2640 = vmul.f32 %v1996, %v2624
      %v2641 = vmul.f32 %v2002, %v2629
      %v2642 = vmul.f32 %v2006, %v2632
      %v2643 = vadd.f32 %v783, %v2635
      %v2644 = vadd.f32 %v786, %v2636
      %v2645 = vadd.f32 %v791, %v2637
      %v2646 = vadd.f32 %v794, %v2638
      %v2647 = vadd.f32 %v799, %v2639
      %v2648 = vadd.f32 %v802, %v2640
      %v2649 = vadd.f32 %v807, %v2641
      %v2650 = vadd.f32 %v810, %v2642
      %s2651 = scalar_lea.vmem %s11, 1
      %v2652 = vld [vmem:[%s2651] sm:$0x1]
      %s2653 = scalar_lea.vmem %s12, 1
      %v2654 = vld [vmem:[%s2653] sm:$0x1]
      %2655 = vadd.xlane.f32.xlu0 %v2643
      %v2656 = vpop.xlane.xlu0 %2655
      %2657 = vadd.xlane.f32.xlu0 %v2644
      %v2658 = vpop.xlane.xlu0 %2657
      %2659 = vadd.xlane.f32.xlu0 %v2645
      %v2660 = vpop.xlane.xlu0 %2659
      %2661 = vadd.xlane.f32.xlu0 %v2646
      %v2662 = vpop.xlane.xlu0 %2661
      %2663 = vadd.xlane.f32.xlu0 %v2647
      %v2664 = vpop.xlane.xlu0 %2663
      %2665 = vadd.xlane.f32.xlu0 %v2648
      %v2666 = vpop.xlane.xlu0 %2665
      %2667 = vadd.xlane.f32.xlu0 %v2649
      %v2668 = vpop.xlane.xlu0 %2667
      %2669 = vadd.xlane.f32.xlu0 %v2650
      %v2670 = vpop.xlane.xlu0 %2669
      %v2671 = vmul.f32 %v2656, %v2174
      %v2672 = vmul.f32 %v2658, %v2174
      %v2673 = vmul.f32 %v2660, %v2174
      %v2674 = vmul.f32 %v2662, %v2174
      %v2675 = vmul.f32 %v2664, %v2174
      %v2676 = vmul.f32 %v2666, %v2174
      %v2677 = vmul.f32 %v2668, %v2174
      %v2678 = vmul.f32 %v2670, %v2174
      %v2679 = vsub.f32 %v2643, %v2671
      %v2680 = vsub.f32 %v2644, %v2672
      %v2681 = vsub.f32 %v2645, %v2673
      %v2682 = vsub.f32 %v2646, %v2674
      %v2683 = vsub.f32 %v2647, %v2675
      %v2684 = vsub.f32 %v2648, %v2676
      %v2685 = vsub.f32 %v2649, %v2677
      %v2686 = vsub.f32 %v2650, %v2678
      %v2687 = vmul.f32 %v2679, %v2679
      %v2688 = vmul.f32 %v2680, %v2680
      %v2689 = vmul.f32 %v2681, %v2681
      %v2690 = vmul.f32 %v2682, %v2682
      %v2691 = vmul.f32 %v2683, %v2683
      %v2692 = vmul.f32 %v2684, %v2684
      %v2693 = vmul.f32 %v2685, %v2685
      %v2694 = vmul.f32 %v2686, %v2686
      %2695 = vadd.xlane.f32.xlu0 %v2687
      %v2696 = vpop.xlane.xlu0 %2695
      %2697 = vadd.xlane.f32.xlu0 %v2688
      %v2698 = vpop.xlane.xlu0 %2697
      %2699 = vadd.xlane.f32.xlu0 %v2689
      %v2700 = vpop.xlane.xlu0 %2699
      %2701 = vadd.xlane.f32.xlu0 %v2690
      %v2702 = vpop.xlane.xlu0 %2701
      %2703 = vadd.xlane.f32.xlu0 %v2691
      %v2704 = vpop.xlane.xlu0 %2703
      %2705 = vadd.xlane.f32.xlu0 %v2692
      %v2706 = vpop.xlane.xlu0 %2705
      %2707 = vadd.xlane.f32.xlu0 %v2693
      %v2708 = vpop.xlane.xlu0 %2707
      %2709 = vadd.xlane.f32.xlu0 %v2694
      %v2710 = vpop.xlane.xlu0 %2709
      %v2711 = vmul.f32 %v2696, %v2174
      %v2712 = vmul.f32 %v2698, %v2174
      %v2713 = vmul.f32 %v2700, %v2174
      %v2714 = vmul.f32 %v2702, %v2174
      %v2715 = vmul.f32 %v2704, %v2174
      %v2716 = vmul.f32 %v2706, %v2174
      %v2717 = vmul.f32 %v2708, %v2174
      %v2718 = vmul.f32 %v2710, %v2174
      %v2719 = vadd.f32 %v2711, 1e-06
      %v2720 = vadd.f32 %v2712, 1e-06
      %v2721 = vadd.f32 %v2713, 1e-06
      %v2722 = vadd.f32 %v2714, 1e-06
      %v2723 = vadd.f32 %v2715, 1e-06
      %v2724 = vadd.f32 %v2716, 1e-06
      %v2725 = vadd.f32 %v2717, 1e-06
      %v2726 = vadd.f32 %v2718, 1e-06
      %v2727 = vrsqrt.pop %v2719
      %v2728 = vrsqrt.pop %v2720
      %v2729 = vrsqrt.pop %v2721
      %v2730 = vrsqrt.pop %v2722
      %v2731 = vrsqrt.pop %v2723
      %v2732 = vrsqrt.pop %v2724
      %v2733 = vrsqrt.pop %v2725
      %v2734 = vrsqrt.pop %v2726
      %v2735 = vmul.f32 %v2679, %v2727
      %v2736 = vmul.f32 %v2680, %v2728
      %v2737 = vmul.f32 %v2681, %v2729
      %v2738 = vmul.f32 %v2682, %v2730
      %v2739 = vmul.f32 %v2683, %v2731
      %v2740 = vmul.f32 %v2684, %v2732
      %v2741 = vmul.f32 %v2685, %v2733
      %v2742 = vmul.f32 %v2686, %v2734
      %v2744 = vlaneseq
      %v2745 = vshrl.u32 %v2744, 7
      %v2746 = vsub.s32 0, %v2745
      %v2747 = vrot.slane %v2652, %v2746
      %v2749 = vmul.f32 %v2735, %v2747
      %v2750 = vmul.f32 %v2736, %v2747
      %v2751 = vmul.f32 %v2737, %v2747
      %v2752 = vmul.f32 %v2738, %v2747
      %v2753 = vmul.f32 %v2739, %v2747
      %v2754 = vmul.f32 %v2740, %v2747
      %v2755 = vmul.f32 %v2741, %v2747
      %v2756 = vmul.f32 %v2742, %v2747
      %v2758 = vlaneseq
      %v2759 = vshrl.u32 %v2758, 7
      %v2760 = vsub.s32 0, %v2759
      %v2761 = vrot.slane %v2654, %v2760
      %v2763 = vadd.f32 %v2749, %v2761
      %v2764 = vadd.f32 %v2750, %v2761
      %v2765 = vadd.f32 %v2751, %v2761
      %v2766 = vadd.f32 %v2752, %v2761
      %v2767 = vadd.f32 %v2753, %v2761
      %v2768 = vadd.f32 %v2754, %v2761
      %v2769 = vadd.f32 %v2755, %v2761
      %v2770 = vadd.f32 %v2756, %v2761
      %v2771 = vadd.f32 %v2045, 1.0
      %v2772 = vadd.f32 %v2049, 1.0
      %v2773 = vadd.f32 %v2055, 1.0
      %v2774 = vadd.f32 %v2059, 1.0
      %v2775 = vadd.f32 %v2065, 1.0
      %v2776 = vadd.f32 %v2069, 1.0
      %v2777 = vadd.f32 %v2075, 1.0
      %v2778 = vadd.f32 %v2079, 1.0
      %v2779 = vmul.f32 %v2763, %v2771
      %v2780 = vmul.f32 %v2764, %v2772
      %v2781 = vmul.f32 %v2765, %v2773
      %v2782 = vmul.f32 %v2766, %v2774
      %v2783 = vmul.f32 %v2767, %v2775
      %v2784 = vmul.f32 %v2768, %v2776
      %v2785 = vmul.f32 %v2769, %v2777
      %v2786 = vmul.f32 %v2770, %v2778
      %v2787 = vadd.f32 %v2779, %v1974
      %v2788 = vadd.f32 %v2780, %v1978
      %v2789 = vadd.f32 %v2781, %v1984
      %v2790 = vadd.f32 %v2782, %v1988
      %v2791 = vadd.f32 %v2783, %v1994
      %v2792 = vadd.f32 %v2784, %v1998
      %v2793 = vadd.f32 %v2785, %v2004
      %v2794 = vadd.f32 %v2786, %v2008
      %s2795 = scalar_lea.vmem %s15, 64
      %v2796 = vld [vmem:[%s2795] sm:$0xf]
      %v2797 = vld [vmem:[%s2795 + $0x4] sm:$0xf]
      %v2798 = vld [vmem:[%s2795 + $0x8] sm:$0xf]
      %v2799 = vld [vmem:[%s2795 + $0xc] sm:$0xf]
      %v2800 = vld [vmem:[%s2795 + $0x10] sm:$0xf]
      %v2801 = vld [vmem:[%s2795 + $0x14] sm:$0xf]
      %v2802 = vld [vmem:[%s2795 + $0x18] sm:$0xf]
      %v2803 = vld [vmem:[%s2795 + $0x1c] sm:$0xf]
      %v2804 = vld [vmem:[%s2795 + $0x20] sm:$0xf]
      %v2805 = vld [vmem:[%s2795 + $0x24] sm:$0xf]
      %v2806 = vld [vmem:[%s2795 + $0x28] sm:$0xf]
      %v2807 = vld [vmem:[%s2795 + $0x2c] sm:$0xf]
      %v2808 = vld [vmem:[%s2795 + $0x30] sm:$0xf]
      %v2809 = vld [vmem:[%s2795 + $0x34] sm:$0xf]
      %v2810 = vld [vmem:[%s2795 + $0x38] sm:$0xf]
      %v2811 = vld [vmem:[%s2795 + $0x3c] sm:$0xf]
      %v2812 = vpack.c.bf16 %v2788, %v2787
      %v2813 = vpack.c.bf16 %v2790, %v2789
      %v2814 = vpack.c.bf16 %v2792, %v2791
      %v2815 = vpack.c.bf16 %v2794, %v2793
      %s2816 = scalar_lea.vmem %s16, 1
      %v2817 = vld [vmem:[%s2816] sm:$0x1]
      %v2819 = vlaneseq
      %v2820 = vshrl.u32 %v2819, 7
      %v2821 = vsub.s32 0, %v2820
      %v2822 = vrot.slane %v2817, %v2821
      %v2840 = vunpack.c.l.b16 %v2796
      %v2841 = vunpack.c.l.b16 %v2797
      %v2842 = vunpack.c.l.b16 %v2798
      %v2843 = vunpack.c.l.b16 %v2799
      %v2844 = vunpack.c.l.b16 %v2800
      %v2845 = vunpack.c.l.b16 %v2801
      %v2846 = vunpack.c.l.b16 %v2802
      %v2847 = vunpack.c.l.b16 %v2803
      %v2848 = vunpack.c.l.b16 %v2804
      %v2849 = vunpack.c.l.b16 %v2805
      %v2850 = vunpack.c.l.b16 %v2806
      %v2851 = vunpack.c.l.b16 %v2807
      %v2852 = vunpack.c.l.b16 %v2808
      %v2853 = vunpack.c.l.b16 %v2809
      %v2854 = vunpack.c.l.b16 %v2810
      %v2855 = vunpack.c.l.b16 %v2811
      %v2856 = vpack.c.b16 %v2841, %v2840
      %v2857 = vpack.c.b16 %v2843, %v2842
      %v2858 = vpack.c.b16 %v2845, %v2844
      %v2859 = vpack.c.b16 %v2847, %v2846
      %v2860 = vpack.c.b16 %v2849, %v2848
      %v2861 = vpack.c.b16 %v2851, %v2850
      %v2862 = vpack.c.b16 %v2853, %v2852
      %v2863 = vpack.c.b16 %v2855, %v2854
      %2872 = vmatprep.subr.bf16.mxu0 0
      %2873 = vmatpush1.bf16.msra.mxu0 %v2863
      %2874 = vmatprep.subr.bf16.mxu0 0
      %2875 = vmatpush1.bf16.msra.mxu0 %v2862
      %2876 = vmatprep.subr.bf16.mxu0 0
      %2877 = vmatpush1.bf16.msra.mxu0 %v2861
      %2878 = vmatprep.subr.bf16.mxu0 0
      %2879 = vmatpush1.bf16.msra.mxu0 %v2860
      %2880 = vmatprep.subr.bf16.mxu0 0
      %2881 = vmatpush1.bf16.msra.mxu0 %v2859
      %2882 = vmatprep.subr.bf16.mxu0 0
      %2883 = vmatpush1.bf16.msra.mxu0 %v2858
      %2884 = vmatprep.subr.bf16.mxu0 0
      %2885 = vmatpush1.bf16.msra.mxu0 %v2857
      %2886 = vmatprep.subr.bf16.mxu0 0
      %2887 = vmatpush1.bf16.msra.mxu0 %v2856
      %2888 = vmatprep.subr.bf16.mxu0 0
      %2889 = vmatpush2.bf16.msra.mxu0 0
      %2890 = vmatprep.subr.bf16.mxu0 0
      %2891 = vmatpush2.bf16.msra.mxu0 0
      %2892 = vmatprep.subr.bf16.mxu0 0
      %2893 = vmatpush2.bf16.msra.mxu0 0
      %2894 = vmatprep.subr.bf16.mxu0 0
      %2895 = vmatpush2.bf16.msra.mxu0 0
      %2896 = vmatprep.subr.bf16.mxu0 0
      %2897 = vmatpush2.bf16.msra.mxu0 0
      %2898 = vmatprep.subr.bf16.mxu0 0
      %2899 = vmatpush2.bf16.msra.mxu0 0
      %2900 = vmatprep.subr.bf16.mxu0 0
      %2901 = vmatpush2.bf16.msra.mxu0 0
      %2902 = vmatprep.subr.bf16.mxu0 0
      %2903 = vmatpush2.bf16.msra.mxu0 0
      %2904 = vmatprep.mubr.bf16.mxu0 0
      %2905 = vmatmul.mubr.bf16.gmra.mxu0 %v2812
      %v2906 = vpop.f32.mrf.mxu0
      %v2907 = vadd.f32 %v2822, %v2906
      %v2908 = vpop.f32.mrf.mxu0
      %v2909 = vpop.f32.mrf.mxu0
      %v2910 = vadd.f32 %v2822, %v2909
      %v2911 = vpop.f32.mrf.mxu0
      %2912 = vmatprep.mubr.bf16.mxu0 0
      %2913 = vmatmul.mubr.bf16.gmra.mxu0 %v2813
      %v2914 = vpop.f32.mrf.mxu0
      %v2915 = vadd.f32 %v2822, %v2914
      %v2916 = vpop.f32.mrf.mxu0
      %v2917 = vpop.f32.mrf.mxu0
      %v2918 = vadd.f32 %v2822, %v2917
      %v2919 = vpop.f32.mrf.mxu0
      %2920 = vmatprep.mubr.bf16.mxu0 0
      %2921 = vmatmul.mubr.bf16.gmra.mxu0 %v2814
      %v2922 = vpop.f32.mrf.mxu0
      %v2923 = vadd.f32 %v2822, %v2922
      %v2924 = vpop.f32.mrf.mxu0
      %v2925 = vpop.f32.mrf.mxu0
      %v2926 = vadd.f32 %v2822, %v2925
      %v2927 = vpop.f32.mrf.mxu0
      %2928 = vmatprep.mubr.bf16.mxu0 0
      %2929 = vmatmul.mubr.bf16.gmra.mxu0 %v2815
      %v2930 = vpop.f32.mrf.mxu0
      %v2931 = vadd.f32 %v2822, %v2930
      %v2932 = vpop.f32.mrf.mxu0
      %v2933 = vpop.f32.mrf.mxu0
      %v2934 = vadd.f32 %v2822, %v2933
      %v2935 = vpop.f32.mrf.mxu0
      %2936 = vdwg.mxu0
      %v2937 = vxor.u32 %v2907, 2147483648
      %v2938 = vxor.u32 %v2910, 2147483648
      %v2939 = vxor.u32 %v2915, 2147483648
      %v2940 = vxor.u32 %v2918, 2147483648
      %v2941 = vxor.u32 %v2923, 2147483648
      %v2942 = vxor.u32 %v2926, 2147483648
      %v2943 = vxor.u32 %v2931, 2147483648
      %v2944 = vxor.u32 %v2934, 2147483648
      %v2945 = vmul.f32 %v2937, 1.442695
      %v2946 = vpow.pop %v2945
      %v2947 = vmul.f32 %v2938, 1.442695
      %v2948 = vpow.pop %v2947
      %v2949 = vmul.f32 %v2939, 1.442695
      %v2950 = vpow.pop %v2949
      %v2951 = vmul.f32 %v2940, 1.442695
      %v2952 = vpow.pop %v2951
      %v2953 = vmul.f32 %v2941, 1.442695
      %v2954 = vpow.pop %v2953
      %v2955 = vmul.f32 %v2942, 1.442695
      %v2956 = vpow.pop %v2955
      %v2957 = vmul.f32 %v2943, 1.442695
      %v2958 = vpow.pop %v2957
      %v2959 = vmul.f32 %v2944, 1.442695
      %v2960 = vpow.pop %v2959
      %v2961 = vadd.f32 %v2946, 1.0
      %v2962 = vadd.f32 %v2948, 1.0
      %v2963 = vadd.f32 %v2950, 1.0
      %v2964 = vadd.f32 %v2952, 1.0
      %v2965 = vadd.f32 %v2954, 1.0
      %v2966 = vadd.f32 %v2956, 1.0
      %v2967 = vadd.f32 %v2958, 1.0
      %v2968 = vadd.f32 %v2960, 1.0
      %v2969 = vrcp.pop %v2961
      %v2970 = vmul.f32 1.0, %v2969
      %v2971 = vrcp.pop %v2962
      %v2972 = vmul.f32 1.0, %v2971
      %v2973 = vrcp.pop %v2963
      %v2974 = vmul.f32 1.0, %v2973
      %v2975 = vrcp.pop %v2964
      %v2976 = vmul.f32 1.0, %v2975
      %v2977 = vrcp.pop %v2965
      %v2978 = vmul.f32 1.0, %v2977
      %v2979 = vrcp.pop %v2966
      %v2980 = vmul.f32 1.0, %v2979
      %v2981 = vrcp.pop %v2967
      %v2982 = vmul.f32 1.0, %v2981
      %v2983 = vrcp.pop %v2968
      %v2984 = vmul.f32 1.0, %v2983
      %v2985 = vmul.f32 %v2907, %v2970
      %v2986 = vmul.f32 %v2910, %v2972
      %v2987 = vmul.f32 %v2915, %v2974
      %v2988 = vmul.f32 %v2918, %v2976
      %v2989 = vmul.f32 %v2923, %v2978
      %v2990 = vmul.f32 %v2926, %v2980
      %v2991 = vmul.f32 %v2931, %v2982
      %v2992 = vmul.f32 %v2934, %v2984
      %s2993 = scalar_lea.vmem %s17, 64
      %v2994 = vld [vmem:[%s2993] sm:$0xf]
      %v2995 = vld [vmem:[%s2993 + $0x4] sm:$0xf]
      %v2996 = vld [vmem:[%s2993 + $0x8] sm:$0xf]
      %v2997 = vld [vmem:[%s2993 + $0xc] sm:$0xf]
      %v2998 = vld [vmem:[%s2993 + $0x10] sm:$0xf]
      %v2999 = vld [vmem:[%s2993 + $0x14] sm:$0xf]
      %v3000 = vld [vmem:[%s2993 + $0x18] sm:$0xf]
      %v3001 = vld [vmem:[%s2993 + $0x1c] sm:$0xf]
      %v3002 = vld [vmem:[%s2993 + $0x20] sm:$0xf]
      %v3003 = vld [vmem:[%s2993 + $0x24] sm:$0xf]
      %v3004 = vld [vmem:[%s2993 + $0x28] sm:$0xf]
      %v3005 = vld [vmem:[%s2993 + $0x2c] sm:$0xf]
      %v3006 = vld [vmem:[%s2993 + $0x30] sm:$0xf]
      %v3007 = vld [vmem:[%s2993 + $0x34] sm:$0xf]
      %v3008 = vld [vmem:[%s2993 + $0x38] sm:$0xf]
      %v3009 = vld [vmem:[%s2993 + $0x3c] sm:$0xf]
      %v3010 = vpack.c.bf16 %v2986, %v2985
      %v3011 = vpack.c.bf16 %v2988, %v2987
      %v3012 = vpack.c.bf16 %v2990, %v2989
      %v3013 = vpack.c.bf16 %v2992, %v2991
      %s3014 = scalar_lea.vmem %s18, 1
      %v3015 = vld [vmem:[%s3014] sm:$0x1]
      %v3017 = vlaneseq
      %v3018 = vshrl.u32 %v3017, 7
      %v3019 = vsub.s32 0, %v3018
      %v3020 = vrot.slane %v3015, %v3019
      %v3038 = vunpack.c.l.b16 %v2994
      %v3039 = vunpack.c.l.b16 %v2995
      %v3040 = vunpack.c.l.b16 %v2996
      %v3041 = vunpack.c.l.b16 %v2997
      %v3042 = vunpack.c.l.b16 %v2998
      %v3043 = vunpack.c.l.b16 %v2999
      %v3044 = vunpack.c.l.b16 %v3000
      %v3045 = vunpack.c.l.b16 %v3001
      %v3046 = vunpack.c.l.b16 %v3002
      %v3047 = vunpack.c.l.b16 %v3003
      %v3048 = vunpack.c.l.b16 %v3004
      %v3049 = vunpack.c.l.b16 %v3005
      %v3050 = vunpack.c.l.b16 %v3006
      %v3051 = vunpack.c.l.b16 %v3007
      %v3052 = vunpack.c.l.b16 %v3008
      %v3053 = vunpack.c.l.b16 %v3009
      %v3054 = vpack.c.b16 %v3039, %v3038
      %v3055 = vpack.c.b16 %v3041, %v3040
      %v3056 = vpack.c.b16 %v3043, %v3042
      %v3057 = vpack.c.b16 %v3045, %v3044
      %v3058 = vpack.c.b16 %v3047, %v3046
      %v3059 = vpack.c.b16 %v3049, %v3048
      %v3060 = vpack.c.b16 %v3051, %v3050
      %v3061 = vpack.c.b16 %v3053, %v3052
      %3070 = vmatprep.subr.bf16.mxu0 0
      %3071 = vmatpush1.bf16.msra.mxu0 %v3061
      %3072 = vmatprep.subr.bf16.mxu0 0
      %3073 = vmatpush1.bf16.msra.mxu0 %v3060
      %3074 = vmatprep.subr.bf16.mxu0 0
      %3075 = vmatpush1.bf16.msra.mxu0 %v3059
      %3076 = vmatprep.subr.bf16.mxu0 0
      %3077 = vmatpush1.bf16.msra.mxu0 %v3058
      %3078 = vmatprep.subr.bf16.mxu0 0
      %3079 = vmatpush1.bf16.msra.mxu0 %v3057
      %3080 = vmatprep.subr.bf16.mxu0 0
      %3081 = vmatpush1.bf16.msra.mxu0 %v3056
      %3082 = vmatprep.subr.bf16.mxu0 0
      %3083 = vmatpush1.bf16.msra.mxu0 %v3055
      %3084 = vmatprep.subr.bf16.mxu0 0
      %3085 = vmatpush1.bf16.msra.mxu0 %v3054
      %3086 = vmatprep.subr.bf16.mxu0 0
      %3087 = vmatpush2.bf16.msra.mxu0 0
      %3088 = vmatprep.subr.bf16.mxu0 0
      %3089 = vmatpush2.bf16.msra.mxu0 0
      %3090 = vmatprep.subr.bf16.mxu0 0
      %3091 = vmatpush2.bf16.msra.mxu0 0
      %3092 = vmatprep.subr.bf16.mxu0 0
      %3093 = vmatpush2.bf16.msra.mxu0 0
      %3094 = vmatprep.subr.bf16.mxu0 0
      %3095 = vmatpush2.bf16.msra.mxu0 0
      %3096 = vmatprep.subr.bf16.mxu0 0
      %3097 = vmatpush2.bf16.msra.mxu0 0
      %3098 = vmatprep.subr.bf16.mxu0 0
      %3099 = vmatpush2.bf16.msra.mxu0 0
      %3100 = vmatprep.subr.bf16.mxu0 0
      %3101 = vmatpush2.bf16.msra.mxu0 0
      %3102 = vmatprep.mubr.bf16.mxu0 0
      %3103 = vmatmul.mubr.bf16.gmra.mxu0 %v3010
      %v3104 = vpop.f32.mrf.mxu0
      %v3105 = vadd.f32 %v3020, %v3104
      %v3106 = vpop.f32.mrf.mxu0
      %v3107 = vpop.f32.mrf.mxu0
      %v3108 = vadd.f32 %v3020, %v3107
      %v3109 = vpop.f32.mrf.mxu0
      %3110 = vmatprep.mubr.bf16.mxu0 0
      %3111 = vmatmul.mubr.bf16.gmra.mxu0 %v3011
      %v3112 = vpop.f32.mrf.mxu0
      %v3113 = vadd.f32 %v3020, %v3112
      %v3114 = vpop.f32.mrf.mxu0
      %v3115 = vpop.f32.mrf.mxu0
      %v3116 = vadd.f32 %v3020, %v3115
      %v3117 = vpop.f32.mrf.mxu0
      %3118 = vmatprep.mubr.bf16.mxu0 0
      %3119 = vmatmul.mubr.bf16.gmra.mxu0 %v3012
      %v3120 = vpop.f32.mrf.mxu0
      %v3121 = vadd.f32 %v3020, %v3120
      %v3122 = vpop.f32.mrf.mxu0
      %v3123 = vpop.f32.mrf.mxu0
      %v3124 = vadd.f32 %v3020, %v3123
      %v3125 = vpop.f32.mrf.mxu0
      %3126 = vmatprep.mubr.bf16.mxu0 0
      %3127 = vmatmul.mubr.bf16.gmra.mxu0 %v3013
      %v3128 = vpop.f32.mrf.mxu0
      %v3129 = vadd.f32 %v3020, %v3128
      %v3130 = vpop.f32.mrf.mxu0
      %v3131 = vpop.f32.mrf.mxu0
      %v3132 = vadd.f32 %v3020, %v3131
      %v3133 = vpop.f32.mrf.mxu0
      %3134 = vdwg.mxu0
      %v3135 = vmul.f32 %v2047, %v3105
      %v3136 = vmul.f32 %v2051, %v3108
      %v3137 = vmul.f32 %v2057, %v3113
      %v3138 = vmul.f32 %v2061, %v3116
      %v3139 = vmul.f32 %v2067, %v3121
      %v3140 = vmul.f32 %v2071, %v3124
      %v3141 = vmul.f32 %v2077, %v3129
      %v3142 = vmul.f32 %v2081, %v3132
      %v3143 = vadd.f32 %v2643, %v3135
      %v3144 = vadd.f32 %v2644, %v3136
      %v3145 = vadd.f32 %v2645, %v3137
      %v3146 = vadd.f32 %v2646, %v3138
      %v3147 = vadd.f32 %v2647, %v3139
      %v3148 = vadd.f32 %v2648, %v3140
      %v3149 = vadd.f32 %v2649, %v3141
      %v3150 = vadd.f32 %v2650, %v3142
      %3151 = vadd.xlane.f32.xlu0 %v3143
      %v3152 = vpop.xlane.xlu0 %3151
      %3153 = vadd.xlane.f32.xlu0 %v3144
      %v3154 = vpop.xlane.xlu0 %3153
      %3155 = vadd.xlane.f32.xlu0 %v3145
      %v3156 = vpop.xlane.xlu0 %3155
      %3157 = vadd.xlane.f32.xlu0 %v3146
      %v3158 = vpop.xlane.xlu0 %3157
      %3159 = vadd.xlane.f32.xlu0 %v3147
      %v3160 = vpop.xlane.xlu0 %3159
      %3161 = vadd.xlane.f32.xlu0 %v3148
      %v3162 = vpop.xlane.xlu0 %3161
      %3163 = vadd.xlane.f32.xlu0 %v3149
      %v3164 = vpop.xlane.xlu0 %3163
      %3165 = vadd.xlane.f32.xlu0 %v3150
      %v3166 = vpop.xlane.xlu0 %3165
      %v3167 = vmul.f32 %v3152, %v2174
      %v3168 = vmul.f32 %v3154, %v2174
      %v3169 = vmul.f32 %v3156, %v2174
      %v3170 = vmul.f32 %v3158, %v2174
      %v3171 = vmul.f32 %v3160, %v2174
      %v3172 = vmul.f32 %v3162, %v2174
      %v3173 = vmul.f32 %v3164, %v2174
      %v3174 = vmul.f32 %v3166, %v2174
      %v3175 = vsub.f32 %v3143, %v3167
      %v3176 = vsub.f32 %v3144, %v3168
      %v3177 = vsub.f32 %v3145, %v3169
      %v3178 = vsub.f32 %v3146, %v3170
      %v3179 = vsub.f32 %v3147, %v3171
      %v3180 = vsub.f32 %v3148, %v3172
      %v3181 = vsub.f32 %v3149, %v3173
      %v3182 = vsub.f32 %v3150, %v3174
      %v3183 = vmul.f32 %v3175, %v3175
      %v3184 = vmul.f32 %v3176, %v3176
      %v3185 = vmul.f32 %v3177, %v3177
      %v3186 = vmul.f32 %v3178, %v3178
      %v3187 = vmul.f32 %v3179, %v3179
      %v3188 = vmul.f32 %v3180, %v3180
      %v3189 = vmul.f32 %v3181, %v3181
      %v3190 = vmul.f32 %v3182, %v3182
      %3191 = vadd.xlane.f32.xlu0 %v3183
      %v3192 = vpop.xlane.xlu0 %3191
      %3193 = vadd.xlane.f32.xlu0 %v3184
      %v3194 = vpop.xlane.xlu0 %3193
      %3195 = vadd.xlane.f32.xlu0 %v3185
      %v3196 = vpop.xlane.xlu0 %3195
      %3197 = vadd.xlane.f32.xlu0 %v3186
      %v3198 = vpop.xlane.xlu0 %3197
      %3199 = vadd.xlane.f32.xlu0 %v3187
      %v3200 = vpop.xlane.xlu0 %3199
      %3201 = vadd.xlane.f32.xlu0 %v3188
      %v3202 = vpop.xlane.xlu0 %3201
      %3203 = vadd.xlane.f32.xlu0 %v3189
      %v3204 = vpop.xlane.xlu0 %3203
      %3205 = vadd.xlane.f32.xlu0 %v3190
      %v3206 = vpop.xlane.xlu0 %3205
      %v3207 = vmul.f32 %v3192, %v2174
      %v3208 = vmul.f32 %v3194, %v2174
      %v3209 = vmul.f32 %v3196, %v2174
      %v3210 = vmul.f32 %v3198, %v2174
      %v3211 = vmul.f32 %v3200, %v2174
      %v3212 = vmul.f32 %v3202, %v2174
      %v3213 = vmul.f32 %v3204, %v2174
      %v3214 = vmul.f32 %v3206, %v2174
      %v3215 = vadd.f32 %v3207, 1e-06
      %v3216 = vadd.f32 %v3208, 1e-06
      %v3217 = vadd.f32 %v3209, 1e-06
      %v3218 = vadd.f32 %v3210, 1e-06
      %v3219 = vadd.f32 %v3211, 1e-06
      %v3220 = vadd.f32 %v3212, 1e-06
      %v3221 = vadd.f32 %v3213, 1e-06
      %v3222 = vadd.f32 %v3214, 1e-06
      %v3223 = vrsqrt.pop %v3215
      %v3224 = vrsqrt.pop %v3216
      %v3225 = vrsqrt.pop %v3217
      %v3226 = vrsqrt.pop %v3218
      %v3227 = vrsqrt.pop %v3219
      %v3228 = vrsqrt.pop %v3220
      %v3229 = vrsqrt.pop %v3221
      %v3230 = vrsqrt.pop %v3222
      %v3231 = vmul.f32 %v3175, %v3223
      %v3232 = vmul.f32 %v3176, %v3224
      %v3233 = vmul.f32 %v3177, %v3225
      %v3234 = vmul.f32 %v3178, %v3226
      %v3235 = vmul.f32 %v3179, %v3227
      %v3236 = vmul.f32 %v3180, %v3228
      %v3237 = vmul.f32 %v3181, %v3229
      %v3238 = vmul.f32 %v3182, %v3230
      %v3239 = vadd.f32 %v2120, 1.0
      %v3240 = vadd.f32 %v2124, 1.0
      %v3241 = vadd.f32 %v2130, 1.0
      %v3242 = vadd.f32 %v2134, 1.0
      %v3243 = vadd.f32 %v2140, 1.0
      %v3244 = vadd.f32 %v2144, 1.0
      %v3245 = vadd.f32 %v2150, 1.0
      %v3246 = vadd.f32 %v2154, 1.0
      %v3247 = vmul.f32 %v3231, %v3239
      %v3248 = vmul.f32 %v3232, %v3240
      %v3249 = vmul.f32 %v3233, %v3241
      %v3250 = vmul.f32 %v3234, %v3242
      %v3251 = vmul.f32 %v3235, %v3243
      %v3252 = vmul.f32 %v3236, %v3244
      %v3253 = vmul.f32 %v3237, %v3245
      %v3254 = vmul.f32 %v3238, %v3246
      %v3255 = vadd.f32 %v3247, %v2118
      %v3256 = vadd.f32 %v3248, %v2122
      %v3257 = vadd.f32 %v3249, %v2128
      %v3258 = vadd.f32 %v3250, %v2132
      %v3259 = vadd.f32 %v3251, %v2138
      %v3260 = vadd.f32 %v3252, %v2142
      %v3261 = vadd.f32 %v3253, %v2148
      %v3262 = vadd.f32 %v3254, %v2152
      %v3263 = vld [vmem:[%s19] sm:$0xf]
      %v3264 = vld [vmem:[%s19 + $0x4] sm:$0xf]
      %v3265 = vld [vmem:[%s19 + $0x8] sm:$0xf]
      %v3266 = vld [vmem:[%s19 + $0xc] sm:$0xf]
      %v3267 = vld [vmem:[%s19 + $0x10] sm:$0xf]
      %v3268 = vld [vmem:[%s19 + $0x14] sm:$0xf]
      %v3269 = vld [vmem:[%s19 + $0x18] sm:$0xf]
      %v3270 = vld [vmem:[%s19 + $0x1c] sm:$0xf]
      %v3271 = vld [vmem:[%s19 + $0x20] sm:$0xf]
      %v3272 = vld [vmem:[%s19 + $0x24] sm:$0xf]
      %v3273 = vld [vmem:[%s19 + $0x28] sm:$0xf]
      %v3274 = vld [vmem:[%s19 + $0x2c] sm:$0xf]
      %v3275 = vld [vmem:[%s19 + $0x30] sm:$0xf]
      %v3276 = vld [vmem:[%s19 + $0x34] sm:$0xf]
      %v3277 = vld [vmem:[%s19 + $0x38] sm:$0xf]
      %v3278 = vld [vmem:[%s19 + $0x3c] sm:$0xf]
      %v3279 = vpack.c.bf16 %v3256, %v3255
      %v3280 = vpack.c.bf16 %v3258, %v3257
      %v3281 = vpack.c.bf16 %v3260, %v3259
      %v3282 = vpack.c.bf16 %v3262, %v3261
      %v3283 = vld [vmem:[%s20] sm:$0x1]
      %v3285 = vlaneseq
      %v3286 = vshrl.u32 %v3285, 7
      %v3287 = vsub.s32 0, %v3286
      %v3288 = vrot.slane %v3283, %v3287
      %v3306 = vunpack.c.l.b16 %v3263
      %v3307 = vunpack.c.l.b16 %v3264
      %v3308 = vunpack.c.l.b16 %v3265
      %v3309 = vunpack.c.l.b16 %v3266
      %v3310 = vunpack.c.l.b16 %v3267
      %v3311 = vunpack.c.l.b16 %v3268
      %v3312 = vunpack.c.l.b16 %v3269
      %v3313 = vunpack.c.l.b16 %v3270
      %v3314 = vunpack.c.l.b16 %v3271
      %v3315 = vunpack.c.l.b16 %v3272
      %v3316 = vunpack.c.l.b16 %v3273
      %v3317 = vunpack.c.l.b16 %v3274
      %v3318 = vunpack.c.l.b16 %v3275
      %v3319 = vunpack.c.l.b16 %v3276
      %v3320 = vunpack.c.l.b16 %v3277
      %v3321 = vunpack.c.l.b16 %v3278
      %v3322 = vpack.c.b16 %v3307, %v3306
      %v3323 = vpack.c.b16 %v3309, %v3308
      %v3324 = vpack.c.b16 %v3311, %v3310
      %v3325 = vpack.c.b16 %v3313, %v3312
      %v3326 = vpack.c.b16 %v3315, %v3314
      %v3327 = vpack.c.b16 %v3317, %v3316
      %v3328 = vpack.c.b16 %v3319, %v3318
      %v3329 = vpack.c.b16 %v3321, %v3320
      %3338 = vmatprep.subr.bf16.mxu0 0
      %3339 = vmatpush1.bf16.msra.mxu0 %v3329
      %3340 = vmatprep.subr.bf16.mxu0 0
      %3341 = vmatpush1.bf16.msra.mxu0 %v3328
      %3342 = vmatprep.subr.bf16.mxu0 0
      %3343 = vmatpush1.bf16.msra.mxu0 %v3327
      %3344 = vmatprep.subr.bf16.mxu0 0
      %3345 = vmatpush1.bf16.msra.mxu0 %v3326
      %3346 = vmatprep.subr.bf16.mxu0 0
      %3347 = vmatpush1.bf16.msra.mxu0 %v3325
      %3348 = vmatprep.subr.bf16.mxu0 0
      %3349 = vmatpush1.bf16.msra.mxu0 %v3324
      %3350 = vmatprep.subr.bf16.mxu0 0
      %3351 = vmatpush1.bf16.msra.mxu0 %v3323
      %3352 = vmatprep.subr.bf16.mxu0 0
      %3353 = vmatpush1.bf16.msra.mxu0 %v3322
      %3354 = vmatprep.subr.bf16.mxu0 0
      %3355 = vmatpush2.bf16.msra.mxu0 0
      %3356 = vmatprep.subr.bf16.mxu0 0
      %3357 = vmatpush2.bf16.msra.mxu0 0
      %3358 = vmatprep.subr.bf16.mxu0 0
      %3359 = vmatpush2.bf16.msra.mxu0 0
      %3360 = vmatprep.subr.bf16.mxu0 0
      %3361 = vmatpush2.bf16.msra.mxu0 0
      %3362 = vmatprep.subr.bf16.mxu0 0
      %3363 = vmatpush2.bf16.msra.mxu0 0
      %3364 = vmatprep.subr.bf16.mxu0 0
      %3365 = vmatpush2.bf16.msra.mxu0 0
      %3366 = vmatprep.subr.bf16.mxu0 0
      %3367 = vmatpush2.bf16.msra.mxu0 0
      %3368 = vmatprep.subr.bf16.mxu0 0
      %3369 = vmatpush2.bf16.msra.mxu0 0
      %3370 = vmatprep.mubr.bf16.mxu0 0
      %3371 = vmatmul.mubr.bf16.gmra.mxu0 %v3279
      %v3372 = vpop.f32.mrf.mxu0
      %v3373 = vadd.f32 %v3288, %v3372
      %v3374 = vpop.f32.mrf.mxu0
      %v3375 = vpop.f32.mrf.mxu0
      %v3376 = vadd.f32 %v3288, %v3375
      %v3377 = vpop.f32.mrf.mxu0
      %3378 = vmatprep.mubr.bf16.mxu0 0
      %3379 = vmatmul.mubr.bf16.gmra.mxu0 %v3280
      %v3380 = vpop.f32.mrf.mxu0
      %v3381 = vadd.f32 %v3288, %v3380
      %v3382 = vpop.f32.mrf.mxu0
      %v3383 = vpop.f32.mrf.mxu0
      %v3384 = vadd.f32 %v3288, %v3383
      %v3385 = vpop.f32.mrf.mxu0
      %3386 = vmatprep.mubr.bf16.mxu0 0
      %3387 = vmatmul.mubr.bf16.gmra.mxu0 %v3281
      %v3388 = vpop.f32.mrf.mxu0
      %v3389 = vadd.f32 %v3288, %v3388
      %v3390 = vpop.f32.mrf.mxu0
      %v3391 = vpop.f32.mrf.mxu0
      %v3392 = vadd.f32 %v3288, %v3391
      %v3393 = vpop.f32.mrf.mxu0
      %3394 = vmatprep.mubr.bf16.mxu0 0
      %3395 = vmatmul.mubr.bf16.gmra.mxu0 %v3282
      %v3396 = vpop.f32.mrf.mxu0
      %v3397 = vadd.f32 %v3288, %v3396
      %v3398 = vpop.f32.mrf.mxu0
      %v3399 = vpop.f32.mrf.mxu0
      %v3400 = vadd.f32 %v3288, %v3399
      %v3401 = vpop.f32.mrf.mxu0
      %3402 = vdwg.mxu0
      %vm3403 = vcmask 261120
      %3404 = vst.msk [vmem:[%s705] sm:$0xff] %vm3403, %v3373
      %3405 = vst.msk [vmem:[%s705 + $0x8] sm:$0xff] %vm3403, %v3376
      %3406 = vst.msk [vmem:[%s705 + $0x10] sm:$0xff] %vm3403, %v3381
      %3407 = vst.msk [vmem:[%s705 + $0x18] sm:$0xff] %vm3403, %v3384
      %3408 = vst.msk [vmem:[%s705 + $0x20] sm:$0xff] %vm3403, %v3389
      %3409 = vst.msk [vmem:[%s705 + $0x28] sm:$0xff] %vm3403, %v3392
      %3410 = vst.msk [vmem:[%s705 + $0x30] sm:$0xff] %vm3403, %v3397
      %3411 = vst.msk [vmem:[%s705 + $0x38] sm:$0xff] %vm3403, %v3400
      %s3412 = smul.u32 8, %s32
      %p3413 = scmp.lt.s32.totalorder %s3412, 15
      %s3414 = scalar_select %p3413, %s3412, 15
      %s3415 = smul.addr %s3414, 8
      %s3416 = scalar_lea.vmem %s21, %s3415
      // Predicated region
      $region105: #{simple_mlp_adaln_forward.1} parent=103 // pred_check
        %p3417 = pneg %p506
      $region106: #{simple_mlp_adaln_forward.1} parent=103 // pred_check_branch
        %3419 = sbr.rel (%p3417) target = $region108
      $region107: #{simple_mlp_adaln_forward.1} parent=103 // pred_region
        %s3420 = smul.u32 8, %s32
      $region108: #{simple_mlp_adaln_forward.1} parent=103 // pred_fallthru
        _
    $region104: #{simple_mlp_adaln_forward.1} parent=5 // pred_fallthru
      _
    %p3421 = scmp.le.s32.totalorder 2, %s27
    // Predicated region
    $region109: #{simple_mlp_adaln_forward.1} parent=5 // pred_check
      %p3422 = pneg %p3421
    $region110: #{simple_mlp_adaln_forward.1} parent=5 // pred_check_branch
      %3424 = sbr.rel (%p3422) target = $region112
    $region111: #{simple_mlp_adaln_forward.1} parent=5 // pred_region
      %s3425 = ssub.s32 %s27, 2
      // Predicated region
      $region113: #{simple_mlp_adaln_forward.1} parent=111 // pred_check
        %p3426 = pneg %p512
      $region114: #{simple_mlp_adaln_forward.1} parent=111 // pred_check_branch
        %3428 = sbr.rel (%p3426) target = $region116
      $region115: #{simple_mlp_adaln_forward.1} parent=111 // pred_region
        %s3429 = smul.u32 8, %s33
        %p3430 = scmp.lt.s32.totalorder %s3429, 15
        %s3431 = scalar_select %p3430, %s3429, 15
        %s3432 = smul.addr %s3431, 8
        %s3433 = scalar_lea.vmem %s21, %s3432
      $region116: #{simple_mlp_adaln_forward.1} parent=111 // pred_fallthru
        _
    $region112: #{simple_mlp_adaln_forward.1} parent=5 // pred_fallthru
      _
  $region6: #{simple_mlp_adaln_forward.1} parent=0 // loop_footer
    %s31 = sadd.s32 1, %s27
  $region7: #{simple_mlp_adaln_forward.1} parent=0 // loop_footer_branch
    %26 = sbr.rel target = $region3
  $region8: #{simple_mlp_adaln_forward.1} parent=0 // loop_exit
    _

</llo_original>
